<compile_context>
chip_gen: v5e
topology: v5e:2x2
jax: 0.10.0
libtpu: 0.0.40
codegen_flags: <defaults>
</compile_context>

<pallas_src>
import functools
import math

import numpy as np
import jax
import jax.numpy as jnp
from jax.experimental import pallas as pl
from jax.experimental.pallas import tpu as pltpu


CFG = [64, "M", 128, "M", 512, "M"]   # 8x8 input -> 1x1x512 -> flatten 512
NUM_CLASSES = 10
IN_CHANNELS = 3
IN_SPATIAL = 8
LANE = 128


def _parse_cfg(cfg):
    """CFG must be conv,'M' pairs (each conv followed by one 2x2 maxpool)."""
    stages = []
    i = 0
    while i < len(cfg):
        assert cfg[i] != "M", "unexpected leading 'M' in CFG"
        assert i + 1 < len(cfg) and cfg[i + 1] == "M", \
            "fused kernel assumes every conv is followed by a 2x2 maxpool"
        stages.append(int(cfg[i]))
        i += 2
    return stages


def _stage_dims():
    """Per conv stage: (H, W, Cout) of the conv output (pre-pool spatial)."""
    stages = _parse_cfg(CFG)
    dims = []
    spatial = IN_SPATIAL
    for c in stages:
        dims.append((spatial, spatial, c))
        spatial //= 2
    assert spatial == 1, "feature map must reduce to 1x1 before the classifier"
    assert dims[-1][0] == 2 and dims[-1][1] == 2
    assert dims[-1][2] == 512, "classifier expects 512 input features"
    return tuple(dims)


# ----------------------------------------------------------------------------
# Fused Pallas kernel: one batch element per grid step.
# ----------------------------------------------------------------------------
def _vgg_fused_kernel(*refs, dims):
    """refs = x, (w,b) per conv stage, wl, bl, out, scratch buffers.

    x_ref : (H0+2, (W0+2)*Cin0)      bf16  padded input, rows lane-flattened
    w_i   : (3, Lin_i, W_i*C_i)      bf16  banded weight, one matrix per dy
    b_i   : (1, W_i*C_i)             f32   bias pre-tiled over W_i
    wl    : (512, 128)               bf16  classifier weight, lane-padded
    bl    : (1, 128)                 f32
    o_ref : (1, 128)                 f32   lane-dense logits
    buf_i : (H_{i}+2, W_{i-1}*C_{i-1}) bf16 padded, uncompacted pooled rows
    """
    n = len(dims)
    x_ref = refs[0]
    w_refs = [refs[1 + 2 * i] for i in range(n)]
    b_refs = [refs[2 + 2 * i] for i in range(n)]
    wl_ref = refs[1 + 2 * n]
    bl_ref = refs[2 + 2 * n]
    o_ref = refs[3 + 2 * n]
    bufs = list(refs[4 + 2 * n:])

    cur = x_ref
    feat = None
    for li, (H, W, Cout) in enumerate(dims):
        w_ref = w_refs[li]
        b_ref = b_refs[li]
        # 3x3 conv as 3 banded row-GEMMs (bf16 MXU, f32 accumulation).
        acc = jnp.dot(cur[0:H, :], w_ref[0], preferred_element_type=jnp.float32)
        acc = acc + jnp.dot(cur[1:H + 1, :], w_ref[1],
                            preferred_element_type=jnp.float32)
        acc = acc + jnp.dot(cur[2:H + 2, :], w_ref[2],
                            preferred_element_type=jnp.float32)
        acc = jnp.maximum(acc + b_ref[...], 0.0)          # (H, W*Cout) f32
        L = W * Cout

        if li + 1 < n:
            # 2x2 maxpool -> write into next stage's padded VMEM buffer.
            # Pooled value for output col w sits at lane block 2*w (the next
            # banded weight was built to read this uncompacted layout).
            nxt = bufs[li]
            nxt[...] = jnp.zeros_like(nxt)                # zero pad rows/lanes
            for r in range(H // 2):
                row = jnp.maximum(acc[2 * r:2 * r + 1, :],
                                  acc[2 * r + 1:2 * r + 2, :])       # h-max
                pooled = jnp.maximum(row[:, :L - Cout], row[:, Cout:])  # w-max
                nxt[r + 1:r + 2, 0:L - Cout] = pooled.astype(nxt.dtype)
            cur = nxt
        else:
            # Final stage: 2x2 -> 1x1 pool; flatten == channel vector (NCHW
            # view(N,-1) of a 1x1 map equals the NHWC channel layout here).
            row = jnp.maximum(acc[0:1, :], acc[1:2, :])
            feat = jnp.maximum(row[:, 0:Cout], row[:, Cout:2 * Cout])
            feat = feat.astype(jnp.bfloat16)              # (1, 512)

    logits = jnp.dot(feat, wl_ref[...], preferred_element_type=jnp.float32)
    o_ref[...] = logits + bl_ref[...]                     # (1, 128) f32


# ----------------------------------------------------------------------------
# Weight pre-transformation (done once at init)
# ----------------------------------------------------------------------------
def _banded_conv_weight_compact(w_oihw, W):
    """Stage 0: input is the compact padded layout, lanes = (W+2)*Cin.

    wb[dy, (w+dx)*Cin + c, w*Cout + o] = w[o, c, dy, dx]
    """
    Cout, Cin, _, _ = w_oihw.shape
    w_hwio = np.transpose(np.asarray(w_oihw, np.float32), (2, 3, 1, 0))
    Lin, Lout = (W + 2) * Cin, W * Cout
    wb = np.zeros((3, Lin, Lout), np.float32)
    for dy in range(3):
        for dx in range(3):
            for w in range(W):
                wb[dy, (w + dx) * Cin:(w + dx + 1) * Cin,
                   w * Cout:(w + 1) * Cout] = w_hwio[dy, dx]
    return jnp.asarray(wb, jnp.bfloat16)


def _banded_conv_weight_pooled(w_oihw, W, Wprev):
    """Stages >=1: input is the uncompacted pooled layout, lanes = Wprev*Cin,
    with data column p living at lane block 2*p (padding handled by zero rows
    / zero weight rows).

    wb[dy, 2*(w+dx-1)*Cin + c, w*Cout + o] = w[o, c, dy, dx]  if 0<=w+dx-1<W
    """
    Cout, Cin, _, _ = w_oihw.shape
    w_hwio = np.transpose(np.asarray(w_oihw, np.float32), (2, 3, 1, 0))
    Lin, Lout = Wprev * Cin, W * Cout
    wb = np.zeros((3, Lin, Lout), np.float32)
    for dy in range(3):
        for dx in range(3):
            for w in range(W):
                p = w + dx - 1
                if 0 <= p < W:
                    wb[dy, 2 * p * Cin:(2 * p + 1) * Cin,
                       w * Cout:(w + 1) * Cout] = w_hwio[dy, dx]
    return jnp.asarray(wb, jnp.bfloat16)


def init_params(key):
    dims = _stage_dims()
    params = {"convs": [], "linear": None}
    cin = IN_CHANNELS
    for li, (H, W, cout) in enumerate(dims):
        key, kw = jax.random.split(key)
        n = 3 * 3 * cout                         # PyTorch _initialize_weights
        w = jax.random.normal(kw, (cout, cin, 3, 3), jnp.float32) \
            * math.sqrt(2.0 / n)
        b = jnp.zeros((cout,), jnp.float32)
        if li == 0:
            wb = _banded_conv_weight_compact(w, W)
        else:
            wb = _banded_conv_weight_pooled(w, W, dims[li - 1][1])
        b_flat = jnp.tile(b, W).reshape(1, W * cout).astype(jnp.float32)
        params["convs"].append((wb, b_flat))
        cin = cout

    key, kw = jax.random.split(key)
    lw = jax.random.normal(kw, (NUM_CLASSES, 512), jnp.float32) * 0.01
    lb = jnp.zeros((NUM_CLASSES,), jnp.float32)
    w_pad = jnp.zeros((512, LANE), jnp.float32).at[:, :NUM_CLASSES].set(lw.T)
    b_pad = jnp.zeros((1, LANE), jnp.float32).at[0, :NUM_CLASSES].set(lb)
    params["linear"] = (w_pad.astype(jnp.bfloat16), b_pad)
    return params


# ----------------------------------------------------------------------------
# Forward
# ----------------------------------------------------------------------------
def vgg_forward(params, x_nchw):
    dims = _stage_dims()
    n = len(dims)
    N = x_nchw.shape[0]

    # NCHW (PyTorch) -> NHWC, bf16 for the MXU, zero pad=1, lane-flatten rows.
    x = jnp.transpose(x_nchw, (0, 2, 3, 1)).astype(jnp.bfloat16)
    xp = jnp.pad(x, ((0, 0), (1, 1), (1, 1), (0, 0)))
    H0, L0 = IN_SPATIAL + 2, (IN_SPATIAL + 2) * IN_CHANNELS
    x2 = xp.reshape(N, H0, L0)                            # metadata-only

    in_arrays = [x2]
    in_specs = [pl.BlockSpec((None, H0, L0), lambda b: (b, 0, 0))]
    for wb, bf in params["convs"]:
        in_arrays += [wb, bf]
        in_specs += [pl.BlockSpec(wb.shape, lambda b: (0, 0, 0)),
                     pl.BlockSpec(bf.shape, lambda b: (0, 0))]
    wl, bl = params["linear"]
    in_arrays += [wl, bl]
    in_specs += [pl.BlockSpec(wl.shape, lambda b: (0, 0)),
                 pl.BlockSpec(bl.shape, lambda b: (0, 0))]

    scratch = []
    for li in range(1, n):
        H, _, _ = dims[li]
        _, Wp, Cp = dims[li - 1]
        scratch.append(pltpu.VMEM((H + 2, Wp * Cp), jnp.bfloat16))

    out = pl.pallas_call(
        functools.partial(_vgg_fused_kernel, dims=dims),
        out_shape=jax.ShapeDtypeStruct((N, 1, LANE), jnp.float32),
        grid=(N,),
        in_specs=in_specs,
        out_specs=pl.BlockSpec((None, 1, LANE), lambda b: (b, 0, 0)),
        scratch_shapes=scratch,
        compiler_params=pltpu.CompilerParams(
            dimension_semantics=("parallel",),
            vmem_limit_bytes=32 * 1024 * 1024,
        ),
    )(*in_arrays)

    return out.reshape(N, LANE)[:, :NUM_CLASSES]


if __name__ == "__main__":
    key = jax.random.PRNGKey(0)
    key, kx = jax.random.split(key)
    x = jax.random.normal(kx, (2, IN_CHANNELS, IN_SPATIAL, IN_SPATIAL),
                          jnp.float32)                    # NCHW
    params = init_params(key)

    fwd = jax.jit(vgg_forward)
    out = fwd(params, x)
    out = jax.block_until_ready(out)
    assert out.shape == (2, NUM_CLASSES), out.shape
    assert bool(jnp.all(jnp.isfinite(out)))
    print("KERNEL_OK")
</pallas_src>

<mosaic_0001>
module attributes {stable_mosaic.version = 11 : i64} {
  func.func @_vgg_fused_kernel(%arg0: i32, %arg1: memref<1x10x30xbf16, #tpu.memory_space<vmem>>, %arg2: memref<3x30x512xbf16, #tpu.memory_space<vmem>>, %arg3: memref<1x512xf32, #tpu.memory_space<vmem>>, %arg4: memref<3x512x512xbf16, #tpu.memory_space<vmem>>, %arg5: memref<1x512xf32, #tpu.memory_space<vmem>>, %arg6: memref<3x512x1024xbf16, #tpu.memory_space<vmem>>, %arg7: memref<1x1024xf32, #tpu.memory_space<vmem>>, %arg8: memref<512x128xbf16, #tpu.memory_space<vmem>>, %arg9: memref<1x128xf32, #tpu.memory_space<vmem>>, %arg10: memref<1x1x128xf32, #tpu.memory_space<vmem>>, %arg11: memref<6x512xbf16, #tpu.memory_space<vmem>>, %arg12: memref<4x512xbf16, #tpu.memory_space<vmem>>) attributes {dimension_semantics = [#tpu.dimension_semantics<parallel>], iteration_bounds = array<i64: 2>, scalar_prefetch = 0 : i64, scratch_operands = 2 : i64, tpu.core_type = #tpu.core_type<tc>, window_params = [{transform_indices = @transform_0, window_bounds = array<i64: 1, 10, 30>}, {pipeline_mode = #tpu.pipeline_mode<synchronous>, transform_indices = @transform_1, window_bounds = array<i64: 3, 30, 512>}, {pipeline_mode = #tpu.pipeline_mode<synchronous>, transform_indices = @transform_2, window_bounds = array<i64: 1, 512>}, {pipeline_mode = #tpu.pipeline_mode<synchronous>, transform_indices = @transform_3, window_bounds = array<i64: 3, 512, 512>}, {pipeline_mode = #tpu.pipeline_mode<synchronous>, transform_indices = @transform_4, window_bounds = array<i64: 1, 512>}, {pipeline_mode = #tpu.pipeline_mode<synchronous>, transform_indices = @transform_5, window_bounds = array<i64: 3, 512, 1024>}, {pipeline_mode = #tpu.pipeline_mode<synchronous>, transform_indices = @transform_6, window_bounds = array<i64: 1, 1024>}, {pipeline_mode = #tpu.pipeline_mode<synchronous>, transform_indices = @transform_7, window_bounds = array<i64: 512, 128>}, {pipeline_mode = #tpu.pipeline_mode<synchronous>, transform_indices = @transform_8, window_bounds = array<i64: 1, 128>}, {transform_indices = @transform_9, window_bounds = array<i64: 1, 1, 128>}]} {
    %c0 = arith.constant 0 : index
    %c0_0 = arith.constant 0 : index
    %c0_1 = arith.constant 0 : index
    %0 = vector.load %arg1[%c0, %c0_0, %c0_1] : memref<1x10x30xbf16, #tpu.memory_space<vmem>>, vector<1x8x30xbf16>
    %1 = vector.shape_cast %0 : vector<1x8x30xbf16> to vector<8x30xbf16>
    %c0_2 = arith.constant 0 : index
    %c0_3 = arith.constant 0 : index
    %c0_4 = arith.constant 0 : index
    %2 = vector.load %arg2[%c0_2, %c0_3, %c0_4] : memref<3x30x512xbf16, #tpu.memory_space<vmem>>, vector<1x30x512xbf16>
    %3 = vector.shape_cast %2 : vector<1x30x512xbf16> to vector<30x512xbf16>
    %cst = arith.constant dense<0.000000e+00> : vector<8x512xf32>
    %4 = tpu.matmul %1, %3, %cst {dimension_numbers = #tpu.dot_dimension_numbers<[1], [0], [0], [1], [0, 0, 1, 1], [], []>} : vector<8x30xbf16>, vector<30x512xbf16>, vector<8x512xf32> -> vector<8x512xf32>
    %c0_5 = arith.constant 0 : index
    %c1 = arith.constant 1 : index
    %c0_6 = arith.constant 0 : index
    %5 = vector.load %arg1[%c0_5, %c1, %c0_6] : memref<1x10x30xbf16, #tpu.memory_space<vmem>>, vector<1x8x30xbf16>
    %6 = vector.shape_cast %5 : vector<1x8x30xbf16> to vector<8x30xbf16>
    %c1_7 = arith.constant 1 : index
    %c0_8 = arith.constant 0 : index
    %c0_9 = arith.constant 0 : index
    %7 = vector.load %arg2[%c1_7, %c0_8, %c0_9] : memref<3x30x512xbf16, #tpu.memory_space<vmem>>, vector<1x30x512xbf16>
    %8 = vector.shape_cast %7 : vector<1x30x512xbf16> to vector<30x512xbf16>
    %cst_10 = arith.constant dense<0.000000e+00> : vector<8x512xf32>
    %9 = tpu.matmul %6, %8, %cst_10 {dimension_numbers = #tpu.dot_dimension_numbers<[1], [0], [0], [1], [0, 0, 1, 1], [], []>} : vector<8x30xbf16>, vector<30x512xbf16>, vector<8x512xf32> -> vector<8x512xf32>
    %10 = arith.addf %4, %9 : vector<8x512xf32>
    %c0_11 = arith.constant 0 : index
    %c2 = arith.constant 2 : index
    %c0_12 = arith.constant 0 : index
    %11 = vector.load %arg1[%c0_11, %c2, %c0_12] : memref<1x10x30xbf16, #tpu.memory_space<vmem>>, vector<1x8x30xbf16>
    %12 = vector.shape_cast %11 : vector<1x8x30xbf16> to vector<8x30xbf16>
    %c2_13 = arith.constant 2 : index
    %c0_14 = arith.constant 0 : index
    %c0_15 = arith.constant 0 : index
    %13 = vector.load %arg2[%c2_13, %c0_14, %c0_15] : memref<3x30x512xbf16, #tpu.memory_space<vmem>>, vector<1x30x512xbf16>
    %14 = vector.shape_cast %13 : vector<1x30x512xbf16> to vector<30x512xbf16>
    %cst_16 = arith.constant dense<0.000000e+00> : vector<8x512xf32>
    %15 = tpu.matmul %12, %14, %cst_16 {dimension_numbers = #tpu.dot_dimension_numbers<[1], [0], [0], [1], [0, 0, 1, 1], [], []>} : vector<8x30xbf16>, vector<30x512xbf16>, vector<8x512xf32> -> vector<8x512xf32>
    %16 = arith.addf %10, %15 : vector<8x512xf32>
    %c0_17 = arith.constant 0 : index
    %c0_18 = arith.constant 0 : index
    %17 = vector.load %arg3[%c0_17, %c0_18] : memref<1x512xf32, #tpu.memory_space<vmem>>, vector<1x512xf32>
    %18 = vector.broadcast %17 : vector<1x512xf32> to vector<8x512xf32>
    %19 = arith.addf %16, %18 : vector<8x512xf32>
    %cst_19 = arith.constant 0.000000e+00 : f32
    %20 = vector.broadcast %cst_19 : f32 to vector<8x512xf32>
    %21 = arith.maximumf %19, %20 : vector<8x512xf32>
    %cst_20 = arith.constant 0.000000e+00 : bf16
    %22 = vector.broadcast %cst_20 : bf16 to vector<6x512xbf16>
    %c0_21 = arith.constant 0 : index
    %c0_22 = arith.constant 0 : index
    %23 = vector.load %arg11[%c0_21, %c0_22] : memref<6x512xbf16, #tpu.memory_space<vmem>>, vector<6x512xbf16>
    tpu.vector_store %arg11[%c0_21, %c0_22], %22 {strides = array<i32>} : memref<6x512xbf16, #tpu.memory_space<vmem>>, vector<6x512xbf16>,
    %24 = vector.extract_strided_slice %21 {offsets = [0, 0], sizes = [1, 512], strides = [1, 1]} : vector<8x512xf32> to vector<1x512xf32>
    %25 = vector.extract_strided_slice %21 {offsets = [1, 0], sizes = [1, 512], strides = [1, 1]} : vector<8x512xf32> to vector<1x512xf32>
    %26 = arith.maximumf %24, %25 : vector<1x512xf32>
    %27 = vector.extract_strided_slice %26 {offsets = [0, 0], sizes = [1, 448], strides = [1, 1]} : vector<1x512xf32> to vector<1x448xf32>
    %28 = vector.extract_strided_slice %26 {offsets = [0, 64], sizes = [1, 448], strides = [1, 1]} : vector<1x512xf32> to vector<1x448xf32>
    %29 = arith.maximumf %27, %28 : vector<1x448xf32>
    %30 = arith.truncf %29 : vector<1x448xf32> to vector<1x448xbf16>
    %c1_23 = arith.constant 1 : index
    %c0_24 = arith.constant 0 : index
    %31 = vector.load %arg11[%c1_23, %c0_24] : memref<6x512xbf16, #tpu.memory_space<vmem>>, vector<1x448xbf16>
    tpu.vector_store %arg11[%c1_23, %c0_24], %30 {strides = array<i32>} : memref<6x512xbf16, #tpu.memory_space<vmem>>, vector<1x448xbf16>,
    %32 = vector.extract_strided_slice %21 {offsets = [2, 0], sizes = [1, 512], strides = [1, 1]} : vector<8x512xf32> to vector<1x512xf32>
    %33 = vector.extract_strided_slice %21 {offsets = [3, 0], sizes = [1, 512], strides = [1, 1]} : vector<8x512xf32> to vector<1x512xf32>
    %34 = arith.maximumf %32, %33 : vector<1x512xf32>
    %35 = vector.extract_strided_slice %34 {offsets = [0, 0], sizes = [1, 448], strides = [1, 1]} : vector<1x512xf32> to vector<1x448xf32>
    %36 = vector.extract_strided_slice %34 {offsets = [0, 64], sizes = [1, 448], strides = [1, 1]} : vector<1x512xf32> to vector<1x448xf32>
    %37 = arith.maximumf %35, %36 : vector<1x448xf32>
    %38 = arith.truncf %37 : vector<1x448xf32> to vector<1x448xbf16>
    %c2_25 = arith.constant 2 : index
    %c0_26 = arith.constant 0 : index
    %39 = vector.load %arg11[%c2_25, %c0_26] : memref<6x512xbf16, #tpu.memory_space<vmem>>, vector<1x448xbf16>
    tpu.vector_store %arg11[%c2_25, %c0_26], %38 {strides = array<i32>} : memref<6x512xbf16, #tpu.memory_space<vmem>>, vector<1x448xbf16>,
    %40 = vector.extract_strided_slice %21 {offsets = [4, 0], sizes = [1, 512], strides = [1, 1]} : vector<8x512xf32> to vector<1x512xf32>
    %41 = vector.extract_strided_slice %21 {offsets = [5, 0], sizes = [1, 512], strides = [1, 1]} : vector<8x512xf32> to vector<1x512xf32>
    %42 = arith.maximumf %40, %41 : vector<1x512xf32>
    %43 = vector.extract_strided_slice %42 {offsets = [0, 0], sizes = [1, 448], strides = [1, 1]} : vector<1x512xf32> to vector<1x448xf32>
    %44 = vector.extract_strided_slice %42 {offsets = [0, 64], sizes = [1, 448], strides = [1, 1]} : vector<1x512xf32> to vector<1x448xf32>
    %45 = arith.maximumf %43, %44 : vector<1x448xf32>
    %46 = arith.truncf %45 : vector<1x448xf32> to vector<1x448xbf16>
    %c3 = arith.constant 3 : index
    %c0_27 = arith.constant 0 : index
    %47 = vector.load %arg11[%c3, %c0_27] : memref<6x512xbf16, #tpu.memory_space<vmem>>, vector<1x448xbf16>
    tpu.vector_store %arg11[%c3, %c0_27], %46 {strides = array<i32>} : memref<6x512xbf16, #tpu.memory_space<vmem>>, vector<1x448xbf16>,
    %48 = vector.extract_strided_slice %21 {offsets = [6, 0], sizes = [1, 512], strides = [1, 1]} : vector<8x512xf32> to vector<1x512xf32>
    %49 = vector.extract_strided_slice %21 {offsets = [7, 0], sizes = [1, 512], strides = [1, 1]} : vector<8x512xf32> to vector<1x512xf32>
    %50 = arith.maximumf %48, %49 : vector<1x512xf32>
    %51 = vector.extract_strided_slice %50 {offsets = [0, 0], sizes = [1, 448], strides = [1, 1]} : vector<1x512xf32> to vector<1x448xf32>
    %52 = vector.extract_strided_slice %50 {offsets = [0, 64], sizes = [1, 448], strides = [1, 1]} : vector<1x512xf32> to vector<1x448xf32>
    %53 = arith.maximumf %51, %52 : vector<1x448xf32>
    %54 = arith.truncf %53 : vector<1x448xf32> to vector<1x448xbf16>
    %c4 = arith.constant 4 : index
    %c0_28 = arith.constant 0 : index
    %55 = vector.load %arg11[%c4, %c0_28] : memref<6x512xbf16, #tpu.memory_space<vmem>>, vector<1x448xbf16>
    tpu.vector_store %arg11[%c4, %c0_28], %54 {strides = array<i32>} : memref<6x512xbf16, #tpu.memory_space<vmem>>, vector<1x448xbf16>,
    %c0_29 = arith.constant 0 : index
    %c0_30 = arith.constant 0 : index
    %56 = vector.load %arg11[%c0_29, %c0_30] : memref<6x512xbf16, #tpu.memory_space<vmem>>, vector<4x512xbf16>
    %c0_31 = arith.constant 0 : index
    %c0_32 = arith.constant 0 : index
    %c0_33 = arith.constant 0 : index
    %57 = vector.load %arg4[%c0_31, %c0_32, %c0_33] : memref<3x512x512xbf16, #tpu.memory_space<vmem>>, vector<1x512x512xbf16>
    %58 = vector.shape_cast %57 : vector<1x512x512xbf16> to vector<512x512xbf16>
    %cst_34 = arith.constant dense<0.000000e+00> : vector<4x512xf32>
    %59 = tpu.matmul %56, %58, %cst_34 {dimension_numbers = #tpu.dot_dimension_numbers<[1], [0], [0], [1], [0, 0, 1, 1], [], []>} : vector<4x512xbf16>, vector<512x512xbf16>, vector<4x512xf32> -> vector<4x512xf32>
    %c1_35 = arith.constant 1 : index
    %c0_36 = arith.constant 0 : index
    %60 = vector.load %arg11[%c1_35, %c0_36] : memref<6x512xbf16, #tpu.memory_space<vmem>>, vector<4x512xbf16>
    %c1_37 = arith.constant 1 : index
    %c0_38 = arith.constant 0 : index
    %c0_39 = arith.constant 0 : index
    %61 = vector.load %arg4[%c1_37, %c0_38, %c0_39] : memref<3x512x512xbf16, #tpu.memory_space<vmem>>, vector<1x512x512xbf16>
    %62 = vector.shape_cast %61 : vector<1x512x512xbf16> to vector<512x512xbf16>
    %cst_40 = arith.constant dense<0.000000e+00> : vector<4x512xf32>
    %63 = tpu.matmul %60, %62, %cst_40 {dimension_numbers = #tpu.dot_dimension_numbers<[1], [0], [0], [1], [0, 0, 1, 1], [], []>} : vector<4x512xbf16>, vector<512x512xbf16>, vector<4x512xf32> -> vector<4x512xf32>
    %64 = arith.addf %59, %63 : vector<4x512xf32>
    %c2_41 = arith.constant 2 : index
    %c0_42 = arith.constant 0 : index
    %65 = vector.load %arg11[%c2_41, %c0_42] : memref<6x512xbf16, #tpu.memory_space<vmem>>, vector<4x512xbf16>
    %c2_43 = arith.constant 2 : index
    %c0_44 = arith.constant 0 : index
    %c0_45 = arith.constant 0 : index
    %66 = vector.load %arg4[%c2_43, %c0_44, %c0_45] : memref<3x512x512xbf16, #tpu.memory_space<vmem>>, vector<1x512x512xbf16>
    %67 = vector.shape_cast %66 : vector<1x512x512xbf16> to vector<512x512xbf16>
    %cst_46 = arith.constant dense<0.000000e+00> : vector<4x512xf32>
    %68 = tpu.matmul %65, %67, %cst_46 {dimension_numbers = #tpu.dot_dimension_numbers<[1], [0], [0], [1], [0, 0, 1, 1], [], []>} : vector<4x512xbf16>, vector<512x512xbf16>, vector<4x512xf32> -> vector<4x512xf32>
    %69 = arith.addf %64, %68 : vector<4x512xf32>
    %c0_47 = arith.constant 0 : index
    %c0_48 = arith.constant 0 : index
    %70 = vector.load %arg5[%c0_47, %c0_48] : memref<1x512xf32, #tpu.memory_space<vmem>>, vector<1x512xf32>
    %71 = vector.broadcast %70 : vector<1x512xf32> to vector<4x512xf32>
    %72 = arith.addf %69, %71 : vector<4x512xf32>
    %cst_49 = arith.constant 0.000000e+00 : f32
    %73 = vector.broadcast %cst_49 : f32 to vector<4x512xf32>
    %74 = arith.maximumf %72, %73 : vector<4x512xf32>
    %cst_50 = arith.constant 0.000000e+00 : bf16
    %75 = vector.broadcast %cst_50 : bf16 to vector<4x512xbf16>
    %c0_51 = arith.constant 0 : index
    %c0_52 = arith.constant 0 : index
    %76 = vector.load %arg12[%c0_51, %c0_52] : memref<4x512xbf16, #tpu.memory_space<vmem>>, vector<4x512xbf16>
    tpu.vector_store %arg12[%c0_51, %c0_52], %75 {strides = array<i32>} : memref<4x512xbf16, #tpu.memory_space<vmem>>, vector<4x512xbf16>,
    %77 = vector.extract_strided_slice %74 {offsets = [0, 0], sizes = [1, 512], strides = [1, 1]} : vector<4x512xf32> to vector<1x512xf32>
    %78 = vector.extract_strided_slice %74 {offsets = [1, 0], sizes = [1, 512], strides = [1, 1]} : vector<4x512xf32> to vector<1x512xf32>
    %79 = arith.maximumf %77, %78 : vector<1x512xf32>
    %80 = vector.extract_strided_slice %79 {offsets = [0, 0], sizes = [1, 384], strides = [1, 1]} : vector<1x512xf32> to vector<1x384xf32>
    %81 = vector.extract_strided_slice %79 {offsets = [0, 128], sizes = [1, 384], strides = [1, 1]} : vector<1x512xf32> to vector<1x384xf32>
    %82 = arith.maximumf %80, %81 : vector<1x384xf32>
    %83 = arith.truncf %82 : vector<1x384xf32> to vector<1x384xbf16>
    %c1_53 = arith.constant 1 : index
    %c0_54 = arith.constant 0 : index
    %84 = vector.load %arg12[%c1_53, %c0_54] : memref<4x512xbf16, #tpu.memory_space<vmem>>, vector<1x384xbf16>
    tpu.vector_store %arg12[%c1_53, %c0_54], %83 {strides = array<i32>} : memref<4x512xbf16, #tpu.memory_space<vmem>>, vector<1x384xbf16>,
    %85 = vector.extract_strided_slice %74 {offsets = [2, 0], sizes = [1, 512], strides = [1, 1]} : vector<4x512xf32> to vector<1x512xf32>
    %86 = vector.extract_strided_slice %74 {offsets = [3, 0], sizes = [1, 512], strides = [1, 1]} : vector<4x512xf32> to vector<1x512xf32>
    %87 = arith.maximumf %85, %86 : vector<1x512xf32>
    %88 = vector.extract_strided_slice %87 {offsets = [0, 0], sizes = [1, 384], strides = [1, 1]} : vector<1x512xf32> to vector<1x384xf32>
    %89 = vector.extract_strided_slice %87 {offsets = [0, 128], sizes = [1, 384], strides = [1, 1]} : vector<1x512xf32> to vector<1x384xf32>
    %90 = arith.maximumf %88, %89 : vector<1x384xf32>
    %91 = arith.truncf %90 : vector<1x384xf32> to vector<1x384xbf16>
    %c2_55 = arith.constant 2 : index
    %c0_56 = arith.constant 0 : index
    %92 = vector.load %arg12[%c2_55, %c0_56] : memref<4x512xbf16, #tpu.memory_space<vmem>>, vector<1x384xbf16>
    tpu.vector_store %arg12[%c2_55, %c0_56], %91 {strides = array<i32>} : memref<4x512xbf16, #tpu.memory_space<vmem>>, vector<1x384xbf16>,
    %c0_57 = arith.constant 0 : index
    %c0_58 = arith.constant 0 : index
    %93 = vector.load %arg12[%c0_57, %c0_58] : memref<4x512xbf16, #tpu.memory_space<vmem>>, vector<2x512xbf16>
    %c0_59 = arith.constant 0 : index
    %c0_60 = arith.constant 0 : index
    %c0_61 = arith.constant 0 : index
    %94 = vector.load %arg6[%c0_59, %c0_60, %c0_61] : memref<3x512x1024xbf16, #tpu.memory_space<vmem>>, vector<1x512x1024xbf16>
    %95 = vector.shape_cast %94 : vector<1x512x1024xbf16> to vector<512x1024xbf16>
    %cst_62 = arith.constant dense<0.000000e+00> : vector<2x1024xf32>
    %96 = tpu.matmul %93, %95, %cst_62 {dimension_numbers = #tpu.dot_dimension_numbers<[1], [0], [0], [1], [0, 0, 1, 1], [], []>} : vector<2x512xbf16>, vector<512x1024xbf16>, vector<2x1024xf32> -> vector<2x1024xf32>
    %c1_63 = arith.constant 1 : index
    %c0_64 = arith.constant 0 : index
    %97 = vector.load %arg12[%c1_63, %c0_64] : memref<4x512xbf16, #tpu.memory_space<vmem>>, vector<2x512xbf16>
    %c1_65 = arith.constant 1 : index
    %c0_66 = arith.constant 0 : index
    %c0_67 = arith.constant 0 : index
    %98 = vector.load %arg6[%c1_65, %c0_66, %c0_67] : memref<3x512x1024xbf16, #tpu.memory_space<vmem>>, vector<1x512x1024xbf16>
    %99 = vector.shape_cast %98 : vector<1x512x1024xbf16> to vector<512x1024xbf16>
    %cst_68 = arith.constant dense<0.000000e+00> : vector<2x1024xf32>
    %100 = tpu.matmul %97, %99, %cst_68 {dimension_numbers = #tpu.dot_dimension_numbers<[1], [0], [0], [1], [0, 0, 1, 1], [], []>} : vector<2x512xbf16>, vector<512x1024xbf16>, vector<2x1024xf32> -> vector<2x1024xf32>
    %101 = arith.addf %96, %100 : vector<2x1024xf32>
    %c2_69 = arith.constant 2 : index
    %c0_70 = arith.constant 0 : index
    %102 = vector.load %arg12[%c2_69, %c0_70] : memref<4x512xbf16, #tpu.memory_space<vmem>>, vector<2x512xbf16>
    %c2_71 = arith.constant 2 : index
    %c0_72 = arith.constant 0 : index
    %c0_73 = arith.constant 0 : index
    %103 = vector.load %arg6[%c2_71, %c0_72, %c0_73] : memref<3x512x1024xbf16, #tpu.memory_space<vmem>>, vector<1x512x1024xbf16>
    %104 = vector.shape_cast %103 : vector<1x512x1024xbf16> to vector<512x1024xbf16>
    %cst_74 = arith.constant dense<0.000000e+00> : vector<2x1024xf32>
    %105 = tpu.matmul %102, %104, %cst_74 {dimension_numbers = #tpu.dot_dimension_numbers<[1], [0], [0], [1], [0, 0, 1, 1], [], []>} : vector<2x512xbf16>, vector<512x1024xbf16>, vector<2x1024xf32> -> vector<2x1024xf32>
    %106 = arith.addf %101, %105 : vector<2x1024xf32>
    %c0_75 = arith.constant 0 : index
    %c0_76 = arith.constant 0 : index
    %107 = vector.load %arg7[%c0_75, %c0_76] : memref<1x1024xf32, #tpu.memory_space<vmem>>, vector<1x1024xf32>
    %108 = vector.broadcast %107 : vector<1x1024xf32> to vector<2x1024xf32>
    %109 = arith.addf %106, %108 : vector<2x1024xf32>
    %cst_77 = arith.constant 0.000000e+00 : f32
    %110 = vector.broadcast %cst_77 : f32 to vector<2x1024xf32>
    %111 = arith.maximumf %109, %110 : vector<2x1024xf32>
    %112 = vector.extract_strided_slice %111 {offsets = [0, 0], sizes = [1, 1024], strides = [1, 1]} : vector<2x1024xf32> to vector<1x1024xf32>
    %113 = vector.extract_strided_slice %111 {offsets = [1, 0], sizes = [1, 1024], strides = [1, 1]} : vector<2x1024xf32> to vector<1x1024xf32>
    %114 = arith.maximumf %112, %113 : vector<1x1024xf32>
    %115 = vector.extract_strided_slice %114 {offsets = [0, 0], sizes = [1, 512], strides = [1, 1]} : vector<1x1024xf32> to vector<1x512xf32>
    %116 = vector.extract_strided_slice %114 {offsets = [0, 512], sizes = [1, 512], strides = [1, 1]} : vector<1x1024xf32> to vector<1x512xf32>
    %117 = arith.maximumf %115, %116 : vector<1x512xf32>
    %118 = arith.truncf %117 : vector<1x512xf32> to vector<1x512xbf16>
    %c0_78 = arith.constant 0 : index
    %c0_79 = arith.constant 0 : index
    %119 = vector.load %arg8[%c0_78, %c0_79] : memref<512x128xbf16, #tpu.memory_space<vmem>>, vector<512x128xbf16>
    %cst_80 = arith.constant dense<0.000000e+00> : vector<1x128xf32>
    %120 = tpu.matmul %118, %119, %cst_80 {dimension_numbers = #tpu.dot_dimension_numbers<[1], [0], [0], [1], [0, 0, 1, 1], [], []>} : vector<1x512xbf16>, vector<512x128xbf16>, vector<1x128xf32> -> vector<1x128xf32>
    %c0_81 = arith.constant 0 : index
    %c0_82 = arith.constant 0 : index
    %121 = vector.load %arg9[%c0_81, %c0_82] : memref<1x128xf32, #tpu.memory_space<vmem>>, vector<1x128xf32>
    %122 = arith.addf %120, %121 : vector<1x128xf32>
    %c0_83 = arith.constant 0 : index
    %c0_84 = arith.constant 0 : index
    %c0_85 = arith.constant 0 : index
    %123 = vector.load %arg10[%c0_83, %c0_84, %c0_85] : memref<1x1x128xf32, #tpu.memory_space<vmem>>, vector<1x1x128xf32>
    %124 = vector.shape_cast %123 : vector<1x1x128xf32> to vector<1x128xf32>
    %125 = vector.shape_cast %122 : vector<1x128xf32> to vector<1x1x128xf32>
    tpu.vector_store %arg10[%c0_83, %c0_84, %c0_85], %125 {strides = array<i32>} : memref<1x1x128xf32, #tpu.memory_space<vmem>>, vector<1x1x128xf32>,
    return
  }
  func.func @transform_0(%arg0: i32) -> (i32, i32, i32) {
    %c0_i32 = arith.constant 0 : i32
    %c0_i32_0 = arith.constant 0 : i32
    %c0_i32_1 = arith.constant 0 : i32
    return %arg0, %c0_i32, %c0_i32_0 : i32, i32, i32
  }
  func.func @transform_1(%arg0: i32) -> (i32, i32, i32) {
    %c0_i32 = arith.constant 0 : i32
    %c0_i32_0 = arith.constant 0 : i32
    %c0_i32_1 = arith.constant 0 : i32
    %c0_i32_2 = arith.constant 0 : i32
    return %c0_i32, %c0_i32_0, %c0_i32_1 : i32, i32, i32
  }
  func.func @transform_2(%arg0: i32) -> (i32, i32) {
    %c0_i32 = arith.constant 0 : i32
    %c0_i32_0 = arith.constant 0 : i32
    %c0_i32_1 = arith.constant 0 : i32
    return %c0_i32, %c0_i32_0 : i32, i32
  }
  func.func @transform_3(%arg0: i32) -> (i32, i32, i32) {
    %c0_i32 = arith.constant 0 : i32
    %c0_i32_0 = arith.constant 0 : i32
    %c0_i32_1 = arith.constant 0 : i32
    %c0_i32_2 = arith.constant 0 : i32
    return %c0_i32, %c0_i32_0, %c0_i32_1 : i32, i32, i32
  }
  func.func @transform_4(%arg0: i32) -> (i32, i32) {
    %c0_i32 = arith.constant 0 : i32
    %c0_i32_0 = arith.constant 0 : i32
    %c0_i32_1 = arith.constant 0 : i32
    return %c0_i32, %c0_i32_0 : i32, i32
  }
  func.func @transform_5(%arg0: i32) -> (i32, i32, i32) {
    %c0_i32 = arith.constant 0 : i32
    %c0_i32_0 = arith.constant 0 : i32
    %c0_i32_1 = arith.constant 0 : i32
    %c0_i32_2 = arith.constant 0 : i32
    return %c0_i32, %c0_i32_0, %c0_i32_1 : i32, i32, i32
  }
  func.func @transform_6(%arg0: i32) -> (i32, i32) {
    %c0_i32 = arith.constant 0 : i32
    %c0_i32_0 = arith.constant 0 : i32
    %c0_i32_1 = arith.constant 0 : i32
    return %c0_i32, %c0_i32_0 : i32, i32
  }
  func.func @transform_7(%arg0: i32) -> (i32, i32) {
    %c0_i32 = arith.constant 0 : i32
    %c0_i32_0 = arith.constant 0 : i32
    %c0_i32_1 = arith.constant 0 : i32
    return %c0_i32, %c0_i32_0 : i32, i32
  }
  func.func @transform_8(%arg0: i32) -> (i32, i32) {
    %c0_i32 = arith.constant 0 : i32
    %c0_i32_0 = arith.constant 0 : i32
    %c0_i32_1 = arith.constant 0 : i32
    return %c0_i32, %c0_i32_0 : i32, i32
  }
  func.func @transform_9(%arg0: i32) -> (i32, i32, i32) {
    %c0_i32 = arith.constant 0 : i32
    %c0_i32_0 = arith.constant 0 : i32
    %c0_i32_1 = arith.constant 0 : i32
    return %arg0, %c0_i32, %c0_i32_0 : i32, i32, i32
  }
}

</mosaic_0001>

<llo_original>
// kernel: vgg_forward.1
$region0: #{vgg_forward.1}
  #allocation0 [shape = 'u32[]', space=smem, size = 0x4, offset = 0x4, fixed_abs, tag = 'smem constant byte address 0x4 - core index']
  #allocation1 [shape = 'u32[72,128]{1,0:T(1,128)}', space=vmem, size = 0x9000, scoped, tag = 'internal scratch']
  #allocation2 [shape = 'bf16[6,512]{1,0:T(8,128)(2,1)}', space=vmem, size = 0x2000, scoped, tag = 'scratch operand']
  #allocation3 [shape = 'bf16[4,512]{1,0:T(4,128)(2,1)}', space=vmem, size = 0x1000, scoped, tag = 'scratch operand']
  %s0 = inlined_call_operand.vmem [shape: bf16[2,10,30], index: 0, kind: input, shape index: {}]
  %s1 = inlined_call_operand.hbm [shape: bf16[3,30,512], index: 1, kind: input, shape index: {}]
  %s2 = inlined_call_operand.hbm [shape: f32[1,512], index: 2, kind: input, shape index: {}]
  %s3 = inlined_call_operand.hbm [shape: bf16[3,512,512], index: 3, kind: input, shape index: {}]
  %s4 = inlined_call_operand.hbm [shape: f32[1,512], index: 4, kind: input, shape index: {}]
  %s5 = inlined_call_operand.hbm [shape: bf16[3,512,1024], index: 5, kind: input, shape index: {}]
  %s6 = inlined_call_operand.hbm [shape: f32[1,1024], index: 6, kind: input, shape index: {}]
  %s7 = inlined_call_operand.hbm [shape: bf16[512,128], index: 7, kind: input, shape index: {}]
  %s8 = inlined_call_operand.hbm [shape: f32[1,128], index: 8, kind: input, shape index: {}]
  %s9 = inlined_call_operand.hbm [shape: f32[2,1,128], index: 9, kind: output, shape index: {}]
  %s10 = sld [smem:[#allocation0]]
  $region101: #{vgg_forward.1} parent=0
    _
  %s12 = ssub.s32 1, %s10
  %s13 = scalar_select 0, %s12, %s10
  $region1: #{vgg_forward.1} parent=0
    #allocation4 [shape = 'u8[98304]{0}', space=vmem, size = 0x18000, scoped, tag = 'input window, operand 1, single buffered']
    #allocation5 [shape = 's32[2]{0}', space=sflag, size = 0x8, scoped, tag = 'scoped memory for vgg_forward.1']
    #allocation6 [shape = 's32[2]{0}', space=sflag, size = 0x8, scoped, tag = 'scoped memory for vgg_forward.1']
    #allocation7 [shape = 'u8[2048]{0}', space=vmem, size = 0x800, scoped, tag = 'input window, operand 2, single buffered']
    #allocation8 [shape = 's32[1]{0}', space=sflag, size = 0x4, scoped, tag = 'scoped memory for vgg_forward.1']
    #allocation9 [shape = 'u8[1572864]{0}', space=vmem, size = 0x180000, scoped, tag = 'input window, operand 3, single buffered']
    #allocation10 [shape = 'u8[2048]{0}', space=vmem, size = 0x800, scoped, tag = 'input window, operand 4, single buffered']
    #allocation11 [shape = 's32[1]{0}', space=sflag, size = 0x4, scoped, tag = 'scoped memory for vgg_forward.1']
    #allocation12 [shape = 'u8[3145728]{0}', space=vmem, size = 0x300000, scoped, tag = 'input window, operand 5, single buffered']
    #allocation13 [shape = 'u8[4096]{0}', space=vmem, size = 0x1000, scoped, tag = 'input window, operand 6, single buffered']
    #allocation14 [shape = 's32[1]{0}', space=sflag, size = 0x4, scoped, tag = 'scoped memory for vgg_forward.1']
    #allocation15 [shape = 'u8[131072]{0}', space=vmem, size = 0x20000, scoped, tag = 'input window, operand 7, single buffered']
    #allocation16 [shape = 'u8[512]{0}', space=vmem, size = 0x400, scoped, tag = 'input window, operand 8, single buffered']
    #allocation17 [shape = 's32[1]{0}', space=sflag, size = 0x4, scoped, tag = 'scoped memory for vgg_forward.1']
    #allocation18 [shape = 'u8[1024]{0}', space=vmem, size = 0x400, scoped, tag = 'output window, operand 0']
    %14 = vsyncpa [#allocation5], 0
    %15 = vsyncpa [#allocation8], 0
    %16 = vsyncpa [#allocation11], 0
    %17 = vsyncpa [#allocation14], 0
    %18 = vsyncpa [#allocation17], 0
    %19 = vsyncpa [#allocation6], 0
    %s20 = scalar_lea.sflag [#allocation6], 1
    %21 = vsyncpa %s20, 0
    loop: start=0, step=1, limit=4
    $region2: #{vgg_forward.1} parent=1 // loop_pre_header
      _
    $region3: #{vgg_forward.1} parent=1 // loop_header
      %s23 = sphi 0, %s27
      %p24 = scmp.ge.s32.totalorder %s23, 4
      %s33 = sphi 0, %s35
      %s36 = sphi 0, %s33
      %s37 = sphi 0, %s36
      %s53 = sphi 0, %s37
      %s57 = sphi 0, %s57
      %s59 = sphi 0, %s57
      %s60 = sphi 0, %s59
      %s74 = sphi 0, %s60
      %s78 = sphi 0, %s78
      %s80 = sphi 0, %s78
      %s81 = sphi 0, %s80
      %s95 = sphi 0, %s81
      %s99 = sphi 0, %s99
      %s101 = sphi 0, %s99
      %s102 = sphi 0, %s101
      %s116 = sphi 0, %s102
      %s120 = sphi 0, %s120
      %s122 = sphi 0, %s120
      %s123 = sphi 0, %s122
      %s137 = sphi 0, %s123
      %s141 = sphi 0, %s141
      %s143 = sphi 0, %s141
      %s144 = sphi 0, %s143
      %s158 = sphi 0, %s144
      %s162 = sphi 0, %s162
      %s164 = sphi 0, %s162
      %s165 = sphi 0, %s164
      %s179 = sphi 0, %s165
      %s183 = sphi 0, %s183
      %s185 = sphi 0, %s183
      %s186 = sphi 0, %s185
      %s200 = sphi 0, %s186
      %s204 = sphi 0, %s204
      %s206 = sphi 0, %s204
      %s207 = sphi 0, %s206
      %s221 = sphi 0, %s207
      %s227 = sphi 0, %s229
      %s230 = sphi 0, %s227
      %s231 = sphi 0, %s230
      %s247 = sphi 0, %s231
    $region4: #{vgg_forward.1} parent=1 // loop_header_branch
      %26 = sbr.rel (%p24) target = $region8
    $region5: #{vgg_forward.1} parent=1 // loop_body
      %s28 = ssub.s32 %s23, 1
      %s29 = ssub.s32 %s23, 2
      %s30 = sadd.s32 %s23, 1
      %s31 = ssub.s32 %s23, %s30
      %p32 = scmp.eq.s32.totalorder %s31, 0
      %s34 = sadd.s32 %s33, 1
      %s35 = scalar_select %p32, %s33, %s34
      %p38 = pneg %p32
      %p39 = scmp.eq.s32.totalorder %s23, 1
      %p40 = por %p38, %p39
      %p41 = scmp.ne.s32.totalorder %s33, %s36
      %p42 = scmp.eq.s32.totalorder %s23, 0
      %p43 = por %p41, %p42
      %p44 = scmp.ne.s32.totalorder %s33, %s36
      %p45 = scmp.eq.s32.totalorder %s28, 1
      %p46 = por %p44, %p45
      %p47 = scmp.ne.s32.totalorder %s36, %s37
      %p48 = scmp.eq.s32.totalorder %s28, 0
      %p49 = por %p47, %p48
      %p50 = scmp.ne.s32.totalorder %s36, %s37
      %p51 = scmp.eq.s32.totalorder %s29, 1
      %p52 = por %p50, %p51
      %p54 = scmp.ne.s32.totalorder %s37, %s53
      %p55 = scmp.eq.s32.totalorder %s29, 0
      %p56 = por %p54, %p55
      %s58 = sadd.s32 %s57, 1
      %p61 = scmp.eq.s32.totalorder %s23, 1
      %p62 = scmp.ne.s32.totalorder %s57, %s59
      %p63 = scmp.eq.s32.totalorder %s23, 0
      %p64 = por %p62, %p63
      %p65 = scmp.ne.s32.totalorder %s57, %s59
      %p66 = scmp.eq.s32.totalorder %s28, 1
      %p67 = por %p65, %p66
      %p68 = scmp.ne.s32.totalorder %s59, %s60
      %p69 = scmp.eq.s32.totalorder %s28, 0
      %p70 = por %p68, %p69
      %p71 = scmp.ne.s32.totalorder %s59, %s60
      %p72 = scmp.eq.s32.totalorder %s29, 1
      %p73 = por %p71, %p72
      %p75 = scmp.ne.s32.totalorder %s60, %s74
      %p76 = scmp.eq.s32.totalorder %s29, 0
      %p77 = por %p75, %p76
      %s79 = sadd.s32 %s78, 1
      %p82 = scmp.eq.s32.totalorder %s23, 1
      %p83 = scmp.ne.s32.totalorder %s78, %s80
      %p84 = scmp.eq.s32.totalorder %s23, 0
      %p85 = por %p83, %p84
      %p86 = scmp.ne.s32.totalorder %s78, %s80
      %p87 = scmp.eq.s32.totalorder %s28, 1
      %p88 = por %p86, %p87
      %p89 = scmp.ne.s32.totalorder %s80, %s81
      %p90 = scmp.eq.s32.totalorder %s28, 0
      %p91 = por %p89, %p90
      %p92 = scmp.ne.s32.totalorder %s80, %s81
      %p93 = scmp.eq.s32.totalorder %s29, 1
      %p94 = por %p92, %p93
      %p96 = scmp.ne.s32.totalorder %s81, %s95
      %p97 = scmp.eq.s32.totalorder %s29, 0
      %p98 = por %p96, %p97
      %s100 = sadd.s32 %s99, 1
      %p103 = scmp.eq.s32.totalorder %s23, 1
      %p104 = scmp.ne.s32.totalorder %s99, %s101
      %p105 = scmp.eq.s32.totalorder %s23, 0
      %p106 = por %p104, %p105
      %p107 = scmp.ne.s32.totalorder %s99, %s101
      %p108 = scmp.eq.s32.totalorder %s28, 1
      %p109 = por %p107, %p108
      %p110 = scmp.ne.s32.totalorder %s101, %s102
      %p111 = scmp.eq.s32.totalorder %s28, 0
      %p112 = por %p110, %p111
      %p113 = scmp.ne.s32.totalorder %s101, %s102
      %p114 = scmp.eq.s32.totalorder %s29, 1
      %p115 = por %p113, %p114
      %p117 = scmp.ne.s32.totalorder %s102, %s116
      %p118 = scmp.eq.s32.totalorder %s29, 0
      %p119 = por %p117, %p118
      %s121 = sadd.s32 %s120, 1
      %p124 = scmp.eq.s32.totalorder %s23, 1
      %p125 = scmp.ne.s32.totalorder %s120, %s122
      %p126 = scmp.eq.s32.totalorder %s23, 0
      %p127 = por %p125, %p126
      %p128 = scmp.ne.s32.totalorder %s120, %s122
      %p129 = scmp.eq.s32.totalorder %s28, 1
      %p130 = por %p128, %p129
      %p131 = scmp.ne.s32.totalorder %s122, %s123
      %p132 = scmp.eq.s32.totalorder %s28, 0
      %p133 = por %p131, %p132
      %p134 = scmp.ne.s32.totalorder %s122, %s123
      %p135 = scmp.eq.s32.totalorder %s29, 1
      %p136 = por %p134, %p135
      %p138 = scmp.ne.s32.totalorder %s123, %s137
      %p139 = scmp.eq.s32.totalorder %s29, 0
      %p140 = por %p138, %p139
      %s142 = sadd.s32 %s141, 1
      %p145 = scmp.eq.s32.totalorder %s23, 1
      %p146 = scmp.ne.s32.totalorder %s141, %s143
      %p147 = scmp.eq.s32.totalorder %s23, 0
      %p148 = por %p146, %p147
      %p149 = scmp.ne.s32.totalorder %s141, %s143
      %p150 = scmp.eq.s32.totalorder %s28, 1
      %p151 = por %p149, %p150
      %p152 = scmp.ne.s32.totalorder %s143, %s144
      %p153 = scmp.eq.s32.totalorder %s28, 0
      %p154 = por %p152, %p153
      %p155 = scmp.ne.s32.totalorder %s143, %s144
      %p156 = scmp.eq.s32.totalorder %s29, 1
      %p157 = por %p155, %p156
      %p159 = scmp.ne.s32.totalorder %s144, %s158
      %p160 = scmp.eq.s32.totalorder %s29, 0
      %p161 = por %p159, %p160
      %s163 = sadd.s32 %s162, 1
      %p166 = scmp.eq.s32.totalorder %s23, 1
      %p167 = scmp.ne.s32.totalorder %s162, %s164
      %p168 = scmp.eq.s32.totalorder %s23, 0
      %p169 = por %p167, %p168
      %p170 = scmp.ne.s32.totalorder %s162, %s164
      %p171 = scmp.eq.s32.totalorder %s28, 1
      %p172 = por %p170, %p171
      %p173 = scmp.ne.s32.totalorder %s164, %s165
      %p174 = scmp.eq.s32.totalorder %s28, 0
      %p175 = por %p173, %p174
      %p176 = scmp.ne.s32.totalorder %s164, %s165
      %p177 = scmp.eq.s32.totalorder %s29, 1
      %p178 = por %p176, %p177
      %p180 = scmp.ne.s32.totalorder %s165, %s179
      %p181 = scmp.eq.s32.totalorder %s29, 0
      %p182 = por %p180, %p181
      %s184 = sadd.s32 %s183, 1
      %p187 = scmp.eq.s32.totalorder %s23, 1
      %p188 = scmp.ne.s32.totalorder %s183, %s185
      %p189 = scmp.eq.s32.totalorder %s23, 0
      %p190 = por %p188, %p189
      %p191 = scmp.ne.s32.totalorder %s183, %s185
      %p192 = scmp.eq.s32.totalorder %s28, 1
      %p193 = por %p191, %p192
      %p194 = scmp.ne.s32.totalorder %s185, %s186
      %p195 = scmp.eq.s32.totalorder %s28, 0
      %p196 = por %p194, %p195
      %p197 = scmp.ne.s32.totalorder %s185, %s186
      %p198 = scmp.eq.s32.totalorder %s29, 1
      %p199 = por %p197, %p198
      %p201 = scmp.ne.s32.totalorder %s186, %s200
      %p202 = scmp.eq.s32.totalorder %s29, 0
      %p203 = por %p201, %p202
      %s205 = sadd.s32 %s204, 1
      %p208 = scmp.eq.s32.totalorder %s23, 1
      %p209 = scmp.ne.s32.totalorder %s204, %s206
      %p210 = scmp.eq.s32.totalorder %s23, 0
      %p211 = por %p209, %p210
      %p212 = scmp.ne.s32.totalorder %s204, %s206
      %p213 = scmp.eq.s32.totalorder %s28, 1
      %p214 = por %p212, %p213
      %p215 = scmp.ne.s32.totalorder %s206, %s207
      %p216 = scmp.eq.s32.totalorder %s28, 0
      %p217 = por %p215, %p216
      %p218 = scmp.ne.s32.totalorder %s206, %s207
      %p219 = scmp.eq.s32.totalorder %s29, 1
      %p220 = por %p218, %p219
      %p222 = scmp.ne.s32.totalorder %s207, %s221
      %p223 = scmp.eq.s32.totalorder %s29, 0
      %p224 = por %p222, %p223
      %s225 = ssub.s32 %s23, %s30
      %p226 = scmp.eq.s32.totalorder %s225, 0
      %s228 = sadd.s32 %s227, 1
      %s229 = scalar_select %p226, %s227, %s228
      %p232 = pneg %p226
      %p233 = scmp.eq.s32.totalorder %s23, 1
      %p234 = por %p232, %p233
      %p235 = scmp.ne.s32.totalorder %s227, %s230
      %p236 = scmp.eq.s32.totalorder %s23, 0
      %p237 = por %p235, %p236
      %p238 = scmp.ne.s32.totalorder %s227, %s230
      %p239 = scmp.eq.s32.totalorder %s28, 1
      %p240 = por %p238, %p239
      %p241 = scmp.ne.s32.totalorder %s230, %s231
      %p242 = scmp.eq.s32.totalorder %s28, 0
      %p243 = por %p241, %p242
      %p244 = scmp.ne.s32.totalorder %s230, %s231
      %p245 = scmp.eq.s32.totalorder %s29, 1
      %p246 = por %p244, %p245
      %p248 = scmp.ne.s32.totalorder %s231, %s247
      %p249 = scmp.eq.s32.totalorder %s29, 0
      %p250 = por %p248, %p249
      %p251 = scmp.le.s32.totalorder 1, %s23
      %p252 = scmp.lt.s32.totalorder %s23, 3
      %p253 = pnand %p251, %p252
      %p254 = pneg %p253
      // Predicated region
      $region9: #{vgg_forward.1} parent=5 // pred_check
        _
      $region10: #{vgg_forward.1} parent=5 // pred_check_branch
        %256 = sbr.rel (%p253) target = $region12
      $region11: #{vgg_forward.1} parent=5 // pred_region
        %s257 = ssub.s32 %s23, 1
        // Predicated region
        $region13: #{vgg_forward.1} parent=11 // pred_check
          %p258 = pneg %p70
        $region14: #{vgg_forward.1} parent=11 // pred_check_branch
          %260 = sbr.rel (%p258) target = $region16
        $region15: #{vgg_forward.1} parent=11 // pred_region
          %262 = vsyncadd [#allocation5], 0
          %s263 = sshll.u32 %s1, 4
          %s264 = int_to_ptr.hbm [resolvable:$true] %s263
          %s265 = sshll.u32 [#allocation4], 4
          %s266 = int_to_ptr.vmem [resolvable:$true] %s265
          %271 = dma.hbm_to_vmem [thread:$0]  %s264, 3072, %s266, [#allocation5], 256, 256, 16
        $region16: #{vgg_forward.1} parent=11 // pred_fallthru
          _
        // Predicated region
        $region17: #{vgg_forward.1} parent=11 // pred_check
          %p272 = pneg %p91
        $region18: #{vgg_forward.1} parent=11 // pred_check_branch
          %274 = sbr.rel (%p272) target = $region20
        $region19: #{vgg_forward.1} parent=11 // pred_region
          %276 = vsyncadd [#allocation8], 0
          %s278 = sshll.u32 %s2, 4
          %s279 = int_to_ptr.hbm [resolvable:$true] %s278
          %s280 = sshll.u32 [#allocation7], 4
          %s281 = int_to_ptr.vmem [resolvable:$true] %s280
          %283 = dma.hbm_to_vmem [thread:$0]  %s279, 64, %s281, [#allocation8]
        $region20: #{vgg_forward.1} parent=11 // pred_fallthru
          _
        // Predicated region
        $region21: #{vgg_forward.1} parent=11 // pred_check
          %p284 = pneg %p112
        $region22: #{vgg_forward.1} parent=11 // pred_check_branch
          %286 = sbr.rel (%p284) target = $region24
        $region23: #{vgg_forward.1} parent=11 // pred_region
          %288 = vsyncadd [#allocation8], 0
          %s289 = sshll.u32 %s3, 4
          %s290 = int_to_ptr.hbm [resolvable:$true] %s289
          %s291 = sshll.u32 [#allocation9], 4
          %s292 = int_to_ptr.vmem [resolvable:$true] %s291
          %297 = dma.hbm_to_vmem [thread:$0]  %s290, 49152, %s292, [#allocation8], 256, 256, 16
        $region24: #{vgg_forward.1} parent=11 // pred_fallthru
          _
        // Predicated region
        $region25: #{vgg_forward.1} parent=11 // pred_check
          %p298 = pneg %p133
        $region26: #{vgg_forward.1} parent=11 // pred_check_branch
          %300 = sbr.rel (%p298) target = $region28
        $region27: #{vgg_forward.1} parent=11 // pred_region
          %302 = vsyncadd [#allocation11], 0
          %s304 = sshll.u32 %s4, 4
          %s305 = int_to_ptr.hbm [resolvable:$true] %s304
          %s306 = sshll.u32 [#allocation10], 4
          %s307 = int_to_ptr.vmem [resolvable:$true] %s306
          %309 = dma.hbm_to_vmem [thread:$0]  %s305, 64, %s307, [#allocation11]
        $region28: #{vgg_forward.1} parent=11 // pred_fallthru
          _
        // Predicated region
        $region29: #{vgg_forward.1} parent=11 // pred_check
          %p310 = pneg %p154
        $region30: #{vgg_forward.1} parent=11 // pred_check_branch
          %312 = sbr.rel (%p310) target = $region32
        $region31: #{vgg_forward.1} parent=11 // pred_region
          %314 = vsyncadd [#allocation11], 0
          %s315 = sshll.u32 %s5, 4
          %s316 = int_to_ptr.hbm [resolvable:$true] %s315
          %s317 = sshll.u32 [#allocation12], 4
          %s318 = int_to_ptr.vmem [resolvable:$true] %s317
          %323 = dma.hbm_to_vmem [thread:$0]  %s316, 98304, %s318, [#allocation11], 512, 512, 32
        $region32: #{vgg_forward.1} parent=11 // pred_fallthru
          _
        // Predicated region
        $region33: #{vgg_forward.1} parent=11 // pred_check
          %p324 = pneg %p175
        $region34: #{vgg_forward.1} parent=11 // pred_check_branch
          %326 = sbr.rel (%p324) target = $region36
        $region35: #{vgg_forward.1} parent=11 // pred_region
          %328 = vsyncadd [#allocation14], 0
          %s330 = sshll.u32 %s6, 4
          %s331 = int_to_ptr.hbm [resolvable:$true] %s330
          %s332 = sshll.u32 [#allocation13], 4
          %s333 = int_to_ptr.vmem [resolvable:$true] %s332
          %335 = dma.hbm_to_vmem [thread:$0]  %s331, 128, %s333, [#allocation14]
        $region36: #{vgg_forward.1} parent=11 // pred_fallthru
          _
        // Predicated region
        $region37: #{vgg_forward.1} parent=11 // pred_check
          %p336 = pneg %p196
        $region38: #{vgg_forward.1} parent=11 // pred_check_branch
          %338 = sbr.rel (%p336) target = $region40
        $region39: #{vgg_forward.1} parent=11 // pred_region
          %340 = vsyncadd [#allocation14], 0
          %s341 = sshll.u32 %s7, 4
          %s342 = int_to_ptr.hbm [resolvable:$true] %s341
          %s343 = sshll.u32 [#allocation15], 4
          %s344 = int_to_ptr.vmem [resolvable:$true] %s343
          %349 = dma.hbm_to_vmem [thread:$0]  %s342, 4096, %s344, [#allocation14], 64, 64, 4
        $region40: #{vgg_forward.1} parent=11 // pred_fallthru
          _
        // Predicated region
        $region41: #{vgg_forward.1} parent=11 // pred_check
          %p350 = pneg %p217
        $region42: #{vgg_forward.1} parent=11 // pred_check_branch
          %352 = sbr.rel (%p350) target = $region44
        $region43: #{vgg_forward.1} parent=11 // pred_region
          %354 = vsyncadd [#allocation17], 0
          %s356 = sshll.u32 %s8, 4
          %s357 = int_to_ptr.hbm [resolvable:$true] %s356
          %s358 = sshll.u32 [#allocation16], 4
          %s359 = int_to_ptr.vmem [resolvable:$true] %s358
          %361 = dma.hbm_to_vmem [thread:$0]  %s357, 16, %s359, [#allocation17]
        $region44: #{vgg_forward.1} parent=11 // pred_fallthru
          _
      $region12: #{vgg_forward.1} parent=5 // pred_fallthru
        _
      %p362 = scmp.lt.s32.totalorder %s23, 2
      // Predicated region
      $region45: #{vgg_forward.1} parent=5 // pred_check
        %p363 = pneg %p362
      $region46: #{vgg_forward.1} parent=5 // pred_check_branch
        %365 = sbr.rel (%p363) target = $region48
      $region47: #{vgg_forward.1} parent=5 // pred_region
        // Predicated region
        $region49: #{vgg_forward.1} parent=47 // pred_check
          %p366 = pneg %p43
        $region50: #{vgg_forward.1} parent=47 // pred_check_branch
          %368 = sbr.rel (%p366) target = $region52
        $region51: #{vgg_forward.1} parent=47 // pred_region
          %p369 = scmp.lt.s32.totalorder %s23, 1
          %s370 = scalar_select %p369, %s23, 1
          %s371 = smul.addr %s370, 2
          %s372 = smul.addr %s371, 4
          %s373 = scalar_lea.vmem %s0, %s372
        $region52: #{vgg_forward.1} parent=47 // pred_fallthru
          _
      $region48: #{vgg_forward.1} parent=5 // pred_fallthru
        _
      %p374 = scmp.le.s32.totalorder 1, %s23
      %p375 = scmp.lt.s32.totalorder %s23, 3
      %p376 = pnand %p374, %p375
      %p377 = pneg %p376
      // Predicated region
      $region53: #{vgg_forward.1} parent=5 // pred_check
        _
      $region54: #{vgg_forward.1} parent=5 // pred_check_branch
        %379 = sbr.rel (%p376) target = $region56
      $region55: #{vgg_forward.1} parent=5 // pred_region
        %s380 = ssub.s32 %s23, 1
        // Predicated region
        $region57: #{vgg_forward.1} parent=55 // pred_check
          %p381 = pneg %p70
        $region58: #{vgg_forward.1} parent=55 // pred_check_branch
          %383 = sbr.rel (%p381) target = $region60
        $region59: #{vgg_forward.1} parent=55 // pred_region
          %385 = dma.done [#allocation5], 3072
        $region60: #{vgg_forward.1} parent=55 // pred_fallthru
          _
        // Predicated region
        $region61: #{vgg_forward.1} parent=55 // pred_check
          %p386 = pneg %p91
        $region62: #{vgg_forward.1} parent=55 // pred_check_branch
          %388 = sbr.rel (%p386) target = $region64
        $region63: #{vgg_forward.1} parent=55 // pred_region
          %390 = dma.done [#allocation8], 64
        $region64: #{vgg_forward.1} parent=55 // pred_fallthru
          _
        // Predicated region
        $region65: #{vgg_forward.1} parent=55 // pred_check
          %p391 = pneg %p112
        $region66: #{vgg_forward.1} parent=55 // pred_check_branch
          %393 = sbr.rel (%p391) target = $region68
        $region67: #{vgg_forward.1} parent=55 // pred_region
          %395 = dma.done [#allocation8], 49152
        $region68: #{vgg_forward.1} parent=55 // pred_fallthru
          _
        // Predicated region
        $region69: #{vgg_forward.1} parent=55 // pred_check
          %p396 = pneg %p133
        $region70: #{vgg_forward.1} parent=55 // pred_check_branch
          %398 = sbr.rel (%p396) target = $region72
        $region71: #{vgg_forward.1} parent=55 // pred_region
          %400 = dma.done [#allocation11], 64
        $region72: #{vgg_forward.1} parent=55 // pred_fallthru
          _
        // Predicated region
        $region73: #{vgg_forward.1} parent=55 // pred_check
          %p401 = pneg %p154
        $region74: #{vgg_forward.1} parent=55 // pred_check_branch
          %403 = sbr.rel (%p401) target = $region76
        $region75: #{vgg_forward.1} parent=55 // pred_region
          %405 = dma.done [#allocation11], 98304
        $region76: #{vgg_forward.1} parent=55 // pred_fallthru
          _
        // Predicated region
        $region77: #{vgg_forward.1} parent=55 // pred_check
          %p406 = pneg %p175
        $region78: #{vgg_forward.1} parent=55 // pred_check_branch
          %408 = sbr.rel (%p406) target = $region80
        $region79: #{vgg_forward.1} parent=55 // pred_region
          %410 = dma.done [#allocation14], 128
        $region80: #{vgg_forward.1} parent=55 // pred_fallthru
          _
        // Predicated region
        $region81: #{vgg_forward.1} parent=55 // pred_check
          %p411 = pneg %p196
        $region82: #{vgg_forward.1} parent=55 // pred_check_branch
          %413 = sbr.rel (%p411) target = $region84
        $region83: #{vgg_forward.1} parent=55 // pred_region
          %415 = dma.done [#allocation14], 4096
        $region84: #{vgg_forward.1} parent=55 // pred_fallthru
          _
        // Predicated region
        $region85: #{vgg_forward.1} parent=55 // pred_check
          %p416 = pneg %p217
        $region86: #{vgg_forward.1} parent=55 // pred_check_branch
          %418 = sbr.rel (%p416) target = $region88
        $region87: #{vgg_forward.1} parent=55 // pred_region
          %420 = dma.done [#allocation17], 16
        $region88: #{vgg_forward.1} parent=55 // pred_fallthru
          _
        %p421 = scmp.lt.s32.totalorder %s28, 1
        %s422 = scalar_select %p421, %s28, 1
        %s423 = smul.addr %s422, 2
        %s424 = smul.addr %s423, 4
        %s425 = scalar_lea.vmem %s0, %s424
        %p426 = pneg %p49
        %p427 = pneg %p46
        %p428 = pneg %p70
        %p429 = pneg %p67
        %p430 = pneg %p91
        %p431 = pneg %p88
        %p432 = pneg %p112
        %p433 = pneg %p109
        %p434 = pneg %p133
        %p435 = pneg %p130
        %p436 = pneg %p154
        %p437 = pneg %p151
        %p438 = pneg %p175
        %p439 = pneg %p172
        %p440 = pneg %p196
        %p441 = pneg %p193
        %p442 = pneg %p217
        %p443 = pneg %p214
        %p444 = pneg %p243
        %p445 = pneg %p240
        %s446 = sand.u32 %s230, 1
        %s447 = scalar_lea.sflag [#allocation6], %s446
        %s448 = sand.u32 %s230, 1
        %s449 = scalar_lea.vmem [#allocation18], %s448
        %p450 = scmp.lt.s32.totalorder %s28, 1
        %s451 = scalar_select %p450, %s28, 1
        %s452 = smul.addr %s451, 2
        %s453 = smul.addr %s452, 4
        %s454 = scalar_lea.vmem %s0, %s453
        %v456 = vld [vmem:[%s454] sm:$0xf]
        %v457 = vld [vmem:[#allocation4] sm:$0xff]
        %v458 = vld [vmem:[#allocation4 + $0x8] sm:$0xff]
        %v459 = vld [vmem:[#allocation4 + $0x10] sm:$0xff]
        %v460 = vld [vmem:[#allocation4 + $0x18] sm:$0xff]
        %v461 = vld [vmem:[#allocation4 + $0x20] sm:$0xff]
        %v462 = vld [vmem:[#allocation4 + $0x28] sm:$0xff]
        %v463 = vld [vmem:[#allocation4 + $0x30] sm:$0x77]
        %v464 = vld [vmem:[#allocation4 + $0x38] sm:$0x77]
        %v465 = vld [vmem:[%s454 + $0x4] sm:$0x1]
        %s466 = scalar_lea.vmem [#allocation4], 64
        %v467 = vld [vmem:[%s466] sm:$0xff]
        %v468 = vld [vmem:[%s466 + $0x8] sm:$0xff]
        %v469 = vld [vmem:[%s466 + $0x10] sm:$0xff]
        %v470 = vld [vmem:[%s466 + $0x18] sm:$0xff]
        %v471 = vld [vmem:[%s466 + $0x20] sm:$0xff]
        %v472 = vld [vmem:[%s466 + $0x28] sm:$0xff]
        %v473 = vld [vmem:[%s466 + $0x30] sm:$0x77]
        %v474 = vld [vmem:[%s466 + $0x38] sm:$0x77]
        %v477 = vunpack.c.l.b16 %v456
        %v478 = vunpack.c.l.b16 %v465
        %v479 = vpack.c.b16 %v478, %v477
        %v481 = vshrl.u32 %v479, 16
        %v483 = vshll.u32 %v479, 16
        %v485 = vrot.slane %v483, 1
        %v486 = vor.u32 %v481, %v485
        %v495 = vunpack.c.l.b16 %v467
        %v496 = vunpack.c.h.b16 %v467
        %v497 = vunpack.c.l.b16 %v468
        %v498 = vunpack.c.h.b16 %v468
        %v499 = vunpack.c.l.b16 %v469
        %v500 = vunpack.c.h.b16 %v469
        %v501 = vunpack.c.l.b16 %v470
        %v502 = vunpack.c.h.b16 %v470
        %v503 = vunpack.c.l.b16 %v471
        %v504 = vunpack.c.h.b16 %v471
        %v505 = vunpack.c.l.b16 %v472
        %v506 = vunpack.c.h.b16 %v472
        %v507 = vunpack.c.l.b16 %v473
        %v508 = vunpack.c.h.b16 %v473
        %v509 = vunpack.c.l.b16 %v474
        %v510 = vunpack.c.h.b16 %v474
        %v511 = vpack.c.b16 %v499, %v495
        %v512 = vpack.c.b16 %v500, %v496
        %v513 = vpack.c.b16 %v501, %v497
        %v514 = vpack.c.b16 %v502, %v498
        %v515 = vpack.c.b16 %v507, %v503
        %v516 = vpack.c.b16 %v508, %v504
        %v517 = vpack.c.b16 %v509, %v505
        %v518 = vpack.c.b16 %v510, %v506
        %vm523 = vcmask 244736
        %v525 = vsel %vm523, %v486, 0
        %vm527 = vcmask 1046528
        %v529 = vsel %vm527, %v515, 0
        %v532 = vsel %vm527, %v516, 0
        %v535 = vsel %vm527, %v517, 0
        %v538 = vsel %vm527, %v518, 0
        %540 = vmatpush.bf16.msra.mxu0 0
        %541 = vmatpush.bf16.msra.mxu0 0
        %542 = vmatpush.bf16.msra.mxu0 0
        %543 = vmatpush.bf16.msra.mxu0 0
        %544 = vmatpush.bf16.msra.mxu0 0
        %545 = vmatpush.bf16.msra.mxu0 0
        %546 = vmatpush.bf16.msra.mxu0 %v529
        %547 = vmatpush.bf16.msra.mxu0 %v511
        %548 = vmatmul.bf16.gmra.mxu0 %v525
        %v549 = vpop.f32.mrf.mxu0
        %v550 = vadd.f32 0.0, %v549
        %v551 = vpop.f32.mrf.mxu0
        %552 = vdwg.mxu0
        %553 = vmatpush.bf16.msra.mxu0 0
        %554 = vmatpush.bf16.msra.mxu0 0
        %555 = vmatpush.bf16.msra.mxu0 0
        %556 = vmatpush.bf16.msra.mxu0 0
        %557 = vmatpush.bf16.msra.mxu0 0
        %558 = vmatpush.bf16.msra.mxu0 0
        %559 = vmatpush.bf16.msra.mxu0 %v532
        %560 = vmatpush.bf16.msra.mxu0 %v512
        %561 = vmatmul.bf16.gmra.mxu0 %v525
        %v562 = vpop.f32.mrf.mxu0
        %v563 = vadd.f32 0.0, %v562
        %v564 = vpop.f32.mrf.mxu0
        %565 = vdwg.mxu0
        %566 = vmatpush.bf16.msra.mxu0 0
        %567 = vmatpush.bf16.msra.mxu0 0
        %568 = vmatpush.bf16.msra.mxu0 0
        %569 = vmatpush.bf16.msra.mxu0 0
        %570 = vmatpush.bf16.msra.mxu0 0
        %571 = vmatpush.bf16.msra.mxu0 0
        %572 = vmatpush.bf16.msra.mxu0 %v535
        %573 = vmatpush.bf16.msra.mxu0 %v513
        %574 = vmatmul.bf16.gmra.mxu0 %v525
        %v575 = vpop.f32.mrf.mxu0
        %v576 = vadd.f32 0.0, %v575
        %v577 = vpop.f32.mrf.mxu0
        %578 = vdwg.mxu0
        %579 = vmatpush.bf16.msra.mxu0 0
        %580 = vmatpush.bf16.msra.mxu0 0
        %581 = vmatpush.bf16.msra.mxu0 0
        %582 = vmatpush.bf16.msra.mxu0 0
        %583 = vmatpush.bf16.msra.mxu0 0
        %584 = vmatpush.bf16.msra.mxu0 0
        %585 = vmatpush.bf16.msra.mxu0 %v538
        %586 = vmatpush.bf16.msra.mxu0 %v514
        %587 = vmatmul.bf16.gmra.mxu0 %v525
        %v588 = vpop.f32.mrf.mxu0
        %v589 = vadd.f32 0.0, %v588
        %v590 = vpop.f32.mrf.mxu0
        %591 = vdwg.mxu0
        %v600 = vunpack.c.l.b16 %v457
        %v601 = vunpack.c.h.b16 %v457
        %v602 = vunpack.c.l.b16 %v458
        %v603 = vunpack.c.h.b16 %v458
        %v604 = vunpack.c.l.b16 %v459
        %v605 = vunpack.c.h.b16 %v459
        %v606 = vunpack.c.l.b16 %v460
        %v607 = vunpack.c.h.b16 %v460
        %v608 = vunpack.c.l.b16 %v461
        %v609 = vunpack.c.h.b16 %v461
        %v610 = vunpack.c.l.b16 %v462
        %v611 = vunpack.c.h.b16 %v462
        %v612 = vunpack.c.l.b16 %v463
        %v613 = vunpack.c.h.b16 %v463
        %v614 = vunpack.c.l.b16 %v464
        %v615 = vunpack.c.h.b16 %v464
        %v616 = vpack.c.b16 %v604, %v600
        %v617 = vpack.c.b16 %v605, %v601
        %v618 = vpack.c.b16 %v606, %v602
        %v619 = vpack.c.b16 %v607, %v603
        %v620 = vpack.c.b16 %v612, %v608
        %v621 = vpack.c.b16 %v613, %v609
        %v622 = vpack.c.b16 %v614, %v610
        %v623 = vpack.c.b16 %v615, %v611
        %v629 = vsel %vm523, %v456, 0
        %v632 = vsel %vm527, %v620, 0
        %v635 = vsel %vm527, %v621, 0
        %v638 = vsel %vm527, %v622, 0
        %v641 = vsel %vm527, %v623, 0
        %643 = vmatpush.bf16.msra.mxu0 0
        %644 = vmatpush.bf16.msra.mxu0 0
        %645 = vmatpush.bf16.msra.mxu0 0
        %646 = vmatpush.bf16.msra.mxu0 0
        %647 = vmatpush.bf16.msra.mxu0 0
        %648 = vmatpush.bf16.msra.mxu0 0
        %649 = vmatpush.bf16.msra.mxu0 %v632
        %650 = vmatpush.bf16.msra.mxu0 %v616
        %651 = vmatmul.bf16.gmra.mxu0 %v629
        %v652 = vpop.f32.mrf.mxu0
        %v653 = vadd.f32 %v550, %v652
        %v654 = vpop.f32.mrf.mxu0
        %655 = vdwg.mxu0
        %656 = vmatpush.bf16.msra.mxu0 0
        %657 = vmatpush.bf16.msra.mxu0 0
        %658 = vmatpush.bf16.msra.mxu0 0
        %659 = vmatpush.bf16.msra.mxu0 0
        %660 = vmatpush.bf16.msra.mxu0 0
        %661 = vmatpush.bf16.msra.mxu0 0
        %662 = vmatpush.bf16.msra.mxu0 %v635
        %663 = vmatpush.bf16.msra.mxu0 %v617
        %664 = vmatmul.bf16.gmra.mxu0 %v629
        %v665 = vpop.f32.mrf.mxu0
        %v666 = vadd.f32 %v563, %v665
        %v667 = vpop.f32.mrf.mxu0
        %668 = vdwg.mxu0
        %669 = vmatpush.bf16.msra.mxu0 0
        %670 = vmatpush.bf16.msra.mxu0 0
        %671 = vmatpush.bf16.msra.mxu0 0
        %672 = vmatpush.bf16.msra.mxu0 0
        %673 = vmatpush.bf16.msra.mxu0 0
        %674 = vmatpush.bf16.msra.mxu0 0
        %675 = vmatpush.bf16.msra.mxu0 %v638
        %676 = vmatpush.bf16.msra.mxu0 %v618
        %677 = vmatmul.bf16.gmra.mxu0 %v629
        %v678 = vpop.f32.mrf.mxu0
        %v679 = vadd.f32 %v576, %v678
        %v680 = vpop.f32.mrf.mxu0
        %681 = vdwg.mxu0
        %682 = vmatpush.bf16.msra.mxu0 0
        %683 = vmatpush.bf16.msra.mxu0 0
        %684 = vmatpush.bf16.msra.mxu0 0
        %685 = vmatpush.bf16.msra.mxu0 0
        %686 = vmatpush.bf16.msra.mxu0 0
        %687 = vmatpush.bf16.msra.mxu0 0
        %688 = vmatpush.bf16.msra.mxu0 %v641
        %689 = vmatpush.bf16.msra.mxu0 %v619
        %690 = vmatmul.bf16.gmra.mxu0 %v629
        %v691 = vpop.f32.mrf.mxu0
        %v692 = vadd.f32 %v589, %v691
        %v693 = vpop.f32.mrf.mxu0
        %694 = vdwg.mxu0
        %v695 = vld [vmem:[%s454] sm:$0xe]
        %s696 = scalar_lea.vmem [#allocation4], 128
        %v697 = vld [vmem:[%s696] sm:$0xff]
        %v698 = vld [vmem:[%s696 + $0x8] sm:$0xff]
        %v699 = vld [vmem:[%s696 + $0x10] sm:$0xff]
        %v700 = vld [vmem:[%s696 + $0x18] sm:$0xff]
        %v701 = vld [vmem:[%s696 + $0x20] sm:$0xff]
        %v702 = vld [vmem:[%s696 + $0x28] sm:$0xff]
        %v703 = vld [vmem:[%s696 + $0x30] sm:$0x77]
        %v704 = vld [vmem:[%s696 + $0x38] sm:$0x77]
        %v706 = vunpack.c.l.b16 %v695
        %v707 = vpack.c.b16 %v478, %v706
        %v708 = vrot.slane %v707, 1
        %v717 = vunpack.c.l.b16 %v697
        %v718 = vunpack.c.h.b16 %v697
        %v719 = vunpack.c.l.b16 %v698
        %v720 = vunpack.c.h.b16 %v698
        %v721 = vunpack.c.l.b16 %v699
        %v722 = vunpack.c.h.b16 %v699
        %v723 = vunpack.c.l.b16 %v700
        %v724 = vunpack.c.h.b16 %v700
        %v725 = vunpack.c.l.b16 %v701
        %v726 = vunpack.c.h.b16 %v701
        %v727 = vunpack.c.l.b16 %v702
        %v728 = vunpack.c.h.b16 %v702
        %v729 = vunpack.c.l.b16 %v703
        %v730 = vunpack.c.h.b16 %v703
        %v731 = vunpack.c.l.b16 %v704
        %v732 = vunpack.c.h.b16 %v704
        %v733 = vpack.c.b16 %v721, %v717
        %v734 = vpack.c.b16 %v722, %v718
        %v735 = vpack.c.b16 %v723, %v719
        %v736 = vpack.c.b16 %v724, %v720
        %v737 = vpack.c.b16 %v729, %v725
        %v738 = vpack.c.b16 %v730, %v726
        %v739 = vpack.c.b16 %v731, %v727
        %v740 = vpack.c.b16 %v732, %v728
        %v746 = vsel %vm523, %v708, 0
        %v749 = vsel %vm527, %v737, 0
        %v752 = vsel %vm527, %v738, 0
        %v755 = vsel %vm527, %v739, 0
        %v758 = vsel %vm527, %v740, 0
        %760 = vmatpush.bf16.msra.mxu0 0
        %761 = vmatpush.bf16.msra.mxu0 0
        %762 = vmatpush.bf16.msra.mxu0 0
        %763 = vmatpush.bf16.msra.mxu0 0
        %764 = vmatpush.bf16.msra.mxu0 0
        %765 = vmatpush.bf16.msra.mxu0 0
        %766 = vmatpush.bf16.msra.mxu0 %v749
        %767 = vmatpush.bf16.msra.mxu0 %v733
        %768 = vmatmul.bf16.gmra.mxu0 %v746
        %v769 = vpop.f32.mrf.mxu0
        %v770 = vadd.f32 0.0, %v769
        %v771 = vpop.f32.mrf.mxu0
        %772 = vdwg.mxu0
        %773 = vmatpush.bf16.msra.mxu0 0
        %774 = vmatpush.bf16.msra.mxu0 0
        %775 = vmatpush.bf16.msra.mxu0 0
        %776 = vmatpush.bf16.msra.mxu0 0
        %777 = vmatpush.bf16.msra.mxu0 0
        %778 = vmatpush.bf16.msra.mxu0 0
        %779 = vmatpush.bf16.msra.mxu0 %v752
        %780 = vmatpush.bf16.msra.mxu0 %v734
        %781 = vmatmul.bf16.gmra.mxu0 %v746
        %v782 = vpop.f32.mrf.mxu0
        %v783 = vadd.f32 0.0, %v782
        %v784 = vpop.f32.mrf.mxu0
        %785 = vdwg.mxu0
        %786 = vmatpush.bf16.msra.mxu0 0
        %787 = vmatpush.bf16.msra.mxu0 0
        %788 = vmatpush.bf16.msra.mxu0 0
        %789 = vmatpush.bf16.msra.mxu0 0
        %790 = vmatpush.bf16.msra.mxu0 0
        %791 = vmatpush.bf16.msra.mxu0 0
        %792 = vmatpush.bf16.msra.mxu0 %v755
        %793 = vmatpush.bf16.msra.mxu0 %v735
        %794 = vmatmul.bf16.gmra.mxu0 %v746
        %v795 = vpop.f32.mrf.mxu0
        %v796 = vadd.f32 0.0, %v795
        %v797 = vpop.f32.mrf.mxu0
        %798 = vdwg.mxu0
        %799 = vmatpush.bf16.msra.mxu0 0
        %800 = vmatpush.bf16.msra.mxu0 0
        %801 = vmatpush.bf16.msra.mxu0 0
        %802 = vmatpush.bf16.msra.mxu0 0
        %803 = vmatpush.bf16.msra.mxu0 0
        %804 = vmatpush.bf16.msra.mxu0 0
        %805 = vmatpush.bf16.msra.mxu0 %v758
        %806 = vmatpush.bf16.msra.mxu0 %v736
        %807 = vmatmul.bf16.gmra.mxu0 %v746
        %v808 = vpop.f32.mrf.mxu0
        %v809 = vadd.f32 0.0, %v808
        %v810 = vpop.f32.mrf.mxu0
        %811 = vdwg.mxu0
        %v812 = vadd.f32 %v653, %v770
        %v813 = vadd.f32 %v666, %v783
        %v814 = vadd.f32 %v679, %v796
        %v815 = vadd.f32 %v692, %v809
        %v816 = vld [vmem:[#allocation7] sm:$0xf]
        %v818 = vperm.slane %v816, 0
        %v819 = vperm.slane %v816, 1
        %v820 = vperm.slane %v816, 2
        %v821 = vperm.slane %v816, 3
        %v826 = vadd.f32 %v812, %v818
        %v827 = vadd.f32 %v813, %v819
        %v828 = vadd.f32 %v814, %v820
        %v829 = vadd.f32 %v815, %v821
        %v830 = vmax.f32 %v826, 0.0
        %v831 = vmax.f32 %v827, 0.0
        %v832 = vmax.f32 %v828, 0.0
        %v833 = vmax.f32 %v829, 0.0
        %834 = vst [vmem:[#allocation2] sm:$0x77] 0
        %835 = vst [vmem:[#allocation2 + $0x8] sm:$0x77] 0
        %v840 = vrot.slane %v830, 1
        %v841 = vrot.slane %v831, 1
        %v842 = vrot.slane %v832, 1
        %v843 = vrot.slane %v833, 1
        %v848 = vmax.f32 %v830, %v840
        %v849 = vmax.f32 %v831, %v841
        %v850 = vmax.f32 %v832, %v842
        %v851 = vmax.f32 %v833, %v843
        %856 = vrot.lane.b32.xlu0 %v848, 64
        %v857 = vpop.permute.xlu0 %856
        %858 = vrot.lane.b32.xlu0 %v849, 64
        %v859 = vpop.permute.xlu0 %858
        %860 = vrot.lane.b32.xlu0 %v850, 64
        %v861 = vpop.permute.xlu0 %860
        %862 = vrot.lane.b32.xlu0 %v851, 64
        %v863 = vpop.permute.xlu0 %862
        %vm864 = vcmask 523264
        %v865 = vsel %vm864, %v857, %v859
        %v866 = vsel %vm864, %v859, %v861
        %v867 = vsel %vm864, %v861, %v863
        %v872 = vmax.f32 %v848, %v865
        %v873 = vmax.f32 %v849, %v866
        %v874 = vmax.f32 %v850, %v867
        %v875 = vmax.f32 %v851, %v863
        %v876 = vpack.c.bf16 %v873, %v872
        %v877 = vpack.c.bf16 %v875, %v874
        %v879 = vshll.u32 %v876, 16
        %v882 = vshll.u32 %v877, 16
        %vm886 = vcmask 1040384
        %vm887 = vsmask.f32 7938
        %vm888 = vmand %vm886, %vm887
        %vm889 = vcmask 1044484
        %vm890 = vsmask.f32 7954
        %vm891 = vmand %vm889, %vm890
        %vm892 = vmor %vm891, %vm888
        %v893 = vld [vmem:[#allocation2] sm:$0x11]
        %v894 = vsel %vm892, %v879, %v893
        %895 = vst [vmem:[#allocation2] sm:$0x11] %v894
        %vm896 = vcmask 520196
        %vm897 = vmand %vm896, %vm890
        %vm898 = vmor %vm897, %vm888
        %v899 = vld [vmem:[#allocation2 + $0x8] sm:$0x11]
        %v900 = vsel %vm898, %v882, %v899
        %901 = vst [vmem:[#allocation2 + $0x8] sm:$0x11] %v900
        %vm902 = vcmask 1041409
        %vm903 = vsmask.f32 1280
        %vm904 = vmand %vm902, %vm903
        %vm905 = vcmask 1045509
        %vm906 = vsmask.f32 5376
        %vm907 = vmand %vm905, %vm906
        %vm908 = vmor %vm907, %vm904
        %v909 = vld [vmem:[#allocation2] sm:$0x22]
        %v910 = vsel %vm908, %v876, %v909
        %911 = vst [vmem:[#allocation2] sm:$0x22] %v910
        %vm912 = vcmask 521221
        %vm913 = vmand %vm912, %vm906
        %vm914 = vmor %vm913, %vm904
        %v915 = vld [vmem:[#allocation2 + $0x8] sm:$0x22]
        %v916 = vsel %vm914, %v877, %v915
        %917 = vst [vmem:[#allocation2 + $0x8] sm:$0x22] %v916
        %v918 = vrot.slane %v879, 5
        %v919 = vrot.slane %v918, 4
        %v920 = vrot.slane %v882, 5
        %v921 = vrot.slane %v920, 4
        %vm924 = vsmask.f32 7942
        %vm925 = vmand %vm902, %vm924
        %vm926 = vsmask.f32 7958
        %vm927 = vmand %vm905, %vm926
        %vm928 = vmor %vm927, %vm925
        %v929 = vld [vmem:[#allocation2] sm:$0x22]
        %v930 = vsel %vm928, %v919, %v929
        %931 = vst [vmem:[#allocation2] sm:$0x22] %v930
        %vm932 = vmand %vm912, %vm926
        %vm933 = vmor %vm932, %vm925
        %v934 = vld [vmem:[#allocation2 + $0x8] sm:$0x22]
        %v935 = vsel %vm933, %v921, %v934
        %936 = vst [vmem:[#allocation2 + $0x8] sm:$0x22] %v935
        %v939 = vrot.slane %v876, 5
        %v940 = vrot.slane %v939, 4
        %v941 = vrot.slane %v877, 5
        %v942 = vrot.slane %v941, 4
        %vm945 = vcmask 1042434
        %vm946 = vsmask.f32 2304
        %vm947 = vmand %vm945, %vm946
        %vm948 = vcmask 1046534
        %vm949 = vsmask.f32 6400
        %vm950 = vmand %vm948, %vm949
        %vm951 = vmor %vm950, %vm947
        %v952 = vld [vmem:[#allocation2] sm:$0x44]
        %v953 = vsel %vm951, %v940, %v952
        %954 = vst [vmem:[#allocation2] sm:$0x44] %v953
        %vm955 = vcmask 522246
        %vm956 = vmand %vm955, %vm949
        %vm957 = vmor %vm956, %vm947
        %v958 = vld [vmem:[#allocation2 + $0x8] sm:$0x44]
        %v959 = vsel %vm957, %v942, %v958
        %960 = vst [vmem:[#allocation2 + $0x8] sm:$0x44] %v959
        %v961 = vld [vmem:[#allocation2] sm:$0x33]
        %v962 = vld [vmem:[#allocation2 + $0x8] sm:$0x33]
        %v963 = vld [vmem:[#allocation9] sm:$0xff]
        %v964 = vld [vmem:[#allocation9 + $0x8] sm:$0xff]
        %v965 = vld [vmem:[#allocation9 + $0x10] sm:$0xff]
        %v966 = vld [vmem:[#allocation9 + $0x18] sm:$0xff]
        %v967 = vld [vmem:[#allocation9 + $0x20] sm:$0xff]
        %v968 = vld [vmem:[#allocation9 + $0x28] sm:$0xff]
        %v969 = vld [vmem:[#allocation9 + $0x30] sm:$0xff]
        %v970 = vld [vmem:[#allocation9 + $0x38] sm:$0xff]
        %v971 = vld [vmem:[#allocation9 + $0x40] sm:$0xff]
        %v972 = vld [vmem:[#allocation9 + $0x48] sm:$0xff]
        %v973 = vld [vmem:[#allocation9 + $0x50] sm:$0xff]
        %v974 = vld [vmem:[#allocation9 + $0x58] sm:$0xff]
        %v975 = vld [vmem:[#allocation9 + $0x60] sm:$0xff]
        %v976 = vld [vmem:[#allocation9 + $0x68] sm:$0xff]
        %v977 = vld [vmem:[#allocation9 + $0x70] sm:$0xff]
        %v978 = vld [vmem:[#allocation9 + $0x78] sm:$0xff]
        %v979 = vld [vmem:[#allocation9 + $0x80] sm:$0xff]
        %v980 = vld [vmem:[#allocation9 + $0x88] sm:$0xff]
        %v981 = vld [vmem:[#allocation9 + $0x90] sm:$0xff]
        %v982 = vld [vmem:[#allocation9 + $0x98] sm:$0xff]
        %v983 = vld [vmem:[#allocation9 + $0xa0] sm:$0xff]
        %v984 = vld [vmem:[#allocation9 + $0xa8] sm:$0xff]
        %v985 = vld [vmem:[#allocation9 + $0xb0] sm:$0xff]
        %v986 = vld [vmem:[#allocation9 + $0xb8] sm:$0xff]
        %v987 = vld [vmem:[#allocation9 + $0xc0] sm:$0xff]
        %v988 = vld [vmem:[#allocation9 + $0xc8] sm:$0xff]
        %v989 = vld [vmem:[#allocation9 + $0xd0] sm:$0xff]
        %v990 = vld [vmem:[#allocation9 + $0xd8] sm:$0xff]
        %v991 = vld [vmem:[#allocation9 + $0xe0] sm:$0xff]
        %v992 = vld [vmem:[#allocation9 + $0xe8] sm:$0xff]
        %v993 = vld [vmem:[#allocation9 + $0xf0] sm:$0xff]
        %v994 = vld [vmem:[#allocation9 + $0xf8] sm:$0xff]
        %v995 = vld [vmem:[#allocation9 + $0x100] sm:$0xff]
        %v996 = vld [vmem:[#allocation9 + $0x108] sm:$0xff]
        %v997 = vld [vmem:[#allocation9 + $0x110] sm:$0xff]
        %v998 = vld [vmem:[#allocation9 + $0x118] sm:$0xff]
        %v999 = vld [vmem:[#allocation9 + $0x120] sm:$0xff]
        %v1000 = vld [vmem:[#allocation9 + $0x128] sm:$0xff]
        %v1001 = vld [vmem:[#allocation9 + $0x130] sm:$0xff]
        %v1002 = vld [vmem:[#allocation9 + $0x138] sm:$0xff]
        %v1003 = vld [vmem:[#allocation9 + $0x140] sm:$0xff]
        %v1004 = vld [vmem:[#allocation9 + $0x148] sm:$0xff]
        %v1005 = vld [vmem:[#allocation9 + $0x150] sm:$0xff]
        %v1006 = vld [vmem:[#allocation9 + $0x158] sm:$0xff]
        %v1007 = vld [vmem:[#allocation9 + $0x160] sm:$0xff]
        %v1008 = vld [vmem:[#allocation9 + $0x168] sm:$0xff]
        %v1009 = vld [vmem:[#allocation9 + $0x170] sm:$0xff]
        %v1010 = vld [vmem:[#allocation9 + $0x178] sm:$0xff]
        %v1011 = vld [vmem:[#allocation9 + $0x180] sm:$0xff]
        %v1012 = vld [vmem:[#allocation9 + $0x188] sm:$0xff]
        %v1013 = vld [vmem:[#allocation9 + $0x190] sm:$0xff]
        %v1014 = vld [vmem:[#allocation9 + $0x198] sm:$0xff]
        %v1015 = vld [vmem:[#allocation9 + $0x1a0] sm:$0xff]
        %v1016 = vld [vmem:[#allocation9 + $0x1a8] sm:$0xff]
        %v1017 = vld [vmem:[#allocation9 + $0x1b0] sm:$0xff]
        %v1018 = vld [vmem:[#allocation9 + $0x1b8] sm:$0xff]
        %v1019 = vld [vmem:[#allocation9 + $0x1c0] sm:$0xff]
        %v1020 = vld [vmem:[#allocation9 + $0x1c8] sm:$0xff]
        %v1021 = vld [vmem:[#allocation9 + $0x1d0] sm:$0xff]
        %v1022 = vld [vmem:[#allocation9 + $0x1d8] sm:$0xff]
        %v1023 = vld [vmem:[#allocation9 + $0x1e0] sm:$0xff]
        %v1024 = vld [vmem:[#allocation9 + $0x1e8] sm:$0xff]
        %v1025 = vld [vmem:[#allocation9 + $0x1f0] sm:$0xff]
        %v1026 = vld [vmem:[#allocation9 + $0x1f8] sm:$0xff]
        %v1027 = vld [vmem:[#allocation9 + $0x200] sm:$0xff]
        %v1028 = vld [vmem:[#allocation9 + $0x208] sm:$0xff]
        %v1029 = vld [vmem:[#allocation9 + $0x210] sm:$0xff]
        %v1030 = vld [vmem:[#allocation9 + $0x218] sm:$0xff]
        %v1031 = vld [vmem:[#allocation9 + $0x220] sm:$0xff]
        %v1032 = vld [vmem:[#allocation9 + $0x228] sm:$0xff]
        %v1033 = vld [vmem:[#allocation9 + $0x230] sm:$0xff]
        %v1034 = vld [vmem:[#allocation9 + $0x238] sm:$0xff]
        %v1035 = vld [vmem:[#allocation9 + $0x240] sm:$0xff]
        %v1036 = vld [vmem:[#allocation9 + $0x248] sm:$0xff]
        %v1037 = vld [vmem:[#allocation9 + $0x250] sm:$0xff]
        %v1038 = vld [vmem:[#allocation9 + $0x258] sm:$0xff]
        %v1039 = vld [vmem:[#allocation9 + $0x260] sm:$0xff]
        %v1040 = vld [vmem:[#allocation9 + $0x268] sm:$0xff]
        %v1041 = vld [vmem:[#allocation9 + $0x270] sm:$0xff]
        %v1042 = vld [vmem:[#allocation9 + $0x278] sm:$0xff]
        %v1043 = vld [vmem:[#allocation9 + $0x280] sm:$0xff]
        %v1044 = vld [vmem:[#allocation9 + $0x288] sm:$0xff]
        %v1045 = vld [vmem:[#allocation9 + $0x290] sm:$0xff]
        %v1046 = vld [vmem:[#allocation9 + $0x298] sm:$0xff]
        %v1047 = vld [vmem:[#allocation9 + $0x2a0] sm:$0xff]
        %v1048 = vld [vmem:[#allocation9 + $0x2a8] sm:$0xff]
        %v1049 = vld [vmem:[#allocation9 + $0x2b0] sm:$0xff]
        %v1050 = vld [vmem:[#allocation9 + $0x2b8] sm:$0xff]
        %v1051 = vld [vmem:[#allocation9 + $0x2c0] sm:$0xff]
        %v1052 = vld [vmem:[#allocation9 + $0x2c8] sm:$0xff]
        %v1053 = vld [vmem:[#allocation9 + $0x2d0] sm:$0xff]
        %v1054 = vld [vmem:[#allocation9 + $0x2d8] sm:$0xff]
        %v1055 = vld [vmem:[#allocation9 + $0x2e0] sm:$0xff]
        %v1056 = vld [vmem:[#allocation9 + $0x2e8] sm:$0xff]
        %v1057 = vld [vmem:[#allocation9 + $0x2f0] sm:$0xff]
        %v1058 = vld [vmem:[#allocation9 + $0x2f8] sm:$0xff]
        %v1059 = vld [vmem:[#allocation9 + $0x300] sm:$0xff]
        %v1060 = vld [vmem:[#allocation9 + $0x308] sm:$0xff]
        %v1061 = vld [vmem:[#allocation9 + $0x310] sm:$0xff]
        %v1062 = vld [vmem:[#allocation9 + $0x318] sm:$0xff]
        %v1063 = vld [vmem:[#allocation9 + $0x320] sm:$0xff]
        %v1064 = vld [vmem:[#allocation9 + $0x328] sm:$0xff]
        %v1065 = vld [vmem:[#allocation9 + $0x330] sm:$0xff]
        %v1066 = vld [vmem:[#allocation9 + $0x338] sm:$0xff]
        %v1067 = vld [vmem:[#allocation9 + $0x340] sm:$0xff]
        %v1068 = vld [vmem:[#allocation9 + $0x348] sm:$0xff]
        %v1069 = vld [vmem:[#allocation9 + $0x350] sm:$0xff]
        %v1070 = vld [vmem:[#allocation9 + $0x358] sm:$0xff]
        %v1071 = vld [vmem:[#allocation9 + $0x360] sm:$0xff]
        %v1072 = vld [vmem:[#allocation9 + $0x368] sm:$0xff]
        %v1073 = vld [vmem:[#allocation9 + $0x370] sm:$0xff]
        %v1074 = vld [vmem:[#allocation9 + $0x378] sm:$0xff]
        %v1075 = vld [vmem:[#allocation9 + $0x380] sm:$0xff]
        %v1076 = vld [vmem:[#allocation9 + $0x388] sm:$0xff]
        %v1077 = vld [vmem:[#allocation9 + $0x390] sm:$0xff]
        %v1078 = vld [vmem:[#allocation9 + $0x398] sm:$0xff]
        %v1079 = vld [vmem:[#allocation9 + $0x3a0] sm:$0xff]
        %v1080 = vld [vmem:[#allocation9 + $0x3a8] sm:$0xff]
        %v1081 = vld [vmem:[#allocation9 + $0x3b0] sm:$0xff]
        %v1082 = vld [vmem:[#allocation9 + $0x3b8] sm:$0xff]
        %v1083 = vld [vmem:[#allocation9 + $0x3c0] sm:$0xff]
        %v1084 = vld [vmem:[#allocation9 + $0x3c8] sm:$0xff]
        %v1085 = vld [vmem:[#allocation9 + $0x3d0] sm:$0xff]
        %v1086 = vld [vmem:[#allocation9 + $0x3d8] sm:$0xff]
        %v1087 = vld [vmem:[#allocation9 + $0x3e0] sm:$0xff]
        %v1088 = vld [vmem:[#allocation9 + $0x3e8] sm:$0xff]
        %v1089 = vld [vmem:[#allocation9 + $0x3f0] sm:$0xff]
        %v1090 = vld [vmem:[#allocation9 + $0x3f8] sm:$0xff]
        %v1091 = vld [vmem:[#allocation2] sm:$0x77]
        %v1092 = vld [vmem:[#allocation2 + $0x8] sm:$0x77]
        %s1093 = scalar_lea.vmem [#allocation9], 1024
        %v1094 = vld [vmem:[%s1093] sm:$0xff]
        %v1095 = vld [vmem:[%s1093 + $0x8] sm:$0xff]
        %v1096 = vld [vmem:[%s1093 + $0x10] sm:$0xff]
        %v1097 = vld [vmem:[%s1093 + $0x18] sm:$0xff]
        %v1098 = vld [vmem:[%s1093 + $0x20] sm:$0xff]
        %v1099 = vld [vmem:[%s1093 + $0x28] sm:$0xff]
        %v1100 = vld [vmem:[%s1093 + $0x30] sm:$0xff]
        %v1101 = vld [vmem:[%s1093 + $0x38] sm:$0xff]
        %v1102 = vld [vmem:[%s1093 + $0x40] sm:$0xff]
        %v1103 = vld [vmem:[%s1093 + $0x48] sm:$0xff]
        %v1104 = vld [vmem:[%s1093 + $0x50] sm:$0xff]
        %v1105 = vld [vmem:[%s1093 + $0x58] sm:$0xff]
        %v1106 = vld [vmem:[%s1093 + $0x60] sm:$0xff]
        %v1107 = vld [vmem:[%s1093 + $0x68] sm:$0xff]
        %v1108 = vld [vmem:[%s1093 + $0x70] sm:$0xff]
        %v1109 = vld [vmem:[%s1093 + $0x78] sm:$0xff]
        %v1110 = vld [vmem:[%s1093 + $0x80] sm:$0xff]
        %v1111 = vld [vmem:[%s1093 + $0x88] sm:$0xff]
        %v1112 = vld [vmem:[%s1093 + $0x90] sm:$0xff]
        %v1113 = vld [vmem:[%s1093 + $0x98] sm:$0xff]
        %v1114 = vld [vmem:[%s1093 + $0xa0] sm:$0xff]
        %v1115 = vld [vmem:[%s1093 + $0xa8] sm:$0xff]
        %v1116 = vld [vmem:[%s1093 + $0xb0] sm:$0xff]
        %v1117 = vld [vmem:[%s1093 + $0xb8] sm:$0xff]
        %v1118 = vld [vmem:[%s1093 + $0xc0] sm:$0xff]
        %v1119 = vld [vmem:[%s1093 + $0xc8] sm:$0xff]
        %v1120 = vld [vmem:[%s1093 + $0xd0] sm:$0xff]
        %v1121 = vld [vmem:[%s1093 + $0xd8] sm:$0xff]
        %v1122 = vld [vmem:[%s1093 + $0xe0] sm:$0xff]
        %v1123 = vld [vmem:[%s1093 + $0xe8] sm:$0xff]
        %v1124 = vld [vmem:[%s1093 + $0xf0] sm:$0xff]
        %v1125 = vld [vmem:[%s1093 + $0xf8] sm:$0xff]
        %v1126 = vld [vmem:[%s1093 + $0x100] sm:$0xff]
        %v1127 = vld [vmem:[%s1093 + $0x108] sm:$0xff]
        %v1128 = vld [vmem:[%s1093 + $0x110] sm:$0xff]
        %v1129 = vld [vmem:[%s1093 + $0x118] sm:$0xff]
        %v1130 = vld [vmem:[%s1093 + $0x120] sm:$0xff]
        %v1131 = vld [vmem:[%s1093 + $0x128] sm:$0xff]
        %v1132 = vld [vmem:[%s1093 + $0x130] sm:$0xff]
        %v1133 = vld [vmem:[%s1093 + $0x138] sm:$0xff]
        %v1134 = vld [vmem:[%s1093 + $0x140] sm:$0xff]
        %v1135 = vld [vmem:[%s1093 + $0x148] sm:$0xff]
        %v1136 = vld [vmem:[%s1093 + $0x150] sm:$0xff]
        %v1137 = vld [vmem:[%s1093 + $0x158] sm:$0xff]
        %v1138 = vld [vmem:[%s1093 + $0x160] sm:$0xff]
        %v1139 = vld [vmem:[%s1093 + $0x168] sm:$0xff]
        %v1140 = vld [vmem:[%s1093 + $0x170] sm:$0xff]
        %v1141 = vld [vmem:[%s1093 + $0x178] sm:$0xff]
        %v1142 = vld [vmem:[%s1093 + $0x180] sm:$0xff]
        %v1143 = vld [vmem:[%s1093 + $0x188] sm:$0xff]
        %v1144 = vld [vmem:[%s1093 + $0x190] sm:$0xff]
        %v1145 = vld [vmem:[%s1093 + $0x198] sm:$0xff]
        %v1146 = vld [vmem:[%s1093 + $0x1a0] sm:$0xff]
        %v1147 = vld [vmem:[%s1093 + $0x1a8] sm:$0xff]
        %v1148 = vld [vmem:[%s1093 + $0x1b0] sm:$0xff]
        %v1149 = vld [vmem:[%s1093 + $0x1b8] sm:$0xff]
        %v1150 = vld [vmem:[%s1093 + $0x1c0] sm:$0xff]
        %v1151 = vld [vmem:[%s1093 + $0x1c8] sm:$0xff]
        %v1152 = vld [vmem:[%s1093 + $0x1d0] sm:$0xff]
        %v1153 = vld [vmem:[%s1093 + $0x1d8] sm:$0xff]
        %v1154 = vld [vmem:[%s1093 + $0x1e0] sm:$0xff]
        %v1155 = vld [vmem:[%s1093 + $0x1e8] sm:$0xff]
        %v1156 = vld [vmem:[%s1093 + $0x1f0] sm:$0xff]
        %v1157 = vld [vmem:[%s1093 + $0x1f8] sm:$0xff]
        %v1158 = vld [vmem:[%s1093 + $0x200] sm:$0xff]
        %v1159 = vld [vmem:[%s1093 + $0x208] sm:$0xff]
        %v1160 = vld [vmem:[%s1093 + $0x210] sm:$0xff]
        %v1161 = vld [vmem:[%s1093 + $0x218] sm:$0xff]
        %v1162 = vld [vmem:[%s1093 + $0x220] sm:$0xff]
        %v1163 = vld [vmem:[%s1093 + $0x228] sm:$0xff]
        %v1164 = vld [vmem:[%s1093 + $0x230] sm:$0xff]
        %v1165 = vld [vmem:[%s1093 + $0x238] sm:$0xff]
        %v1166 = vld [vmem:[%s1093 + $0x240] sm:$0xff]
        %v1167 = vld [vmem:[%s1093 + $0x248] sm:$0xff]
        %v1168 = vld [vmem:[%s1093 + $0x250] sm:$0xff]
        %v1169 = vld [vmem:[%s1093 + $0x258] sm:$0xff]
        %v1170 = vld [vmem:[%s1093 + $0x260] sm:$0xff]
        %v1171 = vld [vmem:[%s1093 + $0x268] sm:$0xff]
        %v1172 = vld [vmem:[%s1093 + $0x270] sm:$0xff]
        %v1173 = vld [vmem:[%s1093 + $0x278] sm:$0xff]
        %v1174 = vld [vmem:[%s1093 + $0x280] sm:$0xff]
        %v1175 = vld [vmem:[%s1093 + $0x288] sm:$0xff]
        %v1176 = vld [vmem:[%s1093 + $0x290] sm:$0xff]
        %v1177 = vld [vmem:[%s1093 + $0x298] sm:$0xff]
        %v1178 = vld [vmem:[%s1093 + $0x2a0] sm:$0xff]
        %v1179 = vld [vmem:[%s1093 + $0x2a8] sm:$0xff]
        %v1180 = vld [vmem:[%s1093 + $0x2b0] sm:$0xff]
        %v1181 = vld [vmem:[%s1093 + $0x2b8] sm:$0xff]
        %v1182 = vld [vmem:[%s1093 + $0x2c0] sm:$0xff]
        %v1183 = vld [vmem:[%s1093 + $0x2c8] sm:$0xff]
        %v1184 = vld [vmem:[%s1093 + $0x2d0] sm:$0xff]
        %v1185 = vld [vmem:[%s1093 + $0x2d8] sm:$0xff]
        %v1186 = vld [vmem:[%s1093 + $0x2e0] sm:$0xff]
        %v1187 = vld [vmem:[%s1093 + $0x2e8] sm:$0xff]
        %v1188 = vld [vmem:[%s1093 + $0x2f0] sm:$0xff]
        %v1189 = vld [vmem:[%s1093 + $0x2f8] sm:$0xff]
        %v1190 = vld [vmem:[%s1093 + $0x300] sm:$0xff]
        %v1191 = vld [vmem:[%s1093 + $0x308] sm:$0xff]
        %v1192 = vld [vmem:[%s1093 + $0x310] sm:$0xff]
        %v1193 = vld [vmem:[%s1093 + $0x318] sm:$0xff]
        %v1194 = vld [vmem:[%s1093 + $0x320] sm:$0xff]
        %v1195 = vld [vmem:[%s1093 + $0x328] sm:$0xff]
        %v1196 = vld [vmem:[%s1093 + $0x330] sm:$0xff]
        %v1197 = vld [vmem:[%s1093 + $0x338] sm:$0xff]
        %v1198 = vld [vmem:[%s1093 + $0x340] sm:$0xff]
        %v1199 = vld [vmem:[%s1093 + $0x348] sm:$0xff]
        %v1200 = vld [vmem:[%s1093 + $0x350] sm:$0xff]
        %v1201 = vld [vmem:[%s1093 + $0x358] sm:$0xff]
        %v1202 = vld [vmem:[%s1093 + $0x360] sm:$0xff]
        %v1203 = vld [vmem:[%s1093 + $0x368] sm:$0xff]
        %v1204 = vld [vmem:[%s1093 + $0x370] sm:$0xff]
        %v1205 = vld [vmem:[%s1093 + $0x378] sm:$0xff]
        %v1206 = vld [vmem:[%s1093 + $0x380] sm:$0xff]
        %v1207 = vld [vmem:[%s1093 + $0x388] sm:$0xff]
        %v1208 = vld [vmem:[%s1093 + $0x390] sm:$0xff]
        %v1209 = vld [vmem:[%s1093 + $0x398] sm:$0xff]
        %v1210 = vld [vmem:[%s1093 + $0x3a0] sm:$0xff]
        %v1211 = vld [vmem:[%s1093 + $0x3a8] sm:$0xff]
        %v1212 = vld [vmem:[%s1093 + $0x3b0] sm:$0xff]
        %v1213 = vld [vmem:[%s1093 + $0x3b8] sm:$0xff]
        %v1214 = vld [vmem:[%s1093 + $0x3c0] sm:$0xff]
        %v1215 = vld [vmem:[%s1093 + $0x3c8] sm:$0xff]
        %v1216 = vld [vmem:[%s1093 + $0x3d0] sm:$0xff]
        %v1217 = vld [vmem:[%s1093 + $0x3d8] sm:$0xff]
        %v1218 = vld [vmem:[%s1093 + $0x3e0] sm:$0xff]
        %v1219 = vld [vmem:[%s1093 + $0x3e8] sm:$0xff]
        %v1220 = vld [vmem:[%s1093 + $0x3f0] sm:$0xff]
        %v1221 = vld [vmem:[%s1093 + $0x3f8] sm:$0xff]
        %v1224 = vunpack.c.l.b16 %v1091
        %v1225 = vunpack.c.h.b16 %v1091
        %v1226 = vunpack.c.l.b16 %v1092
        %v1227 = vunpack.c.h.b16 %v1092
        %v1228 = vpack.c.b16 %v1224, %v1224
        %v1229 = vpack.c.b16 %v1225, %v1225
        %v1230 = vpack.c.b16 %v1226, %v1226
        %v1231 = vpack.c.b16 %v1227, %v1227
        %v1233 = vshrl.u32 %v1228, 16
        %v1235 = vshll.u32 %v1228, 16
        %v1237 = vrot.slane %v1235, 1
        %v1238 = vor.u32 %v1233, %v1237
        %v1240 = vshrl.u32 %v1229, 16
        %v1242 = vshll.u32 %v1229, 16
        %v1244 = vrot.slane %v1242, 1
        %v1245 = vor.u32 %v1240, %v1244
        %v1247 = vshrl.u32 %v1230, 16
        %v1249 = vshll.u32 %v1230, 16
        %v1251 = vrot.slane %v1249, 1
        %v1252 = vor.u32 %v1247, %v1251
        %v1254 = vshrl.u32 %v1231, 16
        %v1256 = vshll.u32 %v1231, 16
        %v1258 = vrot.slane %v1256, 1
        %v1259 = vor.u32 %v1254, %v1258
        %v1392 = vunpack.c.l.b16 %v1094
        %v1393 = vunpack.c.h.b16 %v1094
        %v1394 = vunpack.c.l.b16 %v1095
        %v1395 = vunpack.c.h.b16 %v1095
        %v1396 = vunpack.c.l.b16 %v1096
        %v1397 = vunpack.c.h.b16 %v1096
        %v1398 = vunpack.c.l.b16 %v1097
        %v1399 = vunpack.c.h.b16 %v1097
        %v1400 = vunpack.c.l.b16 %v1098
        %v1401 = vunpack.c.h.b16 %v1098
        %v1402 = vunpack.c.l.b16 %v1099
        %v1403 = vunpack.c.h.b16 %v1099
        %v1404 = vunpack.c.l.b16 %v1100
        %v1405 = vunpack.c.h.b16 %v1100
        %v1406 = vunpack.c.l.b16 %v1101
        %v1407 = vunpack.c.h.b16 %v1101
        %v1408 = vunpack.c.l.b16 %v1102
        %v1409 = vunpack.c.h.b16 %v1102
        %v1410 = vunpack.c.l.b16 %v1103
        %v1411 = vunpack.c.h.b16 %v1103
        %v1412 = vunpack.c.l.b16 %v1104
        %v1413 = vunpack.c.h.b16 %v1104
        %v1414 = vunpack.c.l.b16 %v1105
        %v1415 = vunpack.c.h.b16 %v1105
        %v1416 = vunpack.c.l.b16 %v1106
        %v1417 = vunpack.c.h.b16 %v1106
        %v1418 = vunpack.c.l.b16 %v1107
        %v1419 = vunpack.c.h.b16 %v1107
        %v1420 = vunpack.c.l.b16 %v1108
        %v1421 = vunpack.c.h.b16 %v1108
        %v1422 = vunpack.c.l.b16 %v1109
        %v1423 = vunpack.c.h.b16 %v1109
        %v1424 = vunpack.c.l.b16 %v1110
        %v1425 = vunpack.c.h.b16 %v1110
        %v1426 = vunpack.c.l.b16 %v1111
        %v1427 = vunpack.c.h.b16 %v1111
        %v1428 = vunpack.c.l.b16 %v1112
        %v1429 = vunpack.c.h.b16 %v1112
        %v1430 = vunpack.c.l.b16 %v1113
        %v1431 = vunpack.c.h.b16 %v1113
        %v1432 = vunpack.c.l.b16 %v1114
        %v1433 = vunpack.c.h.b16 %v1114
        %v1434 = vunpack.c.l.b16 %v1115
        %v1435 = vunpack.c.h.b16 %v1115
        %v1436 = vunpack.c.l.b16 %v1116
        %v1437 = vunpack.c.h.b16 %v1116
        %v1438 = vunpack.c.l.b16 %v1117
        %v1439 = vunpack.c.h.b16 %v1117
        %v1440 = vunpack.c.l.b16 %v1118
        %v1441 = vunpack.c.h.b16 %v1118
        %v1442 = vunpack.c.l.b16 %v1119
        %v1443 = vunpack.c.h.b16 %v1119
        %v1444 = vunpack.c.l.b16 %v1120
        %v1445 = vunpack.c.h.b16 %v1120
        %v1446 = vunpack.c.l.b16 %v1121
        %v1447 = vunpack.c.h.b16 %v1121
        %v1448 = vunpack.c.l.b16 %v1122
        %v1449 = vunpack.c.h.b16 %v1122
        %v1450 = vunpack.c.l.b16 %v1123
        %v1451 = vunpack.c.h.b16 %v1123
        %v1452 = vunpack.c.l.b16 %v1124
        %v1453 = vunpack.c.h.b16 %v1124
        %v1454 = vunpack.c.l.b16 %v1125
        %v1455 = vunpack.c.h.b16 %v1125
        %v1456 = vunpack.c.l.b16 %v1126
        %v1457 = vunpack.c.h.b16 %v1126
        %v1458 = vunpack.c.l.b16 %v1127
        %v1459 = vunpack.c.h.b16 %v1127
        %v1460 = vunpack.c.l.b16 %v1128
        %v1461 = vunpack.c.h.b16 %v1128
        %v1462 = vunpack.c.l.b16 %v1129
        %v1463 = vunpack.c.h.b16 %v1129
        %v1464 = vunpack.c.l.b16 %v1130
        %v1465 = vunpack.c.h.b16 %v1130
        %v1466 = vunpack.c.l.b16 %v1131
        %v1467 = vunpack.c.h.b16 %v1131
        %v1468 = vunpack.c.l.b16 %v1132
        %v1469 = vunpack.c.h.b16 %v1132
        %v1470 = vunpack.c.l.b16 %v1133
        %v1471 = vunpack.c.h.b16 %v1133
        %v1472 = vunpack.c.l.b16 %v1134
        %v1473 = vunpack.c.h.b16 %v1134
        %v1474 = vunpack.c.l.b16 %v1135
        %v1475 = vunpack.c.h.b16 %v1135
        %v1476 = vunpack.c.l.b16 %v1136
        %v1477 = vunpack.c.h.b16 %v1136
        %v1478 = vunpack.c.l.b16 %v1137
        %v1479 = vunpack.c.h.b16 %v1137
        %v1480 = vunpack.c.l.b16 %v1138
        %v1481 = vunpack.c.h.b16 %v1138
        %v1482 = vunpack.c.l.b16 %v1139
        %v1483 = vunpack.c.h.b16 %v1139
        %v1484 = vunpack.c.l.b16 %v1140
        %v1485 = vunpack.c.h.b16 %v1140
        %v1486 = vunpack.c.l.b16 %v1141
        %v1487 = vunpack.c.h.b16 %v1141
        %v1488 = vunpack.c.l.b16 %v1142
        %v1489 = vunpack.c.h.b16 %v1142
        %v1490 = vunpack.c.l.b16 %v1143
        %v1491 = vunpack.c.h.b16 %v1143
        %v1492 = vunpack.c.l.b16 %v1144
        %v1493 = vunpack.c.h.b16 %v1144
        %v1494 = vunpack.c.l.b16 %v1145
        %v1495 = vunpack.c.h.b16 %v1145
        %v1496 = vunpack.c.l.b16 %v1146
        %v1497 = vunpack.c.h.b16 %v1146
        %v1498 = vunpack.c.l.b16 %v1147
        %v1499 = vunpack.c.h.b16 %v1147
        %v1500 = vunpack.c.l.b16 %v1148
        %v1501 = vunpack.c.h.b16 %v1148
        %v1502 = vunpack.c.l.b16 %v1149
        %v1503 = vunpack.c.h.b16 %v1149
        %v1504 = vunpack.c.l.b16 %v1150
        %v1505 = vunpack.c.h.b16 %v1150
        %v1506 = vunpack.c.l.b16 %v1151
        %v1507 = vunpack.c.h.b16 %v1151
        %v1508 = vunpack.c.l.b16 %v1152
        %v1509 = vunpack.c.h.b16 %v1152
        %v1510 = vunpack.c.l.b16 %v1153
        %v1511 = vunpack.c.h.b16 %v1153
        %v1512 = vunpack.c.l.b16 %v1154
        %v1513 = vunpack.c.h.b16 %v1154
        %v1514 = vunpack.c.l.b16 %v1155
        %v1515 = vunpack.c.h.b16 %v1155
        %v1516 = vunpack.c.l.b16 %v1156
        %v1517 = vunpack.c.h.b16 %v1156
        %v1518 = vunpack.c.l.b16 %v1157
        %v1519 = vunpack.c.h.b16 %v1157
        %v1520 = vunpack.c.l.b16 %v1158
        %v1521 = vunpack.c.h.b16 %v1158
        %v1522 = vunpack.c.l.b16 %v1159
        %v1523 = vunpack.c.h.b16 %v1159
        %v1524 = vunpack.c.l.b16 %v1160
        %v1525 = vunpack.c.h.b16 %v1160
        %v1526 = vunpack.c.l.b16 %v1161
        %v1527 = vunpack.c.h.b16 %v1161
        %v1528 = vunpack.c.l.b16 %v1162
        %v1529 = vunpack.c.h.b16 %v1162
        %v1530 = vunpack.c.l.b16 %v1163
        %v1531 = vunpack.c.h.b16 %v1163
        %v1532 = vunpack.c.l.b16 %v1164
        %v1533 = vunpack.c.h.b16 %v1164
        %v1534 = vunpack.c.l.b16 %v1165
        %v1535 = vunpack.c.h.b16 %v1165
        %v1536 = vunpack.c.l.b16 %v1166
        %v1537 = vunpack.c.h.b16 %v1166
        %v1538 = vunpack.c.l.b16 %v1167
        %v1539 = vunpack.c.h.b16 %v1167
        %v1540 = vunpack.c.l.b16 %v1168
        %v1541 = vunpack.c.h.b16 %v1168
        %v1542 = vunpack.c.l.b16 %v1169
        %v1543 = vunpack.c.h.b16 %v1169
        %v1544 = vunpack.c.l.b16 %v1170
        %v1545 = vunpack.c.h.b16 %v1170
        %v1546 = vunpack.c.l.b16 %v1171
        %v1547 = vunpack.c.h.b16 %v1171
        %v1548 = vunpack.c.l.b16 %v1172
        %v1549 = vunpack.c.h.b16 %v1172
        %v1550 = vunpack.c.l.b16 %v1173
        %v1551 = vunpack.c.h.b16 %v1173
        %v1552 = vunpack.c.l.b16 %v1174
        %v1553 = vunpack.c.h.b16 %v1174
        %v1554 = vunpack.c.l.b16 %v1175
        %v1555 = vunpack.c.h.b16 %v1175
        %v1556 = vunpack.c.l.b16 %v1176
        %v1557 = vunpack.c.h.b16 %v1176
        %v1558 = vunpack.c.l.b16 %v1177
        %v1559 = vunpack.c.h.b16 %v1177
        %v1560 = vunpack.c.l.b16 %v1178
        %v1561 = vunpack.c.h.b16 %v1178
        %v1562 = vunpack.c.l.b16 %v1179
        %v1563 = vunpack.c.h.b16 %v1179
        %v1564 = vunpack.c.l.b16 %v1180
        %v1565 = vunpack.c.h.b16 %v1180
        %v1566 = vunpack.c.l.b16 %v1181
        %v1567 = vunpack.c.h.b16 %v1181
        %v1568 = vunpack.c.l.b16 %v1182
        %v1569 = vunpack.c.h.b16 %v1182
        %v1570 = vunpack.c.l.b16 %v1183
        %v1571 = vunpack.c.h.b16 %v1183
        %v1572 = vunpack.c.l.b16 %v1184
        %v1573 = vunpack.c.h.b16 %v1184
        %v1574 = vunpack.c.l.b16 %v1185
        %v1575 = vunpack.c.h.b16 %v1185
        %v1576 = vunpack.c.l.b16 %v1186
        %v1577 = vunpack.c.h.b16 %v1186
        %v1578 = vunpack.c.l.b16 %v1187
        %v1579 = vunpack.c.h.b16 %v1187
        %v1580 = vunpack.c.l.b16 %v1188
        %v1581 = vunpack.c.h.b16 %v1188
        %v1582 = vunpack.c.l.b16 %v1189
        %v1583 = vunpack.c.h.b16 %v1189
        %v1584 = vunpack.c.l.b16 %v1190
        %v1585 = vunpack.c.h.b16 %v1190
        %v1586 = vunpack.c.l.b16 %v1191
        %v1587 = vunpack.c.h.b16 %v1191
        %v1588 = vunpack.c.l.b16 %v1192
        %v1589 = vunpack.c.h.b16 %v1192
        %v1590 = vunpack.c.l.b16 %v1193
        %v1591 = vunpack.c.h.b16 %v1193
        %v1592 = vunpack.c.l.b16 %v1194
        %v1593 = vunpack.c.h.b16 %v1194
        %v1594 = vunpack.c.l.b16 %v1195
        %v1595 = vunpack.c.h.b16 %v1195
        %v1596 = vunpack.c.l.b16 %v1196
        %v1597 = vunpack.c.h.b16 %v1196
        %v1598 = vunpack.c.l.b16 %v1197
        %v1599 = vunpack.c.h.b16 %v1197
        %v1600 = vunpack.c.l.b16 %v1198
        %v1601 = vunpack.c.h.b16 %v1198
        %v1602 = vunpack.c.l.b16 %v1199
        %v1603 = vunpack.c.h.b16 %v1199
        %v1604 = vunpack.c.l.b16 %v1200
        %v1605 = vunpack.c.h.b16 %v1200
        %v1606 = vunpack.c.l.b16 %v1201
        %v1607 = vunpack.c.h.b16 %v1201
        %v1608 = vunpack.c.l.b16 %v1202
        %v1609 = vunpack.c.h.b16 %v1202
        %v1610 = vunpack.c.l.b16 %v1203
        %v1611 = vunpack.c.h.b16 %v1203
        %v1612 = vunpack.c.l.b16 %v1204
        %v1613 = vunpack.c.h.b16 %v1204
        %v1614 = vunpack.c.l.b16 %v1205
        %v1615 = vunpack.c.h.b16 %v1205
        %v1616 = vunpack.c.l.b16 %v1206
        %v1617 = vunpack.c.h.b16 %v1206
        %v1618 = vunpack.c.l.b16 %v1207
        %v1619 = vunpack.c.h.b16 %v1207
        %v1620 = vunpack.c.l.b16 %v1208
        %v1621 = vunpack.c.h.b16 %v1208
        %v1622 = vunpack.c.l.b16 %v1209
        %v1623 = vunpack.c.h.b16 %v1209
        %v1624 = vunpack.c.l.b16 %v1210
        %v1625 = vunpack.c.h.b16 %v1210
        %v1626 = vunpack.c.l.b16 %v1211
        %v1627 = vunpack.c.h.b16 %v1211
        %v1628 = vunpack.c.l.b16 %v1212
        %v1629 = vunpack.c.h.b16 %v1212
        %v1630 = vunpack.c.l.b16 %v1213
        %v1631 = vunpack.c.h.b16 %v1213
        %v1632 = vunpack.c.l.b16 %v1214
        %v1633 = vunpack.c.h.b16 %v1214
        %v1634 = vunpack.c.l.b16 %v1215
        %v1635 = vunpack.c.h.b16 %v1215
        %v1636 = vunpack.c.l.b16 %v1216
        %v1637 = vunpack.c.h.b16 %v1216
        %v1638 = vunpack.c.l.b16 %v1217
        %v1639 = vunpack.c.h.b16 %v1217
        %v1640 = vunpack.c.l.b16 %v1218
        %v1641 = vunpack.c.h.b16 %v1218
        %v1642 = vunpack.c.l.b16 %v1219
        %v1643 = vunpack.c.h.b16 %v1219
        %v1644 = vunpack.c.l.b16 %v1220
        %v1645 = vunpack.c.h.b16 %v1220
        %v1646 = vunpack.c.l.b16 %v1221
        %v1647 = vunpack.c.h.b16 %v1221
        %v1648 = vpack.c.b16 %v1396, %v1392
        %v1649 = vpack.c.b16 %v1397, %v1393
        %v1650 = vpack.c.b16 %v1398, %v1394
        %v1651 = vpack.c.b16 %v1399, %v1395
        %v1652 = vpack.c.b16 %v1404, %v1400
        %v1653 = vpack.c.b16 %v1405, %v1401
        %v1654 = vpack.c.b16 %v1406, %v1402
        %v1655 = vpack.c.b16 %v1407, %v1403
        %v1656 = vpack.c.b16 %v1412, %v1408
        %v1657 = vpack.c.b16 %v1413, %v1409
        %v1658 = vpack.c.b16 %v1414, %v1410
        %v1659 = vpack.c.b16 %v1415, %v1411
        %v1660 = vpack.c.b16 %v1420, %v1416
        %v1661 = vpack.c.b16 %v1421, %v1417
        %v1662 = vpack.c.b16 %v1422, %v1418
        %v1663 = vpack.c.b16 %v1423, %v1419
        %v1664 = vpack.c.b16 %v1428, %v1424
        %v1665 = vpack.c.b16 %v1429, %v1425
        %v1666 = vpack.c.b16 %v1430, %v1426
        %v1667 = vpack.c.b16 %v1431, %v1427
        %v1668 = vpack.c.b16 %v1436, %v1432
        %v1669 = vpack.c.b16 %v1437, %v1433
        %v1670 = vpack.c.b16 %v1438, %v1434
        %v1671 = vpack.c.b16 %v1439, %v1435
        %v1672 = vpack.c.b16 %v1444, %v1440
        %v1673 = vpack.c.b16 %v1445, %v1441
        %v1674 = vpack.c.b16 %v1446, %v1442
        %v1675 = vpack.c.b16 %v1447, %v1443
        %v1676 = vpack.c.b16 %v1452, %v1448
        %v1677 = vpack.c.b16 %v1453, %v1449
        %v1678 = vpack.c.b16 %v1454, %v1450
        %v1679 = vpack.c.b16 %v1455, %v1451
        %v1680 = vpack.c.b16 %v1460, %v1456
        %v1681 = vpack.c.b16 %v1461, %v1457
        %v1682 = vpack.c.b16 %v1462, %v1458
        %v1683 = vpack.c.b16 %v1463, %v1459
        %v1684 = vpack.c.b16 %v1468, %v1464
        %v1685 = vpack.c.b16 %v1469, %v1465
        %v1686 = vpack.c.b16 %v1470, %v1466
        %v1687 = vpack.c.b16 %v1471, %v1467
        %v1688 = vpack.c.b16 %v1476, %v1472
        %v1689 = vpack.c.b16 %v1477, %v1473
        %v1690 = vpack.c.b16 %v1478, %v1474
        %v1691 = vpack.c.b16 %v1479, %v1475
        %v1692 = vpack.c.b16 %v1484, %v1480
        %v1693 = vpack.c.b16 %v1485, %v1481
        %v1694 = vpack.c.b16 %v1486, %v1482
        %v1695 = vpack.c.b16 %v1487, %v1483
        %v1696 = vpack.c.b16 %v1492, %v1488
        %v1697 = vpack.c.b16 %v1493, %v1489
        %v1698 = vpack.c.b16 %v1494, %v1490
        %v1699 = vpack.c.b16 %v1495, %v1491
        %v1700 = vpack.c.b16 %v1500, %v1496
        %v1701 = vpack.c.b16 %v1501, %v1497
        %v1702 = vpack.c.b16 %v1502, %v1498
        %v1703 = vpack.c.b16 %v1503, %v1499
        %v1704 = vpack.c.b16 %v1508, %v1504
        %v1705 = vpack.c.b16 %v1509, %v1505
        %v1706 = vpack.c.b16 %v1510, %v1506
        %v1707 = vpack.c.b16 %v1511, %v1507
        %v1708 = vpack.c.b16 %v1516, %v1512
        %v1709 = vpack.c.b16 %v1517, %v1513
        %v1710 = vpack.c.b16 %v1518, %v1514
        %v1711 = vpack.c.b16 %v1519, %v1515
        %v1712 = vpack.c.b16 %v1524, %v1520
        %v1713 = vpack.c.b16 %v1525, %v1521
        %v1714 = vpack.c.b16 %v1526, %v1522
        %v1715 = vpack.c.b16 %v1527, %v1523
        %v1716 = vpack.c.b16 %v1532, %v1528
        %v1717 = vpack.c.b16 %v1533, %v1529
        %v1718 = vpack.c.b16 %v1534, %v1530
        %v1719 = vpack.c.b16 %v1535, %v1531
        %v1720 = vpack.c.b16 %v1540, %v1536
        %v1721 = vpack.c.b16 %v1541, %v1537
        %v1722 = vpack.c.b16 %v1542, %v1538
        %v1723 = vpack.c.b16 %v1543, %v1539
        %v1724 = vpack.c.b16 %v1548, %v1544
        %v1725 = vpack.c.b16 %v1549, %v1545
        %v1726 = vpack.c.b16 %v1550, %v1546
        %v1727 = vpack.c.b16 %v1551, %v1547
        %v1728 = vpack.c.b16 %v1556, %v1552
        %v1729 = vpack.c.b16 %v1557, %v1553
        %v1730 = vpack.c.b16 %v1558, %v1554
        %v1731 = vpack.c.b16 %v1559, %v1555
        %v1732 = vpack.c.b16 %v1564, %v1560
        %v1733 = vpack.c.b16 %v1565, %v1561
        %v1734 = vpack.c.b16 %v1566, %v1562
        %v1735 = vpack.c.b16 %v1567, %v1563
        %v1736 = vpack.c.b16 %v1572, %v1568
        %v1737 = vpack.c.b16 %v1573, %v1569
        %v1738 = vpack.c.b16 %v1574, %v1570
        %v1739 = vpack.c.b16 %v1575, %v1571
        %v1740 = vpack.c.b16 %v1580, %v1576
        %v1741 = vpack.c.b16 %v1581, %v1577
        %v1742 = vpack.c.b16 %v1582, %v1578
        %v1743 = vpack.c.b16 %v1583, %v1579
        %v1744 = vpack.c.b16 %v1588, %v1584
        %v1745 = vpack.c.b16 %v1589, %v1585
        %v1746 = vpack.c.b16 %v1590, %v1586
        %v1747 = vpack.c.b16 %v1591, %v1587
        %v1748 = vpack.c.b16 %v1596, %v1592
        %v1749 = vpack.c.b16 %v1597, %v1593
        %v1750 = vpack.c.b16 %v1598, %v1594
        %v1751 = vpack.c.b16 %v1599, %v1595
        %v1752 = vpack.c.b16 %v1604, %v1600
        %v1753 = vpack.c.b16 %v1605, %v1601
        %v1754 = vpack.c.b16 %v1606, %v1602
        %v1755 = vpack.c.b16 %v1607, %v1603
        %v1756 = vpack.c.b16 %v1612, %v1608
        %v1757 = vpack.c.b16 %v1613, %v1609
        %v1758 = vpack.c.b16 %v1614, %v1610
        %v1759 = vpack.c.b16 %v1615, %v1611
        %v1760 = vpack.c.b16 %v1620, %v1616
        %v1761 = vpack.c.b16 %v1621, %v1617
        %v1762 = vpack.c.b16 %v1622, %v1618
        %v1763 = vpack.c.b16 %v1623, %v1619
        %v1764 = vpack.c.b16 %v1628, %v1624
        %v1765 = vpack.c.b16 %v1629, %v1625
        %v1766 = vpack.c.b16 %v1630, %v1626
        %v1767 = vpack.c.b16 %v1631, %v1627
        %v1768 = vpack.c.b16 %v1636, %v1632
        %v1769 = vpack.c.b16 %v1637, %v1633
        %v1770 = vpack.c.b16 %v1638, %v1634
        %v1771 = vpack.c.b16 %v1639, %v1635
        %v1772 = vpack.c.b16 %v1644, %v1640
        %v1773 = vpack.c.b16 %v1645, %v1641
        %v1774 = vpack.c.b16 %v1646, %v1642
        %v1775 = vpack.c.b16 %v1647, %v1643
        %1904 = vmatpush.bf16.msra.mxu0 %v1676
        %1905 = vmatpush.bf16.msra.mxu0 %v1672
        %1906 = vmatpush.bf16.msra.mxu0 %v1668
        %1907 = vmatpush.bf16.msra.mxu0 %v1664
        %1908 = vmatpush.bf16.msra.mxu0 %v1660
        %1909 = vmatpush.bf16.msra.mxu0 %v1656
        %1910 = vmatpush.bf16.msra.mxu0 %v1652
        %1911 = vmatpush.bf16.msra.mxu0 %v1648
        %1912 = vmatmul.bf16.gmra.mxu0 %v1238
        %v1913 = vpop.f32.mrf.mxu0
        %v1914 = vadd.f32 0.0, %v1913
        %v1915 = vpop.f32.mrf.mxu0
        %1916 = vdwg.mxu0
        %1917 = vmatpush.bf16.msra.mxu0 %v1708
        %1918 = vmatpush.bf16.msra.mxu0 %v1704
        %1919 = vmatpush.bf16.msra.mxu0 %v1700
        %1920 = vmatpush.bf16.msra.mxu0 %v1696
        %1921 = vmatpush.bf16.msra.mxu0 %v1692
        %1922 = vmatpush.bf16.msra.mxu0 %v1688
        %1923 = vmatpush.bf16.msra.mxu0 %v1684
        %1924 = vmatpush.bf16.msra.mxu0 %v1680
        %1925 = vmatmul.bf16.gmra.mxu0 %v1245
        %v1926 = vpop.f32.mrf.mxu0
        %v1927 = vadd.f32 %v1914, %v1926
        %v1928 = vpop.f32.mrf.mxu0
        %1929 = vdwg.mxu0
        %1930 = vmatpush.bf16.msra.mxu0 %v1740
        %1931 = vmatpush.bf16.msra.mxu0 %v1736
        %1932 = vmatpush.bf16.msra.mxu0 %v1732
        %1933 = vmatpush.bf16.msra.mxu0 %v1728
        %1934 = vmatpush.bf16.msra.mxu0 %v1724
        %1935 = vmatpush.bf16.msra.mxu0 %v1720
        %1936 = vmatpush.bf16.msra.mxu0 %v1716
        %1937 = vmatpush.bf16.msra.mxu0 %v1712
        %1938 = vmatmul.bf16.gmra.mxu0 %v1252
        %v1939 = vpop.f32.mrf.mxu0
        %v1940 = vadd.f32 %v1927, %v1939
        %v1941 = vpop.f32.mrf.mxu0
        %1942 = vdwg.mxu0
        %1943 = vmatpush.bf16.msra.mxu0 %v1772
        %1944 = vmatpush.bf16.msra.mxu0 %v1768
        %1945 = vmatpush.bf16.msra.mxu0 %v1764
        %1946 = vmatpush.bf16.msra.mxu0 %v1760
        %1947 = vmatpush.bf16.msra.mxu0 %v1756
        %1948 = vmatpush.bf16.msra.mxu0 %v1752
        %1949 = vmatpush.bf16.msra.mxu0 %v1748
        %1950 = vmatpush.bf16.msra.mxu0 %v1744
        %1951 = vmatmul.bf16.gmra.mxu0 %v1259
        %v1952 = vpop.f32.mrf.mxu0
        %v1953 = vadd.f32 %v1940, %v1952
        %v1954 = vpop.f32.mrf.mxu0
        %1955 = vdwg.mxu0
        %1956 = vmatpush.bf16.msra.mxu0 %v1677
        %1957 = vmatpush.bf16.msra.mxu0 %v1673
        %1958 = vmatpush.bf16.msra.mxu0 %v1669
        %1959 = vmatpush.bf16.msra.mxu0 %v1665
        %1960 = vmatpush.bf16.msra.mxu0 %v1661
        %1961 = vmatpush.bf16.msra.mxu0 %v1657
        %1962 = vmatpush.bf16.msra.mxu0 %v1653
        %1963 = vmatpush.bf16.msra.mxu0 %v1649
        %1964 = vmatmul.bf16.gmra.mxu0 %v1238
        %v1965 = vpop.f32.mrf.mxu0
        %v1966 = vadd.f32 0.0, %v1965
        %v1967 = vpop.f32.mrf.mxu0
        %1968 = vdwg.mxu0
        %1969 = vmatpush.bf16.msra.mxu0 %v1709
        %1970 = vmatpush.bf16.msra.mxu0 %v1705
        %1971 = vmatpush.bf16.msra.mxu0 %v1701
        %1972 = vmatpush.bf16.msra.mxu0 %v1697
        %1973 = vmatpush.bf16.msra.mxu0 %v1693
        %1974 = vmatpush.bf16.msra.mxu0 %v1689
        %1975 = vmatpush.bf16.msra.mxu0 %v1685
        %1976 = vmatpush.bf16.msra.mxu0 %v1681
        %1977 = vmatmul.bf16.gmra.mxu0 %v1245
        %v1978 = vpop.f32.mrf.mxu0
        %v1979 = vadd.f32 %v1966, %v1978
        %v1980 = vpop.f32.mrf.mxu0
        %1981 = vdwg.mxu0
        %1982 = vmatpush.bf16.msra.mxu0 %v1741
        %1983 = vmatpush.bf16.msra.mxu0 %v1737
        %1984 = vmatpush.bf16.msra.mxu0 %v1733
        %1985 = vmatpush.bf16.msra.mxu0 %v1729
        %1986 = vmatpush.bf16.msra.mxu0 %v1725
        %1987 = vmatpush.bf16.msra.mxu0 %v1721
        %1988 = vmatpush.bf16.msra.mxu0 %v1717
        %1989 = vmatpush.bf16.msra.mxu0 %v1713
        %1990 = vmatmul.bf16.gmra.mxu0 %v1252
        %v1991 = vpop.f32.mrf.mxu0
        %v1992 = vadd.f32 %v1979, %v1991
        %v1993 = vpop.f32.mrf.mxu0
        %1994 = vdwg.mxu0
        %1995 = vmatpush.bf16.msra.mxu0 %v1773
        %1996 = vmatpush.bf16.msra.mxu0 %v1769
        %1997 = vmatpush.bf16.msra.mxu0 %v1765
        %1998 = vmatpush.bf16.msra.mxu0 %v1761
        %1999 = vmatpush.bf16.msra.mxu0 %v1757
        %2000 = vmatpush.bf16.msra.mxu0 %v1753
        %2001 = vmatpush.bf16.msra.mxu0 %v1749
        %2002 = vmatpush.bf16.msra.mxu0 %v1745
        %2003 = vmatmul.bf16.gmra.mxu0 %v1259
        %v2004 = vpop.f32.mrf.mxu0
        %v2005 = vadd.f32 %v1992, %v2004
        %v2006 = vpop.f32.mrf.mxu0
        %2007 = vdwg.mxu0
        %2008 = vmatpush.bf16.msra.mxu0 %v1678
        %2009 = vmatpush.bf16.msra.mxu0 %v1674
        %2010 = vmatpush.bf16.msra.mxu0 %v1670
        %2011 = vmatpush.bf16.msra.mxu0 %v1666
        %2012 = vmatpush.bf16.msra.mxu0 %v1662
        %2013 = vmatpush.bf16.msra.mxu0 %v1658
        %2014 = vmatpush.bf16.msra.mxu0 %v1654
        %2015 = vmatpush.bf16.msra.mxu0 %v1650
        %2016 = vmatmul.bf16.gmra.mxu0 %v1238
        %v2017 = vpop.f32.mrf.mxu0
        %v2018 = vadd.f32 0.0, %v2017
        %v2019 = vpop.f32.mrf.mxu0
        %2020 = vdwg.mxu0
        %2021 = vmatpush.bf16.msra.mxu0 %v1710
        %2022 = vmatpush.bf16.msra.mxu0 %v1706
        %2023 = vmatpush.bf16.msra.mxu0 %v1702
        %2024 = vmatpush.bf16.msra.mxu0 %v1698
        %2025 = vmatpush.bf16.msra.mxu0 %v1694
        %2026 = vmatpush.bf16.msra.mxu0 %v1690
        %2027 = vmatpush.bf16.msra.mxu0 %v1686
        %2028 = vmatpush.bf16.msra.mxu0 %v1682
        %2029 = vmatmul.bf16.gmra.mxu0 %v1245
        %v2030 = vpop.f32.mrf.mxu0
        %v2031 = vadd.f32 %v2018, %v2030
        %v2032 = vpop.f32.mrf.mxu0
        %2033 = vdwg.mxu0
        %2034 = vmatpush.bf16.msra.mxu0 %v1742
        %2035 = vmatpush.bf16.msra.mxu0 %v1738
        %2036 = vmatpush.bf16.msra.mxu0 %v1734
        %2037 = vmatpush.bf16.msra.mxu0 %v1730
        %2038 = vmatpush.bf16.msra.mxu0 %v1726
        %2039 = vmatpush.bf16.msra.mxu0 %v1722
        %2040 = vmatpush.bf16.msra.mxu0 %v1718
        %2041 = vmatpush.bf16.msra.mxu0 %v1714
        %2042 = vmatmul.bf16.gmra.mxu0 %v1252
        %v2043 = vpop.f32.mrf.mxu0
        %v2044 = vadd.f32 %v2031, %v2043
        %v2045 = vpop.f32.mrf.mxu0
        %2046 = vdwg.mxu0
        %2047 = vmatpush.bf16.msra.mxu0 %v1774
        %2048 = vmatpush.bf16.msra.mxu0 %v1770
        %2049 = vmatpush.bf16.msra.mxu0 %v1766
        %2050 = vmatpush.bf16.msra.mxu0 %v1762
        %2051 = vmatpush.bf16.msra.mxu0 %v1758
        %2052 = vmatpush.bf16.msra.mxu0 %v1754
        %2053 = vmatpush.bf16.msra.mxu0 %v1750
        %2054 = vmatpush.bf16.msra.mxu0 %v1746
        %2055 = vmatmul.bf16.gmra.mxu0 %v1259
        %v2056 = vpop.f32.mrf.mxu0
        %v2057 = vadd.f32 %v2044, %v2056
        %v2058 = vpop.f32.mrf.mxu0
        %2059 = vdwg.mxu0
        %2060 = vmatpush.bf16.msra.mxu0 %v1679
        %2061 = vmatpush.bf16.msra.mxu0 %v1675
        %2062 = vmatpush.bf16.msra.mxu0 %v1671
        %2063 = vmatpush.bf16.msra.mxu0 %v1667
        %2064 = vmatpush.bf16.msra.mxu0 %v1663
        %2065 = vmatpush.bf16.msra.mxu0 %v1659
        %2066 = vmatpush.bf16.msra.mxu0 %v1655
        %2067 = vmatpush.bf16.msra.mxu0 %v1651
        %2068 = vmatmul.bf16.gmra.mxu0 %v1238
        %v2069 = vpop.f32.mrf.mxu0
        %v2070 = vadd.f32 0.0, %v2069
        %v2071 = vpop.f32.mrf.mxu0
        %2072 = vdwg.mxu0
        %2073 = vmatpush.bf16.msra.mxu0 %v1711
        %2074 = vmatpush.bf16.msra.mxu0 %v1707
        %2075 = vmatpush.bf16.msra.mxu0 %v1703
        %2076 = vmatpush.bf16.msra.mxu0 %v1699
        %2077 = vmatpush.bf16.msra.mxu0 %v1695
        %2078 = vmatpush.bf16.msra.mxu0 %v1691
        %2079 = vmatpush.bf16.msra.mxu0 %v1687
        %2080 = vmatpush.bf16.msra.mxu0 %v1683
        %2081 = vmatmul.bf16.gmra.mxu0 %v1245
        %v2082 = vpop.f32.mrf.mxu0
        %v2083 = vadd.f32 %v2070, %v2082
        %v2084 = vpop.f32.mrf.mxu0
        %2085 = vdwg.mxu0
        %2086 = vmatpush.bf16.msra.mxu0 %v1743
        %2087 = vmatpush.bf16.msra.mxu0 %v1739
        %2088 = vmatpush.bf16.msra.mxu0 %v1735
        %2089 = vmatpush.bf16.msra.mxu0 %v1731
        %2090 = vmatpush.bf16.msra.mxu0 %v1727
        %2091 = vmatpush.bf16.msra.mxu0 %v1723
        %2092 = vmatpush.bf16.msra.mxu0 %v1719
        %2093 = vmatpush.bf16.msra.mxu0 %v1715
        %2094 = vmatmul.bf16.gmra.mxu0 %v1252
        %v2095 = vpop.f32.mrf.mxu0
        %v2096 = vadd.f32 %v2083, %v2095
        %v2097 = vpop.f32.mrf.mxu0
        %2098 = vdwg.mxu0
        %2099 = vmatpush.bf16.msra.mxu0 %v1775
        %2100 = vmatpush.bf16.msra.mxu0 %v1771
        %2101 = vmatpush.bf16.msra.mxu0 %v1767
        %2102 = vmatpush.bf16.msra.mxu0 %v1763
        %2103 = vmatpush.bf16.msra.mxu0 %v1759
        %2104 = vmatpush.bf16.msra.mxu0 %v1755
        %2105 = vmatpush.bf16.msra.mxu0 %v1751
        %2106 = vmatpush.bf16.msra.mxu0 %v1747
        %2107 = vmatmul.bf16.gmra.mxu0 %v1259
        %v2108 = vpop.f32.mrf.mxu0
        %v2109 = vadd.f32 %v2096, %v2108
        %v2110 = vpop.f32.mrf.mxu0
        %2111 = vdwg.mxu0
        %v2114 = vunpack.c.l.b16 %v961
        %v2115 = vunpack.c.h.b16 %v961
        %v2116 = vunpack.c.l.b16 %v962
        %v2117 = vunpack.c.h.b16 %v962
        %v2118 = vpack.c.b16 %v2114, %v2114
        %v2119 = vpack.c.b16 %v2115, %v2115
        %v2120 = vpack.c.b16 %v2116, %v2116
        %v2121 = vpack.c.b16 %v2117, %v2117
        %v2254 = vunpack.c.l.b16 %v963
        %v2255 = vunpack.c.h.b16 %v963
        %v2256 = vunpack.c.l.b16 %v964
        %v2257 = vunpack.c.h.b16 %v964
        %v2258 = vunpack.c.l.b16 %v965
        %v2259 = vunpack.c.h.b16 %v965
        %v2260 = vunpack.c.l.b16 %v966
        %v2261 = vunpack.c.h.b16 %v966
        %v2262 = vunpack.c.l.b16 %v967
        %v2263 = vunpack.c.h.b16 %v967
        %v2264 = vunpack.c.l.b16 %v968
        %v2265 = vunpack.c.h.b16 %v968
        %v2266 = vunpack.c.l.b16 %v969
        %v2267 = vunpack.c.h.b16 %v969
        %v2268 = vunpack.c.l.b16 %v970
        %v2269 = vunpack.c.h.b16 %v970
        %v2270 = vunpack.c.l.b16 %v971
        %v2271 = vunpack.c.h.b16 %v971
        %v2272 = vunpack.c.l.b16 %v972
        %v2273 = vunpack.c.h.b16 %v972
        %v2274 = vunpack.c.l.b16 %v973
        %v2275 = vunpack.c.h.b16 %v973
        %v2276 = vunpack.c.l.b16 %v974
        %v2277 = vunpack.c.h.b16 %v974
        %v2278 = vunpack.c.l.b16 %v975
        %v2279 = vunpack.c.h.b16 %v975
        %v2280 = vunpack.c.l.b16 %v976
        %v2281 = vunpack.c.h.b16 %v976
        %v2282 = vunpack.c.l.b16 %v977
        %v2283 = vunpack.c.h.b16 %v977
        %v2284 = vunpack.c.l.b16 %v978
        %v2285 = vunpack.c.h.b16 %v978
        %v2286 = vunpack.c.l.b16 %v979
        %v2287 = vunpack.c.h.b16 %v979
        %v2288 = vunpack.c.l.b16 %v980
        %v2289 = vunpack.c.h.b16 %v980
        %v2290 = vunpack.c.l.b16 %v981
        %v2291 = vunpack.c.h.b16 %v981
        %v2292 = vunpack.c.l.b16 %v982
        %v2293 = vunpack.c.h.b16 %v982
        %v2294 = vunpack.c.l.b16 %v983
        %v2295 = vunpack.c.h.b16 %v983
        %v2296 = vunpack.c.l.b16 %v984
        %v2297 = vunpack.c.h.b16 %v984
        %v2298 = vunpack.c.l.b16 %v985
        %v2299 = vunpack.c.h.b16 %v985
        %v2300 = vunpack.c.l.b16 %v986
        %v2301 = vunpack.c.h.b16 %v986
        %v2302 = vunpack.c.l.b16 %v987
        %v2303 = vunpack.c.h.b16 %v987
        %v2304 = vunpack.c.l.b16 %v988
        %v2305 = vunpack.c.h.b16 %v988
        %v2306 = vunpack.c.l.b16 %v989
        %v2307 = vunpack.c.h.b16 %v989
        %v2308 = vunpack.c.l.b16 %v990
        %v2309 = vunpack.c.h.b16 %v990
        %v2310 = vunpack.c.l.b16 %v991
        %v2311 = vunpack.c.h.b16 %v991
        %v2312 = vunpack.c.l.b16 %v992
        %v2313 = vunpack.c.h.b16 %v992
        %v2314 = vunpack.c.l.b16 %v993
        %v2315 = vunpack.c.h.b16 %v993
        %v2316 = vunpack.c.l.b16 %v994
        %v2317 = vunpack.c.h.b16 %v994
        %v2318 = vunpack.c.l.b16 %v995
        %v2319 = vunpack.c.h.b16 %v995
        %v2320 = vunpack.c.l.b16 %v996
        %v2321 = vunpack.c.h.b16 %v996
        %v2322 = vunpack.c.l.b16 %v997
        %v2323 = vunpack.c.h.b16 %v997
        %v2324 = vunpack.c.l.b16 %v998
        %v2325 = vunpack.c.h.b16 %v998
        %v2326 = vunpack.c.l.b16 %v999
        %v2327 = vunpack.c.h.b16 %v999
        %v2328 = vunpack.c.l.b16 %v1000
        %v2329 = vunpack.c.h.b16 %v1000
        %v2330 = vunpack.c.l.b16 %v1001
        %v2331 = vunpack.c.h.b16 %v1001
        %v2332 = vunpack.c.l.b16 %v1002
        %v2333 = vunpack.c.h.b16 %v1002
        %v2334 = vunpack.c.l.b16 %v1003
        %v2335 = vunpack.c.h.b16 %v1003
        %v2336 = vunpack.c.l.b16 %v1004
        %v2337 = vunpack.c.h.b16 %v1004
        %v2338 = vunpack.c.l.b16 %v1005
        %v2339 = vunpack.c.h.b16 %v1005
        %v2340 = vunpack.c.l.b16 %v1006
        %v2341 = vunpack.c.h.b16 %v1006
        %v2342 = vunpack.c.l.b16 %v1007
        %v2343 = vunpack.c.h.b16 %v1007
        %v2344 = vunpack.c.l.b16 %v1008
        %v2345 = vunpack.c.h.b16 %v1008
        %v2346 = vunpack.c.l.b16 %v1009
        %v2347 = vunpack.c.h.b16 %v1009
        %v2348 = vunpack.c.l.b16 %v1010
        %v2349 = vunpack.c.h.b16 %v1010
        %v2350 = vunpack.c.l.b16 %v1011
        %v2351 = vunpack.c.h.b16 %v1011
        %v2352 = vunpack.c.l.b16 %v1012
        %v2353 = vunpack.c.h.b16 %v1012
        %v2354 = vunpack.c.l.b16 %v1013
        %v2355 = vunpack.c.h.b16 %v1013
        %v2356 = vunpack.c.l.b16 %v1014
        %v2357 = vunpack.c.h.b16 %v1014
        %v2358 = vunpack.c.l.b16 %v1015
        %v2359 = vunpack.c.h.b16 %v1015
        %v2360 = vunpack.c.l.b16 %v1016
        %v2361 = vunpack.c.h.b16 %v1016
        %v2362 = vunpack.c.l.b16 %v1017
        %v2363 = vunpack.c.h.b16 %v1017
        %v2364 = vunpack.c.l.b16 %v1018
        %v2365 = vunpack.c.h.b16 %v1018
        %v2366 = vunpack.c.l.b16 %v1019
        %v2367 = vunpack.c.h.b16 %v1019
        %v2368 = vunpack.c.l.b16 %v1020
        %v2369 = vunpack.c.h.b16 %v1020
        %v2370 = vunpack.c.l.b16 %v1021
        %v2371 = vunpack.c.h.b16 %v1021
        %v2372 = vunpack.c.l.b16 %v1022
        %v2373 = vunpack.c.h.b16 %v1022
        %v2374 = vunpack.c.l.b16 %v1023
        %v2375 = vunpack.c.h.b16 %v1023
        %v2376 = vunpack.c.l.b16 %v1024
        %v2377 = vunpack.c.h.b16 %v1024
        %v2378 = vunpack.c.l.b16 %v1025
        %v2379 = vunpack.c.h.b16 %v1025
        %v2380 = vunpack.c.l.b16 %v1026
        %v2381 = vunpack.c.h.b16 %v1026
        %v2382 = vunpack.c.l.b16 %v1027
        %v2383 = vunpack.c.h.b16 %v1027
        %v2384 = vunpack.c.l.b16 %v1028
        %v2385 = vunpack.c.h.b16 %v1028
        %v2386 = vunpack.c.l.b16 %v1029
        %v2387 = vunpack.c.h.b16 %v1029
        %v2388 = vunpack.c.l.b16 %v1030
        %v2389 = vunpack.c.h.b16 %v1030
        %v2390 = vunpack.c.l.b16 %v1031
        %v2391 = vunpack.c.h.b16 %v1031
        %v2392 = vunpack.c.l.b16 %v1032
        %v2393 = vunpack.c.h.b16 %v1032
        %v2394 = vunpack.c.l.b16 %v1033
        %v2395 = vunpack.c.h.b16 %v1033
        %v2396 = vunpack.c.l.b16 %v1034
        %v2397 = vunpack.c.h.b16 %v1034
        %v2398 = vunpack.c.l.b16 %v1035
        %v2399 = vunpack.c.h.b16 %v1035
        %v2400 = vunpack.c.l.b16 %v1036
        %v2401 = vunpack.c.h.b16 %v1036
        %v2402 = vunpack.c.l.b16 %v1037
        %v2403 = vunpack.c.h.b16 %v1037
        %v2404 = vunpack.c.l.b16 %v1038
        %v2405 = vunpack.c.h.b16 %v1038
        %v2406 = vunpack.c.l.b16 %v1039
        %v2407 = vunpack.c.h.b16 %v1039
        %v2408 = vunpack.c.l.b16 %v1040
        %v2409 = vunpack.c.h.b16 %v1040
        %v2410 = vunpack.c.l.b16 %v1041
        %v2411 = vunpack.c.h.b16 %v1041
        %v2412 = vunpack.c.l.b16 %v1042
        %v2413 = vunpack.c.h.b16 %v1042
        %v2414 = vunpack.c.l.b16 %v1043
        %v2415 = vunpack.c.h.b16 %v1043
        %v2416 = vunpack.c.l.b16 %v1044
        %v2417 = vunpack.c.h.b16 %v1044
        %v2418 = vunpack.c.l.b16 %v1045
        %v2419 = vunpack.c.h.b16 %v1045
        %v2420 = vunpack.c.l.b16 %v1046
        %v2421 = vunpack.c.h.b16 %v1046
        %v2422 = vunpack.c.l.b16 %v1047
        %v2423 = vunpack.c.h.b16 %v1047
        %v2424 = vunpack.c.l.b16 %v1048
        %v2425 = vunpack.c.h.b16 %v1048
        %v2426 = vunpack.c.l.b16 %v1049
        %v2427 = vunpack.c.h.b16 %v1049
        %v2428 = vunpack.c.l.b16 %v1050
        %v2429 = vunpack.c.h.b16 %v1050
        %v2430 = vunpack.c.l.b16 %v1051
        %v2431 = vunpack.c.h.b16 %v1051
        %v2432 = vunpack.c.l.b16 %v1052
        %v2433 = vunpack.c.h.b16 %v1052
        %v2434 = vunpack.c.l.b16 %v1053
        %v2435 = vunpack.c.h.b16 %v1053
        %v2436 = vunpack.c.l.b16 %v1054
        %v2437 = vunpack.c.h.b16 %v1054
        %v2438 = vunpack.c.l.b16 %v1055
        %v2439 = vunpack.c.h.b16 %v1055
        %v2440 = vunpack.c.l.b16 %v1056
        %v2441 = vunpack.c.h.b16 %v1056
        %v2442 = vunpack.c.l.b16 %v1057
        %v2443 = vunpack.c.h.b16 %v1057
        %v2444 = vunpack.c.l.b16 %v1058
        %v2445 = vunpack.c.h.b16 %v1058
        %v2446 = vunpack.c.l.b16 %v1059
        %v2447 = vunpack.c.h.b16 %v1059
        %v2448 = vunpack.c.l.b16 %v1060
        %v2449 = vunpack.c.h.b16 %v1060
        %v2450 = vunpack.c.l.b16 %v1061
        %v2451 = vunpack.c.h.b16 %v1061
        %v2452 = vunpack.c.l.b16 %v1062
        %v2453 = vunpack.c.h.b16 %v1062
        %v2454 = vunpack.c.l.b16 %v1063
        %v2455 = vunpack.c.h.b16 %v1063
        %v2456 = vunpack.c.l.b16 %v1064
        %v2457 = vunpack.c.h.b16 %v1064
        %v2458 = vunpack.c.l.b16 %v1065
        %v2459 = vunpack.c.h.b16 %v1065
        %v2460 = vunpack.c.l.b16 %v1066
        %v2461 = vunpack.c.h.b16 %v1066
        %v2462 = vunpack.c.l.b16 %v1067
        %v2463 = vunpack.c.h.b16 %v1067
        %v2464 = vunpack.c.l.b16 %v1068
        %v2465 = vunpack.c.h.b16 %v1068
        %v2466 = vunpack.c.l.b16 %v1069
        %v2467 = vunpack.c.h.b16 %v1069
        %v2468 = vunpack.c.l.b16 %v1070
        %v2469 = vunpack.c.h.b16 %v1070
        %v2470 = vunpack.c.l.b16 %v1071
        %v2471 = vunpack.c.h.b16 %v1071
        %v2472 = vunpack.c.l.b16 %v1072
        %v2473 = vunpack.c.h.b16 %v1072
        %v2474 = vunpack.c.l.b16 %v1073
        %v2475 = vunpack.c.h.b16 %v1073
        %v2476 = vunpack.c.l.b16 %v1074
        %v2477 = vunpack.c.h.b16 %v1074
        %v2478 = vunpack.c.l.b16 %v1075
        %v2479 = vunpack.c.h.b16 %v1075
        %v2480 = vunpack.c.l.b16 %v1076
        %v2481 = vunpack.c.h.b16 %v1076
        %v2482 = vunpack.c.l.b16 %v1077
        %v2483 = vunpack.c.h.b16 %v1077
        %v2484 = vunpack.c.l.b16 %v1078
        %v2485 = vunpack.c.h.b16 %v1078
        %v2486 = vunpack.c.l.b16 %v1079
        %v2487 = vunpack.c.h.b16 %v1079
        %v2488 = vunpack.c.l.b16 %v1080
        %v2489 = vunpack.c.h.b16 %v1080
        %v2490 = vunpack.c.l.b16 %v1081
        %v2491 = vunpack.c.h.b16 %v1081
        %v2492 = vunpack.c.l.b16 %v1082
        %v2493 = vunpack.c.h.b16 %v1082
        %v2494 = vunpack.c.l.b16 %v1083
        %v2495 = vunpack.c.h.b16 %v1083
        %v2496 = vunpack.c.l.b16 %v1084
        %v2497 = vunpack.c.h.b16 %v1084
        %v2498 = vunpack.c.l.b16 %v1085
        %v2499 = vunpack.c.h.b16 %v1085
        %v2500 = vunpack.c.l.b16 %v1086
        %v2501 = vunpack.c.h.b16 %v1086
        %v2502 = vunpack.c.l.b16 %v1087
        %v2503 = vunpack.c.h.b16 %v1087
        %v2504 = vunpack.c.l.b16 %v1088
        %v2505 = vunpack.c.h.b16 %v1088
        %v2506 = vunpack.c.l.b16 %v1089
        %v2507 = vunpack.c.h.b16 %v1089
        %v2508 = vunpack.c.l.b16 %v1090
        %v2509 = vunpack.c.h.b16 %v1090
        %v2510 = vpack.c.b16 %v2258, %v2254
        %v2511 = vpack.c.b16 %v2259, %v2255
        %v2512 = vpack.c.b16 %v2260, %v2256
        %v2513 = vpack.c.b16 %v2261, %v2257
        %v2514 = vpack.c.b16 %v2266, %v2262
        %v2515 = vpack.c.b16 %v2267, %v2263
        %v2516 = vpack.c.b16 %v2268, %v2264
        %v2517 = vpack.c.b16 %v2269, %v2265
        %v2518 = vpack.c.b16 %v2274, %v2270
        %v2519 = vpack.c.b16 %v2275, %v2271
        %v2520 = vpack.c.b16 %v2276, %v2272
        %v2521 = vpack.c.b16 %v2277, %v2273
        %v2522 = vpack.c.b16 %v2282, %v2278
        %v2523 = vpack.c.b16 %v2283, %v2279
        %v2524 = vpack.c.b16 %v2284, %v2280
        %v2525 = vpack.c.b16 %v2285, %v2281
        %v2526 = vpack.c.b16 %v2290, %v2286
        %v2527 = vpack.c.b16 %v2291, %v2287
        %v2528 = vpack.c.b16 %v2292, %v2288
        %v2529 = vpack.c.b16 %v2293, %v2289
        %v2530 = vpack.c.b16 %v2298, %v2294
        %v2531 = vpack.c.b16 %v2299, %v2295
        %v2532 = vpack.c.b16 %v2300, %v2296
        %v2533 = vpack.c.b16 %v2301, %v2297
        %v2534 = vpack.c.b16 %v2306, %v2302
        %v2535 = vpack.c.b16 %v2307, %v2303
        %v2536 = vpack.c.b16 %v2308, %v2304
        %v2537 = vpack.c.b16 %v2309, %v2305
        %v2538 = vpack.c.b16 %v2314, %v2310
        %v2539 = vpack.c.b16 %v2315, %v2311
        %v2540 = vpack.c.b16 %v2316, %v2312
        %v2541 = vpack.c.b16 %v2317, %v2313
        %v2542 = vpack.c.b16 %v2322, %v2318
        %v2543 = vpack.c.b16 %v2323, %v2319
        %v2544 = vpack.c.b16 %v2324, %v2320
        %v2545 = vpack.c.b16 %v2325, %v2321
        %v2546 = vpack.c.b16 %v2330, %v2326
        %v2547 = vpack.c.b16 %v2331, %v2327
        %v2548 = vpack.c.b16 %v2332, %v2328
        %v2549 = vpack.c.b16 %v2333, %v2329
        %v2550 = vpack.c.b16 %v2338, %v2334
        %v2551 = vpack.c.b16 %v2339, %v2335
        %v2552 = vpack.c.b16 %v2340, %v2336
        %v2553 = vpack.c.b16 %v2341, %v2337
        %v2554 = vpack.c.b16 %v2346, %v2342
        %v2555 = vpack.c.b16 %v2347, %v2343
        %v2556 = vpack.c.b16 %v2348, %v2344
        %v2557 = vpack.c.b16 %v2349, %v2345
        %v2558 = vpack.c.b16 %v2354, %v2350
        %v2559 = vpack.c.b16 %v2355, %v2351
        %v2560 = vpack.c.b16 %v2356, %v2352
        %v2561 = vpack.c.b16 %v2357, %v2353
        %v2562 = vpack.c.b16 %v2362, %v2358
        %v2563 = vpack.c.b16 %v2363, %v2359
        %v2564 = vpack.c.b16 %v2364, %v2360
        %v2565 = vpack.c.b16 %v2365, %v2361
        %v2566 = vpack.c.b16 %v2370, %v2366
        %v2567 = vpack.c.b16 %v2371, %v2367
        %v2568 = vpack.c.b16 %v2372, %v2368
        %v2569 = vpack.c.b16 %v2373, %v2369
        %v2570 = vpack.c.b16 %v2378, %v2374
        %v2571 = vpack.c.b16 %v2379, %v2375
        %v2572 = vpack.c.b16 %v2380, %v2376
        %v2573 = vpack.c.b16 %v2381, %v2377
        %v2574 = vpack.c.b16 %v2386, %v2382
        %v2575 = vpack.c.b16 %v2387, %v2383
        %v2576 = vpack.c.b16 %v2388, %v2384
        %v2577 = vpack.c.b16 %v2389, %v2385
        %v2578 = vpack.c.b16 %v2394, %v2390
        %v2579 = vpack.c.b16 %v2395, %v2391
        %v2580 = vpack.c.b16 %v2396, %v2392
        %v2581 = vpack.c.b16 %v2397, %v2393
        %v2582 = vpack.c.b16 %v2402, %v2398
        %v2583 = vpack.c.b16 %v2403, %v2399
        %v2584 = vpack.c.b16 %v2404, %v2400
        %v2585 = vpack.c.b16 %v2405, %v2401
        %v2586 = vpack.c.b16 %v2410, %v2406
        %v2587 = vpack.c.b16 %v2411, %v2407
        %v2588 = vpack.c.b16 %v2412, %v2408
        %v2589 = vpack.c.b16 %v2413, %v2409
        %v2590 = vpack.c.b16 %v2418, %v2414
        %v2591 = vpack.c.b16 %v2419, %v2415
        %v2592 = vpack.c.b16 %v2420, %v2416
        %v2593 = vpack.c.b16 %v2421, %v2417
        %v2594 = vpack.c.b16 %v2426, %v2422
        %v2595 = vpack.c.b16 %v2427, %v2423
        %v2596 = vpack.c.b16 %v2428, %v2424
        %v2597 = vpack.c.b16 %v2429, %v2425
        %v2598 = vpack.c.b16 %v2434, %v2430
        %v2599 = vpack.c.b16 %v2435, %v2431
        %v2600 = vpack.c.b16 %v2436, %v2432
        %v2601 = vpack.c.b16 %v2437, %v2433
        %v2602 = vpack.c.b16 %v2442, %v2438
        %v2603 = vpack.c.b16 %v2443, %v2439
        %v2604 = vpack.c.b16 %v2444, %v2440
        %v2605 = vpack.c.b16 %v2445, %v2441
        %v2606 = vpack.c.b16 %v2450, %v2446
        %v2607 = vpack.c.b16 %v2451, %v2447
        %v2608 = vpack.c.b16 %v2452, %v2448
        %v2609 = vpack.c.b16 %v2453, %v2449
        %v2610 = vpack.c.b16 %v2458, %v2454
        %v2611 = vpack.c.b16 %v2459, %v2455
        %v2612 = vpack.c.b16 %v2460, %v2456
        %v2613 = vpack.c.b16 %v2461, %v2457
        %v2614 = vpack.c.b16 %v2466, %v2462
        %v2615 = vpack.c.b16 %v2467, %v2463
        %v2616 = vpack.c.b16 %v2468, %v2464
        %v2617 = vpack.c.b16 %v2469, %v2465
        %v2618 = vpack.c.b16 %v2474, %v2470
        %v2619 = vpack.c.b16 %v2475, %v2471
        %v2620 = vpack.c.b16 %v2476, %v2472
        %v2621 = vpack.c.b16 %v2477, %v2473
        %v2622 = vpack.c.b16 %v2482, %v2478
        %v2623 = vpack.c.b16 %v2483, %v2479
        %v2624 = vpack.c.b16 %v2484, %v2480
        %v2625 = vpack.c.b16 %v2485, %v2481
        %v2626 = vpack.c.b16 %v2490, %v2486
        %v2627 = vpack.c.b16 %v2491, %v2487
        %v2628 = vpack.c.b16 %v2492, %v2488
        %v2629 = vpack.c.b16 %v2493, %v2489
        %v2630 = vpack.c.b16 %v2498, %v2494
        %v2631 = vpack.c.b16 %v2499, %v2495
        %v2632 = vpack.c.b16 %v2500, %v2496
        %v2633 = vpack.c.b16 %v2501, %v2497
        %v2634 = vpack.c.b16 %v2506, %v2502
        %v2635 = vpack.c.b16 %v2507, %v2503
        %v2636 = vpack.c.b16 %v2508, %v2504
        %v2637 = vpack.c.b16 %v2509, %v2505
        %2766 = vmatpush.bf16.msra.mxu0 %v2538
        %2767 = vmatpush.bf16.msra.mxu0 %v2534
        %2768 = vmatpush.bf16.msra.mxu0 %v2530
        %2769 = vmatpush.bf16.msra.mxu0 %v2526
        %2770 = vmatpush.bf16.msra.mxu0 %v2522
        %2771 = vmatpush.bf16.msra.mxu0 %v2518
        %2772 = vmatpush.bf16.msra.mxu0 %v2514
        %2773 = vmatpush.bf16.msra.mxu0 %v2510
        %2774 = vmatmul.bf16.gmra.mxu0 %v2118
        %v2775 = vpop.f32.mrf.mxu0
        %v2776 = vadd.f32 %v1953, %v2775
        %v2777 = vpop.f32.mrf.mxu0
        %2778 = vdwg.mxu0
        %2779 = vmatpush.bf16.msra.mxu0 %v2570
        %2780 = vmatpush.bf16.msra.mxu0 %v2566
        %2781 = vmatpush.bf16.msra.mxu0 %v2562
        %2782 = vmatpush.bf16.msra.mxu0 %v2558
        %2783 = vmatpush.bf16.msra.mxu0 %v2554
        %2784 = vmatpush.bf16.msra.mxu0 %v2550
        %2785 = vmatpush.bf16.msra.mxu0 %v2546
        %2786 = vmatpush.bf16.msra.mxu0 %v2542
        %2787 = vmatmul.bf16.gmra.mxu0 %v2119
        %v2788 = vpop.f32.mrf.mxu0
        %v2789 = vadd.f32 %v2776, %v2788
        %v2790 = vpop.f32.mrf.mxu0
        %2791 = vdwg.mxu0
        %2792 = vmatpush.bf16.msra.mxu0 %v2602
        %2793 = vmatpush.bf16.msra.mxu0 %v2598
        %2794 = vmatpush.bf16.msra.mxu0 %v2594
        %2795 = vmatpush.bf16.msra.mxu0 %v2590
        %2796 = vmatpush.bf16.msra.mxu0 %v2586
        %2797 = vmatpush.bf16.msra.mxu0 %v2582
        %2798 = vmatpush.bf16.msra.mxu0 %v2578
        %2799 = vmatpush.bf16.msra.mxu0 %v2574
        %2800 = vmatmul.bf16.gmra.mxu0 %v2120
        %v2801 = vpop.f32.mrf.mxu0
        %v2802 = vadd.f32 %v2789, %v2801
        %v2803 = vpop.f32.mrf.mxu0
        %2804 = vdwg.mxu0
        %2805 = vmatpush.bf16.msra.mxu0 %v2634
        %2806 = vmatpush.bf16.msra.mxu0 %v2630
        %2807 = vmatpush.bf16.msra.mxu0 %v2626
        %2808 = vmatpush.bf16.msra.mxu0 %v2622
        %2809 = vmatpush.bf16.msra.mxu0 %v2618
        %2810 = vmatpush.bf16.msra.mxu0 %v2614
        %2811 = vmatpush.bf16.msra.mxu0 %v2610
        %2812 = vmatpush.bf16.msra.mxu0 %v2606
        %2813 = vmatmul.bf16.gmra.mxu0 %v2121
        %v2814 = vpop.f32.mrf.mxu0
        %v2815 = vadd.f32 %v2802, %v2814
        %v2816 = vpop.f32.mrf.mxu0
        %2817 = vdwg.mxu0
        %2818 = vmatpush.bf16.msra.mxu0 %v2539
        %2819 = vmatpush.bf16.msra.mxu0 %v2535
        %2820 = vmatpush.bf16.msra.mxu0 %v2531
        %2821 = vmatpush.bf16.msra.mxu0 %v2527
        %2822 = vmatpush.bf16.msra.mxu0 %v2523
        %2823 = vmatpush.bf16.msra.mxu0 %v2519
        %2824 = vmatpush.bf16.msra.mxu0 %v2515
        %2825 = vmatpush.bf16.msra.mxu0 %v2511
        %2826 = vmatmul.bf16.gmra.mxu0 %v2118
        %v2827 = vpop.f32.mrf.mxu0
        %v2828 = vadd.f32 %v2005, %v2827
        %v2829 = vpop.f32.mrf.mxu0
        %2830 = vdwg.mxu0
        %2831 = vmatpush.bf16.msra.mxu0 %v2571
        %2832 = vmatpush.bf16.msra.mxu0 %v2567
        %2833 = vmatpush.bf16.msra.mxu0 %v2563
        %2834 = vmatpush.bf16.msra.mxu0 %v2559
        %2835 = vmatpush.bf16.msra.mxu0 %v2555
        %2836 = vmatpush.bf16.msra.mxu0 %v2551
        %2837 = vmatpush.bf16.msra.mxu0 %v2547
        %2838 = vmatpush.bf16.msra.mxu0 %v2543
        %2839 = vmatmul.bf16.gmra.mxu0 %v2119
        %v2840 = vpop.f32.mrf.mxu0
        %v2841 = vadd.f32 %v2828, %v2840
        %v2842 = vpop.f32.mrf.mxu0
        %2843 = vdwg.mxu0
        %2844 = vmatpush.bf16.msra.mxu0 %v2603
        %2845 = vmatpush.bf16.msra.mxu0 %v2599
        %2846 = vmatpush.bf16.msra.mxu0 %v2595
        %2847 = vmatpush.bf16.msra.mxu0 %v2591
        %2848 = vmatpush.bf16.msra.mxu0 %v2587
        %2849 = vmatpush.bf16.msra.mxu0 %v2583
        %2850 = vmatpush.bf16.msra.mxu0 %v2579
        %2851 = vmatpush.bf16.msra.mxu0 %v2575
        %2852 = vmatmul.bf16.gmra.mxu0 %v2120
        %v2853 = vpop.f32.mrf.mxu0
        %v2854 = vadd.f32 %v2841, %v2853
        %v2855 = vpop.f32.mrf.mxu0
        %2856 = vdwg.mxu0
        %2857 = vmatpush.bf16.msra.mxu0 %v2635
        %2858 = vmatpush.bf16.msra.mxu0 %v2631
        %2859 = vmatpush.bf16.msra.mxu0 %v2627
        %2860 = vmatpush.bf16.msra.mxu0 %v2623
        %2861 = vmatpush.bf16.msra.mxu0 %v2619
        %2862 = vmatpush.bf16.msra.mxu0 %v2615
        %2863 = vmatpush.bf16.msra.mxu0 %v2611
        %2864 = vmatpush.bf16.msra.mxu0 %v2607
        %2865 = vmatmul.bf16.gmra.mxu0 %v2121
        %v2866 = vpop.f32.mrf.mxu0
        %v2867 = vadd.f32 %v2854, %v2866
        %v2868 = vpop.f32.mrf.mxu0
        %2869 = vdwg.mxu0
        %2870 = vmatpush.bf16.msra.mxu0 %v2540
        %2871 = vmatpush.bf16.msra.mxu0 %v2536
        %2872 = vmatpush.bf16.msra.mxu0 %v2532
        %2873 = vmatpush.bf16.msra.mxu0 %v2528
        %2874 = vmatpush.bf16.msra.mxu0 %v2524
        %2875 = vmatpush.bf16.msra.mxu0 %v2520
        %2876 = vmatpush.bf16.msra.mxu0 %v2516
        %2877 = vmatpush.bf16.msra.mxu0 %v2512
        %2878 = vmatmul.bf16.gmra.mxu0 %v2118
        %v2879 = vpop.f32.mrf.mxu0
        %v2880 = vadd.f32 %v2057, %v2879
        %v2881 = vpop.f32.mrf.mxu0
        %2882 = vdwg.mxu0
        %2883 = vmatpush.bf16.msra.mxu0 %v2572
        %2884 = vmatpush.bf16.msra.mxu0 %v2568
        %2885 = vmatpush.bf16.msra.mxu0 %v2564
        %2886 = vmatpush.bf16.msra.mxu0 %v2560
        %2887 = vmatpush.bf16.msra.mxu0 %v2556
        %2888 = vmatpush.bf16.msra.mxu0 %v2552
        %2889 = vmatpush.bf16.msra.mxu0 %v2548
        %2890 = vmatpush.bf16.msra.mxu0 %v2544
        %2891 = vmatmul.bf16.gmra.mxu0 %v2119
        %v2892 = vpop.f32.mrf.mxu0
        %v2893 = vadd.f32 %v2880, %v2892
        %v2894 = vpop.f32.mrf.mxu0
        %2895 = vdwg.mxu0
        %2896 = vmatpush.bf16.msra.mxu0 %v2604
        %2897 = vmatpush.bf16.msra.mxu0 %v2600
        %2898 = vmatpush.bf16.msra.mxu0 %v2596
        %2899 = vmatpush.bf16.msra.mxu0 %v2592
        %2900 = vmatpush.bf16.msra.mxu0 %v2588
        %2901 = vmatpush.bf16.msra.mxu0 %v2584
        %2902 = vmatpush.bf16.msra.mxu0 %v2580
        %2903 = vmatpush.bf16.msra.mxu0 %v2576
        %2904 = vmatmul.bf16.gmra.mxu0 %v2120
        %v2905 = vpop.f32.mrf.mxu0
        %v2906 = vadd.f32 %v2893, %v2905
        %v2907 = vpop.f32.mrf.mxu0
        %2908 = vdwg.mxu0
        %2909 = vmatpush.bf16.msra.mxu0 %v2636
        %2910 = vmatpush.bf16.msra.mxu0 %v2632
        %2911 = vmatpush.bf16.msra.mxu0 %v2628
        %2912 = vmatpush.bf16.msra.mxu0 %v2624
        %2913 = vmatpush.bf16.msra.mxu0 %v2620
        %2914 = vmatpush.bf16.msra.mxu0 %v2616
        %2915 = vmatpush.bf16.msra.mxu0 %v2612
        %2916 = vmatpush.bf16.msra.mxu0 %v2608
        %2917 = vmatmul.bf16.gmra.mxu0 %v2121
        %v2918 = vpop.f32.mrf.mxu0
        %v2919 = vadd.f32 %v2906, %v2918
        %v2920 = vpop.f32.mrf.mxu0
        %2921 = vdwg.mxu0
        %2922 = vmatpush.bf16.msra.mxu0 %v2541
        %2923 = vmatpush.bf16.msra.mxu0 %v2537
        %2924 = vmatpush.bf16.msra.mxu0 %v2533
        %2925 = vmatpush.bf16.msra.mxu0 %v2529
        %2926 = vmatpush.bf16.msra.mxu0 %v2525
        %2927 = vmatpush.bf16.msra.mxu0 %v2521
        %2928 = vmatpush.bf16.msra.mxu0 %v2517
        %2929 = vmatpush.bf16.msra.mxu0 %v2513
        %2930 = vmatmul.bf16.gmra.mxu0 %v2118
        %v2931 = vpop.f32.mrf.mxu0
        %v2932 = vadd.f32 %v2109, %v2931
        %v2933 = vpop.f32.mrf.mxu0
        %2934 = vdwg.mxu0
        %2935 = vmatpush.bf16.msra.mxu0 %v2573
        %2936 = vmatpush.bf16.msra.mxu0 %v2569
        %2937 = vmatpush.bf16.msra.mxu0 %v2565
        %2938 = vmatpush.bf16.msra.mxu0 %v2561
        %2939 = vmatpush.bf16.msra.mxu0 %v2557
        %2940 = vmatpush.bf16.msra.mxu0 %v2553
        %2941 = vmatpush.bf16.msra.mxu0 %v2549
        %2942 = vmatpush.bf16.msra.mxu0 %v2545
        %2943 = vmatmul.bf16.gmra.mxu0 %v2119
        %v2944 = vpop.f32.mrf.mxu0
        %v2945 = vadd.f32 %v2932, %v2944
        %v2946 = vpop.f32.mrf.mxu0
        %2947 = vdwg.mxu0
        %2948 = vmatpush.bf16.msra.mxu0 %v2605
        %2949 = vmatpush.bf16.msra.mxu0 %v2601
        %2950 = vmatpush.bf16.msra.mxu0 %v2597
        %2951 = vmatpush.bf16.msra.mxu0 %v2593
        %2952 = vmatpush.bf16.msra.mxu0 %v2589
        %2953 = vmatpush.bf16.msra.mxu0 %v2585
        %2954 = vmatpush.bf16.msra.mxu0 %v2581
        %2955 = vmatpush.bf16.msra.mxu0 %v2577
        %2956 = vmatmul.bf16.gmra.mxu0 %v2120
        %v2957 = vpop.f32.mrf.mxu0
        %v2958 = vadd.f32 %v2945, %v2957
        %v2959 = vpop.f32.mrf.mxu0
        %2960 = vdwg.mxu0
        %2961 = vmatpush.bf16.msra.mxu0 %v2637
        %2962 = vmatpush.bf16.msra.mxu0 %v2633
        %2963 = vmatpush.bf16.msra.mxu0 %v2629
        %2964 = vmatpush.bf16.msra.mxu0 %v2625
        %2965 = vmatpush.bf16.msra.mxu0 %v2621
        %2966 = vmatpush.bf16.msra.mxu0 %v2617
        %2967 = vmatpush.bf16.msra.mxu0 %v2613
        %2968 = vmatpush.bf16.msra.mxu0 %v2609
        %2969 = vmatmul.bf16.gmra.mxu0 %v2121
        %v2970 = vpop.f32.mrf.mxu0
        %v2971 = vadd.f32 %v2958, %v2970
        %v2972 = vpop.f32.mrf.mxu0
        %2973 = vdwg.mxu0
        %v2974 = vld [vmem:[#allocation2] sm:$0x66]
        %v2975 = vld [vmem:[#allocation2 + $0x8] sm:$0x66]
        %s2976 = scalar_lea.vmem [#allocation9], 2048
        %v2977 = vld [vmem:[%s2976] sm:$0xff]
        %v2978 = vld [vmem:[%s2976 + $0x8] sm:$0xff]
        %v2979 = vld [vmem:[%s2976 + $0x10] sm:$0xff]
        %v2980 = vld [vmem:[%s2976 + $0x18] sm:$0xff]
        %v2981 = vld [vmem:[%s2976 + $0x20] sm:$0xff]
        %v2982 = vld [vmem:[%s2976 + $0x28] sm:$0xff]
        %v2983 = vld [vmem:[%s2976 + $0x30] sm:$0xff]
        %v2984 = vld [vmem:[%s2976 + $0x38] sm:$0xff]
        %v2985 = vld [vmem:[%s2976 + $0x40] sm:$0xff]
        %v2986 = vld [vmem:[%s2976 + $0x48] sm:$0xff]
        %v2987 = vld [vmem:[%s2976 + $0x50] sm:$0xff]
        %v2988 = vld [vmem:[%s2976 + $0x58] sm:$0xff]
        %v2989 = vld [vmem:[%s2976 + $0x60] sm:$0xff]
        %v2990 = vld [vmem:[%s2976 + $0x68] sm:$0xff]
        %v2991 = vld [vmem:[%s2976 + $0x70] sm:$0xff]
        %v2992 = vld [vmem:[%s2976 + $0x78] sm:$0xff]
        %v2993 = vld [vmem:[%s2976 + $0x80] sm:$0xff]
        %v2994 = vld [vmem:[%s2976 + $0x88] sm:$0xff]
        %v2995 = vld [vmem:[%s2976 + $0x90] sm:$0xff]
        %v2996 = vld [vmem:[%s2976 + $0x98] sm:$0xff]
        %v2997 = vld [vmem:[%s2976 + $0xa0] sm:$0xff]
        %v2998 = vld [vmem:[%s2976 + $0xa8] sm:$0xff]
        %v2999 = vld [vmem:[%s2976 + $0xb0] sm:$0xff]
        %v3000 = vld [vmem:[%s2976 + $0xb8] sm:$0xff]
        %v3001 = vld [vmem:[%s2976 + $0xc0] sm:$0xff]
        %v3002 = vld [vmem:[%s2976 + $0xc8] sm:$0xff]
        %v3003 = vld [vmem:[%s2976 + $0xd0] sm:$0xff]
        %v3004 = vld [vmem:[%s2976 + $0xd8] sm:$0xff]
        %v3005 = vld [vmem:[%s2976 + $0xe0] sm:$0xff]
        %v3006 = vld [vmem:[%s2976 + $0xe8] sm:$0xff]
        %v3007 = vld [vmem:[%s2976 + $0xf0] sm:$0xff]
        %v3008 = vld [vmem:[%s2976 + $0xf8] sm:$0xff]
        %v3009 = vld [vmem:[%s2976 + $0x100] sm:$0xff]
        %v3010 = vld [vmem:[%s2976 + $0x108] sm:$0xff]
        %v3011 = vld [vmem:[%s2976 + $0x110] sm:$0xff]
        %v3012 = vld [vmem:[%s2976 + $0x118] sm:$0xff]
        %v3013 = vld [vmem:[%s2976 + $0x120] sm:$0xff]
        %v3014 = vld [vmem:[%s2976 + $0x128] sm:$0xff]
        %v3015 = vld [vmem:[%s2976 + $0x130] sm:$0xff]
        %v3016 = vld [vmem:[%s2976 + $0x138] sm:$0xff]
        %v3017 = vld [vmem:[%s2976 + $0x140] sm:$0xff]
        %v3018 = vld [vmem:[%s2976 + $0x148] sm:$0xff]
        %v3019 = vld [vmem:[%s2976 + $0x150] sm:$0xff]
        %v3020 = vld [vmem:[%s2976 + $0x158] sm:$0xff]
        %v3021 = vld [vmem:[%s2976 + $0x160] sm:$0xff]
        %v3022 = vld [vmem:[%s2976 + $0x168] sm:$0xff]
        %v3023 = vld [vmem:[%s2976 + $0x170] sm:$0xff]
        %v3024 = vld [vmem:[%s2976 + $0x178] sm:$0xff]
        %v3025 = vld [vmem:[%s2976 + $0x180] sm:$0xff]
        %v3026 = vld [vmem:[%s2976 + $0x188] sm:$0xff]
        %v3027 = vld [vmem:[%s2976 + $0x190] sm:$0xff]
        %v3028 = vld [vmem:[%s2976 + $0x198] sm:$0xff]
        %v3029 = vld [vmem:[%s2976 + $0x1a0] sm:$0xff]
        %v3030 = vld [vmem:[%s2976 + $0x1a8] sm:$0xff]
        %v3031 = vld [vmem:[%s2976 + $0x1b0] sm:$0xff]
        %v3032 = vld [vmem:[%s2976 + $0x1b8] sm:$0xff]
        %v3033 = vld [vmem:[%s2976 + $0x1c0] sm:$0xff]
        %v3034 = vld [vmem:[%s2976 + $0x1c8] sm:$0xff]
        %v3035 = vld [vmem:[%s2976 + $0x1d0] sm:$0xff]
        %v3036 = vld [vmem:[%s2976 + $0x1d8] sm:$0xff]
        %v3037 = vld [vmem:[%s2976 + $0x1e0] sm:$0xff]
        %v3038 = vld [vmem:[%s2976 + $0x1e8] sm:$0xff]
        %v3039 = vld [vmem:[%s2976 + $0x1f0] sm:$0xff]
        %v3040 = vld [vmem:[%s2976 + $0x1f8] sm:$0xff]
        %v3041 = vld [vmem:[%s2976 + $0x200] sm:$0xff]
        %v3042 = vld [vmem:[%s2976 + $0x208] sm:$0xff]
        %v3043 = vld [vmem:[%s2976 + $0x210] sm:$0xff]
        %v3044 = vld [vmem:[%s2976 + $0x218] sm:$0xff]
        %v3045 = vld [vmem:[%s2976 + $0x220] sm:$0xff]
        %v3046 = vld [vmem:[%s2976 + $0x228] sm:$0xff]
        %v3047 = vld [vmem:[%s2976 + $0x230] sm:$0xff]
        %v3048 = vld [vmem:[%s2976 + $0x238] sm:$0xff]
        %v3049 = vld [vmem:[%s2976 + $0x240] sm:$0xff]
        %v3050 = vld [vmem:[%s2976 + $0x248] sm:$0xff]
        %v3051 = vld [vmem:[%s2976 + $0x250] sm:$0xff]
        %v3052 = vld [vmem:[%s2976 + $0x258] sm:$0xff]
        %v3053 = vld [vmem:[%s2976 + $0x260] sm:$0xff]
        %v3054 = vld [vmem:[%s2976 + $0x268] sm:$0xff]
        %v3055 = vld [vmem:[%s2976 + $0x270] sm:$0xff]
        %v3056 = vld [vmem:[%s2976 + $0x278] sm:$0xff]
        %v3057 = vld [vmem:[%s2976 + $0x280] sm:$0xff]
        %v3058 = vld [vmem:[%s2976 + $0x288] sm:$0xff]
        %v3059 = vld [vmem:[%s2976 + $0x290] sm:$0xff]
        %v3060 = vld [vmem:[%s2976 + $0x298] sm:$0xff]
        %v3061 = vld [vmem:[%s2976 + $0x2a0] sm:$0xff]
        %v3062 = vld [vmem:[%s2976 + $0x2a8] sm:$0xff]
        %v3063 = vld [vmem:[%s2976 + $0x2b0] sm:$0xff]
        %v3064 = vld [vmem:[%s2976 + $0x2b8] sm:$0xff]
        %v3065 = vld [vmem:[%s2976 + $0x2c0] sm:$0xff]
        %v3066 = vld [vmem:[%s2976 + $0x2c8] sm:$0xff]
        %v3067 = vld [vmem:[%s2976 + $0x2d0] sm:$0xff]
        %v3068 = vld [vmem:[%s2976 + $0x2d8] sm:$0xff]
        %v3069 = vld [vmem:[%s2976 + $0x2e0] sm:$0xff]
        %v3070 = vld [vmem:[%s2976 + $0x2e8] sm:$0xff]
        %v3071 = vld [vmem:[%s2976 + $0x2f0] sm:$0xff]
        %v3072 = vld [vmem:[%s2976 + $0x2f8] sm:$0xff]
        %v3073 = vld [vmem:[%s2976 + $0x300] sm:$0xff]
        %v3074 = vld [vmem:[%s2976 + $0x308] sm:$0xff]
        %v3075 = vld [vmem:[%s2976 + $0x310] sm:$0xff]
        %v3076 = vld [vmem:[%s2976 + $0x318] sm:$0xff]
        %v3077 = vld [vmem:[%s2976 + $0x320] sm:$0xff]
        %v3078 = vld [vmem:[%s2976 + $0x328] sm:$0xff]
        %v3079 = vld [vmem:[%s2976 + $0x330] sm:$0xff]
        %v3080 = vld [vmem:[%s2976 + $0x338] sm:$0xff]
        %v3081 = vld [vmem:[%s2976 + $0x340] sm:$0xff]
        %v3082 = vld [vmem:[%s2976 + $0x348] sm:$0xff]
        %v3083 = vld [vmem:[%s2976 + $0x350] sm:$0xff]
        %v3084 = vld [vmem:[%s2976 + $0x358] sm:$0xff]
        %v3085 = vld [vmem:[%s2976 + $0x360] sm:$0xff]
        %v3086 = vld [vmem:[%s2976 + $0x368] sm:$0xff]
        %v3087 = vld [vmem:[%s2976 + $0x370] sm:$0xff]
        %v3088 = vld [vmem:[%s2976 + $0x378] sm:$0xff]
        %v3089 = vld [vmem:[%s2976 + $0x380] sm:$0xff]
        %v3090 = vld [vmem:[%s2976 + $0x388] sm:$0xff]
        %v3091 = vld [vmem:[%s2976 + $0x390] sm:$0xff]
        %v3092 = vld [vmem:[%s2976 + $0x398] sm:$0xff]
        %v3093 = vld [vmem:[%s2976 + $0x3a0] sm:$0xff]
        %v3094 = vld [vmem:[%s2976 + $0x3a8] sm:$0xff]
        %v3095 = vld [vmem:[%s2976 + $0x3b0] sm:$0xff]
        %v3096 = vld [vmem:[%s2976 + $0x3b8] sm:$0xff]
        %v3097 = vld [vmem:[%s2976 + $0x3c0] sm:$0xff]
        %v3098 = vld [vmem:[%s2976 + $0x3c8] sm:$0xff]
        %v3099 = vld [vmem:[%s2976 + $0x3d0] sm:$0xff]
        %v3100 = vld [vmem:[%s2976 + $0x3d8] sm:$0xff]
        %v3101 = vld [vmem:[%s2976 + $0x3e0] sm:$0xff]
        %v3102 = vld [vmem:[%s2976 + $0x3e8] sm:$0xff]
        %v3103 = vld [vmem:[%s2976 + $0x3f0] sm:$0xff]
        %v3104 = vld [vmem:[%s2976 + $0x3f8] sm:$0xff]
        %v3107 = vunpack.c.l.b16 %v2974
        %v3108 = vunpack.c.h.b16 %v2974
        %v3109 = vunpack.c.l.b16 %v2975
        %v3110 = vunpack.c.h.b16 %v2975
        %v3111 = vpack.c.b16 %v3107, %v3107
        %v3112 = vpack.c.b16 %v3108, %v3108
        %v3113 = vpack.c.b16 %v3109, %v3109
        %v3114 = vpack.c.b16 %v3110, %v3110
        %v3115 = vrot.slane %v3111, 1
        %v3116 = vrot.slane %v3112, 1
        %v3117 = vrot.slane %v3113, 1
        %v3118 = vrot.slane %v3114, 1
        %v3251 = vunpack.c.l.b16 %v2977
        %v3252 = vunpack.c.h.b16 %v2977
        %v3253 = vunpack.c.l.b16 %v2978
        %v3254 = vunpack.c.h.b16 %v2978
        %v3255 = vunpack.c.l.b16 %v2979
        %v3256 = vunpack.c.h.b16 %v2979
        %v3257 = vunpack.c.l.b16 %v2980
        %v3258 = vunpack.c.h.b16 %v2980
        %v3259 = vunpack.c.l.b16 %v2981
        %v3260 = vunpack.c.h.b16 %v2981
        %v3261 = vunpack.c.l.b16 %v2982
        %v3262 = vunpack.c.h.b16 %v2982
        %v3263 = vunpack.c.l.b16 %v2983
        %v3264 = vunpack.c.h.b16 %v2983
        %v3265 = vunpack.c.l.b16 %v2984
        %v3266 = vunpack.c.h.b16 %v2984
        %v3267 = vunpack.c.l.b16 %v2985
        %v3268 = vunpack.c.h.b16 %v2985
        %v3269 = vunpack.c.l.b16 %v2986
        %v3270 = vunpack.c.h.b16 %v2986
        %v3271 = vunpack.c.l.b16 %v2987
        %v3272 = vunpack.c.h.b16 %v2987
        %v3273 = vunpack.c.l.b16 %v2988
        %v3274 = vunpack.c.h.b16 %v2988
        %v3275 = vunpack.c.l.b16 %v2989
        %v3276 = vunpack.c.h.b16 %v2989
        %v3277 = vunpack.c.l.b16 %v2990
        %v3278 = vunpack.c.h.b16 %v2990
        %v3279 = vunpack.c.l.b16 %v2991
        %v3280 = vunpack.c.h.b16 %v2991
        %v3281 = vunpack.c.l.b16 %v2992
        %v3282 = vunpack.c.h.b16 %v2992
        %v3283 = vunpack.c.l.b16 %v2993
        %v3284 = vunpack.c.h.b16 %v2993
        %v3285 = vunpack.c.l.b16 %v2994
        %v3286 = vunpack.c.h.b16 %v2994
        %v3287 = vunpack.c.l.b16 %v2995
        %v3288 = vunpack.c.h.b16 %v2995
        %v3289 = vunpack.c.l.b16 %v2996
        %v3290 = vunpack.c.h.b16 %v2996
        %v3291 = vunpack.c.l.b16 %v2997
        %v3292 = vunpack.c.h.b16 %v2997
        %v3293 = vunpack.c.l.b16 %v2998
        %v3294 = vunpack.c.h.b16 %v2998
        %v3295 = vunpack.c.l.b16 %v2999
        %v3296 = vunpack.c.h.b16 %v2999
        %v3297 = vunpack.c.l.b16 %v3000
        %v3298 = vunpack.c.h.b16 %v3000
        %v3299 = vunpack.c.l.b16 %v3001
        %v3300 = vunpack.c.h.b16 %v3001
        %v3301 = vunpack.c.l.b16 %v3002
        %v3302 = vunpack.c.h.b16 %v3002
        %v3303 = vunpack.c.l.b16 %v3003
        %v3304 = vunpack.c.h.b16 %v3003
        %v3305 = vunpack.c.l.b16 %v3004
        %v3306 = vunpack.c.h.b16 %v3004
        %v3307 = vunpack.c.l.b16 %v3005
        %v3308 = vunpack.c.h.b16 %v3005
        %v3309 = vunpack.c.l.b16 %v3006
        %v3310 = vunpack.c.h.b16 %v3006
        %v3311 = vunpack.c.l.b16 %v3007
        %v3312 = vunpack.c.h.b16 %v3007
        %v3313 = vunpack.c.l.b16 %v3008
        %v3314 = vunpack.c.h.b16 %v3008
        %v3315 = vunpack.c.l.b16 %v3009
        %v3316 = vunpack.c.h.b16 %v3009
        %v3317 = vunpack.c.l.b16 %v3010
        %v3318 = vunpack.c.h.b16 %v3010
        %v3319 = vunpack.c.l.b16 %v3011
        %v3320 = vunpack.c.h.b16 %v3011
        %v3321 = vunpack.c.l.b16 %v3012
        %v3322 = vunpack.c.h.b16 %v3012
        %v3323 = vunpack.c.l.b16 %v3013
        %v3324 = vunpack.c.h.b16 %v3013
        %v3325 = vunpack.c.l.b16 %v3014
        %v3326 = vunpack.c.h.b16 %v3014
        %v3327 = vunpack.c.l.b16 %v3015
        %v3328 = vunpack.c.h.b16 %v3015
        %v3329 = vunpack.c.l.b16 %v3016
        %v3330 = vunpack.c.h.b16 %v3016
        %v3331 = vunpack.c.l.b16 %v3017
        %v3332 = vunpack.c.h.b16 %v3017
        %v3333 = vunpack.c.l.b16 %v3018
        %v3334 = vunpack.c.h.b16 %v3018
        %v3335 = vunpack.c.l.b16 %v3019
        %v3336 = vunpack.c.h.b16 %v3019
        %v3337 = vunpack.c.l.b16 %v3020
        %v3338 = vunpack.c.h.b16 %v3020
        %v3339 = vunpack.c.l.b16 %v3021
        %v3340 = vunpack.c.h.b16 %v3021
        %v3341 = vunpack.c.l.b16 %v3022
        %v3342 = vunpack.c.h.b16 %v3022
        %v3343 = vunpack.c.l.b16 %v3023
        %v3344 = vunpack.c.h.b16 %v3023
        %v3345 = vunpack.c.l.b16 %v3024
        %v3346 = vunpack.c.h.b16 %v3024
        %v3347 = vunpack.c.l.b16 %v3025
        %v3348 = vunpack.c.h.b16 %v3025
        %v3349 = vunpack.c.l.b16 %v3026
        %v3350 = vunpack.c.h.b16 %v3026
        %v3351 = vunpack.c.l.b16 %v3027
        %v3352 = vunpack.c.h.b16 %v3027
        %v3353 = vunpack.c.l.b16 %v3028
        %v3354 = vunpack.c.h.b16 %v3028
        %v3355 = vunpack.c.l.b16 %v3029
        %v3356 = vunpack.c.h.b16 %v3029
        %v3357 = vunpack.c.l.b16 %v3030
        %v3358 = vunpack.c.h.b16 %v3030
        %v3359 = vunpack.c.l.b16 %v3031
        %v3360 = vunpack.c.h.b16 %v3031
        %v3361 = vunpack.c.l.b16 %v3032
        %v3362 = vunpack.c.h.b16 %v3032
        %v3363 = vunpack.c.l.b16 %v3033
        %v3364 = vunpack.c.h.b16 %v3033
        %v3365 = vunpack.c.l.b16 %v3034
        %v3366 = vunpack.c.h.b16 %v3034
        %v3367 = vunpack.c.l.b16 %v3035
        %v3368 = vunpack.c.h.b16 %v3035
        %v3369 = vunpack.c.l.b16 %v3036
        %v3370 = vunpack.c.h.b16 %v3036
        %v3371 = vunpack.c.l.b16 %v3037
        %v3372 = vunpack.c.h.b16 %v3037
        %v3373 = vunpack.c.l.b16 %v3038
        %v3374 = vunpack.c.h.b16 %v3038
        %v3375 = vunpack.c.l.b16 %v3039
        %v3376 = vunpack.c.h.b16 %v3039
        %v3377 = vunpack.c.l.b16 %v3040
        %v3378 = vunpack.c.h.b16 %v3040
        %v3379 = vunpack.c.l.b16 %v3041
        %v3380 = vunpack.c.h.b16 %v3041
        %v3381 = vunpack.c.l.b16 %v3042
        %v3382 = vunpack.c.h.b16 %v3042
        %v3383 = vunpack.c.l.b16 %v3043
        %v3384 = vunpack.c.h.b16 %v3043
        %v3385 = vunpack.c.l.b16 %v3044
        %v3386 = vunpack.c.h.b16 %v3044
        %v3387 = vunpack.c.l.b16 %v3045
        %v3388 = vunpack.c.h.b16 %v3045
        %v3389 = vunpack.c.l.b16 %v3046
        %v3390 = vunpack.c.h.b16 %v3046
        %v3391 = vunpack.c.l.b16 %v3047
        %v3392 = vunpack.c.h.b16 %v3047
        %v3393 = vunpack.c.l.b16 %v3048
        %v3394 = vunpack.c.h.b16 %v3048
        %v3395 = vunpack.c.l.b16 %v3049
        %v3396 = vunpack.c.h.b16 %v3049
        %v3397 = vunpack.c.l.b16 %v3050
        %v3398 = vunpack.c.h.b16 %v3050
        %v3399 = vunpack.c.l.b16 %v3051
        %v3400 = vunpack.c.h.b16 %v3051
        %v3401 = vunpack.c.l.b16 %v3052
        %v3402 = vunpack.c.h.b16 %v3052
        %v3403 = vunpack.c.l.b16 %v3053
        %v3404 = vunpack.c.h.b16 %v3053
        %v3405 = vunpack.c.l.b16 %v3054
        %v3406 = vunpack.c.h.b16 %v3054
        %v3407 = vunpack.c.l.b16 %v3055
        %v3408 = vunpack.c.h.b16 %v3055
        %v3409 = vunpack.c.l.b16 %v3056
        %v3410 = vunpack.c.h.b16 %v3056
        %v3411 = vunpack.c.l.b16 %v3057
        %v3412 = vunpack.c.h.b16 %v3057
        %v3413 = vunpack.c.l.b16 %v3058
        %v3414 = vunpack.c.h.b16 %v3058
        %v3415 = vunpack.c.l.b16 %v3059
        %v3416 = vunpack.c.h.b16 %v3059
        %v3417 = vunpack.c.l.b16 %v3060
        %v3418 = vunpack.c.h.b16 %v3060
        %v3419 = vunpack.c.l.b16 %v3061
        %v3420 = vunpack.c.h.b16 %v3061
        %v3421 = vunpack.c.l.b16 %v3062
        %v3422 = vunpack.c.h.b16 %v3062
        %v3423 = vunpack.c.l.b16 %v3063
        %v3424 = vunpack.c.h.b16 %v3063
        %v3425 = vunpack.c.l.b16 %v3064
        %v3426 = vunpack.c.h.b16 %v3064
        %v3427 = vunpack.c.l.b16 %v3065
        %v3428 = vunpack.c.h.b16 %v3065
        %v3429 = vunpack.c.l.b16 %v3066
        %v3430 = vunpack.c.h.b16 %v3066
        %v3431 = vunpack.c.l.b16 %v3067
        %v3432 = vunpack.c.h.b16 %v3067
        %v3433 = vunpack.c.l.b16 %v3068
        %v3434 = vunpack.c.h.b16 %v3068
        %v3435 = vunpack.c.l.b16 %v3069
        %v3436 = vunpack.c.h.b16 %v3069
        %v3437 = vunpack.c.l.b16 %v3070
        %v3438 = vunpack.c.h.b16 %v3070
        %v3439 = vunpack.c.l.b16 %v3071
        %v3440 = vunpack.c.h.b16 %v3071
        %v3441 = vunpack.c.l.b16 %v3072
        %v3442 = vunpack.c.h.b16 %v3072
        %v3443 = vunpack.c.l.b16 %v3073
        %v3444 = vunpack.c.h.b16 %v3073
        %v3445 = vunpack.c.l.b16 %v3074
        %v3446 = vunpack.c.h.b16 %v3074
        %v3447 = vunpack.c.l.b16 %v3075
        %v3448 = vunpack.c.h.b16 %v3075
        %v3449 = vunpack.c.l.b16 %v3076
        %v3450 = vunpack.c.h.b16 %v3076
        %v3451 = vunpack.c.l.b16 %v3077
        %v3452 = vunpack.c.h.b16 %v3077
        %v3453 = vunpack.c.l.b16 %v3078
        %v3454 = vunpack.c.h.b16 %v3078
        %v3455 = vunpack.c.l.b16 %v3079
        %v3456 = vunpack.c.h.b16 %v3079
        %v3457 = vunpack.c.l.b16 %v3080
        %v3458 = vunpack.c.h.b16 %v3080
        %v3459 = vunpack.c.l.b16 %v3081
        %v3460 = vunpack.c.h.b16 %v3081
        %v3461 = vunpack.c.l.b16 %v3082
        %v3462 = vunpack.c.h.b16 %v3082
        %v3463 = vunpack.c.l.b16 %v3083
        %v3464 = vunpack.c.h.b16 %v3083
        %v3465 = vunpack.c.l.b16 %v3084
        %v3466 = vunpack.c.h.b16 %v3084
        %v3467 = vunpack.c.l.b16 %v3085
        %v3468 = vunpack.c.h.b16 %v3085
        %v3469 = vunpack.c.l.b16 %v3086
        %v3470 = vunpack.c.h.b16 %v3086
        %v3471 = vunpack.c.l.b16 %v3087
        %v3472 = vunpack.c.h.b16 %v3087
        %v3473 = vunpack.c.l.b16 %v3088
        %v3474 = vunpack.c.h.b16 %v3088
        %v3475 = vunpack.c.l.b16 %v3089
        %v3476 = vunpack.c.h.b16 %v3089
        %v3477 = vunpack.c.l.b16 %v3090
        %v3478 = vunpack.c.h.b16 %v3090
        %v3479 = vunpack.c.l.b16 %v3091
        %v3480 = vunpack.c.h.b16 %v3091
        %v3481 = vunpack.c.l.b16 %v3092
        %v3482 = vunpack.c.h.b16 %v3092
        %v3483 = vunpack.c.l.b16 %v3093
        %v3484 = vunpack.c.h.b16 %v3093
        %v3485 = vunpack.c.l.b16 %v3094
        %v3486 = vunpack.c.h.b16 %v3094
        %v3487 = vunpack.c.l.b16 %v3095
        %v3488 = vunpack.c.h.b16 %v3095
        %v3489 = vunpack.c.l.b16 %v3096
        %v3490 = vunpack.c.h.b16 %v3096
        %v3491 = vunpack.c.l.b16 %v3097
        %v3492 = vunpack.c.h.b16 %v3097
        %v3493 = vunpack.c.l.b16 %v3098
        %v3494 = vunpack.c.h.b16 %v3098
        %v3495 = vunpack.c.l.b16 %v3099
        %v3496 = vunpack.c.h.b16 %v3099
        %v3497 = vunpack.c.l.b16 %v3100
        %v3498 = vunpack.c.h.b16 %v3100
        %v3499 = vunpack.c.l.b16 %v3101
        %v3500 = vunpack.c.h.b16 %v3101
        %v3501 = vunpack.c.l.b16 %v3102
        %v3502 = vunpack.c.h.b16 %v3102
        %v3503 = vunpack.c.l.b16 %v3103
        %v3504 = vunpack.c.h.b16 %v3103
        %v3505 = vunpack.c.l.b16 %v3104
        %v3506 = vunpack.c.h.b16 %v3104
        %v3507 = vpack.c.b16 %v3255, %v3251
        %v3508 = vpack.c.b16 %v3256, %v3252
        %v3509 = vpack.c.b16 %v3257, %v3253
        %v3510 = vpack.c.b16 %v3258, %v3254
        %v3511 = vpack.c.b16 %v3263, %v3259
        %v3512 = vpack.c.b16 %v3264, %v3260
        %v3513 = vpack.c.b16 %v3265, %v3261
        %v3514 = vpack.c.b16 %v3266, %v3262
        %v3515 = vpack.c.b16 %v3271, %v3267
        %v3516 = vpack.c.b16 %v3272, %v3268
        %v3517 = vpack.c.b16 %v3273, %v3269
        %v3518 = vpack.c.b16 %v3274, %v3270
        %v3519 = vpack.c.b16 %v3279, %v3275
        %v3520 = vpack.c.b16 %v3280, %v3276
        %v3521 = vpack.c.b16 %v3281, %v3277
        %v3522 = vpack.c.b16 %v3282, %v3278
        %v3523 = vpack.c.b16 %v3287, %v3283
        %v3524 = vpack.c.b16 %v3288, %v3284
        %v3525 = vpack.c.b16 %v3289, %v3285
        %v3526 = vpack.c.b16 %v3290, %v3286
        %v3527 = vpack.c.b16 %v3295, %v3291
        %v3528 = vpack.c.b16 %v3296, %v3292
        %v3529 = vpack.c.b16 %v3297, %v3293
        %v3530 = vpack.c.b16 %v3298, %v3294
        %v3531 = vpack.c.b16 %v3303, %v3299
        %v3532 = vpack.c.b16 %v3304, %v3300
        %v3533 = vpack.c.b16 %v3305, %v3301
        %v3534 = vpack.c.b16 %v3306, %v3302
        %v3535 = vpack.c.b16 %v3311, %v3307
        %v3536 = vpack.c.b16 %v3312, %v3308
        %v3537 = vpack.c.b16 %v3313, %v3309
        %v3538 = vpack.c.b16 %v3314, %v3310
        %v3539 = vpack.c.b16 %v3319, %v3315
        %v3540 = vpack.c.b16 %v3320, %v3316
        %v3541 = vpack.c.b16 %v3321, %v3317
        %v3542 = vpack.c.b16 %v3322, %v3318
        %v3543 = vpack.c.b16 %v3327, %v3323
        %v3544 = vpack.c.b16 %v3328, %v3324
        %v3545 = vpack.c.b16 %v3329, %v3325
        %v3546 = vpack.c.b16 %v3330, %v3326
        %v3547 = vpack.c.b16 %v3335, %v3331
        %v3548 = vpack.c.b16 %v3336, %v3332
        %v3549 = vpack.c.b16 %v3337, %v3333
        %v3550 = vpack.c.b16 %v3338, %v3334
        %v3551 = vpack.c.b16 %v3343, %v3339
        %v3552 = vpack.c.b16 %v3344, %v3340
        %v3553 = vpack.c.b16 %v3345, %v3341
        %v3554 = vpack.c.b16 %v3346, %v3342
        %v3555 = vpack.c.b16 %v3351, %v3347
        %v3556 = vpack.c.b16 %v3352, %v3348
        %v3557 = vpack.c.b16 %v3353, %v3349
        %v3558 = vpack.c.b16 %v3354, %v3350
        %v3559 = vpack.c.b16 %v3359, %v3355
        %v3560 = vpack.c.b16 %v3360, %v3356
        %v3561 = vpack.c.b16 %v3361, %v3357
        %v3562 = vpack.c.b16 %v3362, %v3358
        %v3563 = vpack.c.b16 %v3367, %v3363
        %v3564 = vpack.c.b16 %v3368, %v3364
        %v3565 = vpack.c.b16 %v3369, %v3365
        %v3566 = vpack.c.b16 %v3370, %v3366
        %v3567 = vpack.c.b16 %v3375, %v3371
        %v3568 = vpack.c.b16 %v3376, %v3372
        %v3569 = vpack.c.b16 %v3377, %v3373
        %v3570 = vpack.c.b16 %v3378, %v3374
        %v3571 = vpack.c.b16 %v3383, %v3379
        %v3572 = vpack.c.b16 %v3384, %v3380
        %v3573 = vpack.c.b16 %v3385, %v3381
        %v3574 = vpack.c.b16 %v3386, %v3382
        %v3575 = vpack.c.b16 %v3391, %v3387
        %v3576 = vpack.c.b16 %v3392, %v3388
        %v3577 = vpack.c.b16 %v3393, %v3389
        %v3578 = vpack.c.b16 %v3394, %v3390
        %v3579 = vpack.c.b16 %v3399, %v3395
        %v3580 = vpack.c.b16 %v3400, %v3396
        %v3581 = vpack.c.b16 %v3401, %v3397
        %v3582 = vpack.c.b16 %v3402, %v3398
        %v3583 = vpack.c.b16 %v3407, %v3403
        %v3584 = vpack.c.b16 %v3408, %v3404
        %v3585 = vpack.c.b16 %v3409, %v3405
        %v3586 = vpack.c.b16 %v3410, %v3406
        %v3587 = vpack.c.b16 %v3415, %v3411
        %v3588 = vpack.c.b16 %v3416, %v3412
        %v3589 = vpack.c.b16 %v3417, %v3413
        %v3590 = vpack.c.b16 %v3418, %v3414
        %v3591 = vpack.c.b16 %v3423, %v3419
        %v3592 = vpack.c.b16 %v3424, %v3420
        %v3593 = vpack.c.b16 %v3425, %v3421
        %v3594 = vpack.c.b16 %v3426, %v3422
        %v3595 = vpack.c.b16 %v3431, %v3427
        %v3596 = vpack.c.b16 %v3432, %v3428
        %v3597 = vpack.c.b16 %v3433, %v3429
        %v3598 = vpack.c.b16 %v3434, %v3430
        %v3599 = vpack.c.b16 %v3439, %v3435
        %v3600 = vpack.c.b16 %v3440, %v3436
        %v3601 = vpack.c.b16 %v3441, %v3437
        %v3602 = vpack.c.b16 %v3442, %v3438
        %v3603 = vpack.c.b16 %v3447, %v3443
        %v3604 = vpack.c.b16 %v3448, %v3444
        %v3605 = vpack.c.b16 %v3449, %v3445
        %v3606 = vpack.c.b16 %v3450, %v3446
        %v3607 = vpack.c.b16 %v3455, %v3451
        %v3608 = vpack.c.b16 %v3456, %v3452
        %v3609 = vpack.c.b16 %v3457, %v3453
        %v3610 = vpack.c.b16 %v3458, %v3454
        %v3611 = vpack.c.b16 %v3463, %v3459
        %v3612 = vpack.c.b16 %v3464, %v3460
        %v3613 = vpack.c.b16 %v3465, %v3461
        %v3614 = vpack.c.b16 %v3466, %v3462
        %v3615 = vpack.c.b16 %v3471, %v3467
        %v3616 = vpack.c.b16 %v3472, %v3468
        %v3617 = vpack.c.b16 %v3473, %v3469
        %v3618 = vpack.c.b16 %v3474, %v3470
        %v3619 = vpack.c.b16 %v3479, %v3475
        %v3620 = vpack.c.b16 %v3480, %v3476
        %v3621 = vpack.c.b16 %v3481, %v3477
        %v3622 = vpack.c.b16 %v3482, %v3478
        %v3623 = vpack.c.b16 %v3487, %v3483
        %v3624 = vpack.c.b16 %v3488, %v3484
        %v3625 = vpack.c.b16 %v3489, %v3485
        %v3626 = vpack.c.b16 %v3490, %v3486
        %v3627 = vpack.c.b16 %v3495, %v3491
        %v3628 = vpack.c.b16 %v3496, %v3492
        %v3629 = vpack.c.b16 %v3497, %v3493
        %v3630 = vpack.c.b16 %v3498, %v3494
        %v3631 = vpack.c.b16 %v3503, %v3499
        %v3632 = vpack.c.b16 %v3504, %v3500
        %v3633 = vpack.c.b16 %v3505, %v3501
        %v3634 = vpack.c.b16 %v3506, %v3502
        %3763 = vmatpush.bf16.msra.mxu0 %v3535
        %3764 = vmatpush.bf16.msra.mxu0 %v3531
        %3765 = vmatpush.bf16.msra.mxu0 %v3527
        %3766 = vmatpush.bf16.msra.mxu0 %v3523
        %3767 = vmatpush.bf16.msra.mxu0 %v3519
        %3768 = vmatpush.bf16.msra.mxu0 %v3515
        %3769 = vmatpush.bf16.msra.mxu0 %v3511
        %3770 = vmatpush.bf16.msra.mxu0 %v3507
        %3771 = vmatmul.bf16.gmra.mxu0 %v3115
        %v3772 = vpop.f32.mrf.mxu0
        %v3773 = vadd.f32 0.0, %v3772
        %v3774 = vpop.f32.mrf.mxu0
        %3775 = vdwg.mxu0
        %3776 = vmatpush.bf16.msra.mxu0 %v3567
        %3777 = vmatpush.bf16.msra.mxu0 %v3563
        %3778 = vmatpush.bf16.msra.mxu0 %v3559
        %3779 = vmatpush.bf16.msra.mxu0 %v3555
        %3780 = vmatpush.bf16.msra.mxu0 %v3551
        %3781 = vmatpush.bf16.msra.mxu0 %v3547
        %3782 = vmatpush.bf16.msra.mxu0 %v3543
        %3783 = vmatpush.bf16.msra.mxu0 %v3539
        %3784 = vmatmul.bf16.gmra.mxu0 %v3116
        %v3785 = vpop.f32.mrf.mxu0
        %v3786 = vadd.f32 %v3773, %v3785
        %v3787 = vpop.f32.mrf.mxu0
        %3788 = vdwg.mxu0
        %3789 = vmatpush.bf16.msra.mxu0 %v3599
        %3790 = vmatpush.bf16.msra.mxu0 %v3595
        %3791 = vmatpush.bf16.msra.mxu0 %v3591
        %3792 = vmatpush.bf16.msra.mxu0 %v3587
        %3793 = vmatpush.bf16.msra.mxu0 %v3583
        %3794 = vmatpush.bf16.msra.mxu0 %v3579
        %3795 = vmatpush.bf16.msra.mxu0 %v3575
        %3796 = vmatpush.bf16.msra.mxu0 %v3571
        %3797 = vmatmul.bf16.gmra.mxu0 %v3117
        %v3798 = vpop.f32.mrf.mxu0
        %v3799 = vadd.f32 %v3786, %v3798
        %v3800 = vpop.f32.mrf.mxu0
        %3801 = vdwg.mxu0
        %3802 = vmatpush.bf16.msra.mxu0 %v3631
        %3803 = vmatpush.bf16.msra.mxu0 %v3627
        %3804 = vmatpush.bf16.msra.mxu0 %v3623
        %3805 = vmatpush.bf16.msra.mxu0 %v3619
        %3806 = vmatpush.bf16.msra.mxu0 %v3615
        %3807 = vmatpush.bf16.msra.mxu0 %v3611
        %3808 = vmatpush.bf16.msra.mxu0 %v3607
        %3809 = vmatpush.bf16.msra.mxu0 %v3603
        %3810 = vmatmul.bf16.gmra.mxu0 %v3118
        %v3811 = vpop.f32.mrf.mxu0
        %v3812 = vadd.f32 %v3799, %v3811
        %v3813 = vpop.f32.mrf.mxu0
        %3814 = vdwg.mxu0
        %3815 = vmatpush.bf16.msra.mxu0 %v3536
        %3816 = vmatpush.bf16.msra.mxu0 %v3532
        %3817 = vmatpush.bf16.msra.mxu0 %v3528
        %3818 = vmatpush.bf16.msra.mxu0 %v3524
        %3819 = vmatpush.bf16.msra.mxu0 %v3520
        %3820 = vmatpush.bf16.msra.mxu0 %v3516
        %3821 = vmatpush.bf16.msra.mxu0 %v3512
        %3822 = vmatpush.bf16.msra.mxu0 %v3508
        %3823 = vmatmul.bf16.gmra.mxu0 %v3115
        %v3824 = vpop.f32.mrf.mxu0
        %v3825 = vadd.f32 0.0, %v3824
        %v3826 = vpop.f32.mrf.mxu0
        %3827 = vdwg.mxu0
        %3828 = vmatpush.bf16.msra.mxu0 %v3568
        %3829 = vmatpush.bf16.msra.mxu0 %v3564
        %3830 = vmatpush.bf16.msra.mxu0 %v3560
        %3831 = vmatpush.bf16.msra.mxu0 %v3556
        %3832 = vmatpush.bf16.msra.mxu0 %v3552
        %3833 = vmatpush.bf16.msra.mxu0 %v3548
        %3834 = vmatpush.bf16.msra.mxu0 %v3544
        %3835 = vmatpush.bf16.msra.mxu0 %v3540
        %3836 = vmatmul.bf16.gmra.mxu0 %v3116
        %v3837 = vpop.f32.mrf.mxu0
        %v3838 = vadd.f32 %v3825, %v3837
        %v3839 = vpop.f32.mrf.mxu0
        %3840 = vdwg.mxu0
        %3841 = vmatpush.bf16.msra.mxu0 %v3600
        %3842 = vmatpush.bf16.msra.mxu0 %v3596
        %3843 = vmatpush.bf16.msra.mxu0 %v3592
        %3844 = vmatpush.bf16.msra.mxu0 %v3588
        %3845 = vmatpush.bf16.msra.mxu0 %v3584
        %3846 = vmatpush.bf16.msra.mxu0 %v3580
        %3847 = vmatpush.bf16.msra.mxu0 %v3576
        %3848 = vmatpush.bf16.msra.mxu0 %v3572
        %3849 = vmatmul.bf16.gmra.mxu0 %v3117
        %v3850 = vpop.f32.mrf.mxu0
        %v3851 = vadd.f32 %v3838, %v3850
        %v3852 = vpop.f32.mrf.mxu0
        %3853 = vdwg.mxu0
        %3854 = vmatpush.bf16.msra.mxu0 %v3632
        %3855 = vmatpush.bf16.msra.mxu0 %v3628
        %3856 = vmatpush.bf16.msra.mxu0 %v3624
        %3857 = vmatpush.bf16.msra.mxu0 %v3620
        %3858 = vmatpush.bf16.msra.mxu0 %v3616
        %3859 = vmatpush.bf16.msra.mxu0 %v3612
        %3860 = vmatpush.bf16.msra.mxu0 %v3608
        %3861 = vmatpush.bf16.msra.mxu0 %v3604
        %3862 = vmatmul.bf16.gmra.mxu0 %v3118
        %v3863 = vpop.f32.mrf.mxu0
        %v3864 = vadd.f32 %v3851, %v3863
        %v3865 = vpop.f32.mrf.mxu0
        %3866 = vdwg.mxu0
        %3867 = vmatpush.bf16.msra.mxu0 %v3537
        %3868 = vmatpush.bf16.msra.mxu0 %v3533
        %3869 = vmatpush.bf16.msra.mxu0 %v3529
        %3870 = vmatpush.bf16.msra.mxu0 %v3525
        %3871 = vmatpush.bf16.msra.mxu0 %v3521
        %3872 = vmatpush.bf16.msra.mxu0 %v3517
        %3873 = vmatpush.bf16.msra.mxu0 %v3513
        %3874 = vmatpush.bf16.msra.mxu0 %v3509
        %3875 = vmatmul.bf16.gmra.mxu0 %v3115
        %v3876 = vpop.f32.mrf.mxu0
        %v3877 = vadd.f32 0.0, %v3876
        %v3878 = vpop.f32.mrf.mxu0
        %3879 = vdwg.mxu0
        %3880 = vmatpush.bf16.msra.mxu0 %v3569
        %3881 = vmatpush.bf16.msra.mxu0 %v3565
        %3882 = vmatpush.bf16.msra.mxu0 %v3561
        %3883 = vmatpush.bf16.msra.mxu0 %v3557
        %3884 = vmatpush.bf16.msra.mxu0 %v3553
        %3885 = vmatpush.bf16.msra.mxu0 %v3549
        %3886 = vmatpush.bf16.msra.mxu0 %v3545
        %3887 = vmatpush.bf16.msra.mxu0 %v3541
        %3888 = vmatmul.bf16.gmra.mxu0 %v3116
        %v3889 = vpop.f32.mrf.mxu0
        %v3890 = vadd.f32 %v3877, %v3889
        %v3891 = vpop.f32.mrf.mxu0
        %3892 = vdwg.mxu0
        %3893 = vmatpush.bf16.msra.mxu0 %v3601
        %3894 = vmatpush.bf16.msra.mxu0 %v3597
        %3895 = vmatpush.bf16.msra.mxu0 %v3593
        %3896 = vmatpush.bf16.msra.mxu0 %v3589
        %3897 = vmatpush.bf16.msra.mxu0 %v3585
        %3898 = vmatpush.bf16.msra.mxu0 %v3581
        %3899 = vmatpush.bf16.msra.mxu0 %v3577
        %3900 = vmatpush.bf16.msra.mxu0 %v3573
        %3901 = vmatmul.bf16.gmra.mxu0 %v3117
        %v3902 = vpop.f32.mrf.mxu0
        %v3903 = vadd.f32 %v3890, %v3902
        %v3904 = vpop.f32.mrf.mxu0
        %3905 = vdwg.mxu0
        %3906 = vmatpush.bf16.msra.mxu0 %v3633
        %3907 = vmatpush.bf16.msra.mxu0 %v3629
        %3908 = vmatpush.bf16.msra.mxu0 %v3625
        %3909 = vmatpush.bf16.msra.mxu0 %v3621
        %3910 = vmatpush.bf16.msra.mxu0 %v3617
        %3911 = vmatpush.bf16.msra.mxu0 %v3613
        %3912 = vmatpush.bf16.msra.mxu0 %v3609
        %3913 = vmatpush.bf16.msra.mxu0 %v3605
        %3914 = vmatmul.bf16.gmra.mxu0 %v3118
        %v3915 = vpop.f32.mrf.mxu0
        %v3916 = vadd.f32 %v3903, %v3915
        %v3917 = vpop.f32.mrf.mxu0
        %3918 = vdwg.mxu0
        %3919 = vmatpush.bf16.msra.mxu0 %v3538
        %3920 = vmatpush.bf16.msra.mxu0 %v3534
        %3921 = vmatpush.bf16.msra.mxu0 %v3530
        %3922 = vmatpush.bf16.msra.mxu0 %v3526
        %3923 = vmatpush.bf16.msra.mxu0 %v3522
        %3924 = vmatpush.bf16.msra.mxu0 %v3518
        %3925 = vmatpush.bf16.msra.mxu0 %v3514
        %3926 = vmatpush.bf16.msra.mxu0 %v3510
        %3927 = vmatmul.bf16.gmra.mxu0 %v3115
        %v3928 = vpop.f32.mrf.mxu0
        %v3929 = vadd.f32 0.0, %v3928
        %v3930 = vpop.f32.mrf.mxu0
        %3931 = vdwg.mxu0
        %3932 = vmatpush.bf16.msra.mxu0 %v3570
        %3933 = vmatpush.bf16.msra.mxu0 %v3566
        %3934 = vmatpush.bf16.msra.mxu0 %v3562
        %3935 = vmatpush.bf16.msra.mxu0 %v3558
        %3936 = vmatpush.bf16.msra.mxu0 %v3554
        %3937 = vmatpush.bf16.msra.mxu0 %v3550
        %3938 = vmatpush.bf16.msra.mxu0 %v3546
        %3939 = vmatpush.bf16.msra.mxu0 %v3542
        %3940 = vmatmul.bf16.gmra.mxu0 %v3116
        %v3941 = vpop.f32.mrf.mxu0
        %v3942 = vadd.f32 %v3929, %v3941
        %v3943 = vpop.f32.mrf.mxu0
        %3944 = vdwg.mxu0
        %3945 = vmatpush.bf16.msra.mxu0 %v3602
        %3946 = vmatpush.bf16.msra.mxu0 %v3598
        %3947 = vmatpush.bf16.msra.mxu0 %v3594
        %3948 = vmatpush.bf16.msra.mxu0 %v3590
        %3949 = vmatpush.bf16.msra.mxu0 %v3586
        %3950 = vmatpush.bf16.msra.mxu0 %v3582
        %3951 = vmatpush.bf16.msra.mxu0 %v3578
        %3952 = vmatpush.bf16.msra.mxu0 %v3574
        %3953 = vmatmul.bf16.gmra.mxu0 %v3117
        %v3954 = vpop.f32.mrf.mxu0
        %v3955 = vadd.f32 %v3942, %v3954
        %v3956 = vpop.f32.mrf.mxu0
        %3957 = vdwg.mxu0
        %3958 = vmatpush.bf16.msra.mxu0 %v3634
        %3959 = vmatpush.bf16.msra.mxu0 %v3630
        %3960 = vmatpush.bf16.msra.mxu0 %v3626
        %3961 = vmatpush.bf16.msra.mxu0 %v3622
        %3962 = vmatpush.bf16.msra.mxu0 %v3618
        %3963 = vmatpush.bf16.msra.mxu0 %v3614
        %3964 = vmatpush.bf16.msra.mxu0 %v3610
        %3965 = vmatpush.bf16.msra.mxu0 %v3606
        %3966 = vmatmul.bf16.gmra.mxu0 %v3118
        %v3967 = vpop.f32.mrf.mxu0
        %v3968 = vadd.f32 %v3955, %v3967
        %v3969 = vpop.f32.mrf.mxu0
        %3970 = vdwg.mxu0
        %v3971 = vadd.f32 %v2815, %v3812
        %v3972 = vadd.f32 %v2867, %v3864
        %v3973 = vadd.f32 %v2919, %v3916
        %v3974 = vadd.f32 %v2971, %v3968
        %v3975 = vld [vmem:[#allocation10] sm:$0xf]
        %v3977 = vperm.slane %v3975, 0
        %v3978 = vperm.slane %v3975, 1
        %v3979 = vperm.slane %v3975, 2
        %v3980 = vperm.slane %v3975, 3
        %v3985 = vadd.f32 %v3971, %v3977
        %v3986 = vadd.f32 %v3972, %v3978
        %v3987 = vadd.f32 %v3973, %v3979
        %v3988 = vadd.f32 %v3974, %v3980
        %v3989 = vmax.f32 %v3985, 0.0
        %v3990 = vmax.f32 %v3986, 0.0
        %v3991 = vmax.f32 %v3987, 0.0
        %v3992 = vmax.f32 %v3988, 0.0
        %3993 = vst [vmem:[#allocation3] sm:$0xff] 0
        %v3998 = vrot.slane %v3989, 1
        %v3999 = vrot.slane %v3990, 1
        %v4000 = vrot.slane %v3991, 1
        %v4001 = vrot.slane %v3992, 1
        %v4006 = vmax.f32 %v3989, %v3998
        %v4007 = vmax.f32 %v3990, %v3999
        %v4008 = vmax.f32 %v3991, %v4000
        %v4009 = vmax.f32 %v3992, %v4001
        %v4010 = vmax.f32 %v4006, %v4007
        %v4011 = vmax.f32 %v4007, %v4008
        %v4012 = vmax.f32 %v4008, %v4009
        %v4013 = vpack.c.bf16 %v4011, %v4010
        %v4014 = vpack.c.bf16 %v4012, %v4012
        %v4017 = vrot.slane %v4013, 2
        %v4018 = vrot.slane %v4014, 4
        %v4019 = vrot.slane %v4014, 6
        %vm4020 = vcmask 1041408
        %v4023 = vsel %vm4020, %v4013, %v4017
        %vm4024 = vcmask 1045508
        %v4027 = vsel %vm4024, %v4018, %v4019
        %vm4028 = vcmask 1043456
        %v4029 = vsel %vm4028, %v4023, %v4027
        %v4030 = vshll.u32 %v4029, 16
        %vm4033 = vsmask.f32 7946
        %vm4034 = vmand %vm945, %vm4033
        %vm4035 = vmor %vm4034, %vm888
        %vm4036 = vmor %vm891, %vm4035
        %v4037 = vld [vmem:[#allocation3] sm:$0x15]
        %v4038 = vsel %vm4036, %v4030, %v4037
        %4039 = vst [vmem:[#allocation3] sm:$0x15] %v4038
        %vm4041 = vcmask 1043459
        %vm4042 = vsmask.f32 3328
        %vm4043 = vmand %vm4041, %vm4042
        %vm4044 = vmor %vm4043, %vm904
        %vm4045 = vmor %vm907, %vm4044
        %v4046 = vld [vmem:[#allocation3] sm:$0x2a]
        %v4047 = vsel %vm4045, %v4029, %v4046
        %4048 = vst [vmem:[#allocation3] sm:$0x2a] %v4047
        %v4049 = vld [vmem:[#allocation3] sm:$0x55]
        %v4050 = vld [vmem:[#allocation12] sm:$0xff]
        %v4051 = vld [vmem:[#allocation12 + $0x8] sm:$0xff]
        %v4052 = vld [vmem:[#allocation12 + $0x10] sm:$0xff]
        %v4053 = vld [vmem:[#allocation12 + $0x18] sm:$0xff]
        %v4054 = vld [vmem:[#allocation12 + $0x20] sm:$0xff]
        %v4055 = vld [vmem:[#allocation12 + $0x28] sm:$0xff]
        %v4056 = vld [vmem:[#allocation12 + $0x30] sm:$0xff]
        %v4057 = vld [vmem:[#allocation12 + $0x38] sm:$0xff]
        %v4058 = vld [vmem:[#allocation12 + $0x40] sm:$0xff]
        %v4059 = vld [vmem:[#allocation12 + $0x48] sm:$0xff]
        %v4060 = vld [vmem:[#allocation12 + $0x50] sm:$0xff]
        %v4061 = vld [vmem:[#allocation12 + $0x58] sm:$0xff]
        %v4062 = vld [vmem:[#allocation12 + $0x60] sm:$0xff]
        %v4063 = vld [vmem:[#allocation12 + $0x68] sm:$0xff]
        %v4064 = vld [vmem:[#allocation12 + $0x70] sm:$0xff]
        %v4065 = vld [vmem:[#allocation12 + $0x78] sm:$0xff]
        %v4066 = vld [vmem:[#allocation12 + $0x80] sm:$0xff]
        %v4067 = vld [vmem:[#allocation12 + $0x88] sm:$0xff]
        %v4068 = vld [vmem:[#allocation12 + $0x90] sm:$0xff]
        %v4069 = vld [vmem:[#allocation12 + $0x98] sm:$0xff]
        %v4070 = vld [vmem:[#allocation12 + $0xa0] sm:$0xff]
        %v4071 = vld [vmem:[#allocation12 + $0xa8] sm:$0xff]
        %v4072 = vld [vmem:[#allocation12 + $0xb0] sm:$0xff]
        %v4073 = vld [vmem:[#allocation12 + $0xb8] sm:$0xff]
        %v4074 = vld [vmem:[#allocation12 + $0xc0] sm:$0xff]
        %v4075 = vld [vmem:[#allocation12 + $0xc8] sm:$0xff]
        %v4076 = vld [vmem:[#allocation12 + $0xd0] sm:$0xff]
        %v4077 = vld [vmem:[#allocation12 + $0xd8] sm:$0xff]
        %v4078 = vld [vmem:[#allocation12 + $0xe0] sm:$0xff]
        %v4079 = vld [vmem:[#allocation12 + $0xe8] sm:$0xff]
        %v4080 = vld [vmem:[#allocation12 + $0xf0] sm:$0xff]
        %v4081 = vld [vmem:[#allocation12 + $0xf8] sm:$0xff]
        %v4082 = vld [vmem:[#allocation12 + $0x100] sm:$0xff]
        %v4083 = vld [vmem:[#allocation12 + $0x108] sm:$0xff]
        %v4084 = vld [vmem:[#allocation12 + $0x110] sm:$0xff]
        %v4085 = vld [vmem:[#allocation12 + $0x118] sm:$0xff]
        %v4086 = vld [vmem:[#allocation12 + $0x120] sm:$0xff]
        %v4087 = vld [vmem:[#allocation12 + $0x128] sm:$0xff]
        %v4088 = vld [vmem:[#allocation12 + $0x130] sm:$0xff]
        %v4089 = vld [vmem:[#allocation12 + $0x138] sm:$0xff]
        %v4090 = vld [vmem:[#allocation12 + $0x140] sm:$0xff]
        %v4091 = vld [vmem:[#allocation12 + $0x148] sm:$0xff]
        %v4092 = vld [vmem:[#allocation12 + $0x150] sm:$0xff]
        %v4093 = vld [vmem:[#allocation12 + $0x158] sm:$0xff]
        %v4094 = vld [vmem:[#allocation12 + $0x160] sm:$0xff]
        %v4095 = vld [vmem:[#allocation12 + $0x168] sm:$0xff]
        %v4096 = vld [vmem:[#allocation12 + $0x170] sm:$0xff]
        %v4097 = vld [vmem:[#allocation12 + $0x178] sm:$0xff]
        %v4098 = vld [vmem:[#allocation12 + $0x180] sm:$0xff]
        %v4099 = vld [vmem:[#allocation12 + $0x188] sm:$0xff]
        %v4100 = vld [vmem:[#allocation12 + $0x190] sm:$0xff]
        %v4101 = vld [vmem:[#allocation12 + $0x198] sm:$0xff]
        %v4102 = vld [vmem:[#allocation12 + $0x1a0] sm:$0xff]
        %v4103 = vld [vmem:[#allocation12 + $0x1a8] sm:$0xff]
        %v4104 = vld [vmem:[#allocation12 + $0x1b0] sm:$0xff]
        %v4105 = vld [vmem:[#allocation12 + $0x1b8] sm:$0xff]
        %v4106 = vld [vmem:[#allocation12 + $0x1c0] sm:$0xff]
        %v4107 = vld [vmem:[#allocation12 + $0x1c8] sm:$0xff]
        %v4108 = vld [vmem:[#allocation12 + $0x1d0] sm:$0xff]
        %v4109 = vld [vmem:[#allocation12 + $0x1d8] sm:$0xff]
        %v4110 = vld [vmem:[#allocation12 + $0x1e0] sm:$0xff]
        %v4111 = vld [vmem:[#allocation12 + $0x1e8] sm:$0xff]
        %v4112 = vld [vmem:[#allocation12 + $0x1f0] sm:$0xff]
        %v4113 = vld [vmem:[#allocation12 + $0x1f8] sm:$0xff]
        %v4114 = vld [vmem:[#allocation12 + $0x200] sm:$0xff]
        %v4115 = vld [vmem:[#allocation12 + $0x208] sm:$0xff]
        %v4116 = vld [vmem:[#allocation12 + $0x210] sm:$0xff]
        %v4117 = vld [vmem:[#allocation12 + $0x218] sm:$0xff]
        %v4118 = vld [vmem:[#allocation12 + $0x220] sm:$0xff]
        %v4119 = vld [vmem:[#allocation12 + $0x228] sm:$0xff]
        %v4120 = vld [vmem:[#allocation12 + $0x230] sm:$0xff]
        %v4121 = vld [vmem:[#allocation12 + $0x238] sm:$0xff]
        %v4122 = vld [vmem:[#allocation12 + $0x240] sm:$0xff]
        %v4123 = vld [vmem:[#allocation12 + $0x248] sm:$0xff]
        %v4124 = vld [vmem:[#allocation12 + $0x250] sm:$0xff]
        %v4125 = vld [vmem:[#allocation12 + $0x258] sm:$0xff]
        %v4126 = vld [vmem:[#allocation12 + $0x260] sm:$0xff]
        %v4127 = vld [vmem:[#allocation12 + $0x268] sm:$0xff]
        %v4128 = vld [vmem:[#allocation12 + $0x270] sm:$0xff]
        %v4129 = vld [vmem:[#allocation12 + $0x278] sm:$0xff]
        %v4130 = vld [vmem:[#allocation12 + $0x280] sm:$0xff]
        %v4131 = vld [vmem:[#allocation12 + $0x288] sm:$0xff]
        %v4132 = vld [vmem:[#allocation12 + $0x290] sm:$0xff]
        %v4133 = vld [vmem:[#allocation12 + $0x298] sm:$0xff]
        %v4134 = vld [vmem:[#allocation12 + $0x2a0] sm:$0xff]
        %v4135 = vld [vmem:[#allocation12 + $0x2a8] sm:$0xff]
        %v4136 = vld [vmem:[#allocation12 + $0x2b0] sm:$0xff]
        %v4137 = vld [vmem:[#allocation12 + $0x2b8] sm:$0xff]
        %v4138 = vld [vmem:[#allocation12 + $0x2c0] sm:$0xff]
        %v4139 = vld [vmem:[#allocation12 + $0x2c8] sm:$0xff]
        %v4140 = vld [vmem:[#allocation12 + $0x2d0] sm:$0xff]
        %v4141 = vld [vmem:[#allocation12 + $0x2d8] sm:$0xff]
        %v4142 = vld [vmem:[#allocation12 + $0x2e0] sm:$0xff]
        %v4143 = vld [vmem:[#allocation12 + $0x2e8] sm:$0xff]
        %v4144 = vld [vmem:[#allocation12 + $0x2f0] sm:$0xff]
        %v4145 = vld [vmem:[#allocation12 + $0x2f8] sm:$0xff]
        %v4146 = vld [vmem:[#allocation12 + $0x300] sm:$0xff]
        %v4147 = vld [vmem:[#allocation12 + $0x308] sm:$0xff]
        %v4148 = vld [vmem:[#allocation12 + $0x310] sm:$0xff]
        %v4149 = vld [vmem:[#allocation12 + $0x318] sm:$0xff]
        %v4150 = vld [vmem:[#allocation12 + $0x320] sm:$0xff]
        %v4151 = vld [vmem:[#allocation12 + $0x328] sm:$0xff]
        %v4152 = vld [vmem:[#allocation12 + $0x330] sm:$0xff]
        %v4153 = vld [vmem:[#allocation12 + $0x338] sm:$0xff]
        %v4154 = vld [vmem:[#allocation12 + $0x340] sm:$0xff]
        %v4155 = vld [vmem:[#allocation12 + $0x348] sm:$0xff]
        %v4156 = vld [vmem:[#allocation12 + $0x350] sm:$0xff]
        %v4157 = vld [vmem:[#allocation12 + $0x358] sm:$0xff]
        %v4158 = vld [vmem:[#allocation12 + $0x360] sm:$0xff]
        %v4159 = vld [vmem:[#allocation12 + $0x368] sm:$0xff]
        %v4160 = vld [vmem:[#allocation12 + $0x370] sm:$0xff]
        %v4161 = vld [vmem:[#allocation12 + $0x378] sm:$0xff]
        %v4162 = vld [vmem:[#allocation12 + $0x380] sm:$0xff]
        %v4163 = vld [vmem:[#allocation12 + $0x388] sm:$0xff]
        %v4164 = vld [vmem:[#allocation12 + $0x390] sm:$0xff]
        %v4165 = vld [vmem:[#allocation12 + $0x398] sm:$0xff]
        %v4166 = vld [vmem:[#allocation12 + $0x3a0] sm:$0xff]
        %v4167 = vld [vmem:[#allocation12 + $0x3a8] sm:$0xff]
        %v4168 = vld [vmem:[#allocation12 + $0x3b0] sm:$0xff]
        %v4169 = vld [vmem:[#allocation12 + $0x3b8] sm:$0xff]
        %v4170 = vld [vmem:[#allocation12 + $0x3c0] sm:$0xff]
        %v4171 = vld [vmem:[#allocation12 + $0x3c8] sm:$0xff]
        %v4172 = vld [vmem:[#allocation12 + $0x3d0] sm:$0xff]
        %v4173 = vld [vmem:[#allocation12 + $0x3d8] sm:$0xff]
        %v4174 = vld [vmem:[#allocation12 + $0x3e0] sm:$0xff]
        %v4175 = vld [vmem:[#allocation12 + $0x3e8] sm:$0xff]
        %v4176 = vld [vmem:[#allocation12 + $0x3f0] sm:$0xff]
        %v4177 = vld [vmem:[#allocation12 + $0x3f8] sm:$0xff]
        %v4178 = vld [vmem:[#allocation12 + $0x400] sm:$0xff]
        %v4179 = vld [vmem:[#allocation12 + $0x408] sm:$0xff]
        %v4180 = vld [vmem:[#allocation12 + $0x410] sm:$0xff]
        %v4181 = vld [vmem:[#allocation12 + $0x418] sm:$0xff]
        %v4182 = vld [vmem:[#allocation12 + $0x420] sm:$0xff]
        %v4183 = vld [vmem:[#allocation12 + $0x428] sm:$0xff]
        %v4184 = vld [vmem:[#allocation12 + $0x430] sm:$0xff]
        %v4185 = vld [vmem:[#allocation12 + $0x438] sm:$0xff]
        %v4186 = vld [vmem:[#allocation12 + $0x440] sm:$0xff]
        %v4187 = vld [vmem:[#allocation12 + $0x448] sm:$0xff]
        %v4188 = vld [vmem:[#allocation12 + $0x450] sm:$0xff]
        %v4189 = vld [vmem:[#allocation12 + $0x458] sm:$0xff]
        %v4190 = vld [vmem:[#allocation12 + $0x460] sm:$0xff]
        %v4191 = vld [vmem:[#allocation12 + $0x468] sm:$0xff]
        %v4192 = vld [vmem:[#allocation12 + $0x470] sm:$0xff]
        %v4193 = vld [vmem:[#allocation12 + $0x478] sm:$0xff]
        %v4194 = vld [vmem:[#allocation12 + $0x480] sm:$0xff]
        %v4195 = vld [vmem:[#allocation12 + $0x488] sm:$0xff]
        %v4196 = vld [vmem:[#allocation12 + $0x490] sm:$0xff]
        %v4197 = vld [vmem:[#allocation12 + $0x498] sm:$0xff]
        %v4198 = vld [vmem:[#allocation12 + $0x4a0] sm:$0xff]
        %v4199 = vld [vmem:[#allocation12 + $0x4a8] sm:$0xff]
        %v4200 = vld [vmem:[#allocation12 + $0x4b0] sm:$0xff]
        %v4201 = vld [vmem:[#allocation12 + $0x4b8] sm:$0xff]
        %v4202 = vld [vmem:[#allocation12 + $0x4c0] sm:$0xff]
        %v4203 = vld [vmem:[#allocation12 + $0x4c8] sm:$0xff]
        %v4204 = vld [vmem:[#allocation12 + $0x4d0] sm:$0xff]
        %v4205 = vld [vmem:[#allocation12 + $0x4d8] sm:$0xff]
        %v4206 = vld [vmem:[#allocation12 + $0x4e0] sm:$0xff]
        %v4207 = vld [vmem:[#allocation12 + $0x4e8] sm:$0xff]
        %v4208 = vld [vmem:[#allocation12 + $0x4f0] sm:$0xff]
        %v4209 = vld [vmem:[#allocation12 + $0x4f8] sm:$0xff]
        %v4210 = vld [vmem:[#allocation12 + $0x500] sm:$0xff]
        %v4211 = vld [vmem:[#allocation12 + $0x508] sm:$0xff]
        %v4212 = vld [vmem:[#allocation12 + $0x510] sm:$0xff]
        %v4213 = vld [vmem:[#allocation12 + $0x518] sm:$0xff]
        %v4214 = vld [vmem:[#allocation12 + $0x520] sm:$0xff]
        %v4215 = vld [vmem:[#allocation12 + $0x528] sm:$0xff]
        %v4216 = vld [vmem:[#allocation12 + $0x530] sm:$0xff]
        %v4217 = vld [vmem:[#allocation12 + $0x538] sm:$0xff]
        %v4218 = vld [vmem:[#allocation12 + $0x540] sm:$0xff]
        %v4219 = vld [vmem:[#allocation12 + $0x548] sm:$0xff]
        %v4220 = vld [vmem:[#allocation12 + $0x550] sm:$0xff]
        %v4221 = vld [vmem:[#allocation12 + $0x558] sm:$0xff]
        %v4222 = vld [vmem:[#allocation12 + $0x560] sm:$0xff]
        %v4223 = vld [vmem:[#allocation12 + $0x568] sm:$0xff]
        %v4224 = vld [vmem:[#allocation12 + $0x570] sm:$0xff]
        %v4225 = vld [vmem:[#allocation12 + $0x578] sm:$0xff]
        %v4226 = vld [vmem:[#allocation12 + $0x580] sm:$0xff]
        %v4227 = vld [vmem:[#allocation12 + $0x588] sm:$0xff]
        %v4228 = vld [vmem:[#allocation12 + $0x590] sm:$0xff]
        %v4229 = vld [vmem:[#allocation12 + $0x598] sm:$0xff]
        %v4230 = vld [vmem:[#allocation12 + $0x5a0] sm:$0xff]
        %v4231 = vld [vmem:[#allocation12 + $0x5a8] sm:$0xff]
        %v4232 = vld [vmem:[#allocation12 + $0x5b0] sm:$0xff]
        %v4233 = vld [vmem:[#allocation12 + $0x5b8] sm:$0xff]
        %v4234 = vld [vmem:[#allocation12 + $0x5c0] sm:$0xff]
        %v4235 = vld [vmem:[#allocation12 + $0x5c8] sm:$0xff]
        %v4236 = vld [vmem:[#allocation12 + $0x5d0] sm:$0xff]
        %v4237 = vld [vmem:[#allocation12 + $0x5d8] sm:$0xff]
        %v4238 = vld [vmem:[#allocation12 + $0x5e0] sm:$0xff]
        %v4239 = vld [vmem:[#allocation12 + $0x5e8] sm:$0xff]
        %v4240 = vld [vmem:[#allocation12 + $0x5f0] sm:$0xff]
        %v4241 = vld [vmem:[#allocation12 + $0x5f8] sm:$0xff]
        %v4242 = vld [vmem:[#allocation12 + $0x600] sm:$0xff]
        %v4243 = vld [vmem:[#allocation12 + $0x608] sm:$0xff]
        %v4244 = vld [vmem:[#allocation12 + $0x610] sm:$0xff]
        %v4245 = vld [vmem:[#allocation12 + $0x618] sm:$0xff]
        %v4246 = vld [vmem:[#allocation12 + $0x620] sm:$0xff]
        %v4247 = vld [vmem:[#allocation12 + $0x628] sm:$0xff]
        %v4248 = vld [vmem:[#allocation12 + $0x630] sm:$0xff]
        %v4249 = vld [vmem:[#allocation12 + $0x638] sm:$0xff]
        %v4250 = vld [vmem:[#allocation12 + $0x640] sm:$0xff]
        %v4251 = vld [vmem:[#allocation12 + $0x648] sm:$0xff]
        %v4252 = vld [vmem:[#allocation12 + $0x650] sm:$0xff]
        %v4253 = vld [vmem:[#allocation12 + $0x658] sm:$0xff]
        %v4254 = vld [vmem:[#allocation12 + $0x660] sm:$0xff]
        %v4255 = vld [vmem:[#allocation12 + $0x668] sm:$0xff]
        %v4256 = vld [vmem:[#allocation12 + $0x670] sm:$0xff]
        %v4257 = vld [vmem:[#allocation12 + $0x678] sm:$0xff]
        %v4258 = vld [vmem:[#allocation12 + $0x680] sm:$0xff]
        %v4259 = vld [vmem:[#allocation12 + $0x688] sm:$0xff]
        %v4260 = vld [vmem:[#allocation12 + $0x690] sm:$0xff]
        %v4261 = vld [vmem:[#allocation12 + $0x698] sm:$0xff]
        %v4262 = vld [vmem:[#allocation12 + $0x6a0] sm:$0xff]
        %v4263 = vld [vmem:[#allocation12 + $0x6a8] sm:$0xff]
        %v4264 = vld [vmem:[#allocation12 + $0x6b0] sm:$0xff]
        %v4265 = vld [vmem:[#allocation12 + $0x6b8] sm:$0xff]
        %v4266 = vld [vmem:[#allocation12 + $0x6c0] sm:$0xff]
        %v4267 = vld [vmem:[#allocation12 + $0x6c8] sm:$0xff]
        %v4268 = vld [vmem:[#allocation12 + $0x6d0] sm:$0xff]
        %v4269 = vld [vmem:[#allocation12 + $0x6d8] sm:$0xff]
        %v4270 = vld [vmem:[#allocation12 + $0x6e0] sm:$0xff]
        %v4271 = vld [vmem:[#allocation12 + $0x6e8] sm:$0xff]
        %v4272 = vld [vmem:[#allocation12 + $0x6f0] sm:$0xff]
        %v4273 = vld [vmem:[#allocation12 + $0x6f8] sm:$0xff]
        %v4274 = vld [vmem:[#allocation12 + $0x700] sm:$0xff]
        %v4275 = vld [vmem:[#allocation12 + $0x708] sm:$0xff]
        %v4276 = vld [vmem:[#allocation12 + $0x710] sm:$0xff]
        %v4277 = vld [vmem:[#allocation12 + $0x718] sm:$0xff]
        %v4278 = vld [vmem:[#allocation12 + $0x720] sm:$0xff]
        %v4279 = vld [vmem:[#allocation12 + $0x728] sm:$0xff]
        %v4280 = vld [vmem:[#allocation12 + $0x730] sm:$0xff]
        %v4281 = vld [vmem:[#allocation12 + $0x738] sm:$0xff]
        %v4282 = vld [vmem:[#allocation12 + $0x740] sm:$0xff]
        %v4283 = vld [vmem:[#allocation12 + $0x748] sm:$0xff]
        %v4284 = vld [vmem:[#allocation12 + $0x750] sm:$0xff]
        %v4285 = vld [vmem:[#allocation12 + $0x758] sm:$0xff]
        %v4286 = vld [vmem:[#allocation12 + $0x760] sm:$0xff]
        %v4287 = vld [vmem:[#allocation12 + $0x768] sm:$0xff]
        %v4288 = vld [vmem:[#allocation12 + $0x770] sm:$0xff]
        %v4289 = vld [vmem:[#allocation12 + $0x778] sm:$0xff]
        %v4290 = vld [vmem:[#allocation12 + $0x780] sm:$0xff]
        %v4291 = vld [vmem:[#allocation12 + $0x788] sm:$0xff]
        %v4292 = vld [vmem:[#allocation12 + $0x790] sm:$0xff]
        %v4293 = vld [vmem:[#allocation12 + $0x798] sm:$0xff]
        %v4294 = vld [vmem:[#allocation12 + $0x7a0] sm:$0xff]
        %v4295 = vld [vmem:[#allocation12 + $0x7a8] sm:$0xff]
        %v4296 = vld [vmem:[#allocation12 + $0x7b0] sm:$0xff]
        %v4297 = vld [vmem:[#allocation12 + $0x7b8] sm:$0xff]
        %v4298 = vld [vmem:[#allocation12 + $0x7c0] sm:$0xff]
        %v4299 = vld [vmem:[#allocation12 + $0x7c8] sm:$0xff]
        %v4300 = vld [vmem:[#allocation12 + $0x7d0] sm:$0xff]
        %v4301 = vld [vmem:[#allocation12 + $0x7d8] sm:$0xff]
        %v4302 = vld [vmem:[#allocation12 + $0x7e0] sm:$0xff]
        %v4303 = vld [vmem:[#allocation12 + $0x7e8] sm:$0xff]
        %v4304 = vld [vmem:[#allocation12 + $0x7f0] sm:$0xff]
        %v4305 = vld [vmem:[#allocation12 + $0x7f8] sm:$0xff]
        %v4306 = vld [vmem:[#allocation3] sm:$0xff]
        %s4307 = scalar_lea.vmem [#allocation12], 2048
        %v4308 = vld [vmem:[%s4307] sm:$0xff]
        %v4309 = vld [vmem:[%s4307 + $0x8] sm:$0xff]
        %v4310 = vld [vmem:[%s4307 + $0x10] sm:$0xff]
        %v4311 = vld [vmem:[%s4307 + $0x18] sm:$0xff]
        %v4312 = vld [vmem:[%s4307 + $0x20] sm:$0xff]
        %v4313 = vld [vmem:[%s4307 + $0x28] sm:$0xff]
        %v4314 = vld [vmem:[%s4307 + $0x30] sm:$0xff]
        %v4315 = vld [vmem:[%s4307 + $0x38] sm:$0xff]
        %v4316 = vld [vmem:[%s4307 + $0x40] sm:$0xff]
        %v4317 = vld [vmem:[%s4307 + $0x48] sm:$0xff]
        %v4318 = vld [vmem:[%s4307 + $0x50] sm:$0xff]
        %v4319 = vld [vmem:[%s4307 + $0x58] sm:$0xff]
        %v4320 = vld [vmem:[%s4307 + $0x60] sm:$0xff]
        %v4321 = vld [vmem:[%s4307 + $0x68] sm:$0xff]
        %v4322 = vld [vmem:[%s4307 + $0x70] sm:$0xff]
        %v4323 = vld [vmem:[%s4307 + $0x78] sm:$0xff]
        %v4324 = vld [vmem:[%s4307 + $0x80] sm:$0xff]
        %v4325 = vld [vmem:[%s4307 + $0x88] sm:$0xff]
        %v4326 = vld [vmem:[%s4307 + $0x90] sm:$0xff]
        %v4327 = vld [vmem:[%s4307 + $0x98] sm:$0xff]
        %v4328 = vld [vmem:[%s4307 + $0xa0] sm:$0xff]
        %v4329 = vld [vmem:[%s4307 + $0xa8] sm:$0xff]
        %v4330 = vld [vmem:[%s4307 + $0xb0] sm:$0xff]
        %v4331 = vld [vmem:[%s4307 + $0xb8] sm:$0xff]
        %v4332 = vld [vmem:[%s4307 + $0xc0] sm:$0xff]
        %v4333 = vld [vmem:[%s4307 + $0xc8] sm:$0xff]
        %v4334 = vld [vmem:[%s4307 + $0xd0] sm:$0xff]
        %v4335 = vld [vmem:[%s4307 + $0xd8] sm:$0xff]
        %v4336 = vld [vmem:[%s4307 + $0xe0] sm:$0xff]
        %v4337 = vld [vmem:[%s4307 + $0xe8] sm:$0xff]
        %v4338 = vld [vmem:[%s4307 + $0xf0] sm:$0xff]
        %v4339 = vld [vmem:[%s4307 + $0xf8] sm:$0xff]
        %v4340 = vld [vmem:[%s4307 + $0x100] sm:$0xff]
        %v4341 = vld [vmem:[%s4307 + $0x108] sm:$0xff]
        %v4342 = vld [vmem:[%s4307 + $0x110] sm:$0xff]
        %v4343 = vld [vmem:[%s4307 + $0x118] sm:$0xff]
        %v4344 = vld [vmem:[%s4307 + $0x120] sm:$0xff]
        %v4345 = vld [vmem:[%s4307 + $0x128] sm:$0xff]
        %v4346 = vld [vmem:[%s4307 + $0x130] sm:$0xff]
        %v4347 = vld [vmem:[%s4307 + $0x138] sm:$0xff]
        %v4348 = vld [vmem:[%s4307 + $0x140] sm:$0xff]
        %v4349 = vld [vmem:[%s4307 + $0x148] sm:$0xff]
        %v4350 = vld [vmem:[%s4307 + $0x150] sm:$0xff]
        %v4351 = vld [vmem:[%s4307 + $0x158] sm:$0xff]
        %v4352 = vld [vmem:[%s4307 + $0x160] sm:$0xff]
        %v4353 = vld [vmem:[%s4307 + $0x168] sm:$0xff]
        %v4354 = vld [vmem:[%s4307 + $0x170] sm:$0xff]
        %v4355 = vld [vmem:[%s4307 + $0x178] sm:$0xff]
        %v4356 = vld [vmem:[%s4307 + $0x180] sm:$0xff]
        %v4357 = vld [vmem:[%s4307 + $0x188] sm:$0xff]
        %v4358 = vld [vmem:[%s4307 + $0x190] sm:$0xff]
        %v4359 = vld [vmem:[%s4307 + $0x198] sm:$0xff]
        %v4360 = vld [vmem:[%s4307 + $0x1a0] sm:$0xff]
        %v4361 = vld [vmem:[%s4307 + $0x1a8] sm:$0xff]
        %v4362 = vld [vmem:[%s4307 + $0x1b0] sm:$0xff]
        %v4363 = vld [vmem:[%s4307 + $0x1b8] sm:$0xff]
        %v4364 = vld [vmem:[%s4307 + $0x1c0] sm:$0xff]
        %v4365 = vld [vmem:[%s4307 + $0x1c8] sm:$0xff]
        %v4366 = vld [vmem:[%s4307 + $0x1d0] sm:$0xff]
        %v4367 = vld [vmem:[%s4307 + $0x1d8] sm:$0xff]
        %v4368 = vld [vmem:[%s4307 + $0x1e0] sm:$0xff]
        %v4369 = vld [vmem:[%s4307 + $0x1e8] sm:$0xff]
        %v4370 = vld [vmem:[%s4307 + $0x1f0] sm:$0xff]
        %v4371 = vld [vmem:[%s4307 + $0x1f8] sm:$0xff]
        %v4372 = vld [vmem:[%s4307 + $0x200] sm:$0xff]
        %v4373 = vld [vmem:[%s4307 + $0x208] sm:$0xff]
        %v4374 = vld [vmem:[%s4307 + $0x210] sm:$0xff]
        %v4375 = vld [vmem:[%s4307 + $0x218] sm:$0xff]
        %v4376 = vld [vmem:[%s4307 + $0x220] sm:$0xff]
        %v4377 = vld [vmem:[%s4307 + $0x228] sm:$0xff]
        %v4378 = vld [vmem:[%s4307 + $0x230] sm:$0xff]
        %v4379 = vld [vmem:[%s4307 + $0x238] sm:$0xff]
        %v4380 = vld [vmem:[%s4307 + $0x240] sm:$0xff]
        %v4381 = vld [vmem:[%s4307 + $0x248] sm:$0xff]
        %v4382 = vld [vmem:[%s4307 + $0x250] sm:$0xff]
        %v4383 = vld [vmem:[%s4307 + $0x258] sm:$0xff]
        %v4384 = vld [vmem:[%s4307 + $0x260] sm:$0xff]
        %v4385 = vld [vmem:[%s4307 + $0x268] sm:$0xff]
        %v4386 = vld [vmem:[%s4307 + $0x270] sm:$0xff]
        %v4387 = vld [vmem:[%s4307 + $0x278] sm:$0xff]
        %v4388 = vld [vmem:[%s4307 + $0x280] sm:$0xff]
        %v4389 = vld [vmem:[%s4307 + $0x288] sm:$0xff]
        %v4390 = vld [vmem:[%s4307 + $0x290] sm:$0xff]
        %v4391 = vld [vmem:[%s4307 + $0x298] sm:$0xff]
        %v4392 = vld [vmem:[%s4307 + $0x2a0] sm:$0xff]
        %v4393 = vld [vmem:[%s4307 + $0x2a8] sm:$0xff]
        %v4394 = vld [vmem:[%s4307 + $0x2b0] sm:$0xff]
        %v4395 = vld [vmem:[%s4307 + $0x2b8] sm:$0xff]
        %v4396 = vld [vmem:[%s4307 + $0x2c0] sm:$0xff]
        %v4397 = vld [vmem:[%s4307 + $0x2c8] sm:$0xff]
        %v4398 = vld [vmem:[%s4307 + $0x2d0] sm:$0xff]
        %v4399 = vld [vmem:[%s4307 + $0x2d8] sm:$0xff]
        %v4400 = vld [vmem:[%s4307 + $0x2e0] sm:$0xff]
        %v4401 = vld [vmem:[%s4307 + $0x2e8] sm:$0xff]
        %v4402 = vld [vmem:[%s4307 + $0x2f0] sm:$0xff]
        %v4403 = vld [vmem:[%s4307 + $0x2f8] sm:$0xff]
        %v4404 = vld [vmem:[%s4307 + $0x300] sm:$0xff]
        %v4405 = vld [vmem:[%s4307 + $0x308] sm:$0xff]
        %v4406 = vld [vmem:[%s4307 + $0x310] sm:$0xff]
        %v4407 = vld [vmem:[%s4307 + $0x318] sm:$0xff]
        %v4408 = vld [vmem:[%s4307 + $0x320] sm:$0xff]
        %v4409 = vld [vmem:[%s4307 + $0x328] sm:$0xff]
        %v4410 = vld [vmem:[%s4307 + $0x330] sm:$0xff]
        %v4411 = vld [vmem:[%s4307 + $0x338] sm:$0xff]
        %v4412 = vld [vmem:[%s4307 + $0x340] sm:$0xff]
        %v4413 = vld [vmem:[%s4307 + $0x348] sm:$0xff]
        %v4414 = vld [vmem:[%s4307 + $0x350] sm:$0xff]
        %v4415 = vld [vmem:[%s4307 + $0x358] sm:$0xff]
        %v4416 = vld [vmem:[%s4307 + $0x360] sm:$0xff]
        %v4417 = vld [vmem:[%s4307 + $0x368] sm:$0xff]
        %v4418 = vld [vmem:[%s4307 + $0x370] sm:$0xff]
        %v4419 = vld [vmem:[%s4307 + $0x378] sm:$0xff]
        %v4420 = vld [vmem:[%s4307 + $0x380] sm:$0xff]
        %v4421 = vld [vmem:[%s4307 + $0x388] sm:$0xff]
        %v4422 = vld [vmem:[%s4307 + $0x390] sm:$0xff]
        %v4423 = vld [vmem:[%s4307 + $0x398] sm:$0xff]
        %v4424 = vld [vmem:[%s4307 + $0x3a0] sm:$0xff]
        %v4425 = vld [vmem:[%s4307 + $0x3a8] sm:$0xff]
        %v4426 = vld [vmem:[%s4307 + $0x3b0] sm:$0xff]
        %v4427 = vld [vmem:[%s4307 + $0x3b8] sm:$0xff]
        %v4428 = vld [vmem:[%s4307 + $0x3c0] sm:$0xff]
        %v4429 = vld [vmem:[%s4307 + $0x3c8] sm:$0xff]
        %v4430 = vld [vmem:[%s4307 + $0x3d0] sm:$0xff]
        %v4431 = vld [vmem:[%s4307 + $0x3d8] sm:$0xff]
        %v4432 = vld [vmem:[%s4307 + $0x3e0] sm:$0xff]
        %v4433 = vld [vmem:[%s4307 + $0x3e8] sm:$0xff]
        %v4434 = vld [vmem:[%s4307 + $0x3f0] sm:$0xff]
        %v4435 = vld [vmem:[%s4307 + $0x3f8] sm:$0xff]
        %v4436 = vld [vmem:[%s4307 + $0x400] sm:$0xff]
        %v4437 = vld [vmem:[%s4307 + $0x408] sm:$0xff]
        %v4438 = vld [vmem:[%s4307 + $0x410] sm:$0xff]
        %v4439 = vld [vmem:[%s4307 + $0x418] sm:$0xff]
        %v4440 = vld [vmem:[%s4307 + $0x420] sm:$0xff]
        %v4441 = vld [vmem:[%s4307 + $0x428] sm:$0xff]
        %v4442 = vld [vmem:[%s4307 + $0x430] sm:$0xff]
        %v4443 = vld [vmem:[%s4307 + $0x438] sm:$0xff]
        %v4444 = vld [vmem:[%s4307 + $0x440] sm:$0xff]
        %v4445 = vld [vmem:[%s4307 + $0x448] sm:$0xff]
        %v4446 = vld [vmem:[%s4307 + $0x450] sm:$0xff]
        %v4447 = vld [vmem:[%s4307 + $0x458] sm:$0xff]
        %v4448 = vld [vmem:[%s4307 + $0x460] sm:$0xff]
        %v4449 = vld [vmem:[%s4307 + $0x468] sm:$0xff]
        %v4450 = vld [vmem:[%s4307 + $0x470] sm:$0xff]
        %v4451 = vld [vmem:[%s4307 + $0x478] sm:$0xff]
        %v4452 = vld [vmem:[%s4307 + $0x480] sm:$0xff]
        %v4453 = vld [vmem:[%s4307 + $0x488] sm:$0xff]
        %v4454 = vld [vmem:[%s4307 + $0x490] sm:$0xff]
        %v4455 = vld [vmem:[%s4307 + $0x498] sm:$0xff]
        %v4456 = vld [vmem:[%s4307 + $0x4a0] sm:$0xff]
        %v4457 = vld [vmem:[%s4307 + $0x4a8] sm:$0xff]
        %v4458 = vld [vmem:[%s4307 + $0x4b0] sm:$0xff]
        %v4459 = vld [vmem:[%s4307 + $0x4b8] sm:$0xff]
        %v4460 = vld [vmem:[%s4307 + $0x4c0] sm:$0xff]
        %v4461 = vld [vmem:[%s4307 + $0x4c8] sm:$0xff]
        %v4462 = vld [vmem:[%s4307 + $0x4d0] sm:$0xff]
        %v4463 = vld [vmem:[%s4307 + $0x4d8] sm:$0xff]
        %v4464 = vld [vmem:[%s4307 + $0x4e0] sm:$0xff]
        %v4465 = vld [vmem:[%s4307 + $0x4e8] sm:$0xff]
        %v4466 = vld [vmem:[%s4307 + $0x4f0] sm:$0xff]
        %v4467 = vld [vmem:[%s4307 + $0x4f8] sm:$0xff]
        %v4468 = vld [vmem:[%s4307 + $0x500] sm:$0xff]
        %v4469 = vld [vmem:[%s4307 + $0x508] sm:$0xff]
        %v4470 = vld [vmem:[%s4307 + $0x510] sm:$0xff]
        %v4471 = vld [vmem:[%s4307 + $0x518] sm:$0xff]
        %v4472 = vld [vmem:[%s4307 + $0x520] sm:$0xff]
        %v4473 = vld [vmem:[%s4307 + $0x528] sm:$0xff]
        %v4474 = vld [vmem:[%s4307 + $0x530] sm:$0xff]
        %v4475 = vld [vmem:[%s4307 + $0x538] sm:$0xff]
        %v4476 = vld [vmem:[%s4307 + $0x540] sm:$0xff]
        %v4477 = vld [vmem:[%s4307 + $0x548] sm:$0xff]
        %v4478 = vld [vmem:[%s4307 + $0x550] sm:$0xff]
        %v4479 = vld [vmem:[%s4307 + $0x558] sm:$0xff]
        %v4480 = vld [vmem:[%s4307 + $0x560] sm:$0xff]
        %v4481 = vld [vmem:[%s4307 + $0x568] sm:$0xff]
        %v4482 = vld [vmem:[%s4307 + $0x570] sm:$0xff]
        %v4483 = vld [vmem:[%s4307 + $0x578] sm:$0xff]
        %v4484 = vld [vmem:[%s4307 + $0x580] sm:$0xff]
        %v4485 = vld [vmem:[%s4307 + $0x588] sm:$0xff]
        %v4486 = vld [vmem:[%s4307 + $0x590] sm:$0xff]
        %v4487 = vld [vmem:[%s4307 + $0x598] sm:$0xff]
        %v4488 = vld [vmem:[%s4307 + $0x5a0] sm:$0xff]
        %v4489 = vld [vmem:[%s4307 + $0x5a8] sm:$0xff]
        %v4490 = vld [vmem:[%s4307 + $0x5b0] sm:$0xff]
        %v4491 = vld [vmem:[%s4307 + $0x5b8] sm:$0xff]
        %v4492 = vld [vmem:[%s4307 + $0x5c0] sm:$0xff]
        %v4493 = vld [vmem:[%s4307 + $0x5c8] sm:$0xff]
        %v4494 = vld [vmem:[%s4307 + $0x5d0] sm:$0xff]
        %v4495 = vld [vmem:[%s4307 + $0x5d8] sm:$0xff]
        %v4496 = vld [vmem:[%s4307 + $0x5e0] sm:$0xff]
        %v4497 = vld [vmem:[%s4307 + $0x5e8] sm:$0xff]
        %v4498 = vld [vmem:[%s4307 + $0x5f0] sm:$0xff]
        %v4499 = vld [vmem:[%s4307 + $0x5f8] sm:$0xff]
        %v4500 = vld [vmem:[%s4307 + $0x600] sm:$0xff]
        %v4501 = vld [vmem:[%s4307 + $0x608] sm:$0xff]
        %v4502 = vld [vmem:[%s4307 + $0x610] sm:$0xff]
        %v4503 = vld [vmem:[%s4307 + $0x618] sm:$0xff]
        %v4504 = vld [vmem:[%s4307 + $0x620] sm:$0xff]
        %v4505 = vld [vmem:[%s4307 + $0x628] sm:$0xff]
        %v4506 = vld [vmem:[%s4307 + $0x630] sm:$0xff]
        %v4507 = vld [vmem:[%s4307 + $0x638] sm:$0xff]
        %v4508 = vld [vmem:[%s4307 + $0x640] sm:$0xff]
        %v4509 = vld [vmem:[%s4307 + $0x648] sm:$0xff]
        %v4510 = vld [vmem:[%s4307 + $0x650] sm:$0xff]
        %v4511 = vld [vmem:[%s4307 + $0x658] sm:$0xff]
        %v4512 = vld [vmem:[%s4307 + $0x660] sm:$0xff]
        %v4513 = vld [vmem:[%s4307 + $0x668] sm:$0xff]
        %v4514 = vld [vmem:[%s4307 + $0x670] sm:$0xff]
        %v4515 = vld [vmem:[%s4307 + $0x678] sm:$0xff]
        %v4516 = vld [vmem:[%s4307 + $0x680] sm:$0xff]
        %v4517 = vld [vmem:[%s4307 + $0x688] sm:$0xff]
        %v4518 = vld [vmem:[%s4307 + $0x690] sm:$0xff]
        %v4519 = vld [vmem:[%s4307 + $0x698] sm:$0xff]
        %v4520 = vld [vmem:[%s4307 + $0x6a0] sm:$0xff]
        %v4521 = vld [vmem:[%s4307 + $0x6a8] sm:$0xff]
        %v4522 = vld [vmem:[%s4307 + $0x6b0] sm:$0xff]
        %v4523 = vld [vmem:[%s4307 + $0x6b8] sm:$0xff]
        %v4524 = vld [vmem:[%s4307 + $0x6c0] sm:$0xff]
        %v4525 = vld [vmem:[%s4307 + $0x6c8] sm:$0xff]
        %v4526 = vld [vmem:[%s4307 + $0x6d0] sm:$0xff]
        %v4527 = vld [vmem:[%s4307 + $0x6d8] sm:$0xff]
        %v4528 = vld [vmem:[%s4307 + $0x6e0] sm:$0xff]
        %v4529 = vld [vmem:[%s4307 + $0x6e8] sm:$0xff]
        %v4530 = vld [vmem:[%s4307 + $0x6f0] sm:$0xff]
        %v4531 = vld [vmem:[%s4307 + $0x6f8] sm:$0xff]
        %v4532 = vld [vmem:[%s4307 + $0x700] sm:$0xff]
        %v4533 = vld [vmem:[%s4307 + $0x708] sm:$0xff]
        %v4534 = vld [vmem:[%s4307 + $0x710] sm:$0xff]
        %v4535 = vld [vmem:[%s4307 + $0x718] sm:$0xff]
        %v4536 = vld [vmem:[%s4307 + $0x720] sm:$0xff]
        %v4537 = vld [vmem:[%s4307 + $0x728] sm:$0xff]
        %v4538 = vld [vmem:[%s4307 + $0x730] sm:$0xff]
        %v4539 = vld [vmem:[%s4307 + $0x738] sm:$0xff]
        %v4540 = vld [vmem:[%s4307 + $0x740] sm:$0xff]
        %v4541 = vld [vmem:[%s4307 + $0x748] sm:$0xff]
        %v4542 = vld [vmem:[%s4307 + $0x750] sm:$0xff]
        %v4543 = vld [vmem:[%s4307 + $0x758] sm:$0xff]
        %v4544 = vld [vmem:[%s4307 + $0x760] sm:$0xff]
        %v4545 = vld [vmem:[%s4307 + $0x768] sm:$0xff]
        %v4546 = vld [vmem:[%s4307 + $0x770] sm:$0xff]
        %v4547 = vld [vmem:[%s4307 + $0x778] sm:$0xff]
        %v4548 = vld [vmem:[%s4307 + $0x780] sm:$0xff]
        %v4549 = vld [vmem:[%s4307 + $0x788] sm:$0xff]
        %v4550 = vld [vmem:[%s4307 + $0x790] sm:$0xff]
        %v4551 = vld [vmem:[%s4307 + $0x798] sm:$0xff]
        %v4552 = vld [vmem:[%s4307 + $0x7a0] sm:$0xff]
        %v4553 = vld [vmem:[%s4307 + $0x7a8] sm:$0xff]
        %v4554 = vld [vmem:[%s4307 + $0x7b0] sm:$0xff]
        %v4555 = vld [vmem:[%s4307 + $0x7b8] sm:$0xff]
        %v4556 = vld [vmem:[%s4307 + $0x7c0] sm:$0xff]
        %v4557 = vld [vmem:[%s4307 + $0x7c8] sm:$0xff]
        %v4558 = vld [vmem:[%s4307 + $0x7d0] sm:$0xff]
        %v4559 = vld [vmem:[%s4307 + $0x7d8] sm:$0xff]
        %v4560 = vld [vmem:[%s4307 + $0x7e0] sm:$0xff]
        %v4561 = vld [vmem:[%s4307 + $0x7e8] sm:$0xff]
        %v4562 = vld [vmem:[%s4307 + $0x7f0] sm:$0xff]
        %v4563 = vld [vmem:[%s4307 + $0x7f8] sm:$0xff]
        %4565 = vst [vmem:[#allocation1] ss:$4 sm:$0xff] %v4306
        %v4566 = vld.sshfl [vmem:[#allocation1] sm:$0xff pattern:$0x73625140]
        %v4567 = vld.sshfl [vmem:[#allocation1 + $0x8] sm:$0xff pattern:$0x73625140]
        %v4568 = vld.sshfl [vmem:[#allocation1 + $0x10] sm:$0xff pattern:$0x73625140]
        %v4569 = vld.sshfl [vmem:[#allocation1 + $0x18] sm:$0xff pattern:$0x73625140]
        %v4570 = vshrl.u32 %v4566, 16
        %v4572 = vshll.u32 %v4566, 16
        %v4574 = vrot.slane %v4572, 1
        %v4575 = vor.u32 %v4570, %v4574
        %v4576 = vshrl.u32 %v4567, 16
        %v4578 = vshll.u32 %v4567, 16
        %v4580 = vrot.slane %v4578, 1
        %v4581 = vor.u32 %v4576, %v4580
        %v4582 = vshrl.u32 %v4568, 16
        %v4584 = vshll.u32 %v4568, 16
        %v4586 = vrot.slane %v4584, 1
        %v4587 = vor.u32 %v4582, %v4586
        %v4588 = vshrl.u32 %v4569, 16
        %v4590 = vshll.u32 %v4569, 16
        %v4592 = vrot.slane %v4590, 1
        %v4593 = vor.u32 %v4588, %v4592
        %v4854 = vunpack.c.l.b16 %v4308
        %v4855 = vunpack.c.h.b16 %v4308
        %v4856 = vunpack.c.l.b16 %v4309
        %v4857 = vunpack.c.h.b16 %v4309
        %v4858 = vunpack.c.l.b16 %v4310
        %v4859 = vunpack.c.h.b16 %v4310
        %v4860 = vunpack.c.l.b16 %v4311
        %v4861 = vunpack.c.h.b16 %v4311
        %v4862 = vunpack.c.l.b16 %v4312
        %v4863 = vunpack.c.h.b16 %v4312
        %v4864 = vunpack.c.l.b16 %v4313
        %v4865 = vunpack.c.h.b16 %v4313
        %v4866 = vunpack.c.l.b16 %v4314
        %v4867 = vunpack.c.h.b16 %v4314
        %v4868 = vunpack.c.l.b16 %v4315
        %v4869 = vunpack.c.h.b16 %v4315
        %v4870 = vunpack.c.l.b16 %v4316
        %v4871 = vunpack.c.h.b16 %v4316
        %v4872 = vunpack.c.l.b16 %v4317
        %v4873 = vunpack.c.h.b16 %v4317
        %v4874 = vunpack.c.l.b16 %v4318
        %v4875 = vunpack.c.h.b16 %v4318
        %v4876 = vunpack.c.l.b16 %v4319
        %v4877 = vunpack.c.h.b16 %v4319
        %v4878 = vunpack.c.l.b16 %v4320
        %v4879 = vunpack.c.h.b16 %v4320
        %v4880 = vunpack.c.l.b16 %v4321
        %v4881 = vunpack.c.h.b16 %v4321
        %v4882 = vunpack.c.l.b16 %v4322
        %v4883 = vunpack.c.h.b16 %v4322
        %v4884 = vunpack.c.l.b16 %v4323
        %v4885 = vunpack.c.h.b16 %v4323
        %v4886 = vunpack.c.l.b16 %v4324
        %v4887 = vunpack.c.h.b16 %v4324
        %v4888 = vunpack.c.l.b16 %v4325
        %v4889 = vunpack.c.h.b16 %v4325
        %v4890 = vunpack.c.l.b16 %v4326
        %v4891 = vunpack.c.h.b16 %v4326
        %v4892 = vunpack.c.l.b16 %v4327
        %v4893 = vunpack.c.h.b16 %v4327
        %v4894 = vunpack.c.l.b16 %v4328
        %v4895 = vunpack.c.h.b16 %v4328
        %v4896 = vunpack.c.l.b16 %v4329
        %v4897 = vunpack.c.h.b16 %v4329
        %v4898 = vunpack.c.l.b16 %v4330
        %v4899 = vunpack.c.h.b16 %v4330
        %v4900 = vunpack.c.l.b16 %v4331
        %v4901 = vunpack.c.h.b16 %v4331
        %v4902 = vunpack.c.l.b16 %v4332
        %v4903 = vunpack.c.h.b16 %v4332
        %v4904 = vunpack.c.l.b16 %v4333
        %v4905 = vunpack.c.h.b16 %v4333
        %v4906 = vunpack.c.l.b16 %v4334
        %v4907 = vunpack.c.h.b16 %v4334
        %v4908 = vunpack.c.l.b16 %v4335
        %v4909 = vunpack.c.h.b16 %v4335
        %v4910 = vunpack.c.l.b16 %v4336
        %v4911 = vunpack.c.h.b16 %v4336
        %v4912 = vunpack.c.l.b16 %v4337
        %v4913 = vunpack.c.h.b16 %v4337
        %v4914 = vunpack.c.l.b16 %v4338
        %v4915 = vunpack.c.h.b16 %v4338
        %v4916 = vunpack.c.l.b16 %v4339
        %v4917 = vunpack.c.h.b16 %v4339
        %v4918 = vunpack.c.l.b16 %v4340
        %v4919 = vunpack.c.h.b16 %v4340
        %v4920 = vunpack.c.l.b16 %v4341
        %v4921 = vunpack.c.h.b16 %v4341
        %v4922 = vunpack.c.l.b16 %v4342
        %v4923 = vunpack.c.h.b16 %v4342
        %v4924 = vunpack.c.l.b16 %v4343
        %v4925 = vunpack.c.h.b16 %v4343
        %v4926 = vunpack.c.l.b16 %v4344
        %v4927 = vunpack.c.h.b16 %v4344
        %v4928 = vunpack.c.l.b16 %v4345
        %v4929 = vunpack.c.h.b16 %v4345
        %v4930 = vunpack.c.l.b16 %v4346
        %v4931 = vunpack.c.h.b16 %v4346
        %v4932 = vunpack.c.l.b16 %v4347
        %v4933 = vunpack.c.h.b16 %v4347
        %v4934 = vunpack.c.l.b16 %v4348
        %v4935 = vunpack.c.h.b16 %v4348
        %v4936 = vunpack.c.l.b16 %v4349
        %v4937 = vunpack.c.h.b16 %v4349
        %v4938 = vunpack.c.l.b16 %v4350
        %v4939 = vunpack.c.h.b16 %v4350
        %v4940 = vunpack.c.l.b16 %v4351
        %v4941 = vunpack.c.h.b16 %v4351
        %v4942 = vunpack.c.l.b16 %v4352
        %v4943 = vunpack.c.h.b16 %v4352
        %v4944 = vunpack.c.l.b16 %v4353
        %v4945 = vunpack.c.h.b16 %v4353
        %v4946 = vunpack.c.l.b16 %v4354
        %v4947 = vunpack.c.h.b16 %v4354
        %v4948 = vunpack.c.l.b16 %v4355
        %v4949 = vunpack.c.h.b16 %v4355
        %v4950 = vunpack.c.l.b16 %v4356
        %v4951 = vunpack.c.h.b16 %v4356
        %v4952 = vunpack.c.l.b16 %v4357
        %v4953 = vunpack.c.h.b16 %v4357
        %v4954 = vunpack.c.l.b16 %v4358
        %v4955 = vunpack.c.h.b16 %v4358
        %v4956 = vunpack.c.l.b16 %v4359
        %v4957 = vunpack.c.h.b16 %v4359
        %v4958 = vunpack.c.l.b16 %v4360
        %v4959 = vunpack.c.h.b16 %v4360
        %v4960 = vunpack.c.l.b16 %v4361
        %v4961 = vunpack.c.h.b16 %v4361
        %v4962 = vunpack.c.l.b16 %v4362
        %v4963 = vunpack.c.h.b16 %v4362
        %v4964 = vunpack.c.l.b16 %v4363
        %v4965 = vunpack.c.h.b16 %v4363
        %v4966 = vunpack.c.l.b16 %v4364
        %v4967 = vunpack.c.h.b16 %v4364
        %v4968 = vunpack.c.l.b16 %v4365
        %v4969 = vunpack.c.h.b16 %v4365
        %v4970 = vunpack.c.l.b16 %v4366
        %v4971 = vunpack.c.h.b16 %v4366
        %v4972 = vunpack.c.l.b16 %v4367
        %v4973 = vunpack.c.h.b16 %v4367
        %v4974 = vunpack.c.l.b16 %v4368
        %v4975 = vunpack.c.h.b16 %v4368
        %v4976 = vunpack.c.l.b16 %v4369
        %v4977 = vunpack.c.h.b16 %v4369
        %v4978 = vunpack.c.l.b16 %v4370
        %v4979 = vunpack.c.h.b16 %v4370
        %v4980 = vunpack.c.l.b16 %v4371
        %v4981 = vunpack.c.h.b16 %v4371
        %v4982 = vunpack.c.l.b16 %v4372
        %v4983 = vunpack.c.h.b16 %v4372
        %v4984 = vunpack.c.l.b16 %v4373
        %v4985 = vunpack.c.h.b16 %v4373
        %v4986 = vunpack.c.l.b16 %v4374
        %v4987 = vunpack.c.h.b16 %v4374
        %v4988 = vunpack.c.l.b16 %v4375
        %v4989 = vunpack.c.h.b16 %v4375
        %v4990 = vunpack.c.l.b16 %v4376
        %v4991 = vunpack.c.h.b16 %v4376
        %v4992 = vunpack.c.l.b16 %v4377
        %v4993 = vunpack.c.h.b16 %v4377
        %v4994 = vunpack.c.l.b16 %v4378
        %v4995 = vunpack.c.h.b16 %v4378
        %v4996 = vunpack.c.l.b16 %v4379
        %v4997 = vunpack.c.h.b16 %v4379
        %v4998 = vunpack.c.l.b16 %v4380
        %v4999 = vunpack.c.h.b16 %v4380
        %v5000 = vunpack.c.l.b16 %v4381
        %v5001 = vunpack.c.h.b16 %v4381
        %v5002 = vunpack.c.l.b16 %v4382
        %v5003 = vunpack.c.h.b16 %v4382
        %v5004 = vunpack.c.l.b16 %v4383
        %v5005 = vunpack.c.h.b16 %v4383
        %v5006 = vunpack.c.l.b16 %v4384
        %v5007 = vunpack.c.h.b16 %v4384
        %v5008 = vunpack.c.l.b16 %v4385
        %v5009 = vunpack.c.h.b16 %v4385
        %v5010 = vunpack.c.l.b16 %v4386
        %v5011 = vunpack.c.h.b16 %v4386
        %v5012 = vunpack.c.l.b16 %v4387
        %v5013 = vunpack.c.h.b16 %v4387
        %v5014 = vunpack.c.l.b16 %v4388
        %v5015 = vunpack.c.h.b16 %v4388
        %v5016 = vunpack.c.l.b16 %v4389
        %v5017 = vunpack.c.h.b16 %v4389
        %v5018 = vunpack.c.l.b16 %v4390
        %v5019 = vunpack.c.h.b16 %v4390
        %v5020 = vunpack.c.l.b16 %v4391
        %v5021 = vunpack.c.h.b16 %v4391
        %v5022 = vunpack.c.l.b16 %v4392
        %v5023 = vunpack.c.h.b16 %v4392
        %v5024 = vunpack.c.l.b16 %v4393
        %v5025 = vunpack.c.h.b16 %v4393
        %v5026 = vunpack.c.l.b16 %v4394
        %v5027 = vunpack.c.h.b16 %v4394
        %v5028 = vunpack.c.l.b16 %v4395
        %v5029 = vunpack.c.h.b16 %v4395
        %v5030 = vunpack.c.l.b16 %v4396
        %v5031 = vunpack.c.h.b16 %v4396
        %v5032 = vunpack.c.l.b16 %v4397
        %v5033 = vunpack.c.h.b16 %v4397
        %v5034 = vunpack.c.l.b16 %v4398
        %v5035 = vunpack.c.h.b16 %v4398
        %v5036 = vunpack.c.l.b16 %v4399
        %v5037 = vunpack.c.h.b16 %v4399
        %v5038 = vunpack.c.l.b16 %v4400
        %v5039 = vunpack.c.h.b16 %v4400
        %v5040 = vunpack.c.l.b16 %v4401
        %v5041 = vunpack.c.h.b16 %v4401
        %v5042 = vunpack.c.l.b16 %v4402
        %v5043 = vunpack.c.h.b16 %v4402
        %v5044 = vunpack.c.l.b16 %v4403
        %v5045 = vunpack.c.h.b16 %v4403
        %v5046 = vunpack.c.l.b16 %v4404
        %v5047 = vunpack.c.h.b16 %v4404
        %v5048 = vunpack.c.l.b16 %v4405
        %v5049 = vunpack.c.h.b16 %v4405
        %v5050 = vunpack.c.l.b16 %v4406
        %v5051 = vunpack.c.h.b16 %v4406
        %v5052 = vunpack.c.l.b16 %v4407
        %v5053 = vunpack.c.h.b16 %v4407
        %v5054 = vunpack.c.l.b16 %v4408
        %v5055 = vunpack.c.h.b16 %v4408
        %v5056 = vunpack.c.l.b16 %v4409
        %v5057 = vunpack.c.h.b16 %v4409
        %v5058 = vunpack.c.l.b16 %v4410
        %v5059 = vunpack.c.h.b16 %v4410
        %v5060 = vunpack.c.l.b16 %v4411
        %v5061 = vunpack.c.h.b16 %v4411
        %v5062 = vunpack.c.l.b16 %v4412
        %v5063 = vunpack.c.h.b16 %v4412
        %v5064 = vunpack.c.l.b16 %v4413
        %v5065 = vunpack.c.h.b16 %v4413
        %v5066 = vunpack.c.l.b16 %v4414
        %v5067 = vunpack.c.h.b16 %v4414
        %v5068 = vunpack.c.l.b16 %v4415
        %v5069 = vunpack.c.h.b16 %v4415
        %v5070 = vunpack.c.l.b16 %v4416
        %v5071 = vunpack.c.h.b16 %v4416
        %v5072 = vunpack.c.l.b16 %v4417
        %v5073 = vunpack.c.h.b16 %v4417
        %v5074 = vunpack.c.l.b16 %v4418
        %v5075 = vunpack.c.h.b16 %v4418
        %v5076 = vunpack.c.l.b16 %v4419
        %v5077 = vunpack.c.h.b16 %v4419
        %v5078 = vunpack.c.l.b16 %v4420
        %v5079 = vunpack.c.h.b16 %v4420
        %v5080 = vunpack.c.l.b16 %v4421
        %v5081 = vunpack.c.h.b16 %v4421
        %v5082 = vunpack.c.l.b16 %v4422
        %v5083 = vunpack.c.h.b16 %v4422
        %v5084 = vunpack.c.l.b16 %v4423
        %v5085 = vunpack.c.h.b16 %v4423
        %v5086 = vunpack.c.l.b16 %v4424
        %v5087 = vunpack.c.h.b16 %v4424
        %v5088 = vunpack.c.l.b16 %v4425
        %v5089 = vunpack.c.h.b16 %v4425
        %v5090 = vunpack.c.l.b16 %v4426
        %v5091 = vunpack.c.h.b16 %v4426
        %v5092 = vunpack.c.l.b16 %v4427
        %v5093 = vunpack.c.h.b16 %v4427
        %v5094 = vunpack.c.l.b16 %v4428
        %v5095 = vunpack.c.h.b16 %v4428
        %v5096 = vunpack.c.l.b16 %v4429
        %v5097 = vunpack.c.h.b16 %v4429
        %v5098 = vunpack.c.l.b16 %v4430
        %v5099 = vunpack.c.h.b16 %v4430
        %v5100 = vunpack.c.l.b16 %v4431
        %v5101 = vunpack.c.h.b16 %v4431
        %v5102 = vunpack.c.l.b16 %v4432
        %v5103 = vunpack.c.h.b16 %v4432
        %v5104 = vunpack.c.l.b16 %v4433
        %v5105 = vunpack.c.h.b16 %v4433
        %v5106 = vunpack.c.l.b16 %v4434
        %v5107 = vunpack.c.h.b16 %v4434
        %v5108 = vunpack.c.l.b16 %v4435
        %v5109 = vunpack.c.h.b16 %v4435
        %v5110 = vunpack.c.l.b16 %v4436
        %v5111 = vunpack.c.h.b16 %v4436
        %v5112 = vunpack.c.l.b16 %v4437
        %v5113 = vunpack.c.h.b16 %v4437
        %v5114 = vunpack.c.l.b16 %v4438
        %v5115 = vunpack.c.h.b16 %v4438
        %v5116 = vunpack.c.l.b16 %v4439
        %v5117 = vunpack.c.h.b16 %v4439
        %v5118 = vunpack.c.l.b16 %v4440
        %v5119 = vunpack.c.h.b16 %v4440
        %v5120 = vunpack.c.l.b16 %v4441
        %v5121 = vunpack.c.h.b16 %v4441
        %v5122 = vunpack.c.l.b16 %v4442
        %v5123 = vunpack.c.h.b16 %v4442
        %v5124 = vunpack.c.l.b16 %v4443
        %v5125 = vunpack.c.h.b16 %v4443
        %v5126 = vunpack.c.l.b16 %v4444
        %v5127 = vunpack.c.h.b16 %v4444
        %v5128 = vunpack.c.l.b16 %v4445
        %v5129 = vunpack.c.h.b16 %v4445
        %v5130 = vunpack.c.l.b16 %v4446
        %v5131 = vunpack.c.h.b16 %v4446
        %v5132 = vunpack.c.l.b16 %v4447
        %v5133 = vunpack.c.h.b16 %v4447
        %v5134 = vunpack.c.l.b16 %v4448
        %v5135 = vunpack.c.h.b16 %v4448
        %v5136 = vunpack.c.l.b16 %v4449
        %v5137 = vunpack.c.h.b16 %v4449
        %v5138 = vunpack.c.l.b16 %v4450
        %v5139 = vunpack.c.h.b16 %v4450
        %v5140 = vunpack.c.l.b16 %v4451
        %v5141 = vunpack.c.h.b16 %v4451
        %v5142 = vunpack.c.l.b16 %v4452
        %v5143 = vunpack.c.h.b16 %v4452
        %v5144 = vunpack.c.l.b16 %v4453
        %v5145 = vunpack.c.h.b16 %v4453
        %v5146 = vunpack.c.l.b16 %v4454
        %v5147 = vunpack.c.h.b16 %v4454
        %v5148 = vunpack.c.l.b16 %v4455
        %v5149 = vunpack.c.h.b16 %v4455
        %v5150 = vunpack.c.l.b16 %v4456
        %v5151 = vunpack.c.h.b16 %v4456
        %v5152 = vunpack.c.l.b16 %v4457
        %v5153 = vunpack.c.h.b16 %v4457
        %v5154 = vunpack.c.l.b16 %v4458
        %v5155 = vunpack.c.h.b16 %v4458
        %v5156 = vunpack.c.l.b16 %v4459
        %v5157 = vunpack.c.h.b16 %v4459
        %v5158 = vunpack.c.l.b16 %v4460
        %v5159 = vunpack.c.h.b16 %v4460
        %v5160 = vunpack.c.l.b16 %v4461
        %v5161 = vunpack.c.h.b16 %v4461
        %v5162 = vunpack.c.l.b16 %v4462
        %v5163 = vunpack.c.h.b16 %v4462
        %v5164 = vunpack.c.l.b16 %v4463
        %v5165 = vunpack.c.h.b16 %v4463
        %v5166 = vunpack.c.l.b16 %v4464
        %v5167 = vunpack.c.h.b16 %v4464
        %v5168 = vunpack.c.l.b16 %v4465
        %v5169 = vunpack.c.h.b16 %v4465
        %v5170 = vunpack.c.l.b16 %v4466
        %v5171 = vunpack.c.h.b16 %v4466
        %v5172 = vunpack.c.l.b16 %v4467
        %v5173 = vunpack.c.h.b16 %v4467
        %v5174 = vunpack.c.l.b16 %v4468
        %v5175 = vunpack.c.h.b16 %v4468
        %v5176 = vunpack.c.l.b16 %v4469
        %v5177 = vunpack.c.h.b16 %v4469
        %v5178 = vunpack.c.l.b16 %v4470
        %v5179 = vunpack.c.h.b16 %v4470
        %v5180 = vunpack.c.l.b16 %v4471
        %v5181 = vunpack.c.h.b16 %v4471
        %v5182 = vunpack.c.l.b16 %v4472
        %v5183 = vunpack.c.h.b16 %v4472
        %v5184 = vunpack.c.l.b16 %v4473
        %v5185 = vunpack.c.h.b16 %v4473
        %v5186 = vunpack.c.l.b16 %v4474
        %v5187 = vunpack.c.h.b16 %v4474
        %v5188 = vunpack.c.l.b16 %v4475
        %v5189 = vunpack.c.h.b16 %v4475
        %v5190 = vunpack.c.l.b16 %v4476
        %v5191 = vunpack.c.h.b16 %v4476
        %v5192 = vunpack.c.l.b16 %v4477
        %v5193 = vunpack.c.h.b16 %v4477
        %v5194 = vunpack.c.l.b16 %v4478
        %v5195 = vunpack.c.h.b16 %v4478
        %v5196 = vunpack.c.l.b16 %v4479
        %v5197 = vunpack.c.h.b16 %v4479
        %v5198 = vunpack.c.l.b16 %v4480
        %v5199 = vunpack.c.h.b16 %v4480
        %v5200 = vunpack.c.l.b16 %v4481
        %v5201 = vunpack.c.h.b16 %v4481
        %v5202 = vunpack.c.l.b16 %v4482
        %v5203 = vunpack.c.h.b16 %v4482
        %v5204 = vunpack.c.l.b16 %v4483
        %v5205 = vunpack.c.h.b16 %v4483
        %v5206 = vunpack.c.l.b16 %v4484
        %v5207 = vunpack.c.h.b16 %v4484
        %v5208 = vunpack.c.l.b16 %v4485
        %v5209 = vunpack.c.h.b16 %v4485
        %v5210 = vunpack.c.l.b16 %v4486
        %v5211 = vunpack.c.h.b16 %v4486
        %v5212 = vunpack.c.l.b16 %v4487
        %v5213 = vunpack.c.h.b16 %v4487
        %v5214 = vunpack.c.l.b16 %v4488
        %v5215 = vunpack.c.h.b16 %v4488
        %v5216 = vunpack.c.l.b16 %v4489
        %v5217 = vunpack.c.h.b16 %v4489
        %v5218 = vunpack.c.l.b16 %v4490
        %v5219 = vunpack.c.h.b16 %v4490
        %v5220 = vunpack.c.l.b16 %v4491
        %v5221 = vunpack.c.h.b16 %v4491
        %v5222 = vunpack.c.l.b16 %v4492
        %v5223 = vunpack.c.h.b16 %v4492
        %v5224 = vunpack.c.l.b16 %v4493
        %v5225 = vunpack.c.h.b16 %v4493
        %v5226 = vunpack.c.l.b16 %v4494
        %v5227 = vunpack.c.h.b16 %v4494
        %v5228 = vunpack.c.l.b16 %v4495
        %v5229 = vunpack.c.h.b16 %v4495
        %v5230 = vunpack.c.l.b16 %v4496
        %v5231 = vunpack.c.h.b16 %v4496
        %v5232 = vunpack.c.l.b16 %v4497
        %v5233 = vunpack.c.h.b16 %v4497
        %v5234 = vunpack.c.l.b16 %v4498
        %v5235 = vunpack.c.h.b16 %v4498
        %v5236 = vunpack.c.l.b16 %v4499
        %v5237 = vunpack.c.h.b16 %v4499
        %v5238 = vunpack.c.l.b16 %v4500
        %v5239 = vunpack.c.h.b16 %v4500
        %v5240 = vunpack.c.l.b16 %v4501
        %v5241 = vunpack.c.h.b16 %v4501
        %v5242 = vunpack.c.l.b16 %v4502
        %v5243 = vunpack.c.h.b16 %v4502
        %v5244 = vunpack.c.l.b16 %v4503
        %v5245 = vunpack.c.h.b16 %v4503
        %v5246 = vunpack.c.l.b16 %v4504
        %v5247 = vunpack.c.h.b16 %v4504
        %v5248 = vunpack.c.l.b16 %v4505
        %v5249 = vunpack.c.h.b16 %v4505
        %v5250 = vunpack.c.l.b16 %v4506
        %v5251 = vunpack.c.h.b16 %v4506
        %v5252 = vunpack.c.l.b16 %v4507
        %v5253 = vunpack.c.h.b16 %v4507
        %v5254 = vunpack.c.l.b16 %v4508
        %v5255 = vunpack.c.h.b16 %v4508
        %v5256 = vunpack.c.l.b16 %v4509
        %v5257 = vunpack.c.h.b16 %v4509
        %v5258 = vunpack.c.l.b16 %v4510
        %v5259 = vunpack.c.h.b16 %v4510
        %v5260 = vunpack.c.l.b16 %v4511
        %v5261 = vunpack.c.h.b16 %v4511
        %v5262 = vunpack.c.l.b16 %v4512
        %v5263 = vunpack.c.h.b16 %v4512
        %v5264 = vunpack.c.l.b16 %v4513
        %v5265 = vunpack.c.h.b16 %v4513
        %v5266 = vunpack.c.l.b16 %v4514
        %v5267 = vunpack.c.h.b16 %v4514
        %v5268 = vunpack.c.l.b16 %v4515
        %v5269 = vunpack.c.h.b16 %v4515
        %v5270 = vunpack.c.l.b16 %v4516
        %v5271 = vunpack.c.h.b16 %v4516
        %v5272 = vunpack.c.l.b16 %v4517
        %v5273 = vunpack.c.h.b16 %v4517
        %v5274 = vunpack.c.l.b16 %v4518
        %v5275 = vunpack.c.h.b16 %v4518
        %v5276 = vunpack.c.l.b16 %v4519
        %v5277 = vunpack.c.h.b16 %v4519
        %v5278 = vunpack.c.l.b16 %v4520
        %v5279 = vunpack.c.h.b16 %v4520
        %v5280 = vunpack.c.l.b16 %v4521
        %v5281 = vunpack.c.h.b16 %v4521
        %v5282 = vunpack.c.l.b16 %v4522
        %v5283 = vunpack.c.h.b16 %v4522
        %v5284 = vunpack.c.l.b16 %v4523
        %v5285 = vunpack.c.h.b16 %v4523
        %v5286 = vunpack.c.l.b16 %v4524
        %v5287 = vunpack.c.h.b16 %v4524
        %v5288 = vunpack.c.l.b16 %v4525
        %v5289 = vunpack.c.h.b16 %v4525
        %v5290 = vunpack.c.l.b16 %v4526
        %v5291 = vunpack.c.h.b16 %v4526
        %v5292 = vunpack.c.l.b16 %v4527
        %v5293 = vunpack.c.h.b16 %v4527
        %v5294 = vunpack.c.l.b16 %v4528
        %v5295 = vunpack.c.h.b16 %v4528
        %v5296 = vunpack.c.l.b16 %v4529
        %v5297 = vunpack.c.h.b16 %v4529
        %v5298 = vunpack.c.l.b16 %v4530
        %v5299 = vunpack.c.h.b16 %v4530
        %v5300 = vunpack.c.l.b16 %v4531
        %v5301 = vunpack.c.h.b16 %v4531
        %v5302 = vunpack.c.l.b16 %v4532
        %v5303 = vunpack.c.h.b16 %v4532
        %v5304 = vunpack.c.l.b16 %v4533
        %v5305 = vunpack.c.h.b16 %v4533
        %v5306 = vunpack.c.l.b16 %v4534
        %v5307 = vunpack.c.h.b16 %v4534
        %v5308 = vunpack.c.l.b16 %v4535
        %v5309 = vunpack.c.h.b16 %v4535
        %v5310 = vunpack.c.l.b16 %v4536
        %v5311 = vunpack.c.h.b16 %v4536
        %v5312 = vunpack.c.l.b16 %v4537
        %v5313 = vunpack.c.h.b16 %v4537
        %v5314 = vunpack.c.l.b16 %v4538
        %v5315 = vunpack.c.h.b16 %v4538
        %v5316 = vunpack.c.l.b16 %v4539
        %v5317 = vunpack.c.h.b16 %v4539
        %v5318 = vunpack.c.l.b16 %v4540
        %v5319 = vunpack.c.h.b16 %v4540
        %v5320 = vunpack.c.l.b16 %v4541
        %v5321 = vunpack.c.h.b16 %v4541
        %v5322 = vunpack.c.l.b16 %v4542
        %v5323 = vunpack.c.h.b16 %v4542
        %v5324 = vunpack.c.l.b16 %v4543
        %v5325 = vunpack.c.h.b16 %v4543
        %v5326 = vunpack.c.l.b16 %v4544
        %v5327 = vunpack.c.h.b16 %v4544
        %v5328 = vunpack.c.l.b16 %v4545
        %v5329 = vunpack.c.h.b16 %v4545
        %v5330 = vunpack.c.l.b16 %v4546
        %v5331 = vunpack.c.h.b16 %v4546
        %v5332 = vunpack.c.l.b16 %v4547
        %v5333 = vunpack.c.h.b16 %v4547
        %v5334 = vunpack.c.l.b16 %v4548
        %v5335 = vunpack.c.h.b16 %v4548
        %v5336 = vunpack.c.l.b16 %v4549
        %v5337 = vunpack.c.h.b16 %v4549
        %v5338 = vunpack.c.l.b16 %v4550
        %v5339 = vunpack.c.h.b16 %v4550
        %v5340 = vunpack.c.l.b16 %v4551
        %v5341 = vunpack.c.h.b16 %v4551
        %v5342 = vunpack.c.l.b16 %v4552
        %v5343 = vunpack.c.h.b16 %v4552
        %v5344 = vunpack.c.l.b16 %v4553
        %v5345 = vunpack.c.h.b16 %v4553
        %v5346 = vunpack.c.l.b16 %v4554
        %v5347 = vunpack.c.h.b16 %v4554
        %v5348 = vunpack.c.l.b16 %v4555
        %v5349 = vunpack.c.h.b16 %v4555
        %v5350 = vunpack.c.l.b16 %v4556
        %v5351 = vunpack.c.h.b16 %v4556
        %v5352 = vunpack.c.l.b16 %v4557
        %v5353 = vunpack.c.h.b16 %v4557
        %v5354 = vunpack.c.l.b16 %v4558
        %v5355 = vunpack.c.h.b16 %v4558
        %v5356 = vunpack.c.l.b16 %v4559
        %v5357 = vunpack.c.h.b16 %v4559
        %v5358 = vunpack.c.l.b16 %v4560
        %v5359 = vunpack.c.h.b16 %v4560
        %v5360 = vunpack.c.l.b16 %v4561
        %v5361 = vunpack.c.h.b16 %v4561
        %v5362 = vunpack.c.l.b16 %v4562
        %v5363 = vunpack.c.h.b16 %v4562
        %v5364 = vunpack.c.l.b16 %v4563
        %v5365 = vunpack.c.h.b16 %v4563
        %v5366 = vpack.c.b16 %v4862, %v4854
        %v5367 = vpack.c.b16 %v4863, %v4855
        %v5368 = vpack.c.b16 %v4864, %v4856
        %v5369 = vpack.c.b16 %v4865, %v4857
        %v5370 = vpack.c.b16 %v4866, %v4858
        %v5371 = vpack.c.b16 %v4867, %v4859
        %v5372 = vpack.c.b16 %v4868, %v4860
        %v5373 = vpack.c.b16 %v4869, %v4861
        %v5374 = vpack.c.b16 %v4878, %v4870
        %v5375 = vpack.c.b16 %v4879, %v4871
        %v5376 = vpack.c.b16 %v4880, %v4872
        %v5377 = vpack.c.b16 %v4881, %v4873
        %v5378 = vpack.c.b16 %v4882, %v4874
        %v5379 = vpack.c.b16 %v4883, %v4875
        %v5380 = vpack.c.b16 %v4884, %v4876
        %v5381 = vpack.c.b16 %v4885, %v4877
        %v5382 = vpack.c.b16 %v4894, %v4886
        %v5383 = vpack.c.b16 %v4895, %v4887
        %v5384 = vpack.c.b16 %v4896, %v4888
        %v5385 = vpack.c.b16 %v4897, %v4889
        %v5386 = vpack.c.b16 %v4898, %v4890
        %v5387 = vpack.c.b16 %v4899, %v4891
        %v5388 = vpack.c.b16 %v4900, %v4892
        %v5389 = vpack.c.b16 %v4901, %v4893
        %v5390 = vpack.c.b16 %v4910, %v4902
        %v5391 = vpack.c.b16 %v4911, %v4903
        %v5392 = vpack.c.b16 %v4912, %v4904
        %v5393 = vpack.c.b16 %v4913, %v4905
        %v5394 = vpack.c.b16 %v4914, %v4906
        %v5395 = vpack.c.b16 %v4915, %v4907
        %v5396 = vpack.c.b16 %v4916, %v4908
        %v5397 = vpack.c.b16 %v4917, %v4909
        %v5398 = vpack.c.b16 %v4926, %v4918
        %v5399 = vpack.c.b16 %v4927, %v4919
        %v5400 = vpack.c.b16 %v4928, %v4920
        %v5401 = vpack.c.b16 %v4929, %v4921
        %v5402 = vpack.c.b16 %v4930, %v4922
        %v5403 = vpack.c.b16 %v4931, %v4923
        %v5404 = vpack.c.b16 %v4932, %v4924
        %v5405 = vpack.c.b16 %v4933, %v4925
        %v5406 = vpack.c.b16 %v4942, %v4934
        %v5407 = vpack.c.b16 %v4943, %v4935
        %v5408 = vpack.c.b16 %v4944, %v4936
        %v5409 = vpack.c.b16 %v4945, %v4937
        %v5410 = vpack.c.b16 %v4946, %v4938
        %v5411 = vpack.c.b16 %v4947, %v4939
        %v5412 = vpack.c.b16 %v4948, %v4940
        %v5413 = vpack.c.b16 %v4949, %v4941
        %v5414 = vpack.c.b16 %v4958, %v4950
        %v5415 = vpack.c.b16 %v4959, %v4951
        %v5416 = vpack.c.b16 %v4960, %v4952
        %v5417 = vpack.c.b16 %v4961, %v4953
        %v5418 = vpack.c.b16 %v4962, %v4954
        %v5419 = vpack.c.b16 %v4963, %v4955
        %v5420 = vpack.c.b16 %v4964, %v4956
        %v5421 = vpack.c.b16 %v4965, %v4957
        %v5422 = vpack.c.b16 %v4974, %v4966
        %v5423 = vpack.c.b16 %v4975, %v4967
        %v5424 = vpack.c.b16 %v4976, %v4968
        %v5425 = vpack.c.b16 %v4977, %v4969
        %v5426 = vpack.c.b16 %v4978, %v4970
        %v5427 = vpack.c.b16 %v4979, %v4971
        %v5428 = vpack.c.b16 %v4980, %v4972
        %v5429 = vpack.c.b16 %v4981, %v4973
        %v5430 = vpack.c.b16 %v4990, %v4982
        %v5431 = vpack.c.b16 %v4991, %v4983
        %v5432 = vpack.c.b16 %v4992, %v4984
        %v5433 = vpack.c.b16 %v4993, %v4985
        %v5434 = vpack.c.b16 %v4994, %v4986
        %v5435 = vpack.c.b16 %v4995, %v4987
        %v5436 = vpack.c.b16 %v4996, %v4988
        %v5437 = vpack.c.b16 %v4997, %v4989
        %v5438 = vpack.c.b16 %v5006, %v4998
        %v5439 = vpack.c.b16 %v5007, %v4999
        %v5440 = vpack.c.b16 %v5008, %v5000
        %v5441 = vpack.c.b16 %v5009, %v5001
        %v5442 = vpack.c.b16 %v5010, %v5002
        %v5443 = vpack.c.b16 %v5011, %v5003
        %v5444 = vpack.c.b16 %v5012, %v5004
        %v5445 = vpack.c.b16 %v5013, %v5005
        %v5446 = vpack.c.b16 %v5022, %v5014
        %v5447 = vpack.c.b16 %v5023, %v5015
        %v5448 = vpack.c.b16 %v5024, %v5016
        %v5449 = vpack.c.b16 %v5025, %v5017
        %v5450 = vpack.c.b16 %v5026, %v5018
        %v5451 = vpack.c.b16 %v5027, %v5019
        %v5452 = vpack.c.b16 %v5028, %v5020
        %v5453 = vpack.c.b16 %v5029, %v5021
        %v5454 = vpack.c.b16 %v5038, %v5030
        %v5455 = vpack.c.b16 %v5039, %v5031
        %v5456 = vpack.c.b16 %v5040, %v5032
        %v5457 = vpack.c.b16 %v5041, %v5033
        %v5458 = vpack.c.b16 %v5042, %v5034
        %v5459 = vpack.c.b16 %v5043, %v5035
        %v5460 = vpack.c.b16 %v5044, %v5036
        %v5461 = vpack.c.b16 %v5045, %v5037
        %v5462 = vpack.c.b16 %v5054, %v5046
        %v5463 = vpack.c.b16 %v5055, %v5047
        %v5464 = vpack.c.b16 %v5056, %v5048
        %v5465 = vpack.c.b16 %v5057, %v5049
        %v5466 = vpack.c.b16 %v5058, %v5050
        %v5467 = vpack.c.b16 %v5059, %v5051
        %v5468 = vpack.c.b16 %v5060, %v5052
        %v5469 = vpack.c.b16 %v5061, %v5053
        %v5470 = vpack.c.b16 %v5070, %v5062
        %v5471 = vpack.c.b16 %v5071, %v5063
        %v5472 = vpack.c.b16 %v5072, %v5064
        %v5473 = vpack.c.b16 %v5073, %v5065
        %v5474 = vpack.c.b16 %v5074, %v5066
        %v5475 = vpack.c.b16 %v5075, %v5067
        %v5476 = vpack.c.b16 %v5076, %v5068
        %v5477 = vpack.c.b16 %v5077, %v5069
        %v5478 = vpack.c.b16 %v5086, %v5078
        %v5479 = vpack.c.b16 %v5087, %v5079
        %v5480 = vpack.c.b16 %v5088, %v5080
        %v5481 = vpack.c.b16 %v5089, %v5081
        %v5482 = vpack.c.b16 %v5090, %v5082
        %v5483 = vpack.c.b16 %v5091, %v5083
        %v5484 = vpack.c.b16 %v5092, %v5084
        %v5485 = vpack.c.b16 %v5093, %v5085
        %v5486 = vpack.c.b16 %v5102, %v5094
        %v5487 = vpack.c.b16 %v5103, %v5095
        %v5488 = vpack.c.b16 %v5104, %v5096
        %v5489 = vpack.c.b16 %v5105, %v5097
        %v5490 = vpack.c.b16 %v5106, %v5098
        %v5491 = vpack.c.b16 %v5107, %v5099
        %v5492 = vpack.c.b16 %v5108, %v5100
        %v5493 = vpack.c.b16 %v5109, %v5101
        %v5494 = vpack.c.b16 %v5118, %v5110
        %v5495 = vpack.c.b16 %v5119, %v5111
        %v5496 = vpack.c.b16 %v5120, %v5112
        %v5497 = vpack.c.b16 %v5121, %v5113
        %v5498 = vpack.c.b16 %v5122, %v5114
        %v5499 = vpack.c.b16 %v5123, %v5115
        %v5500 = vpack.c.b16 %v5124, %v5116
        %v5501 = vpack.c.b16 %v5125, %v5117
        %v5502 = vpack.c.b16 %v5134, %v5126
        %v5503 = vpack.c.b16 %v5135, %v5127
        %v5504 = vpack.c.b16 %v5136, %v5128
        %v5505 = vpack.c.b16 %v5137, %v5129
        %v5506 = vpack.c.b16 %v5138, %v5130
        %v5507 = vpack.c.b16 %v5139, %v5131
        %v5508 = vpack.c.b16 %v5140, %v5132
        %v5509 = vpack.c.b16 %v5141, %v5133
        %v5510 = vpack.c.b16 %v5150, %v5142
        %v5511 = vpack.c.b16 %v5151, %v5143
        %v5512 = vpack.c.b16 %v5152, %v5144
        %v5513 = vpack.c.b16 %v5153, %v5145
        %v5514 = vpack.c.b16 %v5154, %v5146
        %v5515 = vpack.c.b16 %v5155, %v5147
        %v5516 = vpack.c.b16 %v5156, %v5148
        %v5517 = vpack.c.b16 %v5157, %v5149
        %v5518 = vpack.c.b16 %v5166, %v5158
        %v5519 = vpack.c.b16 %v5167, %v5159
        %v5520 = vpack.c.b16 %v5168, %v5160
        %v5521 = vpack.c.b16 %v5169, %v5161
        %v5522 = vpack.c.b16 %v5170, %v5162
        %v5523 = vpack.c.b16 %v5171, %v5163
        %v5524 = vpack.c.b16 %v5172, %v5164
        %v5525 = vpack.c.b16 %v5173, %v5165
        %v5526 = vpack.c.b16 %v5182, %v5174
        %v5527 = vpack.c.b16 %v5183, %v5175
        %v5528 = vpack.c.b16 %v5184, %v5176
        %v5529 = vpack.c.b16 %v5185, %v5177
        %v5530 = vpack.c.b16 %v5186, %v5178
        %v5531 = vpack.c.b16 %v5187, %v5179
        %v5532 = vpack.c.b16 %v5188, %v5180
        %v5533 = vpack.c.b16 %v5189, %v5181
        %v5534 = vpack.c.b16 %v5198, %v5190
        %v5535 = vpack.c.b16 %v5199, %v5191
        %v5536 = vpack.c.b16 %v5200, %v5192
        %v5537 = vpack.c.b16 %v5201, %v5193
        %v5538 = vpack.c.b16 %v5202, %v5194
        %v5539 = vpack.c.b16 %v5203, %v5195
        %v5540 = vpack.c.b16 %v5204, %v5196
        %v5541 = vpack.c.b16 %v5205, %v5197
        %v5542 = vpack.c.b16 %v5214, %v5206
        %v5543 = vpack.c.b16 %v5215, %v5207
        %v5544 = vpack.c.b16 %v5216, %v5208
        %v5545 = vpack.c.b16 %v5217, %v5209
        %v5546 = vpack.c.b16 %v5218, %v5210
        %v5547 = vpack.c.b16 %v5219, %v5211
        %v5548 = vpack.c.b16 %v5220, %v5212
        %v5549 = vpack.c.b16 %v5221, %v5213
        %v5550 = vpack.c.b16 %v5230, %v5222
        %v5551 = vpack.c.b16 %v5231, %v5223
        %v5552 = vpack.c.b16 %v5232, %v5224
        %v5553 = vpack.c.b16 %v5233, %v5225
        %v5554 = vpack.c.b16 %v5234, %v5226
        %v5555 = vpack.c.b16 %v5235, %v5227
        %v5556 = vpack.c.b16 %v5236, %v5228
        %v5557 = vpack.c.b16 %v5237, %v5229
        %v5558 = vpack.c.b16 %v5246, %v5238
        %v5559 = vpack.c.b16 %v5247, %v5239
        %v5560 = vpack.c.b16 %v5248, %v5240
        %v5561 = vpack.c.b16 %v5249, %v5241
        %v5562 = vpack.c.b16 %v5250, %v5242
        %v5563 = vpack.c.b16 %v5251, %v5243
        %v5564 = vpack.c.b16 %v5252, %v5244
        %v5565 = vpack.c.b16 %v5253, %v5245
        %v5566 = vpack.c.b16 %v5262, %v5254
        %v5567 = vpack.c.b16 %v5263, %v5255
        %v5568 = vpack.c.b16 %v5264, %v5256
        %v5569 = vpack.c.b16 %v5265, %v5257
        %v5570 = vpack.c.b16 %v5266, %v5258
        %v5571 = vpack.c.b16 %v5267, %v5259
        %v5572 = vpack.c.b16 %v5268, %v5260
        %v5573 = vpack.c.b16 %v5269, %v5261
        %v5574 = vpack.c.b16 %v5278, %v5270
        %v5575 = vpack.c.b16 %v5279, %v5271
        %v5576 = vpack.c.b16 %v5280, %v5272
        %v5577 = vpack.c.b16 %v5281, %v5273
        %v5578 = vpack.c.b16 %v5282, %v5274
        %v5579 = vpack.c.b16 %v5283, %v5275
        %v5580 = vpack.c.b16 %v5284, %v5276
        %v5581 = vpack.c.b16 %v5285, %v5277
        %v5582 = vpack.c.b16 %v5294, %v5286
        %v5583 = vpack.c.b16 %v5295, %v5287
        %v5584 = vpack.c.b16 %v5296, %v5288
        %v5585 = vpack.c.b16 %v5297, %v5289
        %v5586 = vpack.c.b16 %v5298, %v5290
        %v5587 = vpack.c.b16 %v5299, %v5291
        %v5588 = vpack.c.b16 %v5300, %v5292
        %v5589 = vpack.c.b16 %v5301, %v5293
        %v5590 = vpack.c.b16 %v5310, %v5302
        %v5591 = vpack.c.b16 %v5311, %v5303
        %v5592 = vpack.c.b16 %v5312, %v5304
        %v5593 = vpack.c.b16 %v5313, %v5305
        %v5594 = vpack.c.b16 %v5314, %v5306
        %v5595 = vpack.c.b16 %v5315, %v5307
        %v5596 = vpack.c.b16 %v5316, %v5308
        %v5597 = vpack.c.b16 %v5317, %v5309
        %v5598 = vpack.c.b16 %v5326, %v5318
        %v5599 = vpack.c.b16 %v5327, %v5319
        %v5600 = vpack.c.b16 %v5328, %v5320
        %v5601 = vpack.c.b16 %v5329, %v5321
        %v5602 = vpack.c.b16 %v5330, %v5322
        %v5603 = vpack.c.b16 %v5331, %v5323
        %v5604 = vpack.c.b16 %v5332, %v5324
        %v5605 = vpack.c.b16 %v5333, %v5325
        %v5606 = vpack.c.b16 %v5342, %v5334
        %v5607 = vpack.c.b16 %v5343, %v5335
        %v5608 = vpack.c.b16 %v5344, %v5336
        %v5609 = vpack.c.b16 %v5345, %v5337
        %v5610 = vpack.c.b16 %v5346, %v5338
        %v5611 = vpack.c.b16 %v5347, %v5339
        %v5612 = vpack.c.b16 %v5348, %v5340
        %v5613 = vpack.c.b16 %v5349, %v5341
        %v5614 = vpack.c.b16 %v5358, %v5350
        %v5615 = vpack.c.b16 %v5359, %v5351
        %v5616 = vpack.c.b16 %v5360, %v5352
        %v5617 = vpack.c.b16 %v5361, %v5353
        %v5618 = vpack.c.b16 %v5362, %v5354
        %v5619 = vpack.c.b16 %v5363, %v5355
        %v5620 = vpack.c.b16 %v5364, %v5356
        %v5621 = vpack.c.b16 %v5365, %v5357
        %5878 = vmatpush.bf16.msra.mxu0 %v5422
        %5879 = vmatpush.bf16.msra.mxu0 %v5414
        %5880 = vmatpush.bf16.msra.mxu0 %v5406
        %5881 = vmatpush.bf16.msra.mxu0 %v5398
        %5882 = vmatpush.bf16.msra.mxu0 %v5390
        %5883 = vmatpush.bf16.msra.mxu0 %v5382
        %5884 = vmatpush.bf16.msra.mxu0 %v5374
        %5885 = vmatpush.bf16.msra.mxu0 %v5366
        %5886 = vmatmul.bf16.gmra.mxu0 %v4575
        %v5887 = vpop.f32.mrf.mxu0
        %v5888 = vadd.f32 0.0, %v5887
        %v5889 = vpop.f32.mrf.mxu0
        %5890 = vdwg.mxu0
        %5891 = vmatpush.bf16.msra.mxu0 %v5486
        %5892 = vmatpush.bf16.msra.mxu0 %v5478
        %5893 = vmatpush.bf16.msra.mxu0 %v5470
        %5894 = vmatpush.bf16.msra.mxu0 %v5462
        %5895 = vmatpush.bf16.msra.mxu0 %v5454
        %5896 = vmatpush.bf16.msra.mxu0 %v5446
        %5897 = vmatpush.bf16.msra.mxu0 %v5438
        %5898 = vmatpush.bf16.msra.mxu0 %v5430
        %5899 = vmatmul.bf16.gmra.mxu0 %v4581
        %v5900 = vpop.f32.mrf.mxu0
        %v5901 = vadd.f32 %v5888, %v5900
        %v5902 = vpop.f32.mrf.mxu0
        %5903 = vdwg.mxu0
        %5904 = vmatpush.bf16.msra.mxu0 %v5550
        %5905 = vmatpush.bf16.msra.mxu0 %v5542
        %5906 = vmatpush.bf16.msra.mxu0 %v5534
        %5907 = vmatpush.bf16.msra.mxu0 %v5526
        %5908 = vmatpush.bf16.msra.mxu0 %v5518
        %5909 = vmatpush.bf16.msra.mxu0 %v5510
        %5910 = vmatpush.bf16.msra.mxu0 %v5502
        %5911 = vmatpush.bf16.msra.mxu0 %v5494
        %5912 = vmatmul.bf16.gmra.mxu0 %v4587
        %v5913 = vpop.f32.mrf.mxu0
        %v5914 = vadd.f32 %v5901, %v5913
        %v5915 = vpop.f32.mrf.mxu0
        %5916 = vdwg.mxu0
        %5917 = vmatpush.bf16.msra.mxu0 %v5614
        %5918 = vmatpush.bf16.msra.mxu0 %v5606
        %5919 = vmatpush.bf16.msra.mxu0 %v5598
        %5920 = vmatpush.bf16.msra.mxu0 %v5590
        %5921 = vmatpush.bf16.msra.mxu0 %v5582
        %5922 = vmatpush.bf16.msra.mxu0 %v5574
        %5923 = vmatpush.bf16.msra.mxu0 %v5566
        %5924 = vmatpush.bf16.msra.mxu0 %v5558
        %5925 = vmatmul.bf16.gmra.mxu0 %v4593
        %v5926 = vpop.f32.mrf.mxu0
        %v5927 = vadd.f32 %v5914, %v5926
        %v5928 = vpop.f32.mrf.mxu0
        %5929 = vdwg.mxu0
        %5930 = vmatpush.bf16.msra.mxu0 %v5423
        %5931 = vmatpush.bf16.msra.mxu0 %v5415
        %5932 = vmatpush.bf16.msra.mxu0 %v5407
        %5933 = vmatpush.bf16.msra.mxu0 %v5399
        %5934 = vmatpush.bf16.msra.mxu0 %v5391
        %5935 = vmatpush.bf16.msra.mxu0 %v5383
        %5936 = vmatpush.bf16.msra.mxu0 %v5375
        %5937 = vmatpush.bf16.msra.mxu0 %v5367
        %5938 = vmatmul.bf16.gmra.mxu0 %v4575
        %v5939 = vpop.f32.mrf.mxu0
        %v5940 = vadd.f32 0.0, %v5939
        %v5941 = vpop.f32.mrf.mxu0
        %5942 = vdwg.mxu0
        %5943 = vmatpush.bf16.msra.mxu0 %v5487
        %5944 = vmatpush.bf16.msra.mxu0 %v5479
        %5945 = vmatpush.bf16.msra.mxu0 %v5471
        %5946 = vmatpush.bf16.msra.mxu0 %v5463
        %5947 = vmatpush.bf16.msra.mxu0 %v5455
        %5948 = vmatpush.bf16.msra.mxu0 %v5447
        %5949 = vmatpush.bf16.msra.mxu0 %v5439
        %5950 = vmatpush.bf16.msra.mxu0 %v5431
        %5951 = vmatmul.bf16.gmra.mxu0 %v4581
        %v5952 = vpop.f32.mrf.mxu0
        %v5953 = vadd.f32 %v5940, %v5952
        %v5954 = vpop.f32.mrf.mxu0
        %5955 = vdwg.mxu0
        %5956 = vmatpush.bf16.msra.mxu0 %v5551
        %5957 = vmatpush.bf16.msra.mxu0 %v5543
        %5958 = vmatpush.bf16.msra.mxu0 %v5535
        %5959 = vmatpush.bf16.msra.mxu0 %v5527
        %5960 = vmatpush.bf16.msra.mxu0 %v5519
        %5961 = vmatpush.bf16.msra.mxu0 %v5511
        %5962 = vmatpush.bf16.msra.mxu0 %v5503
        %5963 = vmatpush.bf16.msra.mxu0 %v5495
        %5964 = vmatmul.bf16.gmra.mxu0 %v4587
        %v5965 = vpop.f32.mrf.mxu0
        %v5966 = vadd.f32 %v5953, %v5965
        %v5967 = vpop.f32.mrf.mxu0
        %5968 = vdwg.mxu0
        %5969 = vmatpush.bf16.msra.mxu0 %v5615
        %5970 = vmatpush.bf16.msra.mxu0 %v5607
        %5971 = vmatpush.bf16.msra.mxu0 %v5599
        %5972 = vmatpush.bf16.msra.mxu0 %v5591
        %5973 = vmatpush.bf16.msra.mxu0 %v5583
        %5974 = vmatpush.bf16.msra.mxu0 %v5575
        %5975 = vmatpush.bf16.msra.mxu0 %v5567
        %5976 = vmatpush.bf16.msra.mxu0 %v5559
        %5977 = vmatmul.bf16.gmra.mxu0 %v4593
        %v5978 = vpop.f32.mrf.mxu0
        %v5979 = vadd.f32 %v5966, %v5978
        %v5980 = vpop.f32.mrf.mxu0
        %5981 = vdwg.mxu0
        %5982 = vmatpush.bf16.msra.mxu0 %v5424
        %5983 = vmatpush.bf16.msra.mxu0 %v5416
        %5984 = vmatpush.bf16.msra.mxu0 %v5408
        %5985 = vmatpush.bf16.msra.mxu0 %v5400
        %5986 = vmatpush.bf16.msra.mxu0 %v5392
        %5987 = vmatpush.bf16.msra.mxu0 %v5384
        %5988 = vmatpush.bf16.msra.mxu0 %v5376
        %5989 = vmatpush.bf16.msra.mxu0 %v5368
        %5990 = vmatmul.bf16.gmra.mxu0 %v4575
        %v5991 = vpop.f32.mrf.mxu0
        %v5992 = vadd.f32 0.0, %v5991
        %v5993 = vpop.f32.mrf.mxu0
        %5994 = vdwg.mxu0
        %5995 = vmatpush.bf16.msra.mxu0 %v5488
        %5996 = vmatpush.bf16.msra.mxu0 %v5480
        %5997 = vmatpush.bf16.msra.mxu0 %v5472
        %5998 = vmatpush.bf16.msra.mxu0 %v5464
        %5999 = vmatpush.bf16.msra.mxu0 %v5456
        %6000 = vmatpush.bf16.msra.mxu0 %v5448
        %6001 = vmatpush.bf16.msra.mxu0 %v5440
        %6002 = vmatpush.bf16.msra.mxu0 %v5432
        %6003 = vmatmul.bf16.gmra.mxu0 %v4581
        %v6004 = vpop.f32.mrf.mxu0
        %v6005 = vadd.f32 %v5992, %v6004
        %v6006 = vpop.f32.mrf.mxu0
        %6007 = vdwg.mxu0
        %6008 = vmatpush.bf16.msra.mxu0 %v5552
        %6009 = vmatpush.bf16.msra.mxu0 %v5544
        %6010 = vmatpush.bf16.msra.mxu0 %v5536
        %6011 = vmatpush.bf16.msra.mxu0 %v5528
        %6012 = vmatpush.bf16.msra.mxu0 %v5520
        %6013 = vmatpush.bf16.msra.mxu0 %v5512
        %6014 = vmatpush.bf16.msra.mxu0 %v5504
        %6015 = vmatpush.bf16.msra.mxu0 %v5496
        %6016 = vmatmul.bf16.gmra.mxu0 %v4587
        %v6017 = vpop.f32.mrf.mxu0
        %v6018 = vadd.f32 %v6005, %v6017
        %v6019 = vpop.f32.mrf.mxu0
        %6020 = vdwg.mxu0
        %6021 = vmatpush.bf16.msra.mxu0 %v5616
        %6022 = vmatpush.bf16.msra.mxu0 %v5608
        %6023 = vmatpush.bf16.msra.mxu0 %v5600
        %6024 = vmatpush.bf16.msra.mxu0 %v5592
        %6025 = vmatpush.bf16.msra.mxu0 %v5584
        %6026 = vmatpush.bf16.msra.mxu0 %v5576
        %6027 = vmatpush.bf16.msra.mxu0 %v5568
        %6028 = vmatpush.bf16.msra.mxu0 %v5560
        %6029 = vmatmul.bf16.gmra.mxu0 %v4593
        %v6030 = vpop.f32.mrf.mxu0
        %v6031 = vadd.f32 %v6018, %v6030
        %v6032 = vpop.f32.mrf.mxu0
        %6033 = vdwg.mxu0
        %6034 = vmatpush.bf16.msra.mxu0 %v5425
        %6035 = vmatpush.bf16.msra.mxu0 %v5417
        %6036 = vmatpush.bf16.msra.mxu0 %v5409
        %6037 = vmatpush.bf16.msra.mxu0 %v5401
        %6038 = vmatpush.bf16.msra.mxu0 %v5393
        %6039 = vmatpush.bf16.msra.mxu0 %v5385
        %6040 = vmatpush.bf16.msra.mxu0 %v5377
        %6041 = vmatpush.bf16.msra.mxu0 %v5369
        %6042 = vmatmul.bf16.gmra.mxu0 %v4575
        %v6043 = vpop.f32.mrf.mxu0
        %v6044 = vadd.f32 0.0, %v6043
        %v6045 = vpop.f32.mrf.mxu0
        %6046 = vdwg.mxu0
        %6047 = vmatpush.bf16.msra.mxu0 %v5489
        %6048 = vmatpush.bf16.msra.mxu0 %v5481
        %6049 = vmatpush.bf16.msra.mxu0 %v5473
        %6050 = vmatpush.bf16.msra.mxu0 %v5465
        %6051 = vmatpush.bf16.msra.mxu0 %v5457
        %6052 = vmatpush.bf16.msra.mxu0 %v5449
        %6053 = vmatpush.bf16.msra.mxu0 %v5441
        %6054 = vmatpush.bf16.msra.mxu0 %v5433
        %6055 = vmatmul.bf16.gmra.mxu0 %v4581
        %v6056 = vpop.f32.mrf.mxu0
        %v6057 = vadd.f32 %v6044, %v6056
        %v6058 = vpop.f32.mrf.mxu0
        %6059 = vdwg.mxu0
        %6060 = vmatpush.bf16.msra.mxu0 %v5553
        %6061 = vmatpush.bf16.msra.mxu0 %v5545
        %6062 = vmatpush.bf16.msra.mxu0 %v5537
        %6063 = vmatpush.bf16.msra.mxu0 %v5529
        %6064 = vmatpush.bf16.msra.mxu0 %v5521
        %6065 = vmatpush.bf16.msra.mxu0 %v5513
        %6066 = vmatpush.bf16.msra.mxu0 %v5505
        %6067 = vmatpush.bf16.msra.mxu0 %v5497
        %6068 = vmatmul.bf16.gmra.mxu0 %v4587
        %v6069 = vpop.f32.mrf.mxu0
        %v6070 = vadd.f32 %v6057, %v6069
        %v6071 = vpop.f32.mrf.mxu0
        %6072 = vdwg.mxu0
        %6073 = vmatpush.bf16.msra.mxu0 %v5617
        %6074 = vmatpush.bf16.msra.mxu0 %v5609
        %6075 = vmatpush.bf16.msra.mxu0 %v5601
        %6076 = vmatpush.bf16.msra.mxu0 %v5593
        %6077 = vmatpush.bf16.msra.mxu0 %v5585
        %6078 = vmatpush.bf16.msra.mxu0 %v5577
        %6079 = vmatpush.bf16.msra.mxu0 %v5569
        %6080 = vmatpush.bf16.msra.mxu0 %v5561
        %6081 = vmatmul.bf16.gmra.mxu0 %v4593
        %v6082 = vpop.f32.mrf.mxu0
        %v6083 = vadd.f32 %v6070, %v6082
        %v6084 = vpop.f32.mrf.mxu0
        %6085 = vdwg.mxu0
        %6086 = vmatpush.bf16.msra.mxu0 %v5426
        %6087 = vmatpush.bf16.msra.mxu0 %v5418
        %6088 = vmatpush.bf16.msra.mxu0 %v5410
        %6089 = vmatpush.bf16.msra.mxu0 %v5402
        %6090 = vmatpush.bf16.msra.mxu0 %v5394
        %6091 = vmatpush.bf16.msra.mxu0 %v5386
        %6092 = vmatpush.bf16.msra.mxu0 %v5378
        %6093 = vmatpush.bf16.msra.mxu0 %v5370
        %6094 = vmatmul.bf16.gmra.mxu0 %v4575
        %v6095 = vpop.f32.mrf.mxu0
        %v6096 = vadd.f32 0.0, %v6095
        %v6097 = vpop.f32.mrf.mxu0
        %6098 = vdwg.mxu0
        %6099 = vmatpush.bf16.msra.mxu0 %v5490
        %6100 = vmatpush.bf16.msra.mxu0 %v5482
        %6101 = vmatpush.bf16.msra.mxu0 %v5474
        %6102 = vmatpush.bf16.msra.mxu0 %v5466
        %6103 = vmatpush.bf16.msra.mxu0 %v5458
        %6104 = vmatpush.bf16.msra.mxu0 %v5450
        %6105 = vmatpush.bf16.msra.mxu0 %v5442
        %6106 = vmatpush.bf16.msra.mxu0 %v5434
        %6107 = vmatmul.bf16.gmra.mxu0 %v4581
        %v6108 = vpop.f32.mrf.mxu0
        %v6109 = vadd.f32 %v6096, %v6108
        %v6110 = vpop.f32.mrf.mxu0
        %6111 = vdwg.mxu0
        %6112 = vmatpush.bf16.msra.mxu0 %v5554
        %6113 = vmatpush.bf16.msra.mxu0 %v5546
        %6114 = vmatpush.bf16.msra.mxu0 %v5538
        %6115 = vmatpush.bf16.msra.mxu0 %v5530
        %6116 = vmatpush.bf16.msra.mxu0 %v5522
        %6117 = vmatpush.bf16.msra.mxu0 %v5514
        %6118 = vmatpush.bf16.msra.mxu0 %v5506
        %6119 = vmatpush.bf16.msra.mxu0 %v5498
        %6120 = vmatmul.bf16.gmra.mxu0 %v4587
        %v6121 = vpop.f32.mrf.mxu0
        %v6122 = vadd.f32 %v6109, %v6121
        %v6123 = vpop.f32.mrf.mxu0
        %6124 = vdwg.mxu0
        %6125 = vmatpush.bf16.msra.mxu0 %v5618
        %6126 = vmatpush.bf16.msra.mxu0 %v5610
        %6127 = vmatpush.bf16.msra.mxu0 %v5602
        %6128 = vmatpush.bf16.msra.mxu0 %v5594
        %6129 = vmatpush.bf16.msra.mxu0 %v5586
        %6130 = vmatpush.bf16.msra.mxu0 %v5578
        %6131 = vmatpush.bf16.msra.mxu0 %v5570
        %6132 = vmatpush.bf16.msra.mxu0 %v5562
        %6133 = vmatmul.bf16.gmra.mxu0 %v4593
        %v6134 = vpop.f32.mrf.mxu0
        %v6135 = vadd.f32 %v6122, %v6134
        %v6136 = vpop.f32.mrf.mxu0
        %6137 = vdwg.mxu0
        %6138 = vmatpush.bf16.msra.mxu0 %v5427
        %6139 = vmatpush.bf16.msra.mxu0 %v5419
        %6140 = vmatpush.bf16.msra.mxu0 %v5411
        %6141 = vmatpush.bf16.msra.mxu0 %v5403
        %6142 = vmatpush.bf16.msra.mxu0 %v5395
        %6143 = vmatpush.bf16.msra.mxu0 %v5387
        %6144 = vmatpush.bf16.msra.mxu0 %v5379
        %6145 = vmatpush.bf16.msra.mxu0 %v5371
        %6146 = vmatmul.bf16.gmra.mxu0 %v4575
        %v6147 = vpop.f32.mrf.mxu0
        %v6148 = vadd.f32 0.0, %v6147
        %v6149 = vpop.f32.mrf.mxu0
        %6150 = vdwg.mxu0
        %6151 = vmatpush.bf16.msra.mxu0 %v5491
        %6152 = vmatpush.bf16.msra.mxu0 %v5483
        %6153 = vmatpush.bf16.msra.mxu0 %v5475
        %6154 = vmatpush.bf16.msra.mxu0 %v5467
        %6155 = vmatpush.bf16.msra.mxu0 %v5459
        %6156 = vmatpush.bf16.msra.mxu0 %v5451
        %6157 = vmatpush.bf16.msra.mxu0 %v5443
        %6158 = vmatpush.bf16.msra.mxu0 %v5435
        %6159 = vmatmul.bf16.gmra.mxu0 %v4581
        %v6160 = vpop.f32.mrf.mxu0
        %v6161 = vadd.f32 %v6148, %v6160
        %v6162 = vpop.f32.mrf.mxu0
        %6163 = vdwg.mxu0
        %6164 = vmatpush.bf16.msra.mxu0 %v5555
        %6165 = vmatpush.bf16.msra.mxu0 %v5547
        %6166 = vmatpush.bf16.msra.mxu0 %v5539
        %6167 = vmatpush.bf16.msra.mxu0 %v5531
        %6168 = vmatpush.bf16.msra.mxu0 %v5523
        %6169 = vmatpush.bf16.msra.mxu0 %v5515
        %6170 = vmatpush.bf16.msra.mxu0 %v5507
        %6171 = vmatpush.bf16.msra.mxu0 %v5499
        %6172 = vmatmul.bf16.gmra.mxu0 %v4587
        %v6173 = vpop.f32.mrf.mxu0
        %v6174 = vadd.f32 %v6161, %v6173
        %v6175 = vpop.f32.mrf.mxu0
        %6176 = vdwg.mxu0
        %6177 = vmatpush.bf16.msra.mxu0 %v5619
        %6178 = vmatpush.bf16.msra.mxu0 %v5611
        %6179 = vmatpush.bf16.msra.mxu0 %v5603
        %6180 = vmatpush.bf16.msra.mxu0 %v5595
        %6181 = vmatpush.bf16.msra.mxu0 %v5587
        %6182 = vmatpush.bf16.msra.mxu0 %v5579
        %6183 = vmatpush.bf16.msra.mxu0 %v5571
        %6184 = vmatpush.bf16.msra.mxu0 %v5563
        %6185 = vmatmul.bf16.gmra.mxu0 %v4593
        %v6186 = vpop.f32.mrf.mxu0
        %v6187 = vadd.f32 %v6174, %v6186
        %v6188 = vpop.f32.mrf.mxu0
        %6189 = vdwg.mxu0
        %6190 = vmatpush.bf16.msra.mxu0 %v5428
        %6191 = vmatpush.bf16.msra.mxu0 %v5420
        %6192 = vmatpush.bf16.msra.mxu0 %v5412
        %6193 = vmatpush.bf16.msra.mxu0 %v5404
        %6194 = vmatpush.bf16.msra.mxu0 %v5396
        %6195 = vmatpush.bf16.msra.mxu0 %v5388
        %6196 = vmatpush.bf16.msra.mxu0 %v5380
        %6197 = vmatpush.bf16.msra.mxu0 %v5372
        %6198 = vmatmul.bf16.gmra.mxu0 %v4575
        %v6199 = vpop.f32.mrf.mxu0
        %v6200 = vadd.f32 0.0, %v6199
        %v6201 = vpop.f32.mrf.mxu0
        %6202 = vdwg.mxu0
        %6203 = vmatpush.bf16.msra.mxu0 %v5492
        %6204 = vmatpush.bf16.msra.mxu0 %v5484
        %6205 = vmatpush.bf16.msra.mxu0 %v5476
        %6206 = vmatpush.bf16.msra.mxu0 %v5468
        %6207 = vmatpush.bf16.msra.mxu0 %v5460
        %6208 = vmatpush.bf16.msra.mxu0 %v5452
        %6209 = vmatpush.bf16.msra.mxu0 %v5444
        %6210 = vmatpush.bf16.msra.mxu0 %v5436
        %6211 = vmatmul.bf16.gmra.mxu0 %v4581
        %v6212 = vpop.f32.mrf.mxu0
        %v6213 = vadd.f32 %v6200, %v6212
        %v6214 = vpop.f32.mrf.mxu0
        %6215 = vdwg.mxu0
        %6216 = vmatpush.bf16.msra.mxu0 %v5556
        %6217 = vmatpush.bf16.msra.mxu0 %v5548
        %6218 = vmatpush.bf16.msra.mxu0 %v5540
        %6219 = vmatpush.bf16.msra.mxu0 %v5532
        %6220 = vmatpush.bf16.msra.mxu0 %v5524
        %6221 = vmatpush.bf16.msra.mxu0 %v5516
        %6222 = vmatpush.bf16.msra.mxu0 %v5508
        %6223 = vmatpush.bf16.msra.mxu0 %v5500
        %6224 = vmatmul.bf16.gmra.mxu0 %v4587
        %v6225 = vpop.f32.mrf.mxu0
        %v6226 = vadd.f32 %v6213, %v6225
        %v6227 = vpop.f32.mrf.mxu0
        %6228 = vdwg.mxu0
        %6229 = vmatpush.bf16.msra.mxu0 %v5620
        %6230 = vmatpush.bf16.msra.mxu0 %v5612
        %6231 = vmatpush.bf16.msra.mxu0 %v5604
        %6232 = vmatpush.bf16.msra.mxu0 %v5596
        %6233 = vmatpush.bf16.msra.mxu0 %v5588
        %6234 = vmatpush.bf16.msra.mxu0 %v5580
        %6235 = vmatpush.bf16.msra.mxu0 %v5572
        %6236 = vmatpush.bf16.msra.mxu0 %v5564
        %6237 = vmatmul.bf16.gmra.mxu0 %v4593
        %v6238 = vpop.f32.mrf.mxu0
        %v6239 = vadd.f32 %v6226, %v6238
        %v6240 = vpop.f32.mrf.mxu0
        %6241 = vdwg.mxu0
        %6242 = vmatpush.bf16.msra.mxu0 %v5429
        %6243 = vmatpush.bf16.msra.mxu0 %v5421
        %6244 = vmatpush.bf16.msra.mxu0 %v5413
        %6245 = vmatpush.bf16.msra.mxu0 %v5405
        %6246 = vmatpush.bf16.msra.mxu0 %v5397
        %6247 = vmatpush.bf16.msra.mxu0 %v5389
        %6248 = vmatpush.bf16.msra.mxu0 %v5381
        %6249 = vmatpush.bf16.msra.mxu0 %v5373
        %6250 = vmatmul.bf16.gmra.mxu0 %v4575
        %v6251 = vpop.f32.mrf.mxu0
        %v6252 = vadd.f32 0.0, %v6251
        %v6253 = vpop.f32.mrf.mxu0
        %6254 = vdwg.mxu0
        %6255 = vmatpush.bf16.msra.mxu0 %v5493
        %6256 = vmatpush.bf16.msra.mxu0 %v5485
        %6257 = vmatpush.bf16.msra.mxu0 %v5477
        %6258 = vmatpush.bf16.msra.mxu0 %v5469
        %6259 = vmatpush.bf16.msra.mxu0 %v5461
        %6260 = vmatpush.bf16.msra.mxu0 %v5453
        %6261 = vmatpush.bf16.msra.mxu0 %v5445
        %6262 = vmatpush.bf16.msra.mxu0 %v5437
        %6263 = vmatmul.bf16.gmra.mxu0 %v4581
        %v6264 = vpop.f32.mrf.mxu0
        %v6265 = vadd.f32 %v6252, %v6264
        %v6266 = vpop.f32.mrf.mxu0
        %6267 = vdwg.mxu0
        %6268 = vmatpush.bf16.msra.mxu0 %v5557
        %6269 = vmatpush.bf16.msra.mxu0 %v5549
        %6270 = vmatpush.bf16.msra.mxu0 %v5541
        %6271 = vmatpush.bf16.msra.mxu0 %v5533
        %6272 = vmatpush.bf16.msra.mxu0 %v5525
        %6273 = vmatpush.bf16.msra.mxu0 %v5517
        %6274 = vmatpush.bf16.msra.mxu0 %v5509
        %6275 = vmatpush.bf16.msra.mxu0 %v5501
        %6276 = vmatmul.bf16.gmra.mxu0 %v4587
        %v6277 = vpop.f32.mrf.mxu0
        %v6278 = vadd.f32 %v6265, %v6277
        %v6279 = vpop.f32.mrf.mxu0
        %6280 = vdwg.mxu0
        %6281 = vmatpush.bf16.msra.mxu0 %v5621
        %6282 = vmatpush.bf16.msra.mxu0 %v5613
        %6283 = vmatpush.bf16.msra.mxu0 %v5605
        %6284 = vmatpush.bf16.msra.mxu0 %v5597
        %6285 = vmatpush.bf16.msra.mxu0 %v5589
        %6286 = vmatpush.bf16.msra.mxu0 %v5581
        %6287 = vmatpush.bf16.msra.mxu0 %v5573
        %6288 = vmatpush.bf16.msra.mxu0 %v5565
        %6289 = vmatmul.bf16.gmra.mxu0 %v4593
        %v6290 = vpop.f32.mrf.mxu0
        %v6291 = vadd.f32 %v6278, %v6290
        %v6292 = vpop.f32.mrf.mxu0
        %6293 = vdwg.mxu0
        %6295 = vst [vmem:[#allocation1] ss:$4 sm:$0xff] %v4049
        %v6296 = vld.sshfl [vmem:[#allocation1] sm:$0xff pattern:$0x73625140]
        %v6297 = vld.sshfl [vmem:[#allocation1 + $0x8] sm:$0xff pattern:$0x73625140]
        %v6298 = vld.sshfl [vmem:[#allocation1 + $0x10] sm:$0xff pattern:$0x73625140]
        %v6299 = vld.sshfl [vmem:[#allocation1 + $0x18] sm:$0xff pattern:$0x73625140]
        %v6560 = vunpack.c.l.b16 %v4050
        %v6561 = vunpack.c.h.b16 %v4050
        %v6562 = vunpack.c.l.b16 %v4051
        %v6563 = vunpack.c.h.b16 %v4051
        %v6564 = vunpack.c.l.b16 %v4052
        %v6565 = vunpack.c.h.b16 %v4052
        %v6566 = vunpack.c.l.b16 %v4053
        %v6567 = vunpack.c.h.b16 %v4053
        %v6568 = vunpack.c.l.b16 %v4054
        %v6569 = vunpack.c.h.b16 %v4054
        %v6570 = vunpack.c.l.b16 %v4055
        %v6571 = vunpack.c.h.b16 %v4055
        %v6572 = vunpack.c.l.b16 %v4056
        %v6573 = vunpack.c.h.b16 %v4056
        %v6574 = vunpack.c.l.b16 %v4057
        %v6575 = vunpack.c.h.b16 %v4057
        %v6576 = vunpack.c.l.b16 %v4058
        %v6577 = vunpack.c.h.b16 %v4058
        %v6578 = vunpack.c.l.b16 %v4059
        %v6579 = vunpack.c.h.b16 %v4059
        %v6580 = vunpack.c.l.b16 %v4060
        %v6581 = vunpack.c.h.b16 %v4060
        %v6582 = vunpack.c.l.b16 %v4061
        %v6583 = vunpack.c.h.b16 %v4061
        %v6584 = vunpack.c.l.b16 %v4062
        %v6585 = vunpack.c.h.b16 %v4062
        %v6586 = vunpack.c.l.b16 %v4063
        %v6587 = vunpack.c.h.b16 %v4063
        %v6588 = vunpack.c.l.b16 %v4064
        %v6589 = vunpack.c.h.b16 %v4064
        %v6590 = vunpack.c.l.b16 %v4065
        %v6591 = vunpack.c.h.b16 %v4065
        %v6592 = vunpack.c.l.b16 %v4066
        %v6593 = vunpack.c.h.b16 %v4066
        %v6594 = vunpack.c.l.b16 %v4067
        %v6595 = vunpack.c.h.b16 %v4067
        %v6596 = vunpack.c.l.b16 %v4068
        %v6597 = vunpack.c.h.b16 %v4068
        %v6598 = vunpack.c.l.b16 %v4069
        %v6599 = vunpack.c.h.b16 %v4069
        %v6600 = vunpack.c.l.b16 %v4070
        %v6601 = vunpack.c.h.b16 %v4070
        %v6602 = vunpack.c.l.b16 %v4071
        %v6603 = vunpack.c.h.b16 %v4071
        %v6604 = vunpack.c.l.b16 %v4072
        %v6605 = vunpack.c.h.b16 %v4072
        %v6606 = vunpack.c.l.b16 %v4073
        %v6607 = vunpack.c.h.b16 %v4073
        %v6608 = vunpack.c.l.b16 %v4074
        %v6609 = vunpack.c.h.b16 %v4074
        %v6610 = vunpack.c.l.b16 %v4075
        %v6611 = vunpack.c.h.b16 %v4075
        %v6612 = vunpack.c.l.b16 %v4076
        %v6613 = vunpack.c.h.b16 %v4076
        %v6614 = vunpack.c.l.b16 %v4077
        %v6615 = vunpack.c.h.b16 %v4077
        %v6616 = vunpack.c.l.b16 %v4078
        %v6617 = vunpack.c.h.b16 %v4078
        %v6618 = vunpack.c.l.b16 %v4079
        %v6619 = vunpack.c.h.b16 %v4079
        %v6620 = vunpack.c.l.b16 %v4080
        %v6621 = vunpack.c.h.b16 %v4080
        %v6622 = vunpack.c.l.b16 %v4081
        %v6623 = vunpack.c.h.b16 %v4081
        %v6624 = vunpack.c.l.b16 %v4082
        %v6625 = vunpack.c.h.b16 %v4082
        %v6626 = vunpack.c.l.b16 %v4083
        %v6627 = vunpack.c.h.b16 %v4083
        %v6628 = vunpack.c.l.b16 %v4084
        %v6629 = vunpack.c.h.b16 %v4084
        %v6630 = vunpack.c.l.b16 %v4085
        %v6631 = vunpack.c.h.b16 %v4085
        %v6632 = vunpack.c.l.b16 %v4086
        %v6633 = vunpack.c.h.b16 %v4086
        %v6634 = vunpack.c.l.b16 %v4087
        %v6635 = vunpack.c.h.b16 %v4087
        %v6636 = vunpack.c.l.b16 %v4088
        %v6637 = vunpack.c.h.b16 %v4088
        %v6638 = vunpack.c.l.b16 %v4089
        %v6639 = vunpack.c.h.b16 %v4089
        %v6640 = vunpack.c.l.b16 %v4090
        %v6641 = vunpack.c.h.b16 %v4090
        %v6642 = vunpack.c.l.b16 %v4091
        %v6643 = vunpack.c.h.b16 %v4091
        %v6644 = vunpack.c.l.b16 %v4092
        %v6645 = vunpack.c.h.b16 %v4092
        %v6646 = vunpack.c.l.b16 %v4093
        %v6647 = vunpack.c.h.b16 %v4093
        %v6648 = vunpack.c.l.b16 %v4094
        %v6649 = vunpack.c.h.b16 %v4094
        %v6650 = vunpack.c.l.b16 %v4095
        %v6651 = vunpack.c.h.b16 %v4095
        %v6652 = vunpack.c.l.b16 %v4096
        %v6653 = vunpack.c.h.b16 %v4096
        %v6654 = vunpack.c.l.b16 %v4097
        %v6655 = vunpack.c.h.b16 %v4097
        %v6656 = vunpack.c.l.b16 %v4098
        %v6657 = vunpack.c.h.b16 %v4098
        %v6658 = vunpack.c.l.b16 %v4099
        %v6659 = vunpack.c.h.b16 %v4099
        %v6660 = vunpack.c.l.b16 %v4100
        %v6661 = vunpack.c.h.b16 %v4100
        %v6662 = vunpack.c.l.b16 %v4101
        %v6663 = vunpack.c.h.b16 %v4101
        %v6664 = vunpack.c.l.b16 %v4102
        %v6665 = vunpack.c.h.b16 %v4102
        %v6666 = vunpack.c.l.b16 %v4103
        %v6667 = vunpack.c.h.b16 %v4103
        %v6668 = vunpack.c.l.b16 %v4104
        %v6669 = vunpack.c.h.b16 %v4104
        %v6670 = vunpack.c.l.b16 %v4105
        %v6671 = vunpack.c.h.b16 %v4105
        %v6672 = vunpack.c.l.b16 %v4106
        %v6673 = vunpack.c.h.b16 %v4106
        %v6674 = vunpack.c.l.b16 %v4107
        %v6675 = vunpack.c.h.b16 %v4107
        %v6676 = vunpack.c.l.b16 %v4108
        %v6677 = vunpack.c.h.b16 %v4108
        %v6678 = vunpack.c.l.b16 %v4109
        %v6679 = vunpack.c.h.b16 %v4109
        %v6680 = vunpack.c.l.b16 %v4110
        %v6681 = vunpack.c.h.b16 %v4110
        %v6682 = vunpack.c.l.b16 %v4111
        %v6683 = vunpack.c.h.b16 %v4111
        %v6684 = vunpack.c.l.b16 %v4112
        %v6685 = vunpack.c.h.b16 %v4112
        %v6686 = vunpack.c.l.b16 %v4113
        %v6687 = vunpack.c.h.b16 %v4113
        %v6688 = vunpack.c.l.b16 %v4114
        %v6689 = vunpack.c.h.b16 %v4114
        %v6690 = vunpack.c.l.b16 %v4115
        %v6691 = vunpack.c.h.b16 %v4115
        %v6692 = vunpack.c.l.b16 %v4116
        %v6693 = vunpack.c.h.b16 %v4116
        %v6694 = vunpack.c.l.b16 %v4117
        %v6695 = vunpack.c.h.b16 %v4117
        %v6696 = vunpack.c.l.b16 %v4118
        %v6697 = vunpack.c.h.b16 %v4118
        %v6698 = vunpack.c.l.b16 %v4119
        %v6699 = vunpack.c.h.b16 %v4119
        %v6700 = vunpack.c.l.b16 %v4120
        %v6701 = vunpack.c.h.b16 %v4120
        %v6702 = vunpack.c.l.b16 %v4121
        %v6703 = vunpack.c.h.b16 %v4121
        %v6704 = vunpack.c.l.b16 %v4122
        %v6705 = vunpack.c.h.b16 %v4122
        %v6706 = vunpack.c.l.b16 %v4123
        %v6707 = vunpack.c.h.b16 %v4123
        %v6708 = vunpack.c.l.b16 %v4124
        %v6709 = vunpack.c.h.b16 %v4124
        %v6710 = vunpack.c.l.b16 %v4125
        %v6711 = vunpack.c.h.b16 %v4125
        %v6712 = vunpack.c.l.b16 %v4126
        %v6713 = vunpack.c.h.b16 %v4126
        %v6714 = vunpack.c.l.b16 %v4127
        %v6715 = vunpack.c.h.b16 %v4127
        %v6716 = vunpack.c.l.b16 %v4128
        %v6717 = vunpack.c.h.b16 %v4128
        %v6718 = vunpack.c.l.b16 %v4129
        %v6719 = vunpack.c.h.b16 %v4129
        %v6720 = vunpack.c.l.b16 %v4130
        %v6721 = vunpack.c.h.b16 %v4130
        %v6722 = vunpack.c.l.b16 %v4131
        %v6723 = vunpack.c.h.b16 %v4131
        %v6724 = vunpack.c.l.b16 %v4132
        %v6725 = vunpack.c.h.b16 %v4132
        %v6726 = vunpack.c.l.b16 %v4133
        %v6727 = vunpack.c.h.b16 %v4133
        %v6728 = vunpack.c.l.b16 %v4134
        %v6729 = vunpack.c.h.b16 %v4134
        %v6730 = vunpack.c.l.b16 %v4135
        %v6731 = vunpack.c.h.b16 %v4135
        %v6732 = vunpack.c.l.b16 %v4136
        %v6733 = vunpack.c.h.b16 %v4136
        %v6734 = vunpack.c.l.b16 %v4137
        %v6735 = vunpack.c.h.b16 %v4137
        %v6736 = vunpack.c.l.b16 %v4138
        %v6737 = vunpack.c.h.b16 %v4138
        %v6738 = vunpack.c.l.b16 %v4139
        %v6739 = vunpack.c.h.b16 %v4139
        %v6740 = vunpack.c.l.b16 %v4140
        %v6741 = vunpack.c.h.b16 %v4140
        %v6742 = vunpack.c.l.b16 %v4141
        %v6743 = vunpack.c.h.b16 %v4141
        %v6744 = vunpack.c.l.b16 %v4142
        %v6745 = vunpack.c.h.b16 %v4142
        %v6746 = vunpack.c.l.b16 %v4143
        %v6747 = vunpack.c.h.b16 %v4143
        %v6748 = vunpack.c.l.b16 %v4144
        %v6749 = vunpack.c.h.b16 %v4144
        %v6750 = vunpack.c.l.b16 %v4145
        %v6751 = vunpack.c.h.b16 %v4145
        %v6752 = vunpack.c.l.b16 %v4146
        %v6753 = vunpack.c.h.b16 %v4146
        %v6754 = vunpack.c.l.b16 %v4147
        %v6755 = vunpack.c.h.b16 %v4147
        %v6756 = vunpack.c.l.b16 %v4148
        %v6757 = vunpack.c.h.b16 %v4148
        %v6758 = vunpack.c.l.b16 %v4149
        %v6759 = vunpack.c.h.b16 %v4149
        %v6760 = vunpack.c.l.b16 %v4150
        %v6761 = vunpack.c.h.b16 %v4150
        %v6762 = vunpack.c.l.b16 %v4151
        %v6763 = vunpack.c.h.b16 %v4151
        %v6764 = vunpack.c.l.b16 %v4152
        %v6765 = vunpack.c.h.b16 %v4152
        %v6766 = vunpack.c.l.b16 %v4153
        %v6767 = vunpack.c.h.b16 %v4153
        %v6768 = vunpack.c.l.b16 %v4154
        %v6769 = vunpack.c.h.b16 %v4154
        %v6770 = vunpack.c.l.b16 %v4155
        %v6771 = vunpack.c.h.b16 %v4155
        %v6772 = vunpack.c.l.b16 %v4156
        %v6773 = vunpack.c.h.b16 %v4156
        %v6774 = vunpack.c.l.b16 %v4157
        %v6775 = vunpack.c.h.b16 %v4157
        %v6776 = vunpack.c.l.b16 %v4158
        %v6777 = vunpack.c.h.b16 %v4158
        %v6778 = vunpack.c.l.b16 %v4159
        %v6779 = vunpack.c.h.b16 %v4159
        %v6780 = vunpack.c.l.b16 %v4160
        %v6781 = vunpack.c.h.b16 %v4160
        %v6782 = vunpack.c.l.b16 %v4161
        %v6783 = vunpack.c.h.b16 %v4161
        %v6784 = vunpack.c.l.b16 %v4162
        %v6785 = vunpack.c.h.b16 %v4162
        %v6786 = vunpack.c.l.b16 %v4163
        %v6787 = vunpack.c.h.b16 %v4163
        %v6788 = vunpack.c.l.b16 %v4164
        %v6789 = vunpack.c.h.b16 %v4164
        %v6790 = vunpack.c.l.b16 %v4165
        %v6791 = vunpack.c.h.b16 %v4165
        %v6792 = vunpack.c.l.b16 %v4166
        %v6793 = vunpack.c.h.b16 %v4166
        %v6794 = vunpack.c.l.b16 %v4167
        %v6795 = vunpack.c.h.b16 %v4167
        %v6796 = vunpack.c.l.b16 %v4168
        %v6797 = vunpack.c.h.b16 %v4168
        %v6798 = vunpack.c.l.b16 %v4169
        %v6799 = vunpack.c.h.b16 %v4169
        %v6800 = vunpack.c.l.b16 %v4170
        %v6801 = vunpack.c.h.b16 %v4170
        %v6802 = vunpack.c.l.b16 %v4171
        %v6803 = vunpack.c.h.b16 %v4171
        %v6804 = vunpack.c.l.b16 %v4172
        %v6805 = vunpack.c.h.b16 %v4172
        %v6806 = vunpack.c.l.b16 %v4173
        %v6807 = vunpack.c.h.b16 %v4173
        %v6808 = vunpack.c.l.b16 %v4174
        %v6809 = vunpack.c.h.b16 %v4174
        %v6810 = vunpack.c.l.b16 %v4175
        %v6811 = vunpack.c.h.b16 %v4175
        %v6812 = vunpack.c.l.b16 %v4176
        %v6813 = vunpack.c.h.b16 %v4176
        %v6814 = vunpack.c.l.b16 %v4177
        %v6815 = vunpack.c.h.b16 %v4177
        %v6816 = vunpack.c.l.b16 %v4178
        %v6817 = vunpack.c.h.b16 %v4178
        %v6818 = vunpack.c.l.b16 %v4179
        %v6819 = vunpack.c.h.b16 %v4179
        %v6820 = vunpack.c.l.b16 %v4180
        %v6821 = vunpack.c.h.b16 %v4180
        %v6822 = vunpack.c.l.b16 %v4181
        %v6823 = vunpack.c.h.b16 %v4181
        %v6824 = vunpack.c.l.b16 %v4182
        %v6825 = vunpack.c.h.b16 %v4182
        %v6826 = vunpack.c.l.b16 %v4183
        %v6827 = vunpack.c.h.b16 %v4183
        %v6828 = vunpack.c.l.b16 %v4184
        %v6829 = vunpack.c.h.b16 %v4184
        %v6830 = vunpack.c.l.b16 %v4185
        %v6831 = vunpack.c.h.b16 %v4185
        %v6832 = vunpack.c.l.b16 %v4186
        %v6833 = vunpack.c.h.b16 %v4186
        %v6834 = vunpack.c.l.b16 %v4187
        %v6835 = vunpack.c.h.b16 %v4187
        %v6836 = vunpack.c.l.b16 %v4188
        %v6837 = vunpack.c.h.b16 %v4188
        %v6838 = vunpack.c.l.b16 %v4189
        %v6839 = vunpack.c.h.b16 %v4189
        %v6840 = vunpack.c.l.b16 %v4190
        %v6841 = vunpack.c.h.b16 %v4190
        %v6842 = vunpack.c.l.b16 %v4191
        %v6843 = vunpack.c.h.b16 %v4191
        %v6844 = vunpack.c.l.b16 %v4192
        %v6845 = vunpack.c.h.b16 %v4192
        %v6846 = vunpack.c.l.b16 %v4193
        %v6847 = vunpack.c.h.b16 %v4193
        %v6848 = vunpack.c.l.b16 %v4194
        %v6849 = vunpack.c.h.b16 %v4194
        %v6850 = vunpack.c.l.b16 %v4195
        %v6851 = vunpack.c.h.b16 %v4195
        %v6852 = vunpack.c.l.b16 %v4196
        %v6853 = vunpack.c.h.b16 %v4196
        %v6854 = vunpack.c.l.b16 %v4197
        %v6855 = vunpack.c.h.b16 %v4197
        %v6856 = vunpack.c.l.b16 %v4198
        %v6857 = vunpack.c.h.b16 %v4198
        %v6858 = vunpack.c.l.b16 %v4199
        %v6859 = vunpack.c.h.b16 %v4199
        %v6860 = vunpack.c.l.b16 %v4200
        %v6861 = vunpack.c.h.b16 %v4200
        %v6862 = vunpack.c.l.b16 %v4201
        %v6863 = vunpack.c.h.b16 %v4201
        %v6864 = vunpack.c.l.b16 %v4202
        %v6865 = vunpack.c.h.b16 %v4202
        %v6866 = vunpack.c.l.b16 %v4203
        %v6867 = vunpack.c.h.b16 %v4203
        %v6868 = vunpack.c.l.b16 %v4204
        %v6869 = vunpack.c.h.b16 %v4204
        %v6870 = vunpack.c.l.b16 %v4205
        %v6871 = vunpack.c.h.b16 %v4205
        %v6872 = vunpack.c.l.b16 %v4206
        %v6873 = vunpack.c.h.b16 %v4206
        %v6874 = vunpack.c.l.b16 %v4207
        %v6875 = vunpack.c.h.b16 %v4207
        %v6876 = vunpack.c.l.b16 %v4208
        %v6877 = vunpack.c.h.b16 %v4208
        %v6878 = vunpack.c.l.b16 %v4209
        %v6879 = vunpack.c.h.b16 %v4209
        %v6880 = vunpack.c.l.b16 %v4210
        %v6881 = vunpack.c.h.b16 %v4210
        %v6882 = vunpack.c.l.b16 %v4211
        %v6883 = vunpack.c.h.b16 %v4211
        %v6884 = vunpack.c.l.b16 %v4212
        %v6885 = vunpack.c.h.b16 %v4212
        %v6886 = vunpack.c.l.b16 %v4213
        %v6887 = vunpack.c.h.b16 %v4213
        %v6888 = vunpack.c.l.b16 %v4214
        %v6889 = vunpack.c.h.b16 %v4214
        %v6890 = vunpack.c.l.b16 %v4215
        %v6891 = vunpack.c.h.b16 %v4215
        %v6892 = vunpack.c.l.b16 %v4216
        %v6893 = vunpack.c.h.b16 %v4216
        %v6894 = vunpack.c.l.b16 %v4217
        %v6895 = vunpack.c.h.b16 %v4217
        %v6896 = vunpack.c.l.b16 %v4218
        %v6897 = vunpack.c.h.b16 %v4218
        %v6898 = vunpack.c.l.b16 %v4219
        %v6899 = vunpack.c.h.b16 %v4219
        %v6900 = vunpack.c.l.b16 %v4220
        %v6901 = vunpack.c.h.b16 %v4220
        %v6902 = vunpack.c.l.b16 %v4221
        %v6903 = vunpack.c.h.b16 %v4221
        %v6904 = vunpack.c.l.b16 %v4222
        %v6905 = vunpack.c.h.b16 %v4222
        %v6906 = vunpack.c.l.b16 %v4223
        %v6907 = vunpack.c.h.b16 %v4223
        %v6908 = vunpack.c.l.b16 %v4224
        %v6909 = vunpack.c.h.b16 %v4224
        %v6910 = vunpack.c.l.b16 %v4225
        %v6911 = vunpack.c.h.b16 %v4225
        %v6912 = vunpack.c.l.b16 %v4226
        %v6913 = vunpack.c.h.b16 %v4226
        %v6914 = vunpack.c.l.b16 %v4227
        %v6915 = vunpack.c.h.b16 %v4227
        %v6916 = vunpack.c.l.b16 %v4228
        %v6917 = vunpack.c.h.b16 %v4228
        %v6918 = vunpack.c.l.b16 %v4229
        %v6919 = vunpack.c.h.b16 %v4229
        %v6920 = vunpack.c.l.b16 %v4230
        %v6921 = vunpack.c.h.b16 %v4230
        %v6922 = vunpack.c.l.b16 %v4231
        %v6923 = vunpack.c.h.b16 %v4231
        %v6924 = vunpack.c.l.b16 %v4232
        %v6925 = vunpack.c.h.b16 %v4232
        %v6926 = vunpack.c.l.b16 %v4233
        %v6927 = vunpack.c.h.b16 %v4233
        %v6928 = vunpack.c.l.b16 %v4234
        %v6929 = vunpack.c.h.b16 %v4234
        %v6930 = vunpack.c.l.b16 %v4235
        %v6931 = vunpack.c.h.b16 %v4235
        %v6932 = vunpack.c.l.b16 %v4236
        %v6933 = vunpack.c.h.b16 %v4236
        %v6934 = vunpack.c.l.b16 %v4237
        %v6935 = vunpack.c.h.b16 %v4237
        %v6936 = vunpack.c.l.b16 %v4238
        %v6937 = vunpack.c.h.b16 %v4238
        %v6938 = vunpack.c.l.b16 %v4239
        %v6939 = vunpack.c.h.b16 %v4239
        %v6940 = vunpack.c.l.b16 %v4240
        %v6941 = vunpack.c.h.b16 %v4240
        %v6942 = vunpack.c.l.b16 %v4241
        %v6943 = vunpack.c.h.b16 %v4241
        %v6944 = vunpack.c.l.b16 %v4242
        %v6945 = vunpack.c.h.b16 %v4242
        %v6946 = vunpack.c.l.b16 %v4243
        %v6947 = vunpack.c.h.b16 %v4243
        %v6948 = vunpack.c.l.b16 %v4244
        %v6949 = vunpack.c.h.b16 %v4244
        %v6950 = vunpack.c.l.b16 %v4245
        %v6951 = vunpack.c.h.b16 %v4245
        %v6952 = vunpack.c.l.b16 %v4246
        %v6953 = vunpack.c.h.b16 %v4246
        %v6954 = vunpack.c.l.b16 %v4247
        %v6955 = vunpack.c.h.b16 %v4247
        %v6956 = vunpack.c.l.b16 %v4248
        %v6957 = vunpack.c.h.b16 %v4248
        %v6958 = vunpack.c.l.b16 %v4249
        %v6959 = vunpack.c.h.b16 %v4249
        %v6960 = vunpack.c.l.b16 %v4250
        %v6961 = vunpack.c.h.b16 %v4250
        %v6962 = vunpack.c.l.b16 %v4251
        %v6963 = vunpack.c.h.b16 %v4251
        %v6964 = vunpack.c.l.b16 %v4252
        %v6965 = vunpack.c.h.b16 %v4252
        %v6966 = vunpack.c.l.b16 %v4253
        %v6967 = vunpack.c.h.b16 %v4253
        %v6968 = vunpack.c.l.b16 %v4254
        %v6969 = vunpack.c.h.b16 %v4254
        %v6970 = vunpack.c.l.b16 %v4255
        %v6971 = vunpack.c.h.b16 %v4255
        %v6972 = vunpack.c.l.b16 %v4256
        %v6973 = vunpack.c.h.b16 %v4256
        %v6974 = vunpack.c.l.b16 %v4257
        %v6975 = vunpack.c.h.b16 %v4257
        %v6976 = vunpack.c.l.b16 %v4258
        %v6977 = vunpack.c.h.b16 %v4258
        %v6978 = vunpack.c.l.b16 %v4259
        %v6979 = vunpack.c.h.b16 %v4259
        %v6980 = vunpack.c.l.b16 %v4260
        %v6981 = vunpack.c.h.b16 %v4260
        %v6982 = vunpack.c.l.b16 %v4261
        %v6983 = vunpack.c.h.b16 %v4261
        %v6984 = vunpack.c.l.b16 %v4262
        %v6985 = vunpack.c.h.b16 %v4262
        %v6986 = vunpack.c.l.b16 %v4263
        %v6987 = vunpack.c.h.b16 %v4263
        %v6988 = vunpack.c.l.b16 %v4264
        %v6989 = vunpack.c.h.b16 %v4264
        %v6990 = vunpack.c.l.b16 %v4265
        %v6991 = vunpack.c.h.b16 %v4265
        %v6992 = vunpack.c.l.b16 %v4266
        %v6993 = vunpack.c.h.b16 %v4266
        %v6994 = vunpack.c.l.b16 %v4267
        %v6995 = vunpack.c.h.b16 %v4267
        %v6996 = vunpack.c.l.b16 %v4268
        %v6997 = vunpack.c.h.b16 %v4268
        %v6998 = vunpack.c.l.b16 %v4269
        %v6999 = vunpack.c.h.b16 %v4269
        %v7000 = vunpack.c.l.b16 %v4270
        %v7001 = vunpack.c.h.b16 %v4270
        %v7002 = vunpack.c.l.b16 %v4271
        %v7003 = vunpack.c.h.b16 %v4271
        %v7004 = vunpack.c.l.b16 %v4272
        %v7005 = vunpack.c.h.b16 %v4272
        %v7006 = vunpack.c.l.b16 %v4273
        %v7007 = vunpack.c.h.b16 %v4273
        %v7008 = vunpack.c.l.b16 %v4274
        %v7009 = vunpack.c.h.b16 %v4274
        %v7010 = vunpack.c.l.b16 %v4275
        %v7011 = vunpack.c.h.b16 %v4275
        %v7012 = vunpack.c.l.b16 %v4276
        %v7013 = vunpack.c.h.b16 %v4276
        %v7014 = vunpack.c.l.b16 %v4277
        %v7015 = vunpack.c.h.b16 %v4277
        %v7016 = vunpack.c.l.b16 %v4278
        %v7017 = vunpack.c.h.b16 %v4278
        %v7018 = vunpack.c.l.b16 %v4279
        %v7019 = vunpack.c.h.b16 %v4279
        %v7020 = vunpack.c.l.b16 %v4280
        %v7021 = vunpack.c.h.b16 %v4280
        %v7022 = vunpack.c.l.b16 %v4281
        %v7023 = vunpack.c.h.b16 %v4281
        %v7024 = vunpack.c.l.b16 %v4282
        %v7025 = vunpack.c.h.b16 %v4282
        %v7026 = vunpack.c.l.b16 %v4283
        %v7027 = vunpack.c.h.b16 %v4283
        %v7028 = vunpack.c.l.b16 %v4284
        %v7029 = vunpack.c.h.b16 %v4284
        %v7030 = vunpack.c.l.b16 %v4285
        %v7031 = vunpack.c.h.b16 %v4285
        %v7032 = vunpack.c.l.b16 %v4286
        %v7033 = vunpack.c.h.b16 %v4286
        %v7034 = vunpack.c.l.b16 %v4287
        %v7035 = vunpack.c.h.b16 %v4287
        %v7036 = vunpack.c.l.b16 %v4288
        %v7037 = vunpack.c.h.b16 %v4288
        %v7038 = vunpack.c.l.b16 %v4289
        %v7039 = vunpack.c.h.b16 %v4289
        %v7040 = vunpack.c.l.b16 %v4290
        %v7041 = vunpack.c.h.b16 %v4290
        %v7042 = vunpack.c.l.b16 %v4291
        %v7043 = vunpack.c.h.b16 %v4291
        %v7044 = vunpack.c.l.b16 %v4292
        %v7045 = vunpack.c.h.b16 %v4292
        %v7046 = vunpack.c.l.b16 %v4293
        %v7047 = vunpack.c.h.b16 %v4293
        %v7048 = vunpack.c.l.b16 %v4294
        %v7049 = vunpack.c.h.b16 %v4294
        %v7050 = vunpack.c.l.b16 %v4295
        %v7051 = vunpack.c.h.b16 %v4295
        %v7052 = vunpack.c.l.b16 %v4296
        %v7053 = vunpack.c.h.b16 %v4296
        %v7054 = vunpack.c.l.b16 %v4297
        %v7055 = vunpack.c.h.b16 %v4297
        %v7056 = vunpack.c.l.b16 %v4298
        %v7057 = vunpack.c.h.b16 %v4298
        %v7058 = vunpack.c.l.b16 %v4299
        %v7059 = vunpack.c.h.b16 %v4299
        %v7060 = vunpack.c.l.b16 %v4300
        %v7061 = vunpack.c.h.b16 %v4300
        %v7062 = vunpack.c.l.b16 %v4301
        %v7063 = vunpack.c.h.b16 %v4301
        %v7064 = vunpack.c.l.b16 %v4302
        %v7065 = vunpack.c.h.b16 %v4302
        %v7066 = vunpack.c.l.b16 %v4303
        %v7067 = vunpack.c.h.b16 %v4303
        %v7068 = vunpack.c.l.b16 %v4304
        %v7069 = vunpack.c.h.b16 %v4304
        %v7070 = vunpack.c.l.b16 %v4305
        %v7071 = vunpack.c.h.b16 %v4305
        %v7072 = vpack.c.b16 %v6568, %v6560
        %v7073 = vpack.c.b16 %v6569, %v6561
        %v7074 = vpack.c.b16 %v6570, %v6562
        %v7075 = vpack.c.b16 %v6571, %v6563
        %v7076 = vpack.c.b16 %v6572, %v6564
        %v7077 = vpack.c.b16 %v6573, %v6565
        %v7078 = vpack.c.b16 %v6574, %v6566
        %v7079 = vpack.c.b16 %v6575, %v6567
        %v7080 = vpack.c.b16 %v6584, %v6576
        %v7081 = vpack.c.b16 %v6585, %v6577
        %v7082 = vpack.c.b16 %v6586, %v6578
        %v7083 = vpack.c.b16 %v6587, %v6579
        %v7084 = vpack.c.b16 %v6588, %v6580
        %v7085 = vpack.c.b16 %v6589, %v6581
        %v7086 = vpack.c.b16 %v6590, %v6582
        %v7087 = vpack.c.b16 %v6591, %v6583
        %v7088 = vpack.c.b16 %v6600, %v6592
        %v7089 = vpack.c.b16 %v6601, %v6593
        %v7090 = vpack.c.b16 %v6602, %v6594
        %v7091 = vpack.c.b16 %v6603, %v6595
        %v7092 = vpack.c.b16 %v6604, %v6596
        %v7093 = vpack.c.b16 %v6605, %v6597
        %v7094 = vpack.c.b16 %v6606, %v6598
        %v7095 = vpack.c.b16 %v6607, %v6599
        %v7096 = vpack.c.b16 %v6616, %v6608
        %v7097 = vpack.c.b16 %v6617, %v6609
        %v7098 = vpack.c.b16 %v6618, %v6610
        %v7099 = vpack.c.b16 %v6619, %v6611
        %v7100 = vpack.c.b16 %v6620, %v6612
        %v7101 = vpack.c.b16 %v6621, %v6613
        %v7102 = vpack.c.b16 %v6622, %v6614
        %v7103 = vpack.c.b16 %v6623, %v6615
        %v7104 = vpack.c.b16 %v6632, %v6624
        %v7105 = vpack.c.b16 %v6633, %v6625
        %v7106 = vpack.c.b16 %v6634, %v6626
        %v7107 = vpack.c.b16 %v6635, %v6627
        %v7108 = vpack.c.b16 %v6636, %v6628
        %v7109 = vpack.c.b16 %v6637, %v6629
        %v7110 = vpack.c.b16 %v6638, %v6630
        %v7111 = vpack.c.b16 %v6639, %v6631
        %v7112 = vpack.c.b16 %v6648, %v6640
        %v7113 = vpack.c.b16 %v6649, %v6641
        %v7114 = vpack.c.b16 %v6650, %v6642
        %v7115 = vpack.c.b16 %v6651, %v6643
        %v7116 = vpack.c.b16 %v6652, %v6644
        %v7117 = vpack.c.b16 %v6653, %v6645
        %v7118 = vpack.c.b16 %v6654, %v6646
        %v7119 = vpack.c.b16 %v6655, %v6647
        %v7120 = vpack.c.b16 %v6664, %v6656
        %v7121 = vpack.c.b16 %v6665, %v6657
        %v7122 = vpack.c.b16 %v6666, %v6658
        %v7123 = vpack.c.b16 %v6667, %v6659
        %v7124 = vpack.c.b16 %v6668, %v6660
        %v7125 = vpack.c.b16 %v6669, %v6661
        %v7126 = vpack.c.b16 %v6670, %v6662
        %v7127 = vpack.c.b16 %v6671, %v6663
        %v7128 = vpack.c.b16 %v6680, %v6672
        %v7129 = vpack.c.b16 %v6681, %v6673
        %v7130 = vpack.c.b16 %v6682, %v6674
        %v7131 = vpack.c.b16 %v6683, %v6675
        %v7132 = vpack.c.b16 %v6684, %v6676
        %v7133 = vpack.c.b16 %v6685, %v6677
        %v7134 = vpack.c.b16 %v6686, %v6678
        %v7135 = vpack.c.b16 %v6687, %v6679
        %v7136 = vpack.c.b16 %v6696, %v6688
        %v7137 = vpack.c.b16 %v6697, %v6689
        %v7138 = vpack.c.b16 %v6698, %v6690
        %v7139 = vpack.c.b16 %v6699, %v6691
        %v7140 = vpack.c.b16 %v6700, %v6692
        %v7141 = vpack.c.b16 %v6701, %v6693
        %v7142 = vpack.c.b16 %v6702, %v6694
        %v7143 = vpack.c.b16 %v6703, %v6695
        %v7144 = vpack.c.b16 %v6712, %v6704
        %v7145 = vpack.c.b16 %v6713, %v6705
        %v7146 = vpack.c.b16 %v6714, %v6706
        %v7147 = vpack.c.b16 %v6715, %v6707
        %v7148 = vpack.c.b16 %v6716, %v6708
        %v7149 = vpack.c.b16 %v6717, %v6709
        %v7150 = vpack.c.b16 %v6718, %v6710
        %v7151 = vpack.c.b16 %v6719, %v6711
        %v7152 = vpack.c.b16 %v6728, %v6720
        %v7153 = vpack.c.b16 %v6729, %v6721
        %v7154 = vpack.c.b16 %v6730, %v6722
        %v7155 = vpack.c.b16 %v6731, %v6723
        %v7156 = vpack.c.b16 %v6732, %v6724
        %v7157 = vpack.c.b16 %v6733, %v6725
        %v7158 = vpack.c.b16 %v6734, %v6726
        %v7159 = vpack.c.b16 %v6735, %v6727
        %v7160 = vpack.c.b16 %v6744, %v6736
        %v7161 = vpack.c.b16 %v6745, %v6737
        %v7162 = vpack.c.b16 %v6746, %v6738
        %v7163 = vpack.c.b16 %v6747, %v6739
        %v7164 = vpack.c.b16 %v6748, %v6740
        %v7165 = vpack.c.b16 %v6749, %v6741
        %v7166 = vpack.c.b16 %v6750, %v6742
        %v7167 = vpack.c.b16 %v6751, %v6743
        %v7168 = vpack.c.b16 %v6760, %v6752
        %v7169 = vpack.c.b16 %v6761, %v6753
        %v7170 = vpack.c.b16 %v6762, %v6754
        %v7171 = vpack.c.b16 %v6763, %v6755
        %v7172 = vpack.c.b16 %v6764, %v6756
        %v7173 = vpack.c.b16 %v6765, %v6757
        %v7174 = vpack.c.b16 %v6766, %v6758
        %v7175 = vpack.c.b16 %v6767, %v6759
        %v7176 = vpack.c.b16 %v6776, %v6768
        %v7177 = vpack.c.b16 %v6777, %v6769
        %v7178 = vpack.c.b16 %v6778, %v6770
        %v7179 = vpack.c.b16 %v6779, %v6771
        %v7180 = vpack.c.b16 %v6780, %v6772
        %v7181 = vpack.c.b16 %v6781, %v6773
        %v7182 = vpack.c.b16 %v6782, %v6774
        %v7183 = vpack.c.b16 %v6783, %v6775
        %v7184 = vpack.c.b16 %v6792, %v6784
        %v7185 = vpack.c.b16 %v6793, %v6785
        %v7186 = vpack.c.b16 %v6794, %v6786
        %v7187 = vpack.c.b16 %v6795, %v6787
        %v7188 = vpack.c.b16 %v6796, %v6788
        %v7189 = vpack.c.b16 %v6797, %v6789
        %v7190 = vpack.c.b16 %v6798, %v6790
        %v7191 = vpack.c.b16 %v6799, %v6791
        %v7192 = vpack.c.b16 %v6808, %v6800
        %v7193 = vpack.c.b16 %v6809, %v6801
        %v7194 = vpack.c.b16 %v6810, %v6802
        %v7195 = vpack.c.b16 %v6811, %v6803
        %v7196 = vpack.c.b16 %v6812, %v6804
        %v7197 = vpack.c.b16 %v6813, %v6805
        %v7198 = vpack.c.b16 %v6814, %v6806
        %v7199 = vpack.c.b16 %v6815, %v6807
        %v7200 = vpack.c.b16 %v6824, %v6816
        %v7201 = vpack.c.b16 %v6825, %v6817
        %v7202 = vpack.c.b16 %v6826, %v6818
        %v7203 = vpack.c.b16 %v6827, %v6819
        %v7204 = vpack.c.b16 %v6828, %v6820
        %v7205 = vpack.c.b16 %v6829, %v6821
        %v7206 = vpack.c.b16 %v6830, %v6822
        %v7207 = vpack.c.b16 %v6831, %v6823
        %v7208 = vpack.c.b16 %v6840, %v6832
        %v7209 = vpack.c.b16 %v6841, %v6833
        %v7210 = vpack.c.b16 %v6842, %v6834
        %v7211 = vpack.c.b16 %v6843, %v6835
        %v7212 = vpack.c.b16 %v6844, %v6836
        %v7213 = vpack.c.b16 %v6845, %v6837
        %v7214 = vpack.c.b16 %v6846, %v6838
        %v7215 = vpack.c.b16 %v6847, %v6839
        %v7216 = vpack.c.b16 %v6856, %v6848
        %v7217 = vpack.c.b16 %v6857, %v6849
        %v7218 = vpack.c.b16 %v6858, %v6850
        %v7219 = vpack.c.b16 %v6859, %v6851
        %v7220 = vpack.c.b16 %v6860, %v6852
        %v7221 = vpack.c.b16 %v6861, %v6853
        %v7222 = vpack.c.b16 %v6862, %v6854
        %v7223 = vpack.c.b16 %v6863, %v6855
        %v7224 = vpack.c.b16 %v6872, %v6864
        %v7225 = vpack.c.b16 %v6873, %v6865
        %v7226 = vpack.c.b16 %v6874, %v6866
        %v7227 = vpack.c.b16 %v6875, %v6867
        %v7228 = vpack.c.b16 %v6876, %v6868
        %v7229 = vpack.c.b16 %v6877, %v6869
        %v7230 = vpack.c.b16 %v6878, %v6870
        %v7231 = vpack.c.b16 %v6879, %v6871
        %v7232 = vpack.c.b16 %v6888, %v6880
        %v7233 = vpack.c.b16 %v6889, %v6881
        %v7234 = vpack.c.b16 %v6890, %v6882
        %v7235 = vpack.c.b16 %v6891, %v6883
        %v7236 = vpack.c.b16 %v6892, %v6884
        %v7237 = vpack.c.b16 %v6893, %v6885
        %v7238 = vpack.c.b16 %v6894, %v6886
        %v7239 = vpack.c.b16 %v6895, %v6887
        %v7240 = vpack.c.b16 %v6904, %v6896
        %v7241 = vpack.c.b16 %v6905, %v6897
        %v7242 = vpack.c.b16 %v6906, %v6898
        %v7243 = vpack.c.b16 %v6907, %v6899
        %v7244 = vpack.c.b16 %v6908, %v6900
        %v7245 = vpack.c.b16 %v6909, %v6901
        %v7246 = vpack.c.b16 %v6910, %v6902
        %v7247 = vpack.c.b16 %v6911, %v6903
        %v7248 = vpack.c.b16 %v6920, %v6912
        %v7249 = vpack.c.b16 %v6921, %v6913
        %v7250 = vpack.c.b16 %v6922, %v6914
        %v7251 = vpack.c.b16 %v6923, %v6915
        %v7252 = vpack.c.b16 %v6924, %v6916
        %v7253 = vpack.c.b16 %v6925, %v6917
        %v7254 = vpack.c.b16 %v6926, %v6918
        %v7255 = vpack.c.b16 %v6927, %v6919
        %v7256 = vpack.c.b16 %v6936, %v6928
        %v7257 = vpack.c.b16 %v6937, %v6929
        %v7258 = vpack.c.b16 %v6938, %v6930
        %v7259 = vpack.c.b16 %v6939, %v6931
        %v7260 = vpack.c.b16 %v6940, %v6932
        %v7261 = vpack.c.b16 %v6941, %v6933
        %v7262 = vpack.c.b16 %v6942, %v6934
        %v7263 = vpack.c.b16 %v6943, %v6935
        %v7264 = vpack.c.b16 %v6952, %v6944
        %v7265 = vpack.c.b16 %v6953, %v6945
        %v7266 = vpack.c.b16 %v6954, %v6946
        %v7267 = vpack.c.b16 %v6955, %v6947
        %v7268 = vpack.c.b16 %v6956, %v6948
        %v7269 = vpack.c.b16 %v6957, %v6949
        %v7270 = vpack.c.b16 %v6958, %v6950
        %v7271 = vpack.c.b16 %v6959, %v6951
        %v7272 = vpack.c.b16 %v6968, %v6960
        %v7273 = vpack.c.b16 %v6969, %v6961
        %v7274 = vpack.c.b16 %v6970, %v6962
        %v7275 = vpack.c.b16 %v6971, %v6963
        %v7276 = vpack.c.b16 %v6972, %v6964
        %v7277 = vpack.c.b16 %v6973, %v6965
        %v7278 = vpack.c.b16 %v6974, %v6966
        %v7279 = vpack.c.b16 %v6975, %v6967
        %v7280 = vpack.c.b16 %v6984, %v6976
        %v7281 = vpack.c.b16 %v6985, %v6977
        %v7282 = vpack.c.b16 %v6986, %v6978
        %v7283 = vpack.c.b16 %v6987, %v6979
        %v7284 = vpack.c.b16 %v6988, %v6980
        %v7285 = vpack.c.b16 %v6989, %v6981
        %v7286 = vpack.c.b16 %v6990, %v6982
        %v7287 = vpack.c.b16 %v6991, %v6983
        %v7288 = vpack.c.b16 %v7000, %v6992
        %v7289 = vpack.c.b16 %v7001, %v6993
        %v7290 = vpack.c.b16 %v7002, %v6994
        %v7291 = vpack.c.b16 %v7003, %v6995
        %v7292 = vpack.c.b16 %v7004, %v6996
        %v7293 = vpack.c.b16 %v7005, %v6997
        %v7294 = vpack.c.b16 %v7006, %v6998
        %v7295 = vpack.c.b16 %v7007, %v6999
        %v7296 = vpack.c.b16 %v7016, %v7008
        %v7297 = vpack.c.b16 %v7017, %v7009
        %v7298 = vpack.c.b16 %v7018, %v7010
        %v7299 = vpack.c.b16 %v7019, %v7011
        %v7300 = vpack.c.b16 %v7020, %v7012
        %v7301 = vpack.c.b16 %v7021, %v7013
        %v7302 = vpack.c.b16 %v7022, %v7014
        %v7303 = vpack.c.b16 %v7023, %v7015
        %v7304 = vpack.c.b16 %v7032, %v7024
        %v7305 = vpack.c.b16 %v7033, %v7025
        %v7306 = vpack.c.b16 %v7034, %v7026
        %v7307 = vpack.c.b16 %v7035, %v7027
        %v7308 = vpack.c.b16 %v7036, %v7028
        %v7309 = vpack.c.b16 %v7037, %v7029
        %v7310 = vpack.c.b16 %v7038, %v7030
        %v7311 = vpack.c.b16 %v7039, %v7031
        %v7312 = vpack.c.b16 %v7048, %v7040
        %v7313 = vpack.c.b16 %v7049, %v7041
        %v7314 = vpack.c.b16 %v7050, %v7042
        %v7315 = vpack.c.b16 %v7051, %v7043
        %v7316 = vpack.c.b16 %v7052, %v7044
        %v7317 = vpack.c.b16 %v7053, %v7045
        %v7318 = vpack.c.b16 %v7054, %v7046
        %v7319 = vpack.c.b16 %v7055, %v7047
        %v7320 = vpack.c.b16 %v7064, %v7056
        %v7321 = vpack.c.b16 %v7065, %v7057
        %v7322 = vpack.c.b16 %v7066, %v7058
        %v7323 = vpack.c.b16 %v7067, %v7059
        %v7324 = vpack.c.b16 %v7068, %v7060
        %v7325 = vpack.c.b16 %v7069, %v7061
        %v7326 = vpack.c.b16 %v7070, %v7062
        %v7327 = vpack.c.b16 %v7071, %v7063
        %7584 = vmatpush.bf16.msra.mxu0 %v7128
        %7585 = vmatpush.bf16.msra.mxu0 %v7120
        %7586 = vmatpush.bf16.msra.mxu0 %v7112
        %7587 = vmatpush.bf16.msra.mxu0 %v7104
        %7588 = vmatpush.bf16.msra.mxu0 %v7096
        %7589 = vmatpush.bf16.msra.mxu0 %v7088
        %7590 = vmatpush.bf16.msra.mxu0 %v7080
        %7591 = vmatpush.bf16.msra.mxu0 %v7072
        %7592 = vmatmul.bf16.gmra.mxu0 %v6296
        %v7593 = vpop.f32.mrf.mxu0
        %v7594 = vadd.f32 %v5927, %v7593
        %v7595 = vpop.f32.mrf.mxu0
        %7596 = vdwg.mxu0
        %7597 = vmatpush.bf16.msra.mxu0 %v7192
        %7598 = vmatpush.bf16.msra.mxu0 %v7184
        %7599 = vmatpush.bf16.msra.mxu0 %v7176
        %7600 = vmatpush.bf16.msra.mxu0 %v7168
        %7601 = vmatpush.bf16.msra.mxu0 %v7160
        %7602 = vmatpush.bf16.msra.mxu0 %v7152
        %7603 = vmatpush.bf16.msra.mxu0 %v7144
        %7604 = vmatpush.bf16.msra.mxu0 %v7136
        %7605 = vmatmul.bf16.gmra.mxu0 %v6297
        %v7606 = vpop.f32.mrf.mxu0
        %v7607 = vadd.f32 %v7594, %v7606
        %v7608 = vpop.f32.mrf.mxu0
        %7609 = vdwg.mxu0
        %7610 = vmatpush.bf16.msra.mxu0 %v7256
        %7611 = vmatpush.bf16.msra.mxu0 %v7248
        %7612 = vmatpush.bf16.msra.mxu0 %v7240
        %7613 = vmatpush.bf16.msra.mxu0 %v7232
        %7614 = vmatpush.bf16.msra.mxu0 %v7224
        %7615 = vmatpush.bf16.msra.mxu0 %v7216
        %7616 = vmatpush.bf16.msra.mxu0 %v7208
        %7617 = vmatpush.bf16.msra.mxu0 %v7200
        %7618 = vmatmul.bf16.gmra.mxu0 %v6298
        %v7619 = vpop.f32.mrf.mxu0
        %v7620 = vadd.f32 %v7607, %v7619
        %v7621 = vpop.f32.mrf.mxu0
        %7622 = vdwg.mxu0
        %7623 = vmatpush.bf16.msra.mxu0 %v7320
        %7624 = vmatpush.bf16.msra.mxu0 %v7312
        %7625 = vmatpush.bf16.msra.mxu0 %v7304
        %7626 = vmatpush.bf16.msra.mxu0 %v7296
        %7627 = vmatpush.bf16.msra.mxu0 %v7288
        %7628 = vmatpush.bf16.msra.mxu0 %v7280
        %7629 = vmatpush.bf16.msra.mxu0 %v7272
        %7630 = vmatpush.bf16.msra.mxu0 %v7264
        %7631 = vmatmul.bf16.gmra.mxu0 %v6299
        %v7632 = vpop.f32.mrf.mxu0
        %v7633 = vadd.f32 %v7620, %v7632
        %v7634 = vpop.f32.mrf.mxu0
        %7635 = vdwg.mxu0
        %7636 = vmatpush.bf16.msra.mxu0 %v7129
        %7637 = vmatpush.bf16.msra.mxu0 %v7121
        %7638 = vmatpush.bf16.msra.mxu0 %v7113
        %7639 = vmatpush.bf16.msra.mxu0 %v7105
        %7640 = vmatpush.bf16.msra.mxu0 %v7097
        %7641 = vmatpush.bf16.msra.mxu0 %v7089
        %7642 = vmatpush.bf16.msra.mxu0 %v7081
        %7643 = vmatpush.bf16.msra.mxu0 %v7073
        %7644 = vmatmul.bf16.gmra.mxu0 %v6296
        %v7645 = vpop.f32.mrf.mxu0
        %v7646 = vadd.f32 %v5979, %v7645
        %v7647 = vpop.f32.mrf.mxu0
        %7648 = vdwg.mxu0
        %7649 = vmatpush.bf16.msra.mxu0 %v7193
        %7650 = vmatpush.bf16.msra.mxu0 %v7185
        %7651 = vmatpush.bf16.msra.mxu0 %v7177
        %7652 = vmatpush.bf16.msra.mxu0 %v7169
        %7653 = vmatpush.bf16.msra.mxu0 %v7161
        %7654 = vmatpush.bf16.msra.mxu0 %v7153
        %7655 = vmatpush.bf16.msra.mxu0 %v7145
        %7656 = vmatpush.bf16.msra.mxu0 %v7137
        %7657 = vmatmul.bf16.gmra.mxu0 %v6297
        %v7658 = vpop.f32.mrf.mxu0
        %v7659 = vadd.f32 %v7646, %v7658
        %v7660 = vpop.f32.mrf.mxu0
        %7661 = vdwg.mxu0
        %7662 = vmatpush.bf16.msra.mxu0 %v7257
        %7663 = vmatpush.bf16.msra.mxu0 %v7249
        %7664 = vmatpush.bf16.msra.mxu0 %v7241
        %7665 = vmatpush.bf16.msra.mxu0 %v7233
        %7666 = vmatpush.bf16.msra.mxu0 %v7225
        %7667 = vmatpush.bf16.msra.mxu0 %v7217
        %7668 = vmatpush.bf16.msra.mxu0 %v7209
        %7669 = vmatpush.bf16.msra.mxu0 %v7201
        %7670 = vmatmul.bf16.gmra.mxu0 %v6298
        %v7671 = vpop.f32.mrf.mxu0
        %v7672 = vadd.f32 %v7659, %v7671
        %v7673 = vpop.f32.mrf.mxu0
        %7674 = vdwg.mxu0
        %7675 = vmatpush.bf16.msra.mxu0 %v7321
        %7676 = vmatpush.bf16.msra.mxu0 %v7313
        %7677 = vmatpush.bf16.msra.mxu0 %v7305
        %7678 = vmatpush.bf16.msra.mxu0 %v7297
        %7679 = vmatpush.bf16.msra.mxu0 %v7289
        %7680 = vmatpush.bf16.msra.mxu0 %v7281
        %7681 = vmatpush.bf16.msra.mxu0 %v7273
        %7682 = vmatpush.bf16.msra.mxu0 %v7265
        %7683 = vmatmul.bf16.gmra.mxu0 %v6299
        %v7684 = vpop.f32.mrf.mxu0
        %v7685 = vadd.f32 %v7672, %v7684
        %v7686 = vpop.f32.mrf.mxu0
        %7687 = vdwg.mxu0
        %7688 = vmatpush.bf16.msra.mxu0 %v7130
        %7689 = vmatpush.bf16.msra.mxu0 %v7122
        %7690 = vmatpush.bf16.msra.mxu0 %v7114
        %7691 = vmatpush.bf16.msra.mxu0 %v7106
        %7692 = vmatpush.bf16.msra.mxu0 %v7098
        %7693 = vmatpush.bf16.msra.mxu0 %v7090
        %7694 = vmatpush.bf16.msra.mxu0 %v7082
        %7695 = vmatpush.bf16.msra.mxu0 %v7074
        %7696 = vmatmul.bf16.gmra.mxu0 %v6296
        %v7697 = vpop.f32.mrf.mxu0
        %v7698 = vadd.f32 %v6031, %v7697
        %v7699 = vpop.f32.mrf.mxu0
        %7700 = vdwg.mxu0
        %7701 = vmatpush.bf16.msra.mxu0 %v7194
        %7702 = vmatpush.bf16.msra.mxu0 %v7186
        %7703 = vmatpush.bf16.msra.mxu0 %v7178
        %7704 = vmatpush.bf16.msra.mxu0 %v7170
        %7705 = vmatpush.bf16.msra.mxu0 %v7162
        %7706 = vmatpush.bf16.msra.mxu0 %v7154
        %7707 = vmatpush.bf16.msra.mxu0 %v7146
        %7708 = vmatpush.bf16.msra.mxu0 %v7138
        %7709 = vmatmul.bf16.gmra.mxu0 %v6297
        %v7710 = vpop.f32.mrf.mxu0
        %v7711 = vadd.f32 %v7698, %v7710
        %v7712 = vpop.f32.mrf.mxu0
        %7713 = vdwg.mxu0
        %7714 = vmatpush.bf16.msra.mxu0 %v7258
        %7715 = vmatpush.bf16.msra.mxu0 %v7250
        %7716 = vmatpush.bf16.msra.mxu0 %v7242
        %7717 = vmatpush.bf16.msra.mxu0 %v7234
        %7718 = vmatpush.bf16.msra.mxu0 %v7226
        %7719 = vmatpush.bf16.msra.mxu0 %v7218
        %7720 = vmatpush.bf16.msra.mxu0 %v7210
        %7721 = vmatpush.bf16.msra.mxu0 %v7202
        %7722 = vmatmul.bf16.gmra.mxu0 %v6298
        %v7723 = vpop.f32.mrf.mxu0
        %v7724 = vadd.f32 %v7711, %v7723
        %v7725 = vpop.f32.mrf.mxu0
        %7726 = vdwg.mxu0
        %7727 = vmatpush.bf16.msra.mxu0 %v7322
        %7728 = vmatpush.bf16.msra.mxu0 %v7314
        %7729 = vmatpush.bf16.msra.mxu0 %v7306
        %7730 = vmatpush.bf16.msra.mxu0 %v7298
        %7731 = vmatpush.bf16.msra.mxu0 %v7290
        %7732 = vmatpush.bf16.msra.mxu0 %v7282
        %7733 = vmatpush.bf16.msra.mxu0 %v7274
        %7734 = vmatpush.bf16.msra.mxu0 %v7266
        %7735 = vmatmul.bf16.gmra.mxu0 %v6299
        %v7736 = vpop.f32.mrf.mxu0
        %v7737 = vadd.f32 %v7724, %v7736
        %v7738 = vpop.f32.mrf.mxu0
        %7739 = vdwg.mxu0
        %7740 = vmatpush.bf16.msra.mxu0 %v7131
        %7741 = vmatpush.bf16.msra.mxu0 %v7123
        %7742 = vmatpush.bf16.msra.mxu0 %v7115
        %7743 = vmatpush.bf16.msra.mxu0 %v7107
        %7744 = vmatpush.bf16.msra.mxu0 %v7099
        %7745 = vmatpush.bf16.msra.mxu0 %v7091
        %7746 = vmatpush.bf16.msra.mxu0 %v7083
        %7747 = vmatpush.bf16.msra.mxu0 %v7075
        %7748 = vmatmul.bf16.gmra.mxu0 %v6296
        %v7749 = vpop.f32.mrf.mxu0
        %v7750 = vadd.f32 %v6083, %v7749
        %v7751 = vpop.f32.mrf.mxu0
        %7752 = vdwg.mxu0
        %7753 = vmatpush.bf16.msra.mxu0 %v7195
        %7754 = vmatpush.bf16.msra.mxu0 %v7187
        %7755 = vmatpush.bf16.msra.mxu0 %v7179
        %7756 = vmatpush.bf16.msra.mxu0 %v7171
        %7757 = vmatpush.bf16.msra.mxu0 %v7163
        %7758 = vmatpush.bf16.msra.mxu0 %v7155
        %7759 = vmatpush.bf16.msra.mxu0 %v7147
        %7760 = vmatpush.bf16.msra.mxu0 %v7139
        %7761 = vmatmul.bf16.gmra.mxu0 %v6297
        %v7762 = vpop.f32.mrf.mxu0
        %v7763 = vadd.f32 %v7750, %v7762
        %v7764 = vpop.f32.mrf.mxu0
        %7765 = vdwg.mxu0
        %7766 = vmatpush.bf16.msra.mxu0 %v7259
        %7767 = vmatpush.bf16.msra.mxu0 %v7251
        %7768 = vmatpush.bf16.msra.mxu0 %v7243
        %7769 = vmatpush.bf16.msra.mxu0 %v7235
        %7770 = vmatpush.bf16.msra.mxu0 %v7227
        %7771 = vmatpush.bf16.msra.mxu0 %v7219
        %7772 = vmatpush.bf16.msra.mxu0 %v7211
        %7773 = vmatpush.bf16.msra.mxu0 %v7203
        %7774 = vmatmul.bf16.gmra.mxu0 %v6298
        %v7775 = vpop.f32.mrf.mxu0
        %v7776 = vadd.f32 %v7763, %v7775
        %v7777 = vpop.f32.mrf.mxu0
        %7778 = vdwg.mxu0
        %7779 = vmatpush.bf16.msra.mxu0 %v7323
        %7780 = vmatpush.bf16.msra.mxu0 %v7315
        %7781 = vmatpush.bf16.msra.mxu0 %v7307
        %7782 = vmatpush.bf16.msra.mxu0 %v7299
        %7783 = vmatpush.bf16.msra.mxu0 %v7291
        %7784 = vmatpush.bf16.msra.mxu0 %v7283
        %7785 = vmatpush.bf16.msra.mxu0 %v7275
        %7786 = vmatpush.bf16.msra.mxu0 %v7267
        %7787 = vmatmul.bf16.gmra.mxu0 %v6299
        %v7788 = vpop.f32.mrf.mxu0
        %v7789 = vadd.f32 %v7776, %v7788
        %v7790 = vpop.f32.mrf.mxu0
        %7791 = vdwg.mxu0
        %7792 = vmatpush.bf16.msra.mxu0 %v7132
        %7793 = vmatpush.bf16.msra.mxu0 %v7124
        %7794 = vmatpush.bf16.msra.mxu0 %v7116
        %7795 = vmatpush.bf16.msra.mxu0 %v7108
        %7796 = vmatpush.bf16.msra.mxu0 %v7100
        %7797 = vmatpush.bf16.msra.mxu0 %v7092
        %7798 = vmatpush.bf16.msra.mxu0 %v7084
        %7799 = vmatpush.bf16.msra.mxu0 %v7076
        %7800 = vmatmul.bf16.gmra.mxu0 %v6296
        %v7801 = vpop.f32.mrf.mxu0
        %v7802 = vadd.f32 %v6135, %v7801
        %v7803 = vpop.f32.mrf.mxu0
        %7804 = vdwg.mxu0
        %7805 = vmatpush.bf16.msra.mxu0 %v7196
        %7806 = vmatpush.bf16.msra.mxu0 %v7188
        %7807 = vmatpush.bf16.msra.mxu0 %v7180
        %7808 = vmatpush.bf16.msra.mxu0 %v7172
        %7809 = vmatpush.bf16.msra.mxu0 %v7164
        %7810 = vmatpush.bf16.msra.mxu0 %v7156
        %7811 = vmatpush.bf16.msra.mxu0 %v7148
        %7812 = vmatpush.bf16.msra.mxu0 %v7140
        %7813 = vmatmul.bf16.gmra.mxu0 %v6297
        %v7814 = vpop.f32.mrf.mxu0
        %v7815 = vadd.f32 %v7802, %v7814
        %v7816 = vpop.f32.mrf.mxu0
        %7817 = vdwg.mxu0
        %7818 = vmatpush.bf16.msra.mxu0 %v7260
        %7819 = vmatpush.bf16.msra.mxu0 %v7252
        %7820 = vmatpush.bf16.msra.mxu0 %v7244
        %7821 = vmatpush.bf16.msra.mxu0 %v7236
        %7822 = vmatpush.bf16.msra.mxu0 %v7228
        %7823 = vmatpush.bf16.msra.mxu0 %v7220
        %7824 = vmatpush.bf16.msra.mxu0 %v7212
        %7825 = vmatpush.bf16.msra.mxu0 %v7204
        %7826 = vmatmul.bf16.gmra.mxu0 %v6298
        %v7827 = vpop.f32.mrf.mxu0
        %v7828 = vadd.f32 %v7815, %v7827
        %v7829 = vpop.f32.mrf.mxu0
        %7830 = vdwg.mxu0
        %7831 = vmatpush.bf16.msra.mxu0 %v7324
        %7832 = vmatpush.bf16.msra.mxu0 %v7316
        %7833 = vmatpush.bf16.msra.mxu0 %v7308
        %7834 = vmatpush.bf16.msra.mxu0 %v7300
        %7835 = vmatpush.bf16.msra.mxu0 %v7292
        %7836 = vmatpush.bf16.msra.mxu0 %v7284
        %7837 = vmatpush.bf16.msra.mxu0 %v7276
        %7838 = vmatpush.bf16.msra.mxu0 %v7268
        %7839 = vmatmul.bf16.gmra.mxu0 %v6299
        %v7840 = vpop.f32.mrf.mxu0
        %v7841 = vadd.f32 %v7828, %v7840
        %v7842 = vpop.f32.mrf.mxu0
        %7843 = vdwg.mxu0
        %7844 = vmatpush.bf16.msra.mxu0 %v7133
        %7845 = vmatpush.bf16.msra.mxu0 %v7125
        %7846 = vmatpush.bf16.msra.mxu0 %v7117
        %7847 = vmatpush.bf16.msra.mxu0 %v7109
        %7848 = vmatpush.bf16.msra.mxu0 %v7101
        %7849 = vmatpush.bf16.msra.mxu0 %v7093
        %7850 = vmatpush.bf16.msra.mxu0 %v7085
        %7851 = vmatpush.bf16.msra.mxu0 %v7077
        %7852 = vmatmul.bf16.gmra.mxu0 %v6296
        %v7853 = vpop.f32.mrf.mxu0
        %v7854 = vadd.f32 %v6187, %v7853
        %v7855 = vpop.f32.mrf.mxu0
        %7856 = vdwg.mxu0
        %7857 = vmatpush.bf16.msra.mxu0 %v7197
        %7858 = vmatpush.bf16.msra.mxu0 %v7189
        %7859 = vmatpush.bf16.msra.mxu0 %v7181
        %7860 = vmatpush.bf16.msra.mxu0 %v7173
        %7861 = vmatpush.bf16.msra.mxu0 %v7165
        %7862 = vmatpush.bf16.msra.mxu0 %v7157
        %7863 = vmatpush.bf16.msra.mxu0 %v7149
        %7864 = vmatpush.bf16.msra.mxu0 %v7141
        %7865 = vmatmul.bf16.gmra.mxu0 %v6297
        %v7866 = vpop.f32.mrf.mxu0
        %v7867 = vadd.f32 %v7854, %v7866
        %v7868 = vpop.f32.mrf.mxu0
        %7869 = vdwg.mxu0
        %7870 = vmatpush.bf16.msra.mxu0 %v7261
        %7871 = vmatpush.bf16.msra.mxu0 %v7253
        %7872 = vmatpush.bf16.msra.mxu0 %v7245
        %7873 = vmatpush.bf16.msra.mxu0 %v7237
        %7874 = vmatpush.bf16.msra.mxu0 %v7229
        %7875 = vmatpush.bf16.msra.mxu0 %v7221
        %7876 = vmatpush.bf16.msra.mxu0 %v7213
        %7877 = vmatpush.bf16.msra.mxu0 %v7205
        %7878 = vmatmul.bf16.gmra.mxu0 %v6298
        %v7879 = vpop.f32.mrf.mxu0
        %v7880 = vadd.f32 %v7867, %v7879
        %v7881 = vpop.f32.mrf.mxu0
        %7882 = vdwg.mxu0
        %7883 = vmatpush.bf16.msra.mxu0 %v7325
        %7884 = vmatpush.bf16.msra.mxu0 %v7317
        %7885 = vmatpush.bf16.msra.mxu0 %v7309
        %7886 = vmatpush.bf16.msra.mxu0 %v7301
        %7887 = vmatpush.bf16.msra.mxu0 %v7293
        %7888 = vmatpush.bf16.msra.mxu0 %v7285
        %7889 = vmatpush.bf16.msra.mxu0 %v7277
        %7890 = vmatpush.bf16.msra.mxu0 %v7269
        %7891 = vmatmul.bf16.gmra.mxu0 %v6299
        %v7892 = vpop.f32.mrf.mxu0
        %v7893 = vadd.f32 %v7880, %v7892
        %v7894 = vpop.f32.mrf.mxu0
        %7895 = vdwg.mxu0
        %7896 = vmatpush.bf16.msra.mxu0 %v7134
        %7897 = vmatpush.bf16.msra.mxu0 %v7126
        %7898 = vmatpush.bf16.msra.mxu0 %v7118
        %7899 = vmatpush.bf16.msra.mxu0 %v7110
        %7900 = vmatpush.bf16.msra.mxu0 %v7102
        %7901 = vmatpush.bf16.msra.mxu0 %v7094
        %7902 = vmatpush.bf16.msra.mxu0 %v7086
        %7903 = vmatpush.bf16.msra.mxu0 %v7078
        %7904 = vmatmul.bf16.gmra.mxu0 %v6296
        %v7905 = vpop.f32.mrf.mxu0
        %v7906 = vadd.f32 %v6239, %v7905
        %v7907 = vpop.f32.mrf.mxu0
        %7908 = vdwg.mxu0
        %7909 = vmatpush.bf16.msra.mxu0 %v7198
        %7910 = vmatpush.bf16.msra.mxu0 %v7190
        %7911 = vmatpush.bf16.msra.mxu0 %v7182
        %7912 = vmatpush.bf16.msra.mxu0 %v7174
        %7913 = vmatpush.bf16.msra.mxu0 %v7166
        %7914 = vmatpush.bf16.msra.mxu0 %v7158
        %7915 = vmatpush.bf16.msra.mxu0 %v7150
        %7916 = vmatpush.bf16.msra.mxu0 %v7142
        %7917 = vmatmul.bf16.gmra.mxu0 %v6297
        %v7918 = vpop.f32.mrf.mxu0
        %v7919 = vadd.f32 %v7906, %v7918
        %v7920 = vpop.f32.mrf.mxu0
        %7921 = vdwg.mxu0
        %7922 = vmatpush.bf16.msra.mxu0 %v7262
        %7923 = vmatpush.bf16.msra.mxu0 %v7254
        %7924 = vmatpush.bf16.msra.mxu0 %v7246
        %7925 = vmatpush.bf16.msra.mxu0 %v7238
        %7926 = vmatpush.bf16.msra.mxu0 %v7230
        %7927 = vmatpush.bf16.msra.mxu0 %v7222
        %7928 = vmatpush.bf16.msra.mxu0 %v7214
        %7929 = vmatpush.bf16.msra.mxu0 %v7206
        %7930 = vmatmul.bf16.gmra.mxu0 %v6298
        %v7931 = vpop.f32.mrf.mxu0
        %v7932 = vadd.f32 %v7919, %v7931
        %v7933 = vpop.f32.mrf.mxu0
        %7934 = vdwg.mxu0
        %7935 = vmatpush.bf16.msra.mxu0 %v7326
        %7936 = vmatpush.bf16.msra.mxu0 %v7318
        %7937 = vmatpush.bf16.msra.mxu0 %v7310
        %7938 = vmatpush.bf16.msra.mxu0 %v7302
        %7939 = vmatpush.bf16.msra.mxu0 %v7294
        %7940 = vmatpush.bf16.msra.mxu0 %v7286
        %7941 = vmatpush.bf16.msra.mxu0 %v7278
        %7942 = vmatpush.bf16.msra.mxu0 %v7270
        %7943 = vmatmul.bf16.gmra.mxu0 %v6299
        %v7944 = vpop.f32.mrf.mxu0
        %v7945 = vadd.f32 %v7932, %v7944
        %v7946 = vpop.f32.mrf.mxu0
        %7947 = vdwg.mxu0
        %7948 = vmatpush.bf16.msra.mxu0 %v7135
        %7949 = vmatpush.bf16.msra.mxu0 %v7127
        %7950 = vmatpush.bf16.msra.mxu0 %v7119
        %7951 = vmatpush.bf16.msra.mxu0 %v7111
        %7952 = vmatpush.bf16.msra.mxu0 %v7103
        %7953 = vmatpush.bf16.msra.mxu0 %v7095
        %7954 = vmatpush.bf16.msra.mxu0 %v7087
        %7955 = vmatpush.bf16.msra.mxu0 %v7079
        %7956 = vmatmul.bf16.gmra.mxu0 %v6296
        %v7957 = vpop.f32.mrf.mxu0
        %v7958 = vadd.f32 %v6291, %v7957
        %v7959 = vpop.f32.mrf.mxu0
        %7960 = vdwg.mxu0
        %7961 = vmatpush.bf16.msra.mxu0 %v7199
        %7962 = vmatpush.bf16.msra.mxu0 %v7191
        %7963 = vmatpush.bf16.msra.mxu0 %v7183
        %7964 = vmatpush.bf16.msra.mxu0 %v7175
        %7965 = vmatpush.bf16.msra.mxu0 %v7167
        %7966 = vmatpush.bf16.msra.mxu0 %v7159
        %7967 = vmatpush.bf16.msra.mxu0 %v7151
        %7968 = vmatpush.bf16.msra.mxu0 %v7143
        %7969 = vmatmul.bf16.gmra.mxu0 %v6297
        %v7970 = vpop.f32.mrf.mxu0
        %v7971 = vadd.f32 %v7958, %v7970
        %v7972 = vpop.f32.mrf.mxu0
        %7973 = vdwg.mxu0
        %7974 = vmatpush.bf16.msra.mxu0 %v7263
        %7975 = vmatpush.bf16.msra.mxu0 %v7255
        %7976 = vmatpush.bf16.msra.mxu0 %v7247
        %7977 = vmatpush.bf16.msra.mxu0 %v7239
        %7978 = vmatpush.bf16.msra.mxu0 %v7231
        %7979 = vmatpush.bf16.msra.mxu0 %v7223
        %7980 = vmatpush.bf16.msra.mxu0 %v7215
        %7981 = vmatpush.bf16.msra.mxu0 %v7207
        %7982 = vmatmul.bf16.gmra.mxu0 %v6298
        %v7983 = vpop.f32.mrf.mxu0
        %v7984 = vadd.f32 %v7971, %v7983
        %v7985 = vpop.f32.mrf.mxu0
        %7986 = vdwg.mxu0
        %7987 = vmatpush.bf16.msra.mxu0 %v7327
        %7988 = vmatpush.bf16.msra.mxu0 %v7319
        %7989 = vmatpush.bf16.msra.mxu0 %v7311
        %7990 = vmatpush.bf16.msra.mxu0 %v7303
        %7991 = vmatpush.bf16.msra.mxu0 %v7295
        %7992 = vmatpush.bf16.msra.mxu0 %v7287
        %7993 = vmatpush.bf16.msra.mxu0 %v7279
        %7994 = vmatpush.bf16.msra.mxu0 %v7271
        %7995 = vmatmul.bf16.gmra.mxu0 %v6299
        %v7996 = vpop.f32.mrf.mxu0
        %v7997 = vadd.f32 %v7984, %v7996
        %v7998 = vpop.f32.mrf.mxu0
        %7999 = vdwg.mxu0
        %v8000 = vld [vmem:[#allocation3] sm:$0xaa]
        %s8001 = scalar_lea.vmem [#allocation12], 4096
        %v8002 = vld [vmem:[%s8001] sm:$0xff]
        %v8003 = vld [vmem:[%s8001 + $0x8] sm:$0xff]
        %v8004 = vld [vmem:[%s8001 + $0x10] sm:$0xff]
        %v8005 = vld [vmem:[%s8001 + $0x18] sm:$0xff]
        %v8006 = vld [vmem:[%s8001 + $0x20] sm:$0xff]
        %v8007 = vld [vmem:[%s8001 + $0x28] sm:$0xff]
        %v8008 = vld [vmem:[%s8001 + $0x30] sm:$0xff]
        %v8009 = vld [vmem:[%s8001 + $0x38] sm:$0xff]
        %v8010 = vld [vmem:[%s8001 + $0x40] sm:$0xff]
        %v8011 = vld [vmem:[%s8001 + $0x48] sm:$0xff]
        %v8012 = vld [vmem:[%s8001 + $0x50] sm:$0xff]
        %v8013 = vld [vmem:[%s8001 + $0x58] sm:$0xff]
        %v8014 = vld [vmem:[%s8001 + $0x60] sm:$0xff]
        %v8015 = vld [vmem:[%s8001 + $0x68] sm:$0xff]
        %v8016 = vld [vmem:[%s8001 + $0x70] sm:$0xff]
        %v8017 = vld [vmem:[%s8001 + $0x78] sm:$0xff]
        %v8018 = vld [vmem:[%s8001 + $0x80] sm:$0xff]
        %v8019 = vld [vmem:[%s8001 + $0x88] sm:$0xff]
        %v8020 = vld [vmem:[%s8001 + $0x90] sm:$0xff]
        %v8021 = vld [vmem:[%s8001 + $0x98] sm:$0xff]
        %v8022 = vld [vmem:[%s8001 + $0xa0] sm:$0xff]
        %v8023 = vld [vmem:[%s8001 + $0xa8] sm:$0xff]
        %v8024 = vld [vmem:[%s8001 + $0xb0] sm:$0xff]
        %v8025 = vld [vmem:[%s8001 + $0xb8] sm:$0xff]
        %v8026 = vld [vmem:[%s8001 + $0xc0] sm:$0xff]
        %v8027 = vld [vmem:[%s8001 + $0xc8] sm:$0xff]
        %v8028 = vld [vmem:[%s8001 + $0xd0] sm:$0xff]
        %v8029 = vld [vmem:[%s8001 + $0xd8] sm:$0xff]
        %v8030 = vld [vmem:[%s8001 + $0xe0] sm:$0xff]
        %v8031 = vld [vmem:[%s8001 + $0xe8] sm:$0xff]
        %v8032 = vld [vmem:[%s8001 + $0xf0] sm:$0xff]
        %v8033 = vld [vmem:[%s8001 + $0xf8] sm:$0xff]
        %v8034 = vld [vmem:[%s8001 + $0x100] sm:$0xff]
        %v8035 = vld [vmem:[%s8001 + $0x108] sm:$0xff]
        %v8036 = vld [vmem:[%s8001 + $0x110] sm:$0xff]
        %v8037 = vld [vmem:[%s8001 + $0x118] sm:$0xff]
        %v8038 = vld [vmem:[%s8001 + $0x120] sm:$0xff]
        %v8039 = vld [vmem:[%s8001 + $0x128] sm:$0xff]
        %v8040 = vld [vmem:[%s8001 + $0x130] sm:$0xff]
        %v8041 = vld [vmem:[%s8001 + $0x138] sm:$0xff]
        %v8042 = vld [vmem:[%s8001 + $0x140] sm:$0xff]
        %v8043 = vld [vmem:[%s8001 + $0x148] sm:$0xff]
        %v8044 = vld [vmem:[%s8001 + $0x150] sm:$0xff]
        %v8045 = vld [vmem:[%s8001 + $0x158] sm:$0xff]
        %v8046 = vld [vmem:[%s8001 + $0x160] sm:$0xff]
        %v8047 = vld [vmem:[%s8001 + $0x168] sm:$0xff]
        %v8048 = vld [vmem:[%s8001 + $0x170] sm:$0xff]
        %v8049 = vld [vmem:[%s8001 + $0x178] sm:$0xff]
        %v8050 = vld [vmem:[%s8001 + $0x180] sm:$0xff]
        %v8051 = vld [vmem:[%s8001 + $0x188] sm:$0xff]
        %v8052 = vld [vmem:[%s8001 + $0x190] sm:$0xff]
        %v8053 = vld [vmem:[%s8001 + $0x198] sm:$0xff]
        %v8054 = vld [vmem:[%s8001 + $0x1a0] sm:$0xff]
        %v8055 = vld [vmem:[%s8001 + $0x1a8] sm:$0xff]
        %v8056 = vld [vmem:[%s8001 + $0x1b0] sm:$0xff]
        %v8057 = vld [vmem:[%s8001 + $0x1b8] sm:$0xff]
        %v8058 = vld [vmem:[%s8001 + $0x1c0] sm:$0xff]
        %v8059 = vld [vmem:[%s8001 + $0x1c8] sm:$0xff]
        %v8060 = vld [vmem:[%s8001 + $0x1d0] sm:$0xff]
        %v8061 = vld [vmem:[%s8001 + $0x1d8] sm:$0xff]
        %v8062 = vld [vmem:[%s8001 + $0x1e0] sm:$0xff]
        %v8063 = vld [vmem:[%s8001 + $0x1e8] sm:$0xff]
        %v8064 = vld [vmem:[%s8001 + $0x1f0] sm:$0xff]
        %v8065 = vld [vmem:[%s8001 + $0x1f8] sm:$0xff]
        %v8066 = vld [vmem:[%s8001 + $0x200] sm:$0xff]
        %v8067 = vld [vmem:[%s8001 + $0x208] sm:$0xff]
        %v8068 = vld [vmem:[%s8001 + $0x210] sm:$0xff]
        %v8069 = vld [vmem:[%s8001 + $0x218] sm:$0xff]
        %v8070 = vld [vmem:[%s8001 + $0x220] sm:$0xff]
        %v8071 = vld [vmem:[%s8001 + $0x228] sm:$0xff]
        %v8072 = vld [vmem:[%s8001 + $0x230] sm:$0xff]
        %v8073 = vld [vmem:[%s8001 + $0x238] sm:$0xff]
        %v8074 = vld [vmem:[%s8001 + $0x240] sm:$0xff]
        %v8075 = vld [vmem:[%s8001 + $0x248] sm:$0xff]
        %v8076 = vld [vmem:[%s8001 + $0x250] sm:$0xff]
        %v8077 = vld [vmem:[%s8001 + $0x258] sm:$0xff]
        %v8078 = vld [vmem:[%s8001 + $0x260] sm:$0xff]
        %v8079 = vld [vmem:[%s8001 + $0x268] sm:$0xff]
        %v8080 = vld [vmem:[%s8001 + $0x270] sm:$0xff]
        %v8081 = vld [vmem:[%s8001 + $0x278] sm:$0xff]
        %v8082 = vld [vmem:[%s8001 + $0x280] sm:$0xff]
        %v8083 = vld [vmem:[%s8001 + $0x288] sm:$0xff]
        %v8084 = vld [vmem:[%s8001 + $0x290] sm:$0xff]
        %v8085 = vld [vmem:[%s8001 + $0x298] sm:$0xff]
        %v8086 = vld [vmem:[%s8001 + $0x2a0] sm:$0xff]
        %v8087 = vld [vmem:[%s8001 + $0x2a8] sm:$0xff]
        %v8088 = vld [vmem:[%s8001 + $0x2b0] sm:$0xff]
        %v8089 = vld [vmem:[%s8001 + $0x2b8] sm:$0xff]
        %v8090 = vld [vmem:[%s8001 + $0x2c0] sm:$0xff]
        %v8091 = vld [vmem:[%s8001 + $0x2c8] sm:$0xff]
        %v8092 = vld [vmem:[%s8001 + $0x2d0] sm:$0xff]
        %v8093 = vld [vmem:[%s8001 + $0x2d8] sm:$0xff]
        %v8094 = vld [vmem:[%s8001 + $0x2e0] sm:$0xff]
        %v8095 = vld [vmem:[%s8001 + $0x2e8] sm:$0xff]
        %v8096 = vld [vmem:[%s8001 + $0x2f0] sm:$0xff]
        %v8097 = vld [vmem:[%s8001 + $0x2f8] sm:$0xff]
        %v8098 = vld [vmem:[%s8001 + $0x300] sm:$0xff]
        %v8099 = vld [vmem:[%s8001 + $0x308] sm:$0xff]
        %v8100 = vld [vmem:[%s8001 + $0x310] sm:$0xff]
        %v8101 = vld [vmem:[%s8001 + $0x318] sm:$0xff]
        %v8102 = vld [vmem:[%s8001 + $0x320] sm:$0xff]
        %v8103 = vld [vmem:[%s8001 + $0x328] sm:$0xff]
        %v8104 = vld [vmem:[%s8001 + $0x330] sm:$0xff]
        %v8105 = vld [vmem:[%s8001 + $0x338] sm:$0xff]
        %v8106 = vld [vmem:[%s8001 + $0x340] sm:$0xff]
        %v8107 = vld [vmem:[%s8001 + $0x348] sm:$0xff]
        %v8108 = vld [vmem:[%s8001 + $0x350] sm:$0xff]
        %v8109 = vld [vmem:[%s8001 + $0x358] sm:$0xff]
        %v8110 = vld [vmem:[%s8001 + $0x360] sm:$0xff]
        %v8111 = vld [vmem:[%s8001 + $0x368] sm:$0xff]
        %v8112 = vld [vmem:[%s8001 + $0x370] sm:$0xff]
        %v8113 = vld [vmem:[%s8001 + $0x378] sm:$0xff]
        %v8114 = vld [vmem:[%s8001 + $0x380] sm:$0xff]
        %v8115 = vld [vmem:[%s8001 + $0x388] sm:$0xff]
        %v8116 = vld [vmem:[%s8001 + $0x390] sm:$0xff]
        %v8117 = vld [vmem:[%s8001 + $0x398] sm:$0xff]
        %v8118 = vld [vmem:[%s8001 + $0x3a0] sm:$0xff]
        %v8119 = vld [vmem:[%s8001 + $0x3a8] sm:$0xff]
        %v8120 = vld [vmem:[%s8001 + $0x3b0] sm:$0xff]
        %v8121 = vld [vmem:[%s8001 + $0x3b8] sm:$0xff]
        %v8122 = vld [vmem:[%s8001 + $0x3c0] sm:$0xff]
        %v8123 = vld [vmem:[%s8001 + $0x3c8] sm:$0xff]
        %v8124 = vld [vmem:[%s8001 + $0x3d0] sm:$0xff]
        %v8125 = vld [vmem:[%s8001 + $0x3d8] sm:$0xff]
        %v8126 = vld [vmem:[%s8001 + $0x3e0] sm:$0xff]
        %v8127 = vld [vmem:[%s8001 + $0x3e8] sm:$0xff]
        %v8128 = vld [vmem:[%s8001 + $0x3f0] sm:$0xff]
        %v8129 = vld [vmem:[%s8001 + $0x3f8] sm:$0xff]
        %v8130 = vld [vmem:[%s8001 + $0x400] sm:$0xff]
        %v8131 = vld [vmem:[%s8001 + $0x408] sm:$0xff]
        %v8132 = vld [vmem:[%s8001 + $0x410] sm:$0xff]
        %v8133 = vld [vmem:[%s8001 + $0x418] sm:$0xff]
        %v8134 = vld [vmem:[%s8001 + $0x420] sm:$0xff]
        %v8135 = vld [vmem:[%s8001 + $0x428] sm:$0xff]
        %v8136 = vld [vmem:[%s8001 + $0x430] sm:$0xff]
        %v8137 = vld [vmem:[%s8001 + $0x438] sm:$0xff]
        %v8138 = vld [vmem:[%s8001 + $0x440] sm:$0xff]
        %v8139 = vld [vmem:[%s8001 + $0x448] sm:$0xff]
        %v8140 = vld [vmem:[%s8001 + $0x450] sm:$0xff]
        %v8141 = vld [vmem:[%s8001 + $0x458] sm:$0xff]
        %v8142 = vld [vmem:[%s8001 + $0x460] sm:$0xff]
        %v8143 = vld [vmem:[%s8001 + $0x468] sm:$0xff]
        %v8144 = vld [vmem:[%s8001 + $0x470] sm:$0xff]
        %v8145 = vld [vmem:[%s8001 + $0x478] sm:$0xff]
        %v8146 = vld [vmem:[%s8001 + $0x480] sm:$0xff]
        %v8147 = vld [vmem:[%s8001 + $0x488] sm:$0xff]
        %v8148 = vld [vmem:[%s8001 + $0x490] sm:$0xff]
        %v8149 = vld [vmem:[%s8001 + $0x498] sm:$0xff]
        %v8150 = vld [vmem:[%s8001 + $0x4a0] sm:$0xff]
        %v8151 = vld [vmem:[%s8001 + $0x4a8] sm:$0xff]
        %v8152 = vld [vmem:[%s8001 + $0x4b0] sm:$0xff]
        %v8153 = vld [vmem:[%s8001 + $0x4b8] sm:$0xff]
        %v8154 = vld [vmem:[%s8001 + $0x4c0] sm:$0xff]
        %v8155 = vld [vmem:[%s8001 + $0x4c8] sm:$0xff]
        %v8156 = vld [vmem:[%s8001 + $0x4d0] sm:$0xff]
        %v8157 = vld [vmem:[%s8001 + $0x4d8] sm:$0xff]
        %v8158 = vld [vmem:[%s8001 + $0x4e0] sm:$0xff]
        %v8159 = vld [vmem:[%s8001 + $0x4e8] sm:$0xff]
        %v8160 = vld [vmem:[%s8001 + $0x4f0] sm:$0xff]
        %v8161 = vld [vmem:[%s8001 + $0x4f8] sm:$0xff]
        %v8162 = vld [vmem:[%s8001 + $0x500] sm:$0xff]
        %v8163 = vld [vmem:[%s8001 + $0x508] sm:$0xff]
        %v8164 = vld [vmem:[%s8001 + $0x510] sm:$0xff]
        %v8165 = vld [vmem:[%s8001 + $0x518] sm:$0xff]
        %v8166 = vld [vmem:[%s8001 + $0x520] sm:$0xff]
        %v8167 = vld [vmem:[%s8001 + $0x528] sm:$0xff]
        %v8168 = vld [vmem:[%s8001 + $0x530] sm:$0xff]
        %v8169 = vld [vmem:[%s8001 + $0x538] sm:$0xff]
        %v8170 = vld [vmem:[%s8001 + $0x540] sm:$0xff]
        %v8171 = vld [vmem:[%s8001 + $0x548] sm:$0xff]
        %v8172 = vld [vmem:[%s8001 + $0x550] sm:$0xff]
        %v8173 = vld [vmem:[%s8001 + $0x558] sm:$0xff]
        %v8174 = vld [vmem:[%s8001 + $0x560] sm:$0xff]
        %v8175 = vld [vmem:[%s8001 + $0x568] sm:$0xff]
        %v8176 = vld [vmem:[%s8001 + $0x570] sm:$0xff]
        %v8177 = vld [vmem:[%s8001 + $0x578] sm:$0xff]
        %v8178 = vld [vmem:[%s8001 + $0x580] sm:$0xff]
        %v8179 = vld [vmem:[%s8001 + $0x588] sm:$0xff]
        %v8180 = vld [vmem:[%s8001 + $0x590] sm:$0xff]
        %v8181 = vld [vmem:[%s8001 + $0x598] sm:$0xff]
        %v8182 = vld [vmem:[%s8001 + $0x5a0] sm:$0xff]
        %v8183 = vld [vmem:[%s8001 + $0x5a8] sm:$0xff]
        %v8184 = vld [vmem:[%s8001 + $0x5b0] sm:$0xff]
        %v8185 = vld [vmem:[%s8001 + $0x5b8] sm:$0xff]
        %v8186 = vld [vmem:[%s8001 + $0x5c0] sm:$0xff]
        %v8187 = vld [vmem:[%s8001 + $0x5c8] sm:$0xff]
        %v8188 = vld [vmem:[%s8001 + $0x5d0] sm:$0xff]
        %v8189 = vld [vmem:[%s8001 + $0x5d8] sm:$0xff]
        %v8190 = vld [vmem:[%s8001 + $0x5e0] sm:$0xff]
        %v8191 = vld [vmem:[%s8001 + $0x5e8] sm:$0xff]
        %v8192 = vld [vmem:[%s8001 + $0x5f0] sm:$0xff]
        %v8193 = vld [vmem:[%s8001 + $0x5f8] sm:$0xff]
        %v8194 = vld [vmem:[%s8001 + $0x600] sm:$0xff]
        %v8195 = vld [vmem:[%s8001 + $0x608] sm:$0xff]
        %v8196 = vld [vmem:[%s8001 + $0x610] sm:$0xff]
        %v8197 = vld [vmem:[%s8001 + $0x618] sm:$0xff]
        %v8198 = vld [vmem:[%s8001 + $0x620] sm:$0xff]
        %v8199 = vld [vmem:[%s8001 + $0x628] sm:$0xff]
        %v8200 = vld [vmem:[%s8001 + $0x630] sm:$0xff]
        %v8201 = vld [vmem:[%s8001 + $0x638] sm:$0xff]
        %v8202 = vld [vmem:[%s8001 + $0x640] sm:$0xff]
        %v8203 = vld [vmem:[%s8001 + $0x648] sm:$0xff]
        %v8204 = vld [vmem:[%s8001 + $0x650] sm:$0xff]
        %v8205 = vld [vmem:[%s8001 + $0x658] sm:$0xff]
        %v8206 = vld [vmem:[%s8001 + $0x660] sm:$0xff]
        %v8207 = vld [vmem:[%s8001 + $0x668] sm:$0xff]
        %v8208 = vld [vmem:[%s8001 + $0x670] sm:$0xff]
        %v8209 = vld [vmem:[%s8001 + $0x678] sm:$0xff]
        %v8210 = vld [vmem:[%s8001 + $0x680] sm:$0xff]
        %v8211 = vld [vmem:[%s8001 + $0x688] sm:$0xff]
        %v8212 = vld [vmem:[%s8001 + $0x690] sm:$0xff]
        %v8213 = vld [vmem:[%s8001 + $0x698] sm:$0xff]
        %v8214 = vld [vmem:[%s8001 + $0x6a0] sm:$0xff]
        %v8215 = vld [vmem:[%s8001 + $0x6a8] sm:$0xff]
        %v8216 = vld [vmem:[%s8001 + $0x6b0] sm:$0xff]
        %v8217 = vld [vmem:[%s8001 + $0x6b8] sm:$0xff]
        %v8218 = vld [vmem:[%s8001 + $0x6c0] sm:$0xff]
        %v8219 = vld [vmem:[%s8001 + $0x6c8] sm:$0xff]
        %v8220 = vld [vmem:[%s8001 + $0x6d0] sm:$0xff]
        %v8221 = vld [vmem:[%s8001 + $0x6d8] sm:$0xff]
        %v8222 = vld [vmem:[%s8001 + $0x6e0] sm:$0xff]
        %v8223 = vld [vmem:[%s8001 + $0x6e8] sm:$0xff]
        %v8224 = vld [vmem:[%s8001 + $0x6f0] sm:$0xff]
        %v8225 = vld [vmem:[%s8001 + $0x6f8] sm:$0xff]
        %v8226 = vld [vmem:[%s8001 + $0x700] sm:$0xff]
        %v8227 = vld [vmem:[%s8001 + $0x708] sm:$0xff]
        %v8228 = vld [vmem:[%s8001 + $0x710] sm:$0xff]
        %v8229 = vld [vmem:[%s8001 + $0x718] sm:$0xff]
        %v8230 = vld [vmem:[%s8001 + $0x720] sm:$0xff]
        %v8231 = vld [vmem:[%s8001 + $0x728] sm:$0xff]
        %v8232 = vld [vmem:[%s8001 + $0x730] sm:$0xff]
        %v8233 = vld [vmem:[%s8001 + $0x738] sm:$0xff]
        %v8234 = vld [vmem:[%s8001 + $0x740] sm:$0xff]
        %v8235 = vld [vmem:[%s8001 + $0x748] sm:$0xff]
        %v8236 = vld [vmem:[%s8001 + $0x750] sm:$0xff]
        %v8237 = vld [vmem:[%s8001 + $0x758] sm:$0xff]
        %v8238 = vld [vmem:[%s8001 + $0x760] sm:$0xff]
        %v8239 = vld [vmem:[%s8001 + $0x768] sm:$0xff]
        %v8240 = vld [vmem:[%s8001 + $0x770] sm:$0xff]
        %v8241 = vld [vmem:[%s8001 + $0x778] sm:$0xff]
        %v8242 = vld [vmem:[%s8001 + $0x780] sm:$0xff]
        %v8243 = vld [vmem:[%s8001 + $0x788] sm:$0xff]
        %v8244 = vld [vmem:[%s8001 + $0x790] sm:$0xff]
        %v8245 = vld [vmem:[%s8001 + $0x798] sm:$0xff]
        %v8246 = vld [vmem:[%s8001 + $0x7a0] sm:$0xff]
        %v8247 = vld [vmem:[%s8001 + $0x7a8] sm:$0xff]
        %v8248 = vld [vmem:[%s8001 + $0x7b0] sm:$0xff]
        %v8249 = vld [vmem:[%s8001 + $0x7b8] sm:$0xff]
        %v8250 = vld [vmem:[%s8001 + $0x7c0] sm:$0xff]
        %v8251 = vld [vmem:[%s8001 + $0x7c8] sm:$0xff]
        %v8252 = vld [vmem:[%s8001 + $0x7d0] sm:$0xff]
        %v8253 = vld [vmem:[%s8001 + $0x7d8] sm:$0xff]
        %v8254 = vld [vmem:[%s8001 + $0x7e0] sm:$0xff]
        %v8255 = vld [vmem:[%s8001 + $0x7e8] sm:$0xff]
        %v8256 = vld [vmem:[%s8001 + $0x7f0] sm:$0xff]
        %v8257 = vld [vmem:[%s8001 + $0x7f8] sm:$0xff]
        %8259 = vst [vmem:[#allocation1] ss:$4 sm:$0xff] %v8000
        %v8260 = vld.sshfl [vmem:[#allocation1] sm:$0xff pattern:$0x73625140]
        %v8262 = vld.sshfl [vmem:[#allocation1 + $0x8] sm:$0xff pattern:$0x73625140]
        %v8264 = vld.sshfl [vmem:[#allocation1 + $0x10] sm:$0xff pattern:$0x73625140]
        %v8266 = vld.sshfl [vmem:[#allocation1 + $0x18] sm:$0xff pattern:$0x73625140]
        %v8268 = vrot.slane %v8260, 1
        %v8269 = vrot.slane %v8262, 1
        %v8270 = vrot.slane %v8264, 1
        %v8271 = vrot.slane %v8266, 1
        %v8532 = vunpack.c.l.b16 %v8002
        %v8533 = vunpack.c.h.b16 %v8002
        %v8534 = vunpack.c.l.b16 %v8003
        %v8535 = vunpack.c.h.b16 %v8003
        %v8536 = vunpack.c.l.b16 %v8004
        %v8537 = vunpack.c.h.b16 %v8004
        %v8538 = vunpack.c.l.b16 %v8005
        %v8539 = vunpack.c.h.b16 %v8005
        %v8540 = vunpack.c.l.b16 %v8006
        %v8541 = vunpack.c.h.b16 %v8006
        %v8542 = vunpack.c.l.b16 %v8007
        %v8543 = vunpack.c.h.b16 %v8007
        %v8544 = vunpack.c.l.b16 %v8008
        %v8545 = vunpack.c.h.b16 %v8008
        %v8546 = vunpack.c.l.b16 %v8009
        %v8547 = vunpack.c.h.b16 %v8009
        %v8548 = vunpack.c.l.b16 %v8010
        %v8549 = vunpack.c.h.b16 %v8010
        %v8550 = vunpack.c.l.b16 %v8011
        %v8551 = vunpack.c.h.b16 %v8011
        %v8552 = vunpack.c.l.b16 %v8012
        %v8553 = vunpack.c.h.b16 %v8012
        %v8554 = vunpack.c.l.b16 %v8013
        %v8555 = vunpack.c.h.b16 %v8013
        %v8556 = vunpack.c.l.b16 %v8014
        %v8557 = vunpack.c.h.b16 %v8014
        %v8558 = vunpack.c.l.b16 %v8015
        %v8559 = vunpack.c.h.b16 %v8015
        %v8560 = vunpack.c.l.b16 %v8016
        %v8561 = vunpack.c.h.b16 %v8016
        %v8562 = vunpack.c.l.b16 %v8017
        %v8563 = vunpack.c.h.b16 %v8017
        %v8564 = vunpack.c.l.b16 %v8018
        %v8565 = vunpack.c.h.b16 %v8018
        %v8566 = vunpack.c.l.b16 %v8019
        %v8567 = vunpack.c.h.b16 %v8019
        %v8568 = vunpack.c.l.b16 %v8020
        %v8569 = vunpack.c.h.b16 %v8020
        %v8570 = vunpack.c.l.b16 %v8021
        %v8571 = vunpack.c.h.b16 %v8021
        %v8572 = vunpack.c.l.b16 %v8022
        %v8573 = vunpack.c.h.b16 %v8022
        %v8574 = vunpack.c.l.b16 %v8023
        %v8575 = vunpack.c.h.b16 %v8023
        %v8576 = vunpack.c.l.b16 %v8024
        %v8577 = vunpack.c.h.b16 %v8024
        %v8578 = vunpack.c.l.b16 %v8025
        %v8579 = vunpack.c.h.b16 %v8025
        %v8580 = vunpack.c.l.b16 %v8026
        %v8581 = vunpack.c.h.b16 %v8026
        %v8582 = vunpack.c.l.b16 %v8027
        %v8583 = vunpack.c.h.b16 %v8027
        %v8584 = vunpack.c.l.b16 %v8028
        %v8585 = vunpack.c.h.b16 %v8028
        %v8586 = vunpack.c.l.b16 %v8029
        %v8587 = vunpack.c.h.b16 %v8029
        %v8588 = vunpack.c.l.b16 %v8030
        %v8589 = vunpack.c.h.b16 %v8030
        %v8590 = vunpack.c.l.b16 %v8031
        %v8591 = vunpack.c.h.b16 %v8031
        %v8592 = vunpack.c.l.b16 %v8032
        %v8593 = vunpack.c.h.b16 %v8032
        %v8594 = vunpack.c.l.b16 %v8033
        %v8595 = vunpack.c.h.b16 %v8033
        %v8596 = vunpack.c.l.b16 %v8034
        %v8597 = vunpack.c.h.b16 %v8034
        %v8598 = vunpack.c.l.b16 %v8035
        %v8599 = vunpack.c.h.b16 %v8035
        %v8600 = vunpack.c.l.b16 %v8036
        %v8601 = vunpack.c.h.b16 %v8036
        %v8602 = vunpack.c.l.b16 %v8037
        %v8603 = vunpack.c.h.b16 %v8037
        %v8604 = vunpack.c.l.b16 %v8038
        %v8605 = vunpack.c.h.b16 %v8038
        %v8606 = vunpack.c.l.b16 %v8039
        %v8607 = vunpack.c.h.b16 %v8039
        %v8608 = vunpack.c.l.b16 %v8040
        %v8609 = vunpack.c.h.b16 %v8040
        %v8610 = vunpack.c.l.b16 %v8041
        %v8611 = vunpack.c.h.b16 %v8041
        %v8612 = vunpack.c.l.b16 %v8042
        %v8613 = vunpack.c.h.b16 %v8042
        %v8614 = vunpack.c.l.b16 %v8043
        %v8615 = vunpack.c.h.b16 %v8043
        %v8616 = vunpack.c.l.b16 %v8044
        %v8617 = vunpack.c.h.b16 %v8044
        %v8618 = vunpack.c.l.b16 %v8045
        %v8619 = vunpack.c.h.b16 %v8045
        %v8620 = vunpack.c.l.b16 %v8046
        %v8621 = vunpack.c.h.b16 %v8046
        %v8622 = vunpack.c.l.b16 %v8047
        %v8623 = vunpack.c.h.b16 %v8047
        %v8624 = vunpack.c.l.b16 %v8048
        %v8625 = vunpack.c.h.b16 %v8048
        %v8626 = vunpack.c.l.b16 %v8049
        %v8627 = vunpack.c.h.b16 %v8049
        %v8628 = vunpack.c.l.b16 %v8050
        %v8629 = vunpack.c.h.b16 %v8050
        %v8630 = vunpack.c.l.b16 %v8051
        %v8631 = vunpack.c.h.b16 %v8051
        %v8632 = vunpack.c.l.b16 %v8052
        %v8633 = vunpack.c.h.b16 %v8052
        %v8634 = vunpack.c.l.b16 %v8053
        %v8635 = vunpack.c.h.b16 %v8053
        %v8636 = vunpack.c.l.b16 %v8054
        %v8637 = vunpack.c.h.b16 %v8054
        %v8638 = vunpack.c.l.b16 %v8055
        %v8639 = vunpack.c.h.b16 %v8055
        %v8640 = vunpack.c.l.b16 %v8056
        %v8641 = vunpack.c.h.b16 %v8056
        %v8642 = vunpack.c.l.b16 %v8057
        %v8643 = vunpack.c.h.b16 %v8057
        %v8644 = vunpack.c.l.b16 %v8058
        %v8645 = vunpack.c.h.b16 %v8058
        %v8646 = vunpack.c.l.b16 %v8059
        %v8647 = vunpack.c.h.b16 %v8059
        %v8648 = vunpack.c.l.b16 %v8060
        %v8649 = vunpack.c.h.b16 %v8060
        %v8650 = vunpack.c.l.b16 %v8061
        %v8651 = vunpack.c.h.b16 %v8061
        %v8652 = vunpack.c.l.b16 %v8062
        %v8653 = vunpack.c.h.b16 %v8062
        %v8654 = vunpack.c.l.b16 %v8063
        %v8655 = vunpack.c.h.b16 %v8063
        %v8656 = vunpack.c.l.b16 %v8064
        %v8657 = vunpack.c.h.b16 %v8064
        %v8658 = vunpack.c.l.b16 %v8065
        %v8659 = vunpack.c.h.b16 %v8065
        %v8660 = vunpack.c.l.b16 %v8066
        %v8661 = vunpack.c.h.b16 %v8066
        %v8662 = vunpack.c.l.b16 %v8067
        %v8663 = vunpack.c.h.b16 %v8067
        %v8664 = vunpack.c.l.b16 %v8068
        %v8665 = vunpack.c.h.b16 %v8068
        %v8666 = vunpack.c.l.b16 %v8069
        %v8667 = vunpack.c.h.b16 %v8069
        %v8668 = vunpack.c.l.b16 %v8070
        %v8669 = vunpack.c.h.b16 %v8070
        %v8670 = vunpack.c.l.b16 %v8071
        %v8671 = vunpack.c.h.b16 %v8071
        %v8672 = vunpack.c.l.b16 %v8072
        %v8673 = vunpack.c.h.b16 %v8072
        %v8674 = vunpack.c.l.b16 %v8073
        %v8675 = vunpack.c.h.b16 %v8073
        %v8676 = vunpack.c.l.b16 %v8074
        %v8677 = vunpack.c.h.b16 %v8074
        %v8678 = vunpack.c.l.b16 %v8075
        %v8679 = vunpack.c.h.b16 %v8075
        %v8680 = vunpack.c.l.b16 %v8076
        %v8681 = vunpack.c.h.b16 %v8076
        %v8682 = vunpack.c.l.b16 %v8077
        %v8683 = vunpack.c.h.b16 %v8077
        %v8684 = vunpack.c.l.b16 %v8078
        %v8685 = vunpack.c.h.b16 %v8078
        %v8686 = vunpack.c.l.b16 %v8079
        %v8687 = vunpack.c.h.b16 %v8079
        %v8688 = vunpack.c.l.b16 %v8080
        %v8689 = vunpack.c.h.b16 %v8080
        %v8690 = vunpack.c.l.b16 %v8081
        %v8691 = vunpack.c.h.b16 %v8081
        %v8692 = vunpack.c.l.b16 %v8082
        %v8693 = vunpack.c.h.b16 %v8082
        %v8694 = vunpack.c.l.b16 %v8083
        %v8695 = vunpack.c.h.b16 %v8083
        %v8696 = vunpack.c.l.b16 %v8084
        %v8697 = vunpack.c.h.b16 %v8084
        %v8698 = vunpack.c.l.b16 %v8085
        %v8699 = vunpack.c.h.b16 %v8085
        %v8700 = vunpack.c.l.b16 %v8086
        %v8701 = vunpack.c.h.b16 %v8086
        %v8702 = vunpack.c.l.b16 %v8087
        %v8703 = vunpack.c.h.b16 %v8087
        %v8704 = vunpack.c.l.b16 %v8088
        %v8705 = vunpack.c.h.b16 %v8088
        %v8706 = vunpack.c.l.b16 %v8089
        %v8707 = vunpack.c.h.b16 %v8089
        %v8708 = vunpack.c.l.b16 %v8090
        %v8709 = vunpack.c.h.b16 %v8090
        %v8710 = vunpack.c.l.b16 %v8091
        %v8711 = vunpack.c.h.b16 %v8091
        %v8712 = vunpack.c.l.b16 %v8092
        %v8713 = vunpack.c.h.b16 %v8092
        %v8714 = vunpack.c.l.b16 %v8093
        %v8715 = vunpack.c.h.b16 %v8093
        %v8716 = vunpack.c.l.b16 %v8094
        %v8717 = vunpack.c.h.b16 %v8094
        %v8718 = vunpack.c.l.b16 %v8095
        %v8719 = vunpack.c.h.b16 %v8095
        %v8720 = vunpack.c.l.b16 %v8096
        %v8721 = vunpack.c.h.b16 %v8096
        %v8722 = vunpack.c.l.b16 %v8097
        %v8723 = vunpack.c.h.b16 %v8097
        %v8724 = vunpack.c.l.b16 %v8098
        %v8725 = vunpack.c.h.b16 %v8098
        %v8726 = vunpack.c.l.b16 %v8099
        %v8727 = vunpack.c.h.b16 %v8099
        %v8728 = vunpack.c.l.b16 %v8100
        %v8729 = vunpack.c.h.b16 %v8100
        %v8730 = vunpack.c.l.b16 %v8101
        %v8731 = vunpack.c.h.b16 %v8101
        %v8732 = vunpack.c.l.b16 %v8102
        %v8733 = vunpack.c.h.b16 %v8102
        %v8734 = vunpack.c.l.b16 %v8103
        %v8735 = vunpack.c.h.b16 %v8103
        %v8736 = vunpack.c.l.b16 %v8104
        %v8737 = vunpack.c.h.b16 %v8104
        %v8738 = vunpack.c.l.b16 %v8105
        %v8739 = vunpack.c.h.b16 %v8105
        %v8740 = vunpack.c.l.b16 %v8106
        %v8741 = vunpack.c.h.b16 %v8106
        %v8742 = vunpack.c.l.b16 %v8107
        %v8743 = vunpack.c.h.b16 %v8107
        %v8744 = vunpack.c.l.b16 %v8108
        %v8745 = vunpack.c.h.b16 %v8108
        %v8746 = vunpack.c.l.b16 %v8109
        %v8747 = vunpack.c.h.b16 %v8109
        %v8748 = vunpack.c.l.b16 %v8110
        %v8749 = vunpack.c.h.b16 %v8110
        %v8750 = vunpack.c.l.b16 %v8111
        %v8751 = vunpack.c.h.b16 %v8111
        %v8752 = vunpack.c.l.b16 %v8112
        %v8753 = vunpack.c.h.b16 %v8112
        %v8754 = vunpack.c.l.b16 %v8113
        %v8755 = vunpack.c.h.b16 %v8113
        %v8756 = vunpack.c.l.b16 %v8114
        %v8757 = vunpack.c.h.b16 %v8114
        %v8758 = vunpack.c.l.b16 %v8115
        %v8759 = vunpack.c.h.b16 %v8115
        %v8760 = vunpack.c.l.b16 %v8116
        %v8761 = vunpack.c.h.b16 %v8116
        %v8762 = vunpack.c.l.b16 %v8117
        %v8763 = vunpack.c.h.b16 %v8117
        %v8764 = vunpack.c.l.b16 %v8118
        %v8765 = vunpack.c.h.b16 %v8118
        %v8766 = vunpack.c.l.b16 %v8119
        %v8767 = vunpack.c.h.b16 %v8119
        %v8768 = vunpack.c.l.b16 %v8120
        %v8769 = vunpack.c.h.b16 %v8120
        %v8770 = vunpack.c.l.b16 %v8121
        %v8771 = vunpack.c.h.b16 %v8121
        %v8772 = vunpack.c.l.b16 %v8122
        %v8773 = vunpack.c.h.b16 %v8122
        %v8774 = vunpack.c.l.b16 %v8123
        %v8775 = vunpack.c.h.b16 %v8123
        %v8776 = vunpack.c.l.b16 %v8124
        %v8777 = vunpack.c.h.b16 %v8124
        %v8778 = vunpack.c.l.b16 %v8125
        %v8779 = vunpack.c.h.b16 %v8125
        %v8780 = vunpack.c.l.b16 %v8126
        %v8781 = vunpack.c.h.b16 %v8126
        %v8782 = vunpack.c.l.b16 %v8127
        %v8783 = vunpack.c.h.b16 %v8127
        %v8784 = vunpack.c.l.b16 %v8128
        %v8785 = vunpack.c.h.b16 %v8128
        %v8786 = vunpack.c.l.b16 %v8129
        %v8787 = vunpack.c.h.b16 %v8129
        %v8788 = vunpack.c.l.b16 %v8130
        %v8789 = vunpack.c.h.b16 %v8130
        %v8790 = vunpack.c.l.b16 %v8131
        %v8791 = vunpack.c.h.b16 %v8131
        %v8792 = vunpack.c.l.b16 %v8132
        %v8793 = vunpack.c.h.b16 %v8132
        %v8794 = vunpack.c.l.b16 %v8133
        %v8795 = vunpack.c.h.b16 %v8133
        %v8796 = vunpack.c.l.b16 %v8134
        %v8797 = vunpack.c.h.b16 %v8134
        %v8798 = vunpack.c.l.b16 %v8135
        %v8799 = vunpack.c.h.b16 %v8135
        %v8800 = vunpack.c.l.b16 %v8136
        %v8801 = vunpack.c.h.b16 %v8136
        %v8802 = vunpack.c.l.b16 %v8137
        %v8803 = vunpack.c.h.b16 %v8137
        %v8804 = vunpack.c.l.b16 %v8138
        %v8805 = vunpack.c.h.b16 %v8138
        %v8806 = vunpack.c.l.b16 %v8139
        %v8807 = vunpack.c.h.b16 %v8139
        %v8808 = vunpack.c.l.b16 %v8140
        %v8809 = vunpack.c.h.b16 %v8140
        %v8810 = vunpack.c.l.b16 %v8141
        %v8811 = vunpack.c.h.b16 %v8141
        %v8812 = vunpack.c.l.b16 %v8142
        %v8813 = vunpack.c.h.b16 %v8142
        %v8814 = vunpack.c.l.b16 %v8143
        %v8815 = vunpack.c.h.b16 %v8143
        %v8816 = vunpack.c.l.b16 %v8144
        %v8817 = vunpack.c.h.b16 %v8144
        %v8818 = vunpack.c.l.b16 %v8145
        %v8819 = vunpack.c.h.b16 %v8145
        %v8820 = vunpack.c.l.b16 %v8146
        %v8821 = vunpack.c.h.b16 %v8146
        %v8822 = vunpack.c.l.b16 %v8147
        %v8823 = vunpack.c.h.b16 %v8147
        %v8824 = vunpack.c.l.b16 %v8148
        %v8825 = vunpack.c.h.b16 %v8148
        %v8826 = vunpack.c.l.b16 %v8149
        %v8827 = vunpack.c.h.b16 %v8149
        %v8828 = vunpack.c.l.b16 %v8150
        %v8829 = vunpack.c.h.b16 %v8150
        %v8830 = vunpack.c.l.b16 %v8151
        %v8831 = vunpack.c.h.b16 %v8151
        %v8832 = vunpack.c.l.b16 %v8152
        %v8833 = vunpack.c.h.b16 %v8152
        %v8834 = vunpack.c.l.b16 %v8153
        %v8835 = vunpack.c.h.b16 %v8153
        %v8836 = vunpack.c.l.b16 %v8154
        %v8837 = vunpack.c.h.b16 %v8154
        %v8838 = vunpack.c.l.b16 %v8155
        %v8839 = vunpack.c.h.b16 %v8155
        %v8840 = vunpack.c.l.b16 %v8156
        %v8841 = vunpack.c.h.b16 %v8156
        %v8842 = vunpack.c.l.b16 %v8157
        %v8843 = vunpack.c.h.b16 %v8157
        %v8844 = vunpack.c.l.b16 %v8158
        %v8845 = vunpack.c.h.b16 %v8158
        %v8846 = vunpack.c.l.b16 %v8159
        %v8847 = vunpack.c.h.b16 %v8159
        %v8848 = vunpack.c.l.b16 %v8160
        %v8849 = vunpack.c.h.b16 %v8160
        %v8850 = vunpack.c.l.b16 %v8161
        %v8851 = vunpack.c.h.b16 %v8161
        %v8852 = vunpack.c.l.b16 %v8162
        %v8853 = vunpack.c.h.b16 %v8162
        %v8854 = vunpack.c.l.b16 %v8163
        %v8855 = vunpack.c.h.b16 %v8163
        %v8856 = vunpack.c.l.b16 %v8164
        %v8857 = vunpack.c.h.b16 %v8164
        %v8858 = vunpack.c.l.b16 %v8165
        %v8859 = vunpack.c.h.b16 %v8165
        %v8860 = vunpack.c.l.b16 %v8166
        %v8861 = vunpack.c.h.b16 %v8166
        %v8862 = vunpack.c.l.b16 %v8167
        %v8863 = vunpack.c.h.b16 %v8167
        %v8864 = vunpack.c.l.b16 %v8168
        %v8865 = vunpack.c.h.b16 %v8168
        %v8866 = vunpack.c.l.b16 %v8169
        %v8867 = vunpack.c.h.b16 %v8169
        %v8868 = vunpack.c.l.b16 %v8170
        %v8869 = vunpack.c.h.b16 %v8170
        %v8870 = vunpack.c.l.b16 %v8171
        %v8871 = vunpack.c.h.b16 %v8171
        %v8872 = vunpack.c.l.b16 %v8172
        %v8873 = vunpack.c.h.b16 %v8172
        %v8874 = vunpack.c.l.b16 %v8173
        %v8875 = vunpack.c.h.b16 %v8173
        %v8876 = vunpack.c.l.b16 %v8174
        %v8877 = vunpack.c.h.b16 %v8174
        %v8878 = vunpack.c.l.b16 %v8175
        %v8879 = vunpack.c.h.b16 %v8175
        %v8880 = vunpack.c.l.b16 %v8176
        %v8881 = vunpack.c.h.b16 %v8176
        %v8882 = vunpack.c.l.b16 %v8177
        %v8883 = vunpack.c.h.b16 %v8177
        %v8884 = vunpack.c.l.b16 %v8178
        %v8885 = vunpack.c.h.b16 %v8178
        %v8886 = vunpack.c.l.b16 %v8179
        %v8887 = vunpack.c.h.b16 %v8179
        %v8888 = vunpack.c.l.b16 %v8180
        %v8889 = vunpack.c.h.b16 %v8180
        %v8890 = vunpack.c.l.b16 %v8181
        %v8891 = vunpack.c.h.b16 %v8181
        %v8892 = vunpack.c.l.b16 %v8182
        %v8893 = vunpack.c.h.b16 %v8182
        %v8894 = vunpack.c.l.b16 %v8183
        %v8895 = vunpack.c.h.b16 %v8183
        %v8896 = vunpack.c.l.b16 %v8184
        %v8897 = vunpack.c.h.b16 %v8184
        %v8898 = vunpack.c.l.b16 %v8185
        %v8899 = vunpack.c.h.b16 %v8185
        %v8900 = vunpack.c.l.b16 %v8186
        %v8901 = vunpack.c.h.b16 %v8186
        %v8902 = vunpack.c.l.b16 %v8187
        %v8903 = vunpack.c.h.b16 %v8187
        %v8904 = vunpack.c.l.b16 %v8188
        %v8905 = vunpack.c.h.b16 %v8188
        %v8906 = vunpack.c.l.b16 %v8189
        %v8907 = vunpack.c.h.b16 %v8189
        %v8908 = vunpack.c.l.b16 %v8190
        %v8909 = vunpack.c.h.b16 %v8190
        %v8910 = vunpack.c.l.b16 %v8191
        %v8911 = vunpack.c.h.b16 %v8191
        %v8912 = vunpack.c.l.b16 %v8192
        %v8913 = vunpack.c.h.b16 %v8192
        %v8914 = vunpack.c.l.b16 %v8193
        %v8915 = vunpack.c.h.b16 %v8193
        %v8916 = vunpack.c.l.b16 %v8194
        %v8917 = vunpack.c.h.b16 %v8194
        %v8918 = vunpack.c.l.b16 %v8195
        %v8919 = vunpack.c.h.b16 %v8195
        %v8920 = vunpack.c.l.b16 %v8196
        %v8921 = vunpack.c.h.b16 %v8196
        %v8922 = vunpack.c.l.b16 %v8197
        %v8923 = vunpack.c.h.b16 %v8197
        %v8924 = vunpack.c.l.b16 %v8198
        %v8925 = vunpack.c.h.b16 %v8198
        %v8926 = vunpack.c.l.b16 %v8199
        %v8927 = vunpack.c.h.b16 %v8199
        %v8928 = vunpack.c.l.b16 %v8200
        %v8929 = vunpack.c.h.b16 %v8200
        %v8930 = vunpack.c.l.b16 %v8201
        %v8931 = vunpack.c.h.b16 %v8201
        %v8932 = vunpack.c.l.b16 %v8202
        %v8933 = vunpack.c.h.b16 %v8202
        %v8934 = vunpack.c.l.b16 %v8203
        %v8935 = vunpack.c.h.b16 %v8203
        %v8936 = vunpack.c.l.b16 %v8204
        %v8937 = vunpack.c.h.b16 %v8204
        %v8938 = vunpack.c.l.b16 %v8205
        %v8939 = vunpack.c.h.b16 %v8205
        %v8940 = vunpack.c.l.b16 %v8206
        %v8941 = vunpack.c.h.b16 %v8206
        %v8942 = vunpack.c.l.b16 %v8207
        %v8943 = vunpack.c.h.b16 %v8207
        %v8944 = vunpack.c.l.b16 %v8208
        %v8945 = vunpack.c.h.b16 %v8208
        %v8946 = vunpack.c.l.b16 %v8209
        %v8947 = vunpack.c.h.b16 %v8209
        %v8948 = vunpack.c.l.b16 %v8210
        %v8949 = vunpack.c.h.b16 %v8210
        %v8950 = vunpack.c.l.b16 %v8211
        %v8951 = vunpack.c.h.b16 %v8211
        %v8952 = vunpack.c.l.b16 %v8212
        %v8953 = vunpack.c.h.b16 %v8212
        %v8954 = vunpack.c.l.b16 %v8213
        %v8955 = vunpack.c.h.b16 %v8213
        %v8956 = vunpack.c.l.b16 %v8214
        %v8957 = vunpack.c.h.b16 %v8214
        %v8958 = vunpack.c.l.b16 %v8215
        %v8959 = vunpack.c.h.b16 %v8215
        %v8960 = vunpack.c.l.b16 %v8216
        %v8961 = vunpack.c.h.b16 %v8216
        %v8962 = vunpack.c.l.b16 %v8217
        %v8963 = vunpack.c.h.b16 %v8217
        %v8964 = vunpack.c.l.b16 %v8218
        %v8965 = vunpack.c.h.b16 %v8218
        %v8966 = vunpack.c.l.b16 %v8219
        %v8967 = vunpack.c.h.b16 %v8219
        %v8968 = vunpack.c.l.b16 %v8220
        %v8969 = vunpack.c.h.b16 %v8220
        %v8970 = vunpack.c.l.b16 %v8221
        %v8971 = vunpack.c.h.b16 %v8221
        %v8972 = vunpack.c.l.b16 %v8222
        %v8973 = vunpack.c.h.b16 %v8222
        %v8974 = vunpack.c.l.b16 %v8223
        %v8975 = vunpack.c.h.b16 %v8223
        %v8976 = vunpack.c.l.b16 %v8224
        %v8977 = vunpack.c.h.b16 %v8224
        %v8978 = vunpack.c.l.b16 %v8225
        %v8979 = vunpack.c.h.b16 %v8225
        %v8980 = vunpack.c.l.b16 %v8226
        %v8981 = vunpack.c.h.b16 %v8226
        %v8982 = vunpack.c.l.b16 %v8227
        %v8983 = vunpack.c.h.b16 %v8227
        %v8984 = vunpack.c.l.b16 %v8228
        %v8985 = vunpack.c.h.b16 %v8228
        %v8986 = vunpack.c.l.b16 %v8229
        %v8987 = vunpack.c.h.b16 %v8229
        %v8988 = vunpack.c.l.b16 %v8230
        %v8989 = vunpack.c.h.b16 %v8230
        %v8990 = vunpack.c.l.b16 %v8231
        %v8991 = vunpack.c.h.b16 %v8231
        %v8992 = vunpack.c.l.b16 %v8232
        %v8993 = vunpack.c.h.b16 %v8232
        %v8994 = vunpack.c.l.b16 %v8233
        %v8995 = vunpack.c.h.b16 %v8233
        %v8996 = vunpack.c.l.b16 %v8234
        %v8997 = vunpack.c.h.b16 %v8234
        %v8998 = vunpack.c.l.b16 %v8235
        %v8999 = vunpack.c.h.b16 %v8235
        %v9000 = vunpack.c.l.b16 %v8236
        %v9001 = vunpack.c.h.b16 %v8236
        %v9002 = vunpack.c.l.b16 %v8237
        %v9003 = vunpack.c.h.b16 %v8237
        %v9004 = vunpack.c.l.b16 %v8238
        %v9005 = vunpack.c.h.b16 %v8238
        %v9006 = vunpack.c.l.b16 %v8239
        %v9007 = vunpack.c.h.b16 %v8239
        %v9008 = vunpack.c.l.b16 %v8240
        %v9009 = vunpack.c.h.b16 %v8240
        %v9010 = vunpack.c.l.b16 %v8241
        %v9011 = vunpack.c.h.b16 %v8241
        %v9012 = vunpack.c.l.b16 %v8242
        %v9013 = vunpack.c.h.b16 %v8242
        %v9014 = vunpack.c.l.b16 %v8243
        %v9015 = vunpack.c.h.b16 %v8243
        %v9016 = vunpack.c.l.b16 %v8244
        %v9017 = vunpack.c.h.b16 %v8244
        %v9018 = vunpack.c.l.b16 %v8245
        %v9019 = vunpack.c.h.b16 %v8245
        %v9020 = vunpack.c.l.b16 %v8246
        %v9021 = vunpack.c.h.b16 %v8246
        %v9022 = vunpack.c.l.b16 %v8247
        %v9023 = vunpack.c.h.b16 %v8247
        %v9024 = vunpack.c.l.b16 %v8248
        %v9025 = vunpack.c.h.b16 %v8248
        %v9026 = vunpack.c.l.b16 %v8249
        %v9027 = vunpack.c.h.b16 %v8249
        %v9028 = vunpack.c.l.b16 %v8250
        %v9029 = vunpack.c.h.b16 %v8250
        %v9030 = vunpack.c.l.b16 %v8251
        %v9031 = vunpack.c.h.b16 %v8251
        %v9032 = vunpack.c.l.b16 %v8252
        %v9033 = vunpack.c.h.b16 %v8252
        %v9034 = vunpack.c.l.b16 %v8253
        %v9035 = vunpack.c.h.b16 %v8253
        %v9036 = vunpack.c.l.b16 %v8254
        %v9037 = vunpack.c.h.b16 %v8254
        %v9038 = vunpack.c.l.b16 %v8255
        %v9039 = vunpack.c.h.b16 %v8255
        %v9040 = vunpack.c.l.b16 %v8256
        %v9041 = vunpack.c.h.b16 %v8256
        %v9042 = vunpack.c.l.b16 %v8257
        %v9043 = vunpack.c.h.b16 %v8257
        %v9044 = vpack.c.b16 %v8540, %v8532
        %v9045 = vpack.c.b16 %v8541, %v8533
        %v9046 = vpack.c.b16 %v8542, %v8534
        %v9047 = vpack.c.b16 %v8543, %v8535
        %v9048 = vpack.c.b16 %v8544, %v8536
        %v9049 = vpack.c.b16 %v8545, %v8537
        %v9050 = vpack.c.b16 %v8546, %v8538
        %v9051 = vpack.c.b16 %v8547, %v8539
        %v9052 = vpack.c.b16 %v8556, %v8548
        %v9053 = vpack.c.b16 %v8557, %v8549
        %v9054 = vpack.c.b16 %v8558, %v8550
        %v9055 = vpack.c.b16 %v8559, %v8551
        %v9056 = vpack.c.b16 %v8560, %v8552
        %v9057 = vpack.c.b16 %v8561, %v8553
        %v9058 = vpack.c.b16 %v8562, %v8554
        %v9059 = vpack.c.b16 %v8563, %v8555
        %v9060 = vpack.c.b16 %v8572, %v8564
        %v9061 = vpack.c.b16 %v8573, %v8565
        %v9062 = vpack.c.b16 %v8574, %v8566
        %v9063 = vpack.c.b16 %v8575, %v8567
        %v9064 = vpack.c.b16 %v8576, %v8568
        %v9065 = vpack.c.b16 %v8577, %v8569
        %v9066 = vpack.c.b16 %v8578, %v8570
        %v9067 = vpack.c.b16 %v8579, %v8571
        %v9068 = vpack.c.b16 %v8588, %v8580
        %v9069 = vpack.c.b16 %v8589, %v8581
        %v9070 = vpack.c.b16 %v8590, %v8582
        %v9071 = vpack.c.b16 %v8591, %v8583
        %v9072 = vpack.c.b16 %v8592, %v8584
        %v9073 = vpack.c.b16 %v8593, %v8585
        %v9074 = vpack.c.b16 %v8594, %v8586
        %v9075 = vpack.c.b16 %v8595, %v8587
        %v9076 = vpack.c.b16 %v8604, %v8596
        %v9077 = vpack.c.b16 %v8605, %v8597
        %v9078 = vpack.c.b16 %v8606, %v8598
        %v9079 = vpack.c.b16 %v8607, %v8599
        %v9080 = vpack.c.b16 %v8608, %v8600
        %v9081 = vpack.c.b16 %v8609, %v8601
        %v9082 = vpack.c.b16 %v8610, %v8602
        %v9083 = vpack.c.b16 %v8611, %v8603
        %v9084 = vpack.c.b16 %v8620, %v8612
        %v9085 = vpack.c.b16 %v8621, %v8613
        %v9086 = vpack.c.b16 %v8622, %v8614
        %v9087 = vpack.c.b16 %v8623, %v8615
        %v9088 = vpack.c.b16 %v8624, %v8616
        %v9089 = vpack.c.b16 %v8625, %v8617
        %v9090 = vpack.c.b16 %v8626, %v8618
        %v9091 = vpack.c.b16 %v8627, %v8619
        %v9092 = vpack.c.b16 %v8636, %v8628
        %v9093 = vpack.c.b16 %v8637, %v8629
        %v9094 = vpack.c.b16 %v8638, %v8630
        %v9095 = vpack.c.b16 %v8639, %v8631
        %v9096 = vpack.c.b16 %v8640, %v8632
        %v9097 = vpack.c.b16 %v8641, %v8633
        %v9098 = vpack.c.b16 %v8642, %v8634
        %v9099 = vpack.c.b16 %v8643, %v8635
        %v9100 = vpack.c.b16 %v8652, %v8644
        %v9101 = vpack.c.b16 %v8653, %v8645
        %v9102 = vpack.c.b16 %v8654, %v8646
        %v9103 = vpack.c.b16 %v8655, %v8647
        %v9104 = vpack.c.b16 %v8656, %v8648
        %v9105 = vpack.c.b16 %v8657, %v8649
        %v9106 = vpack.c.b16 %v8658, %v8650
        %v9107 = vpack.c.b16 %v8659, %v8651
        %v9108 = vpack.c.b16 %v8668, %v8660
        %v9109 = vpack.c.b16 %v8669, %v8661
        %v9110 = vpack.c.b16 %v8670, %v8662
        %v9111 = vpack.c.b16 %v8671, %v8663
        %v9112 = vpack.c.b16 %v8672, %v8664
        %v9113 = vpack.c.b16 %v8673, %v8665
        %v9114 = vpack.c.b16 %v8674, %v8666
        %v9115 = vpack.c.b16 %v8675, %v8667
        %v9116 = vpack.c.b16 %v8684, %v8676
        %v9117 = vpack.c.b16 %v8685, %v8677
        %v9118 = vpack.c.b16 %v8686, %v8678
        %v9119 = vpack.c.b16 %v8687, %v8679
        %v9120 = vpack.c.b16 %v8688, %v8680
        %v9121 = vpack.c.b16 %v8689, %v8681
        %v9122 = vpack.c.b16 %v8690, %v8682
        %v9123 = vpack.c.b16 %v8691, %v8683
        %v9124 = vpack.c.b16 %v8700, %v8692
        %v9125 = vpack.c.b16 %v8701, %v8693
        %v9126 = vpack.c.b16 %v8702, %v8694
        %v9127 = vpack.c.b16 %v8703, %v8695
        %v9128 = vpack.c.b16 %v8704, %v8696
        %v9129 = vpack.c.b16 %v8705, %v8697
        %v9130 = vpack.c.b16 %v8706, %v8698
        %v9131 = vpack.c.b16 %v8707, %v8699
        %v9132 = vpack.c.b16 %v8716, %v8708
        %v9133 = vpack.c.b16 %v8717, %v8709
        %v9134 = vpack.c.b16 %v8718, %v8710
        %v9135 = vpack.c.b16 %v8719, %v8711
        %v9136 = vpack.c.b16 %v8720, %v8712
        %v9137 = vpack.c.b16 %v8721, %v8713
        %v9138 = vpack.c.b16 %v8722, %v8714
        %v9139 = vpack.c.b16 %v8723, %v8715
        %v9140 = vpack.c.b16 %v8732, %v8724
        %v9141 = vpack.c.b16 %v8733, %v8725
        %v9142 = vpack.c.b16 %v8734, %v8726
        %v9143 = vpack.c.b16 %v8735, %v8727
        %v9144 = vpack.c.b16 %v8736, %v8728
        %v9145 = vpack.c.b16 %v8737, %v8729
        %v9146 = vpack.c.b16 %v8738, %v8730
        %v9147 = vpack.c.b16 %v8739, %v8731
        %v9148 = vpack.c.b16 %v8748, %v8740
        %v9149 = vpack.c.b16 %v8749, %v8741
        %v9150 = vpack.c.b16 %v8750, %v8742
        %v9151 = vpack.c.b16 %v8751, %v8743
        %v9152 = vpack.c.b16 %v8752, %v8744
        %v9153 = vpack.c.b16 %v8753, %v8745
        %v9154 = vpack.c.b16 %v8754, %v8746
        %v9155 = vpack.c.b16 %v8755, %v8747
        %v9156 = vpack.c.b16 %v8764, %v8756
        %v9157 = vpack.c.b16 %v8765, %v8757
        %v9158 = vpack.c.b16 %v8766, %v8758
        %v9159 = vpack.c.b16 %v8767, %v8759
        %v9160 = vpack.c.b16 %v8768, %v8760
        %v9161 = vpack.c.b16 %v8769, %v8761
        %v9162 = vpack.c.b16 %v8770, %v8762
        %v9163 = vpack.c.b16 %v8771, %v8763
        %v9164 = vpack.c.b16 %v8780, %v8772
        %v9165 = vpack.c.b16 %v8781, %v8773
        %v9166 = vpack.c.b16 %v8782, %v8774
        %v9167 = vpack.c.b16 %v8783, %v8775
        %v9168 = vpack.c.b16 %v8784, %v8776
        %v9169 = vpack.c.b16 %v8785, %v8777
        %v9170 = vpack.c.b16 %v8786, %v8778
        %v9171 = vpack.c.b16 %v8787, %v8779
        %v9172 = vpack.c.b16 %v8796, %v8788
        %v9173 = vpack.c.b16 %v8797, %v8789
        %v9174 = vpack.c.b16 %v8798, %v8790
        %v9175 = vpack.c.b16 %v8799, %v8791
        %v9176 = vpack.c.b16 %v8800, %v8792
        %v9177 = vpack.c.b16 %v8801, %v8793
        %v9178 = vpack.c.b16 %v8802, %v8794
        %v9179 = vpack.c.b16 %v8803, %v8795
        %v9180 = vpack.c.b16 %v8812, %v8804
        %v9181 = vpack.c.b16 %v8813, %v8805
        %v9182 = vpack.c.b16 %v8814, %v8806
        %v9183 = vpack.c.b16 %v8815, %v8807
        %v9184 = vpack.c.b16 %v8816, %v8808
        %v9185 = vpack.c.b16 %v8817, %v8809
        %v9186 = vpack.c.b16 %v8818, %v8810
        %v9187 = vpack.c.b16 %v8819, %v8811
        %v9188 = vpack.c.b16 %v8828, %v8820
        %v9189 = vpack.c.b16 %v8829, %v8821
        %v9190 = vpack.c.b16 %v8830, %v8822
        %v9191 = vpack.c.b16 %v8831, %v8823
        %v9192 = vpack.c.b16 %v8832, %v8824
        %v9193 = vpack.c.b16 %v8833, %v8825
        %v9194 = vpack.c.b16 %v8834, %v8826
        %v9195 = vpack.c.b16 %v8835, %v8827
        %v9196 = vpack.c.b16 %v8844, %v8836
        %v9197 = vpack.c.b16 %v8845, %v8837
        %v9198 = vpack.c.b16 %v8846, %v8838
        %v9199 = vpack.c.b16 %v8847, %v8839
        %v9200 = vpack.c.b16 %v8848, %v8840
        %v9201 = vpack.c.b16 %v8849, %v8841
        %v9202 = vpack.c.b16 %v8850, %v8842
        %v9203 = vpack.c.b16 %v8851, %v8843
        %v9204 = vpack.c.b16 %v8860, %v8852
        %v9205 = vpack.c.b16 %v8861, %v8853
        %v9206 = vpack.c.b16 %v8862, %v8854
        %v9207 = vpack.c.b16 %v8863, %v8855
        %v9208 = vpack.c.b16 %v8864, %v8856
        %v9209 = vpack.c.b16 %v8865, %v8857
        %v9210 = vpack.c.b16 %v8866, %v8858
        %v9211 = vpack.c.b16 %v8867, %v8859
        %v9212 = vpack.c.b16 %v8876, %v8868
        %v9213 = vpack.c.b16 %v8877, %v8869
        %v9214 = vpack.c.b16 %v8878, %v8870
        %v9215 = vpack.c.b16 %v8879, %v8871
        %v9216 = vpack.c.b16 %v8880, %v8872
        %v9217 = vpack.c.b16 %v8881, %v8873
        %v9218 = vpack.c.b16 %v8882, %v8874
        %v9219 = vpack.c.b16 %v8883, %v8875
        %v9220 = vpack.c.b16 %v8892, %v8884
        %v9221 = vpack.c.b16 %v8893, %v8885
        %v9222 = vpack.c.b16 %v8894, %v8886
        %v9223 = vpack.c.b16 %v8895, %v8887
        %v9224 = vpack.c.b16 %v8896, %v8888
        %v9225 = vpack.c.b16 %v8897, %v8889
        %v9226 = vpack.c.b16 %v8898, %v8890
        %v9227 = vpack.c.b16 %v8899, %v8891
        %v9228 = vpack.c.b16 %v8908, %v8900
        %v9229 = vpack.c.b16 %v8909, %v8901
        %v9230 = vpack.c.b16 %v8910, %v8902
        %v9231 = vpack.c.b16 %v8911, %v8903
        %v9232 = vpack.c.b16 %v8912, %v8904
        %v9233 = vpack.c.b16 %v8913, %v8905
        %v9234 = vpack.c.b16 %v8914, %v8906
        %v9235 = vpack.c.b16 %v8915, %v8907
        %v9236 = vpack.c.b16 %v8924, %v8916
        %v9237 = vpack.c.b16 %v8925, %v8917
        %v9238 = vpack.c.b16 %v8926, %v8918
        %v9239 = vpack.c.b16 %v8927, %v8919
        %v9240 = vpack.c.b16 %v8928, %v8920
        %v9241 = vpack.c.b16 %v8929, %v8921
        %v9242 = vpack.c.b16 %v8930, %v8922
        %v9243 = vpack.c.b16 %v8931, %v8923
        %v9244 = vpack.c.b16 %v8940, %v8932
        %v9245 = vpack.c.b16 %v8941, %v8933
        %v9246 = vpack.c.b16 %v8942, %v8934
        %v9247 = vpack.c.b16 %v8943, %v8935
        %v9248 = vpack.c.b16 %v8944, %v8936
        %v9249 = vpack.c.b16 %v8945, %v8937
        %v9250 = vpack.c.b16 %v8946, %v8938
        %v9251 = vpack.c.b16 %v8947, %v8939
        %v9252 = vpack.c.b16 %v8956, %v8948
        %v9253 = vpack.c.b16 %v8957, %v8949
        %v9254 = vpack.c.b16 %v8958, %v8950
        %v9255 = vpack.c.b16 %v8959, %v8951
        %v9256 = vpack.c.b16 %v8960, %v8952
        %v9257 = vpack.c.b16 %v8961, %v8953
        %v9258 = vpack.c.b16 %v8962, %v8954
        %v9259 = vpack.c.b16 %v8963, %v8955
        %v9260 = vpack.c.b16 %v8972, %v8964
        %v9261 = vpack.c.b16 %v8973, %v8965
        %v9262 = vpack.c.b16 %v8974, %v8966
        %v9263 = vpack.c.b16 %v8975, %v8967
        %v9264 = vpack.c.b16 %v8976, %v8968
        %v9265 = vpack.c.b16 %v8977, %v8969
        %v9266 = vpack.c.b16 %v8978, %v8970
        %v9267 = vpack.c.b16 %v8979, %v8971
        %v9268 = vpack.c.b16 %v8988, %v8980
        %v9269 = vpack.c.b16 %v8989, %v8981
        %v9270 = vpack.c.b16 %v8990, %v8982
        %v9271 = vpack.c.b16 %v8991, %v8983
        %v9272 = vpack.c.b16 %v8992, %v8984
        %v9273 = vpack.c.b16 %v8993, %v8985
        %v9274 = vpack.c.b16 %v8994, %v8986
        %v9275 = vpack.c.b16 %v8995, %v8987
        %v9276 = vpack.c.b16 %v9004, %v8996
        %v9277 = vpack.c.b16 %v9005, %v8997
        %v9278 = vpack.c.b16 %v9006, %v8998
        %v9279 = vpack.c.b16 %v9007, %v8999
        %v9280 = vpack.c.b16 %v9008, %v9000
        %v9281 = vpack.c.b16 %v9009, %v9001
        %v9282 = vpack.c.b16 %v9010, %v9002
        %v9283 = vpack.c.b16 %v9011, %v9003
        %v9284 = vpack.c.b16 %v9020, %v9012
        %v9285 = vpack.c.b16 %v9021, %v9013
        %v9286 = vpack.c.b16 %v9022, %v9014
        %v9287 = vpack.c.b16 %v9023, %v9015
        %v9288 = vpack.c.b16 %v9024, %v9016
        %v9289 = vpack.c.b16 %v9025, %v9017
        %v9290 = vpack.c.b16 %v9026, %v9018
        %v9291 = vpack.c.b16 %v9027, %v9019
        %v9292 = vpack.c.b16 %v9036, %v9028
        %v9293 = vpack.c.b16 %v9037, %v9029
        %v9294 = vpack.c.b16 %v9038, %v9030
        %v9295 = vpack.c.b16 %v9039, %v9031
        %v9296 = vpack.c.b16 %v9040, %v9032
        %v9297 = vpack.c.b16 %v9041, %v9033
        %v9298 = vpack.c.b16 %v9042, %v9034
        %v9299 = vpack.c.b16 %v9043, %v9035
        %9556 = vmatpush.bf16.msra.mxu0 %v9100
        %9557 = vmatpush.bf16.msra.mxu0 %v9092
        %9558 = vmatpush.bf16.msra.mxu0 %v9084
        %9559 = vmatpush.bf16.msra.mxu0 %v9076
        %9560 = vmatpush.bf16.msra.mxu0 %v9068
        %9561 = vmatpush.bf16.msra.mxu0 %v9060
        %9562 = vmatpush.bf16.msra.mxu0 %v9052
        %9563 = vmatpush.bf16.msra.mxu0 %v9044
        %9564 = vmatmul.bf16.gmra.mxu0 %v8268
        %v9565 = vpop.f32.mrf.mxu0
        %v9566 = vadd.f32 0.0, %v9565
        %v9567 = vpop.f32.mrf.mxu0
        %9568 = vdwg.mxu0
        %9569 = vmatpush.bf16.msra.mxu0 %v9164
        %9570 = vmatpush.bf16.msra.mxu0 %v9156
        %9571 = vmatpush.bf16.msra.mxu0 %v9148
        %9572 = vmatpush.bf16.msra.mxu0 %v9140
        %9573 = vmatpush.bf16.msra.mxu0 %v9132
        %9574 = vmatpush.bf16.msra.mxu0 %v9124
        %9575 = vmatpush.bf16.msra.mxu0 %v9116
        %9576 = vmatpush.bf16.msra.mxu0 %v9108
        %9577 = vmatmul.bf16.gmra.mxu0 %v8269
        %v9578 = vpop.f32.mrf.mxu0
        %v9579 = vadd.f32 %v9566, %v9578
        %v9580 = vpop.f32.mrf.mxu0
        %9581 = vdwg.mxu0
        %9582 = vmatpush.bf16.msra.mxu0 %v9228
        %9583 = vmatpush.bf16.msra.mxu0 %v9220
        %9584 = vmatpush.bf16.msra.mxu0 %v9212
        %9585 = vmatpush.bf16.msra.mxu0 %v9204
        %9586 = vmatpush.bf16.msra.mxu0 %v9196
        %9587 = vmatpush.bf16.msra.mxu0 %v9188
        %9588 = vmatpush.bf16.msra.mxu0 %v9180
        %9589 = vmatpush.bf16.msra.mxu0 %v9172
        %9590 = vmatmul.bf16.gmra.mxu0 %v8270
        %v9591 = vpop.f32.mrf.mxu0
        %v9592 = vadd.f32 %v9579, %v9591
        %v9593 = vpop.f32.mrf.mxu0
        %9594 = vdwg.mxu0
        %9595 = vmatpush.bf16.msra.mxu0 %v9292
        %9596 = vmatpush.bf16.msra.mxu0 %v9284
        %9597 = vmatpush.bf16.msra.mxu0 %v9276
        %9598 = vmatpush.bf16.msra.mxu0 %v9268
        %9599 = vmatpush.bf16.msra.mxu0 %v9260
        %9600 = vmatpush.bf16.msra.mxu0 %v9252
        %9601 = vmatpush.bf16.msra.mxu0 %v9244
        %9602 = vmatpush.bf16.msra.mxu0 %v9236
        %9603 = vmatmul.bf16.gmra.mxu0 %v8271
        %v9604 = vpop.f32.mrf.mxu0
        %v9605 = vadd.f32 %v9592, %v9604
        %v9606 = vpop.f32.mrf.mxu0
        %9607 = vdwg.mxu0
        %9608 = vmatpush.bf16.msra.mxu0 %v9101
        %9609 = vmatpush.bf16.msra.mxu0 %v9093
        %9610 = vmatpush.bf16.msra.mxu0 %v9085
        %9611 = vmatpush.bf16.msra.mxu0 %v9077
        %9612 = vmatpush.bf16.msra.mxu0 %v9069
        %9613 = vmatpush.bf16.msra.mxu0 %v9061
        %9614 = vmatpush.bf16.msra.mxu0 %v9053
        %9615 = vmatpush.bf16.msra.mxu0 %v9045
        %9616 = vmatmul.bf16.gmra.mxu0 %v8268
        %v9617 = vpop.f32.mrf.mxu0
        %v9618 = vadd.f32 0.0, %v9617
        %v9619 = vpop.f32.mrf.mxu0
        %9620 = vdwg.mxu0
        %9621 = vmatpush.bf16.msra.mxu0 %v9165
        %9622 = vmatpush.bf16.msra.mxu0 %v9157
        %9623 = vmatpush.bf16.msra.mxu0 %v9149
        %9624 = vmatpush.bf16.msra.mxu0 %v9141
        %9625 = vmatpush.bf16.msra.mxu0 %v9133
        %9626 = vmatpush.bf16.msra.mxu0 %v9125
        %9627 = vmatpush.bf16.msra.mxu0 %v9117
        %9628 = vmatpush.bf16.msra.mxu0 %v9109
        %9629 = vmatmul.bf16.gmra.mxu0 %v8269
        %v9630 = vpop.f32.mrf.mxu0
        %v9631 = vadd.f32 %v9618, %v9630
        %v9632 = vpop.f32.mrf.mxu0
        %9633 = vdwg.mxu0
        %9634 = vmatpush.bf16.msra.mxu0 %v9229
        %9635 = vmatpush.bf16.msra.mxu0 %v9221
        %9636 = vmatpush.bf16.msra.mxu0 %v9213
        %9637 = vmatpush.bf16.msra.mxu0 %v9205
        %9638 = vmatpush.bf16.msra.mxu0 %v9197
        %9639 = vmatpush.bf16.msra.mxu0 %v9189
        %9640 = vmatpush.bf16.msra.mxu0 %v9181
        %9641 = vmatpush.bf16.msra.mxu0 %v9173
        %9642 = vmatmul.bf16.gmra.mxu0 %v8270
        %v9643 = vpop.f32.mrf.mxu0
        %v9644 = vadd.f32 %v9631, %v9643
        %v9645 = vpop.f32.mrf.mxu0
        %9646 = vdwg.mxu0
        %9647 = vmatpush.bf16.msra.mxu0 %v9293
        %9648 = vmatpush.bf16.msra.mxu0 %v9285
        %9649 = vmatpush.bf16.msra.mxu0 %v9277
        %9650 = vmatpush.bf16.msra.mxu0 %v9269
        %9651 = vmatpush.bf16.msra.mxu0 %v9261
        %9652 = vmatpush.bf16.msra.mxu0 %v9253
        %9653 = vmatpush.bf16.msra.mxu0 %v9245
        %9654 = vmatpush.bf16.msra.mxu0 %v9237
        %9655 = vmatmul.bf16.gmra.mxu0 %v8271
        %v9656 = vpop.f32.mrf.mxu0
        %v9657 = vadd.f32 %v9644, %v9656
        %v9658 = vpop.f32.mrf.mxu0
        %9659 = vdwg.mxu0
        %9660 = vmatpush.bf16.msra.mxu0 %v9102
        %9661 = vmatpush.bf16.msra.mxu0 %v9094
        %9662 = vmatpush.bf16.msra.mxu0 %v9086
        %9663 = vmatpush.bf16.msra.mxu0 %v9078
        %9664 = vmatpush.bf16.msra.mxu0 %v9070
        %9665 = vmatpush.bf16.msra.mxu0 %v9062
        %9666 = vmatpush.bf16.msra.mxu0 %v9054
        %9667 = vmatpush.bf16.msra.mxu0 %v9046
        %9668 = vmatmul.bf16.gmra.mxu0 %v8268
        %v9669 = vpop.f32.mrf.mxu0
        %v9670 = vadd.f32 0.0, %v9669
        %v9671 = vpop.f32.mrf.mxu0
        %9672 = vdwg.mxu0
        %9673 = vmatpush.bf16.msra.mxu0 %v9166
        %9674 = vmatpush.bf16.msra.mxu0 %v9158
        %9675 = vmatpush.bf16.msra.mxu0 %v9150
        %9676 = vmatpush.bf16.msra.mxu0 %v9142
        %9677 = vmatpush.bf16.msra.mxu0 %v9134
        %9678 = vmatpush.bf16.msra.mxu0 %v9126
        %9679 = vmatpush.bf16.msra.mxu0 %v9118
        %9680 = vmatpush.bf16.msra.mxu0 %v9110
        %9681 = vmatmul.bf16.gmra.mxu0 %v8269
        %v9682 = vpop.f32.mrf.mxu0
        %v9683 = vadd.f32 %v9670, %v9682
        %v9684 = vpop.f32.mrf.mxu0
        %9685 = vdwg.mxu0
        %9686 = vmatpush.bf16.msra.mxu0 %v9230
        %9687 = vmatpush.bf16.msra.mxu0 %v9222
        %9688 = vmatpush.bf16.msra.mxu0 %v9214
        %9689 = vmatpush.bf16.msra.mxu0 %v9206
        %9690 = vmatpush.bf16.msra.mxu0 %v9198
        %9691 = vmatpush.bf16.msra.mxu0 %v9190
        %9692 = vmatpush.bf16.msra.mxu0 %v9182
        %9693 = vmatpush.bf16.msra.mxu0 %v9174
        %9694 = vmatmul.bf16.gmra.mxu0 %v8270
        %v9695 = vpop.f32.mrf.mxu0
        %v9696 = vadd.f32 %v9683, %v9695
        %v9697 = vpop.f32.mrf.mxu0
        %9698 = vdwg.mxu0
        %9699 = vmatpush.bf16.msra.mxu0 %v9294
        %9700 = vmatpush.bf16.msra.mxu0 %v9286
        %9701 = vmatpush.bf16.msra.mxu0 %v9278
        %9702 = vmatpush.bf16.msra.mxu0 %v9270
        %9703 = vmatpush.bf16.msra.mxu0 %v9262
        %9704 = vmatpush.bf16.msra.mxu0 %v9254
        %9705 = vmatpush.bf16.msra.mxu0 %v9246
        %9706 = vmatpush.bf16.msra.mxu0 %v9238
        %9707 = vmatmul.bf16.gmra.mxu0 %v8271
        %v9708 = vpop.f32.mrf.mxu0
        %v9709 = vadd.f32 %v9696, %v9708
        %v9710 = vpop.f32.mrf.mxu0
        %9711 = vdwg.mxu0
        %9712 = vmatpush.bf16.msra.mxu0 %v9103
        %9713 = vmatpush.bf16.msra.mxu0 %v9095
        %9714 = vmatpush.bf16.msra.mxu0 %v9087
        %9715 = vmatpush.bf16.msra.mxu0 %v9079
        %9716 = vmatpush.bf16.msra.mxu0 %v9071
        %9717 = vmatpush.bf16.msra.mxu0 %v9063
        %9718 = vmatpush.bf16.msra.mxu0 %v9055
        %9719 = vmatpush.bf16.msra.mxu0 %v9047
        %9720 = vmatmul.bf16.gmra.mxu0 %v8268
        %v9721 = vpop.f32.mrf.mxu0
        %v9722 = vadd.f32 0.0, %v9721
        %v9723 = vpop.f32.mrf.mxu0
        %9724 = vdwg.mxu0
        %9725 = vmatpush.bf16.msra.mxu0 %v9167
        %9726 = vmatpush.bf16.msra.mxu0 %v9159
        %9727 = vmatpush.bf16.msra.mxu0 %v9151
        %9728 = vmatpush.bf16.msra.mxu0 %v9143
        %9729 = vmatpush.bf16.msra.mxu0 %v9135
        %9730 = vmatpush.bf16.msra.mxu0 %v9127
        %9731 = vmatpush.bf16.msra.mxu0 %v9119
        %9732 = vmatpush.bf16.msra.mxu0 %v9111
        %9733 = vmatmul.bf16.gmra.mxu0 %v8269
        %v9734 = vpop.f32.mrf.mxu0
        %v9735 = vadd.f32 %v9722, %v9734
        %v9736 = vpop.f32.mrf.mxu0
        %9737 = vdwg.mxu0
        %9738 = vmatpush.bf16.msra.mxu0 %v9231
        %9739 = vmatpush.bf16.msra.mxu0 %v9223
        %9740 = vmatpush.bf16.msra.mxu0 %v9215
        %9741 = vmatpush.bf16.msra.mxu0 %v9207
        %9742 = vmatpush.bf16.msra.mxu0 %v9199
        %9743 = vmatpush.bf16.msra.mxu0 %v9191
        %9744 = vmatpush.bf16.msra.mxu0 %v9183
        %9745 = vmatpush.bf16.msra.mxu0 %v9175
        %9746 = vmatmul.bf16.gmra.mxu0 %v8270
        %v9747 = vpop.f32.mrf.mxu0
        %v9748 = vadd.f32 %v9735, %v9747
        %v9749 = vpop.f32.mrf.mxu0
        %9750 = vdwg.mxu0
        %9751 = vmatpush.bf16.msra.mxu0 %v9295
        %9752 = vmatpush.bf16.msra.mxu0 %v9287
        %9753 = vmatpush.bf16.msra.mxu0 %v9279
        %9754 = vmatpush.bf16.msra.mxu0 %v9271
        %9755 = vmatpush.bf16.msra.mxu0 %v9263
        %9756 = vmatpush.bf16.msra.mxu0 %v9255
        %9757 = vmatpush.bf16.msra.mxu0 %v9247
        %9758 = vmatpush.bf16.msra.mxu0 %v9239
        %9759 = vmatmul.bf16.gmra.mxu0 %v8271
        %v9760 = vpop.f32.mrf.mxu0
        %v9761 = vadd.f32 %v9748, %v9760
        %v9762 = vpop.f32.mrf.mxu0
        %9763 = vdwg.mxu0
        %9764 = vmatpush.bf16.msra.mxu0 %v9104
        %9765 = vmatpush.bf16.msra.mxu0 %v9096
        %9766 = vmatpush.bf16.msra.mxu0 %v9088
        %9767 = vmatpush.bf16.msra.mxu0 %v9080
        %9768 = vmatpush.bf16.msra.mxu0 %v9072
        %9769 = vmatpush.bf16.msra.mxu0 %v9064
        %9770 = vmatpush.bf16.msra.mxu0 %v9056
        %9771 = vmatpush.bf16.msra.mxu0 %v9048
        %9772 = vmatmul.bf16.gmra.mxu0 %v8268
        %v9773 = vpop.f32.mrf.mxu0
        %v9774 = vadd.f32 0.0, %v9773
        %v9775 = vpop.f32.mrf.mxu0
        %9776 = vdwg.mxu0
        %9777 = vmatpush.bf16.msra.mxu0 %v9168
        %9778 = vmatpush.bf16.msra.mxu0 %v9160
        %9779 = vmatpush.bf16.msra.mxu0 %v9152
        %9780 = vmatpush.bf16.msra.mxu0 %v9144
        %9781 = vmatpush.bf16.msra.mxu0 %v9136
        %9782 = vmatpush.bf16.msra.mxu0 %v9128
        %9783 = vmatpush.bf16.msra.mxu0 %v9120
        %9784 = vmatpush.bf16.msra.mxu0 %v9112
        %9785 = vmatmul.bf16.gmra.mxu0 %v8269
        %v9786 = vpop.f32.mrf.mxu0
        %v9787 = vadd.f32 %v9774, %v9786
        %v9788 = vpop.f32.mrf.mxu0
        %9789 = vdwg.mxu0
        %9790 = vmatpush.bf16.msra.mxu0 %v9232
        %9791 = vmatpush.bf16.msra.mxu0 %v9224
        %9792 = vmatpush.bf16.msra.mxu0 %v9216
        %9793 = vmatpush.bf16.msra.mxu0 %v9208
        %9794 = vmatpush.bf16.msra.mxu0 %v9200
        %9795 = vmatpush.bf16.msra.mxu0 %v9192
        %9796 = vmatpush.bf16.msra.mxu0 %v9184
        %9797 = vmatpush.bf16.msra.mxu0 %v9176
        %9798 = vmatmul.bf16.gmra.mxu0 %v8270
        %v9799 = vpop.f32.mrf.mxu0
        %v9800 = vadd.f32 %v9787, %v9799
        %v9801 = vpop.f32.mrf.mxu0
        %9802 = vdwg.mxu0
        %9803 = vmatpush.bf16.msra.mxu0 %v9296
        %9804 = vmatpush.bf16.msra.mxu0 %v9288
        %9805 = vmatpush.bf16.msra.mxu0 %v9280
        %9806 = vmatpush.bf16.msra.mxu0 %v9272
        %9807 = vmatpush.bf16.msra.mxu0 %v9264
        %9808 = vmatpush.bf16.msra.mxu0 %v9256
        %9809 = vmatpush.bf16.msra.mxu0 %v9248
        %9810 = vmatpush.bf16.msra.mxu0 %v9240
        %9811 = vmatmul.bf16.gmra.mxu0 %v8271
        %v9812 = vpop.f32.mrf.mxu0
        %v9813 = vadd.f32 %v9800, %v9812
        %v9814 = vpop.f32.mrf.mxu0
        %9815 = vdwg.mxu0
        %9816 = vmatpush.bf16.msra.mxu0 %v9105
        %9817 = vmatpush.bf16.msra.mxu0 %v9097
        %9818 = vmatpush.bf16.msra.mxu0 %v9089
        %9819 = vmatpush.bf16.msra.mxu0 %v9081
        %9820 = vmatpush.bf16.msra.mxu0 %v9073
        %9821 = vmatpush.bf16.msra.mxu0 %v9065
        %9822 = vmatpush.bf16.msra.mxu0 %v9057
        %9823 = vmatpush.bf16.msra.mxu0 %v9049
        %9824 = vmatmul.bf16.gmra.mxu0 %v8268
        %v9825 = vpop.f32.mrf.mxu0
        %v9826 = vadd.f32 0.0, %v9825
        %v9827 = vpop.f32.mrf.mxu0
        %9828 = vdwg.mxu0
        %9829 = vmatpush.bf16.msra.mxu0 %v9169
        %9830 = vmatpush.bf16.msra.mxu0 %v9161
        %9831 = vmatpush.bf16.msra.mxu0 %v9153
        %9832 = vmatpush.bf16.msra.mxu0 %v9145
        %9833 = vmatpush.bf16.msra.mxu0 %v9137
        %9834 = vmatpush.bf16.msra.mxu0 %v9129
        %9835 = vmatpush.bf16.msra.mxu0 %v9121
        %9836 = vmatpush.bf16.msra.mxu0 %v9113
        %9837 = vmatmul.bf16.gmra.mxu0 %v8269
        %v9838 = vpop.f32.mrf.mxu0
        %v9839 = vadd.f32 %v9826, %v9838
        %v9840 = vpop.f32.mrf.mxu0
        %9841 = vdwg.mxu0
        %9842 = vmatpush.bf16.msra.mxu0 %v9233
        %9843 = vmatpush.bf16.msra.mxu0 %v9225
        %9844 = vmatpush.bf16.msra.mxu0 %v9217
        %9845 = vmatpush.bf16.msra.mxu0 %v9209
        %9846 = vmatpush.bf16.msra.mxu0 %v9201
        %9847 = vmatpush.bf16.msra.mxu0 %v9193
        %9848 = vmatpush.bf16.msra.mxu0 %v9185
        %9849 = vmatpush.bf16.msra.mxu0 %v9177
        %9850 = vmatmul.bf16.gmra.mxu0 %v8270
        %v9851 = vpop.f32.mrf.mxu0
        %v9852 = vadd.f32 %v9839, %v9851
        %v9853 = vpop.f32.mrf.mxu0
        %9854 = vdwg.mxu0
        %9855 = vmatpush.bf16.msra.mxu0 %v9297
        %9856 = vmatpush.bf16.msra.mxu0 %v9289
        %9857 = vmatpush.bf16.msra.mxu0 %v9281
        %9858 = vmatpush.bf16.msra.mxu0 %v9273
        %9859 = vmatpush.bf16.msra.mxu0 %v9265
        %9860 = vmatpush.bf16.msra.mxu0 %v9257
        %9861 = vmatpush.bf16.msra.mxu0 %v9249
        %9862 = vmatpush.bf16.msra.mxu0 %v9241
        %9863 = vmatmul.bf16.gmra.mxu0 %v8271
        %v9864 = vpop.f32.mrf.mxu0
        %v9865 = vadd.f32 %v9852, %v9864
        %v9866 = vpop.f32.mrf.mxu0
        %9867 = vdwg.mxu0
        %9868 = vmatpush.bf16.msra.mxu0 %v9106
        %9869 = vmatpush.bf16.msra.mxu0 %v9098
        %9870 = vmatpush.bf16.msra.mxu0 %v9090
        %9871 = vmatpush.bf16.msra.mxu0 %v9082
        %9872 = vmatpush.bf16.msra.mxu0 %v9074
        %9873 = vmatpush.bf16.msra.mxu0 %v9066
        %9874 = vmatpush.bf16.msra.mxu0 %v9058
        %9875 = vmatpush.bf16.msra.mxu0 %v9050
        %9876 = vmatmul.bf16.gmra.mxu0 %v8268
        %v9877 = vpop.f32.mrf.mxu0
        %v9878 = vadd.f32 0.0, %v9877
        %v9879 = vpop.f32.mrf.mxu0
        %9880 = vdwg.mxu0
        %9881 = vmatpush.bf16.msra.mxu0 %v9170
        %9882 = vmatpush.bf16.msra.mxu0 %v9162
        %9883 = vmatpush.bf16.msra.mxu0 %v9154
        %9884 = vmatpush.bf16.msra.mxu0 %v9146
        %9885 = vmatpush.bf16.msra.mxu0 %v9138
        %9886 = vmatpush.bf16.msra.mxu0 %v9130
        %9887 = vmatpush.bf16.msra.mxu0 %v9122
        %9888 = vmatpush.bf16.msra.mxu0 %v9114
        %9889 = vmatmul.bf16.gmra.mxu0 %v8269
        %v9890 = vpop.f32.mrf.mxu0
        %v9891 = vadd.f32 %v9878, %v9890
        %v9892 = vpop.f32.mrf.mxu0
        %9893 = vdwg.mxu0
        %9894 = vmatpush.bf16.msra.mxu0 %v9234
        %9895 = vmatpush.bf16.msra.mxu0 %v9226
        %9896 = vmatpush.bf16.msra.mxu0 %v9218
        %9897 = vmatpush.bf16.msra.mxu0 %v9210
        %9898 = vmatpush.bf16.msra.mxu0 %v9202
        %9899 = vmatpush.bf16.msra.mxu0 %v9194
        %9900 = vmatpush.bf16.msra.mxu0 %v9186
        %9901 = vmatpush.bf16.msra.mxu0 %v9178
        %9902 = vmatmul.bf16.gmra.mxu0 %v8270
        %v9903 = vpop.f32.mrf.mxu0
        %v9904 = vadd.f32 %v9891, %v9903
        %v9905 = vpop.f32.mrf.mxu0
        %9906 = vdwg.mxu0
        %9907 = vmatpush.bf16.msra.mxu0 %v9298
        %9908 = vmatpush.bf16.msra.mxu0 %v9290
        %9909 = vmatpush.bf16.msra.mxu0 %v9282
        %9910 = vmatpush.bf16.msra.mxu0 %v9274
        %9911 = vmatpush.bf16.msra.mxu0 %v9266
        %9912 = vmatpush.bf16.msra.mxu0 %v9258
        %9913 = vmatpush.bf16.msra.mxu0 %v9250
        %9914 = vmatpush.bf16.msra.mxu0 %v9242
        %9915 = vmatmul.bf16.gmra.mxu0 %v8271
        %v9916 = vpop.f32.mrf.mxu0
        %v9917 = vadd.f32 %v9904, %v9916
        %v9918 = vpop.f32.mrf.mxu0
        %9919 = vdwg.mxu0
        %9920 = vmatpush.bf16.msra.mxu0 %v9107
        %9921 = vmatpush.bf16.msra.mxu0 %v9099
        %9922 = vmatpush.bf16.msra.mxu0 %v9091
        %9923 = vmatpush.bf16.msra.mxu0 %v9083
        %9924 = vmatpush.bf16.msra.mxu0 %v9075
        %9925 = vmatpush.bf16.msra.mxu0 %v9067
        %9926 = vmatpush.bf16.msra.mxu0 %v9059
        %9927 = vmatpush.bf16.msra.mxu0 %v9051
        %9928 = vmatmul.bf16.gmra.mxu0 %v8268
        %v9929 = vpop.f32.mrf.mxu0
        %v9930 = vadd.f32 0.0, %v9929
        %v9931 = vpop.f32.mrf.mxu0
        %9932 = vdwg.mxu0
        %9933 = vmatpush.bf16.msra.mxu0 %v9171
        %9934 = vmatpush.bf16.msra.mxu0 %v9163
        %9935 = vmatpush.bf16.msra.mxu0 %v9155
        %9936 = vmatpush.bf16.msra.mxu0 %v9147
        %9937 = vmatpush.bf16.msra.mxu0 %v9139
        %9938 = vmatpush.bf16.msra.mxu0 %v9131
        %9939 = vmatpush.bf16.msra.mxu0 %v9123
        %9940 = vmatpush.bf16.msra.mxu0 %v9115
        %9941 = vmatmul.bf16.gmra.mxu0 %v8269
        %v9942 = vpop.f32.mrf.mxu0
        %v9943 = vadd.f32 %v9930, %v9942
        %v9944 = vpop.f32.mrf.mxu0
        %9945 = vdwg.mxu0
        %9946 = vmatpush.bf16.msra.mxu0 %v9235
        %9947 = vmatpush.bf16.msra.mxu0 %v9227
        %9948 = vmatpush.bf16.msra.mxu0 %v9219
        %9949 = vmatpush.bf16.msra.mxu0 %v9211
        %9950 = vmatpush.bf16.msra.mxu0 %v9203
        %9951 = vmatpush.bf16.msra.mxu0 %v9195
        %9952 = vmatpush.bf16.msra.mxu0 %v9187
        %9953 = vmatpush.bf16.msra.mxu0 %v9179
        %9954 = vmatmul.bf16.gmra.mxu0 %v8270
        %v9955 = vpop.f32.mrf.mxu0
        %v9956 = vadd.f32 %v9943, %v9955
        %v9957 = vpop.f32.mrf.mxu0
        %9958 = vdwg.mxu0
        %9959 = vmatpush.bf16.msra.mxu0 %v9299
        %9960 = vmatpush.bf16.msra.mxu0 %v9291
        %9961 = vmatpush.bf16.msra.mxu0 %v9283
        %9962 = vmatpush.bf16.msra.mxu0 %v9275
        %9963 = vmatpush.bf16.msra.mxu0 %v9267
        %9964 = vmatpush.bf16.msra.mxu0 %v9259
        %9965 = vmatpush.bf16.msra.mxu0 %v9251
        %9966 = vmatpush.bf16.msra.mxu0 %v9243
        %9967 = vmatmul.bf16.gmra.mxu0 %v8271
        %v9968 = vpop.f32.mrf.mxu0
        %v9969 = vadd.f32 %v9956, %v9968
        %v9970 = vpop.f32.mrf.mxu0
        %9971 = vdwg.mxu0
        %v9972 = vadd.f32 %v7633, %v9605
        %v9973 = vadd.f32 %v7685, %v9657
        %v9974 = vadd.f32 %v7737, %v9709
        %v9975 = vadd.f32 %v7789, %v9761
        %v9976 = vadd.f32 %v7841, %v9813
        %v9977 = vadd.f32 %v7893, %v9865
        %v9978 = vadd.f32 %v7945, %v9917
        %v9979 = vadd.f32 %v7997, %v9969
        %v9980 = vld [vmem:[#allocation13] sm:$0xff]
        %v9982 = vperm.slane %v9980, 0
        %v9983 = vperm.slane %v9980, 1
        %v9984 = vperm.slane %v9980, 2
        %v9985 = vperm.slane %v9980, 3
        %v9986 = vperm.slane %v9980, 4
        %v9987 = vperm.slane %v9980, 5
        %v9988 = vperm.slane %v9980, 6
        %v9989 = vperm.slane %v9980, 7
        %v9998 = vadd.f32 %v9972, %v9982
        %v9999 = vadd.f32 %v9973, %v9983
        %v10000 = vadd.f32 %v9974, %v9984
        %v10001 = vadd.f32 %v9975, %v9985
        %v10002 = vadd.f32 %v9976, %v9986
        %v10003 = vadd.f32 %v9977, %v9987
        %v10004 = vadd.f32 %v9978, %v9988
        %v10005 = vadd.f32 %v9979, %v9989
        %v10006 = vmax.f32 %v9998, 0.0
        %v10007 = vmax.f32 %v9999, 0.0
        %v10008 = vmax.f32 %v10000, 0.0
        %v10009 = vmax.f32 %v10001, 0.0
        %v10010 = vmax.f32 %v10002, 0.0
        %v10011 = vmax.f32 %v10003, 0.0
        %v10012 = vmax.f32 %v10004, 0.0
        %v10013 = vmax.f32 %v10005, 0.0
        %v10022 = vrot.slane %v10006, 1
        %v10023 = vrot.slane %v10007, 1
        %v10024 = vrot.slane %v10008, 1
        %v10025 = vrot.slane %v10009, 1
        %v10026 = vrot.slane %v10010, 1
        %v10027 = vrot.slane %v10011, 1
        %v10028 = vrot.slane %v10012, 1
        %v10029 = vrot.slane %v10013, 1
        %v10038 = vmax.f32 %v10006, %v10022
        %v10039 = vmax.f32 %v10007, %v10023
        %v10040 = vmax.f32 %v10008, %v10024
        %v10041 = vmax.f32 %v10009, %v10025
        %v10042 = vmax.f32 %v10010, %v10026
        %v10043 = vmax.f32 %v10011, %v10027
        %v10044 = vmax.f32 %v10012, %v10028
        %v10045 = vmax.f32 %v10013, %v10029
        %v10046 = vmax.f32 %v10038, %v10042
        %v10047 = vmax.f32 %v10039, %v10043
        %v10048 = vmax.f32 %v10040, %v10044
        %v10049 = vmax.f32 %v10041, %v10045
        %v10050 = vpack.c.bf16 %v10046, %v10046
        %v10051 = vpack.c.bf16 %v10047, %v10047
        %v10052 = vpack.c.bf16 %v10048, %v10048
        %v10053 = vpack.c.bf16 %v10049, %v10049
        %v10054 = vld [vmem:[#allocation15] sm:$0xf]
        %v10055 = vld [vmem:[#allocation15 + $0x4] sm:$0xf]
        %v10056 = vld [vmem:[#allocation15 + $0x8] sm:$0xf]
        %v10057 = vld [vmem:[#allocation15 + $0xc] sm:$0xf]
        %v10058 = vld [vmem:[#allocation15 + $0x10] sm:$0xf]
        %v10059 = vld [vmem:[#allocation15 + $0x14] sm:$0xf]
        %v10060 = vld [vmem:[#allocation15 + $0x18] sm:$0xf]
        %v10061 = vld [vmem:[#allocation15 + $0x1c] sm:$0xf]
        %v10062 = vld [vmem:[#allocation15 + $0x20] sm:$0xf]
        %v10063 = vld [vmem:[#allocation15 + $0x24] sm:$0xf]
        %v10064 = vld [vmem:[#allocation15 + $0x28] sm:$0xf]
        %v10065 = vld [vmem:[#allocation15 + $0x2c] sm:$0xf]
        %v10066 = vld [vmem:[#allocation15 + $0x30] sm:$0xf]
        %v10067 = vld [vmem:[#allocation15 + $0x34] sm:$0xf]
        %v10068 = vld [vmem:[#allocation15 + $0x38] sm:$0xf]
        %v10069 = vld [vmem:[#allocation15 + $0x3c] sm:$0xf]
        %v10070 = vld [vmem:[#allocation15 + $0x40] sm:$0xf]
        %v10071 = vld [vmem:[#allocation15 + $0x44] sm:$0xf]
        %v10072 = vld [vmem:[#allocation15 + $0x48] sm:$0xf]
        %v10073 = vld [vmem:[#allocation15 + $0x4c] sm:$0xf]
        %v10074 = vld [vmem:[#allocation15 + $0x50] sm:$0xf]
        %v10075 = vld [vmem:[#allocation15 + $0x54] sm:$0xf]
        %v10076 = vld [vmem:[#allocation15 + $0x58] sm:$0xf]
        %v10077 = vld [vmem:[#allocation15 + $0x5c] sm:$0xf]
        %v10078 = vld [vmem:[#allocation15 + $0x60] sm:$0xf]
        %v10079 = vld [vmem:[#allocation15 + $0x64] sm:$0xf]
        %v10080 = vld [vmem:[#allocation15 + $0x68] sm:$0xf]
        %v10081 = vld [vmem:[#allocation15 + $0x6c] sm:$0xf]
        %v10082 = vld [vmem:[#allocation15 + $0x70] sm:$0xf]
        %v10083 = vld [vmem:[#allocation15 + $0x74] sm:$0xf]
        %v10084 = vld [vmem:[#allocation15 + $0x78] sm:$0xf]
        %v10085 = vld [vmem:[#allocation15 + $0x7c] sm:$0xf]
        %v10086 = vld [vmem:[#allocation15 + $0x80] sm:$0xf]
        %v10087 = vld [vmem:[#allocation15 + $0x84] sm:$0xf]
        %v10088 = vld [vmem:[#allocation15 + $0x88] sm:$0xf]
        %v10089 = vld [vmem:[#allocation15 + $0x8c] sm:$0xf]
        %v10090 = vld [vmem:[#allocation15 + $0x90] sm:$0xf]
        %v10091 = vld [vmem:[#allocation15 + $0x94] sm:$0xf]
        %v10092 = vld [vmem:[#allocation15 + $0x98] sm:$0xf]
        %v10093 = vld [vmem:[#allocation15 + $0x9c] sm:$0xf]
        %v10094 = vld [vmem:[#allocation15 + $0xa0] sm:$0xf]
        %v10095 = vld [vmem:[#allocation15 + $0xa4] sm:$0xf]
        %v10096 = vld [vmem:[#allocation15 + $0xa8] sm:$0xf]
        %v10097 = vld [vmem:[#allocation15 + $0xac] sm:$0xf]
        %v10098 = vld [vmem:[#allocation15 + $0xb0] sm:$0xf]
        %v10099 = vld [vmem:[#allocation15 + $0xb4] sm:$0xf]
        %v10100 = vld [vmem:[#allocation15 + $0xb8] sm:$0xf]
        %v10101 = vld [vmem:[#allocation15 + $0xbc] sm:$0xf]
        %v10102 = vld [vmem:[#allocation15 + $0xc0] sm:$0xf]
        %v10103 = vld [vmem:[#allocation15 + $0xc4] sm:$0xf]
        %v10104 = vld [vmem:[#allocation15 + $0xc8] sm:$0xf]
        %v10105 = vld [vmem:[#allocation15 + $0xcc] sm:$0xf]
        %v10106 = vld [vmem:[#allocation15 + $0xd0] sm:$0xf]
        %v10107 = vld [vmem:[#allocation15 + $0xd4] sm:$0xf]
        %v10108 = vld [vmem:[#allocation15 + $0xd8] sm:$0xf]
        %v10109 = vld [vmem:[#allocation15 + $0xdc] sm:$0xf]
        %v10110 = vld [vmem:[#allocation15 + $0xe0] sm:$0xf]
        %v10111 = vld [vmem:[#allocation15 + $0xe4] sm:$0xf]
        %v10112 = vld [vmem:[#allocation15 + $0xe8] sm:$0xf]
        %v10113 = vld [vmem:[#allocation15 + $0xec] sm:$0xf]
        %v10114 = vld [vmem:[#allocation15 + $0xf0] sm:$0xf]
        %v10115 = vld [vmem:[#allocation15 + $0xf4] sm:$0xf]
        %v10116 = vld [vmem:[#allocation15 + $0xf8] sm:$0xf]
        %v10117 = vld [vmem:[#allocation15 + $0xfc] sm:$0xf]
        %v10118 = vld [vmem:[#allocation16] sm:$0x1]
        %v10183 = vunpack.c.l.b16 %v10054
        %v10184 = vunpack.c.l.b16 %v10055
        %v10185 = vunpack.c.l.b16 %v10056
        %v10186 = vunpack.c.l.b16 %v10057
        %v10187 = vunpack.c.l.b16 %v10058
        %v10188 = vunpack.c.l.b16 %v10059
        %v10189 = vunpack.c.l.b16 %v10060
        %v10190 = vunpack.c.l.b16 %v10061
        %v10191 = vunpack.c.l.b16 %v10062
        %v10192 = vunpack.c.l.b16 %v10063
        %v10193 = vunpack.c.l.b16 %v10064
        %v10194 = vunpack.c.l.b16 %v10065
        %v10195 = vunpack.c.l.b16 %v10066
        %v10196 = vunpack.c.l.b16 %v10067
        %v10197 = vunpack.c.l.b16 %v10068
        %v10198 = vunpack.c.l.b16 %v10069
        %v10199 = vunpack.c.l.b16 %v10070
        %v10200 = vunpack.c.l.b16 %v10071
        %v10201 = vunpack.c.l.b16 %v10072
        %v10202 = vunpack.c.l.b16 %v10073
        %v10203 = vunpack.c.l.b16 %v10074
        %v10204 = vunpack.c.l.b16 %v10075
        %v10205 = vunpack.c.l.b16 %v10076
        %v10206 = vunpack.c.l.b16 %v10077
        %v10207 = vunpack.c.l.b16 %v10078
        %v10208 = vunpack.c.l.b16 %v10079
        %v10209 = vunpack.c.l.b16 %v10080
        %v10210 = vunpack.c.l.b16 %v10081
        %v10211 = vunpack.c.l.b16 %v10082
        %v10212 = vunpack.c.l.b16 %v10083
        %v10213 = vunpack.c.l.b16 %v10084
        %v10214 = vunpack.c.l.b16 %v10085
        %v10215 = vunpack.c.l.b16 %v10086
        %v10216 = vunpack.c.l.b16 %v10087
        %v10217 = vunpack.c.l.b16 %v10088
        %v10218 = vunpack.c.l.b16 %v10089
        %v10219 = vunpack.c.l.b16 %v10090
        %v10220 = vunpack.c.l.b16 %v10091
        %v10221 = vunpack.c.l.b16 %v10092
        %v10222 = vunpack.c.l.b16 %v10093
        %v10223 = vunpack.c.l.b16 %v10094
        %v10224 = vunpack.c.l.b16 %v10095
        %v10225 = vunpack.c.l.b16 %v10096
        %v10226 = vunpack.c.l.b16 %v10097
        %v10227 = vunpack.c.l.b16 %v10098
        %v10228 = vunpack.c.l.b16 %v10099
        %v10229 = vunpack.c.l.b16 %v10100
        %v10230 = vunpack.c.l.b16 %v10101
        %v10231 = vunpack.c.l.b16 %v10102
        %v10232 = vunpack.c.l.b16 %v10103
        %v10233 = vunpack.c.l.b16 %v10104
        %v10234 = vunpack.c.l.b16 %v10105
        %v10235 = vunpack.c.l.b16 %v10106
        %v10236 = vunpack.c.l.b16 %v10107
        %v10237 = vunpack.c.l.b16 %v10108
        %v10238 = vunpack.c.l.b16 %v10109
        %v10239 = vunpack.c.l.b16 %v10110
        %v10240 = vunpack.c.l.b16 %v10111
        %v10241 = vunpack.c.l.b16 %v10112
        %v10242 = vunpack.c.l.b16 %v10113
        %v10243 = vunpack.c.l.b16 %v10114
        %v10244 = vunpack.c.l.b16 %v10115
        %v10245 = vunpack.c.l.b16 %v10116
        %v10246 = vunpack.c.l.b16 %v10117
        %v10247 = vpack.c.b16 %v10184, %v10183
        %v10248 = vpack.c.b16 %v10186, %v10185
        %v10249 = vpack.c.b16 %v10188, %v10187
        %v10250 = vpack.c.b16 %v10190, %v10189
        %v10251 = vpack.c.b16 %v10192, %v10191
        %v10252 = vpack.c.b16 %v10194, %v10193
        %v10253 = vpack.c.b16 %v10196, %v10195
        %v10254 = vpack.c.b16 %v10198, %v10197
        %v10255 = vpack.c.b16 %v10200, %v10199
        %v10256 = vpack.c.b16 %v10202, %v10201
        %v10257 = vpack.c.b16 %v10204, %v10203
        %v10258 = vpack.c.b16 %v10206, %v10205
        %v10259 = vpack.c.b16 %v10208, %v10207
        %v10260 = vpack.c.b16 %v10210, %v10209
        %v10261 = vpack.c.b16 %v10212, %v10211
        %v10262 = vpack.c.b16 %v10214, %v10213
        %v10263 = vpack.c.b16 %v10216, %v10215
        %v10264 = vpack.c.b16 %v10218, %v10217
        %v10265 = vpack.c.b16 %v10220, %v10219
        %v10266 = vpack.c.b16 %v10222, %v10221
        %v10267 = vpack.c.b16 %v10224, %v10223
        %v10268 = vpack.c.b16 %v10226, %v10225
        %v10269 = vpack.c.b16 %v10228, %v10227
        %v10270 = vpack.c.b16 %v10230, %v10229
        %v10271 = vpack.c.b16 %v10232, %v10231
        %v10272 = vpack.c.b16 %v10234, %v10233
        %v10273 = vpack.c.b16 %v10236, %v10235
        %v10274 = vpack.c.b16 %v10238, %v10237
        %v10275 = vpack.c.b16 %v10240, %v10239
        %v10276 = vpack.c.b16 %v10242, %v10241
        %v10277 = vpack.c.b16 %v10244, %v10243
        %v10278 = vpack.c.b16 %v10246, %v10245
        %10311 = vmatpush.bf16.msra.mxu0 %v10254
        %10312 = vmatpush.bf16.msra.mxu0 %v10253
        %10313 = vmatpush.bf16.msra.mxu0 %v10252
        %10314 = vmatpush.bf16.msra.mxu0 %v10251
        %10315 = vmatpush.bf16.msra.mxu0 %v10250
        %10316 = vmatpush.bf16.msra.mxu0 %v10249
        %10317 = vmatpush.bf16.msra.mxu0 %v10248
        %10318 = vmatpush.bf16.msra.mxu0 %v10247
        %10319 = vmatmul.bf16.gmra.mxu0 %v10050
        %v10320 = vpop.f32.mrf.mxu0
        %v10321 = vadd.f32 %v10118, %v10320
        %v10322 = vpop.f32.mrf.mxu0
        %10323 = vdwg.mxu0
        %10324 = vmatpush.bf16.msra.mxu0 %v10262
        %10325 = vmatpush.bf16.msra.mxu0 %v10261
        %10326 = vmatpush.bf16.msra.mxu0 %v10260
        %10327 = vmatpush.bf16.msra.mxu0 %v10259
        %10328 = vmatpush.bf16.msra.mxu0 %v10258
        %10329 = vmatpush.bf16.msra.mxu0 %v10257
        %10330 = vmatpush.bf16.msra.mxu0 %v10256
        %10331 = vmatpush.bf16.msra.mxu0 %v10255
        %10332 = vmatmul.bf16.gmra.mxu0 %v10051
        %v10333 = vpop.f32.mrf.mxu0
        %v10334 = vadd.f32 %v10321, %v10333
        %v10335 = vpop.f32.mrf.mxu0
        %10336 = vdwg.mxu0
        %10337 = vmatpush.bf16.msra.mxu0 %v10270
        %10338 = vmatpush.bf16.msra.mxu0 %v10269
        %10339 = vmatpush.bf16.msra.mxu0 %v10268
        %10340 = vmatpush.bf16.msra.mxu0 %v10267
        %10341 = vmatpush.bf16.msra.mxu0 %v10266
        %10342 = vmatpush.bf16.msra.mxu0 %v10265
        %10343 = vmatpush.bf16.msra.mxu0 %v10264
        %10344 = vmatpush.bf16.msra.mxu0 %v10263
        %10345 = vmatmul.bf16.gmra.mxu0 %v10052
        %v10346 = vpop.f32.mrf.mxu0
        %v10347 = vadd.f32 %v10334, %v10346
        %v10348 = vpop.f32.mrf.mxu0
        %10349 = vdwg.mxu0
        %10350 = vmatpush.bf16.msra.mxu0 %v10278
        %10351 = vmatpush.bf16.msra.mxu0 %v10277
        %10352 = vmatpush.bf16.msra.mxu0 %v10276
        %10353 = vmatpush.bf16.msra.mxu0 %v10275
        %10354 = vmatpush.bf16.msra.mxu0 %v10274
        %10355 = vmatpush.bf16.msra.mxu0 %v10273
        %10356 = vmatpush.bf16.msra.mxu0 %v10272
        %10357 = vmatpush.bf16.msra.mxu0 %v10271
        %10358 = vmatmul.bf16.gmra.mxu0 %v10053
        %v10359 = vpop.f32.mrf.mxu0
        %v10360 = vadd.f32 %v10347, %v10359
        %v10361 = vpop.f32.mrf.mxu0
        %10362 = vdwg.mxu0
        %10363 = vst [vmem:[%s449] sm:$0x1] %v10360
        %s10364 = sand.u32 %s230, 1
        %s10365 = scalar_lea.sflag [#allocation6], %s10364
        %s10366 = sand.u32 %s230, 1
        %s10367 = scalar_lea.vmem [#allocation18], %s10366
        // Predicated region
        $region89: #{vgg_forward.1} parent=55 // pred_check
          %p10368 = pneg %p240
        $region90: #{vgg_forward.1} parent=55 // pred_check_branch
          %10370 = sbr.rel (%p10368) target = $region92
        $region91: #{vgg_forward.1} parent=55 // pred_region
          %10372 = vsyncadd %s10365, 0
          %s10373 = scalar_lea.hbm %s9, %s28
          %s10375 = sshll.u32 %s10367, 4
          %s10376 = int_to_ptr.vmem [resolvable:$true] %s10375
          %s10377 = sshll.u32 %s10373, 4
          %s10378 = int_to_ptr.hbm [resolvable:$true] %s10377
          %10380 = dma.vmem_to_hbm [thread:$0]  %s10376, 16, %s10378, %s10365
        $region92: #{vgg_forward.1} parent=55 // pred_fallthru
          _
      $region56: #{vgg_forward.1} parent=5 // pred_fallthru
        _
      %p10381 = scmp.le.s32.totalorder 2, %s23
      // Predicated region
      $region93: #{vgg_forward.1} parent=5 // pred_check
        %p10382 = pneg %p10381
      $region94: #{vgg_forward.1} parent=5 // pred_check_branch
        %10384 = sbr.rel (%p10382) target = $region96
      $region95: #{vgg_forward.1} parent=5 // pred_region
        %s10385 = ssub.s32 %s23, 2
        // Predicated region
        $region97: #{vgg_forward.1} parent=95 // pred_check
          %p10386 = pneg %p246
        $region98: #{vgg_forward.1} parent=95 // pred_check_branch
          %10388 = sbr.rel (%p10386) target = $region100
        $region99: #{vgg_forward.1} parent=95 // pred_region
          %s10389 = sand.u32 %s231, 1
          %s10390 = scalar_lea.sflag [#allocation6], %s10389
          %s10391 = sand.u32 %s231, 1
          %s10392 = scalar_lea.vmem [#allocation18], %s10391
          %10394 = dma.done %s10390, 16
        $region100: #{vgg_forward.1} parent=95 // pred_fallthru
          _
      $region96: #{vgg_forward.1} parent=5 // pred_fallthru
        _
    $region6: #{vgg_forward.1} parent=1 // loop_footer
      %s27 = sadd.s32 1, %s23
    $region7: #{vgg_forward.1} parent=1 // loop_footer_branch
      %22 = sbr.rel target = $region3
    $region8: #{vgg_forward.1} parent=1 // loop_exit
      _
    %10395 = vsyncpa [#allocation5], 1
    %s10396 = scalar_lea.sflag [#allocation5], 1
    %10397 = vsyncpa %s10396, 1
    %10398 = vsyncpa [#allocation8], 1
    %10399 = vsyncpa [#allocation11], 1
    %10400 = vsyncpa [#allocation14], 1
    %10401 = vsyncpa [#allocation17], 1
    %10402 = vsyncpa [#allocation6], 1
    %s10403 = scalar_lea.sflag [#allocation6], 1
    %10404 = vsyncpa %s10403, 1

</llo_original>
